<compile_context>
chip_gen: v7x
topology: tpu7x:2x2x1
jax: 0.10.0
libtpu: 0.0.40
codegen_flags: <defaults>
</compile_context>

<pallas_src>
import jax
import jax.numpy as jnp
from jax import lax
from jax.experimental import pallas as pl
from jax.experimental.pallas import tpu as pltpu

HIDDEN = 128        # per-direction hidden size (torch.nn.LSTM(..., 128, ...))
N_LAYERS = 2
NUM_CLASSES = 2


# ----------------------------------------------------------------------------
# Fused Pallas kernel: 2 bidirectional LSTM layers + FC, single invocation.
# ----------------------------------------------------------------------------
def _make_fused_kernel(T, BP, H):
    def kernel(x_ref,                    # (T*BP, D)      f32   VMEM
               wih0_ref,                 # (D, 8H)        bf16  VMEM
               whh0_ref,                 # (2H, 8H)       bf16  VMEM (block-diag)
               b0_ref,                   # (1, 8H)        f32   VMEM
               wih1_hbm,                 # (2H, 8H)       bf16  HBM (ANY)
               whh1_hbm,                 # (2H, 8H)       bf16  HBM (ANY)
               b1_ref,                   # (1, 8H)        f32   VMEM
               fcw_ref,                  # (2H, NC)       bf16  VMEM
               fcb_ref,                  # (1, NC)        f32   VMEM
               feat_ref, logits_ref,     # outputs (BP,2H), (BP,NC) f32
               wih1_vmem, whh1_vmem,     # scratch VMEM bf16 (2H, 8H) each
               h01_ref,                  # scratch VMEM (T*BP, 2H) f32
               dma_sem):                 # SemaphoreType.DMA((2,))

        # ---- kick off layer-1 weight DMA; hidden behind layer-0 compute ----
        cp_wih1 = pltpu.make_async_copy(wih1_hbm, wih1_vmem, dma_sem.at[0])
        cp_whh1 = pltpu.make_async_copy(whh1_hbm, whh1_vmem, dma_sem.at[1])
        cp_wih1.start()
        cp_whh1.start()

        zero = jnp.zeros((BP, H), jnp.float32)

        def act(gates, c):
            # gate order i,f,o,g -> one contiguous sigmoid slab + one tanh slab
            s = 0.5 * jnp.tanh(0.5 * gates[:, 0:3 * H]) + 0.5   # sigmoid via EUP tanh
            g = jnp.tanh(gates[:, 3 * H:4 * H])
            i = s[:, 0:H]
            f = s[:, H:2 * H]
            o = s[:, 2 * H:3 * H]
            c_new = f * c + i * g
            h_new = o * jnp.tanh(c_new)
            return h_new, c_new

        def cell_pair(gx_f, gx_b, hf, cf, hb, cb, whh_block):
            # single K=2H matmul per step covering BOTH directions (block-diag W_hh)
            h_cat = jnp.concatenate([hf, hb], axis=-1).astype(jnp.bfloat16)
            rec = jnp.dot(h_cat, whh_block, preferred_element_type=jnp.float32)
            hf, cf = act(gx_f + rec[:, 0:4 * H], cf)
            hb, cb = act(gx_b + rec[:, 4 * H:8 * H], cb)
            return hf, cf, hb, cb

        # ---------------- layer 0: hoisted input projection -----------------
        gx0 = jnp.dot(x_ref[...].astype(jnp.bfloat16), wih0_ref[...],
                      preferred_element_type=jnp.float32) + b0_ref[...]
        whh0 = whh0_ref[...]

        hf = cf = hb = cb = zero
        for t in range(T):                      # fully unrolled, BP-aligned slices
            tb = T - 1 - t
            hf, cf, hb, cb = cell_pair(gx0[t * BP:(t + 1) * BP, 0:4 * H],
                                       gx0[tb * BP:(tb + 1) * BP, 4 * H:8 * H],
                                       hf, cf, hb, cb, whh0)
            h01_ref[t * BP:(t + 1) * BP, 0:H] = hf
            h01_ref[tb * BP:(tb + 1) * BP, H:2 * H] = hb

        # ---- layer-1 weights must be resident now ---------------------------
        cp_wih1.wait()
        cp_whh1.wait()

        # ---------------- layer 1: hoisted input projection -----------------
        gx1 = jnp.dot(h01_ref[...].astype(jnp.bfloat16), wih1_vmem[...],
                      preferred_element_type=jnp.float32) + b1_ref[...]
        whh1 = whh1_vmem[...]

        hf = cf = hb = cb = zero
        hb_last = zero
        for t in range(T):
            tb = T - 1 - t
            hf, cf, hb, cb = cell_pair(gx1[t * BP:(t + 1) * BP, 0:4 * H],
                                       gx1[tb * BP:(tb + 1) * BP, 4 * H:8 * H],
                                       hf, cf, hb, cb, whh1)
            if t == 0:
                hb_last = hb                    # backward hidden at original t=T-1

        # ---------------- epilogue: features = out[:, -1, :]; FC ------------
        feat_ref[:, 0:H] = hf
        feat_ref[:, H:2 * H] = hb_last
        feat_bf = jnp.concatenate([hf, hb_last], axis=-1).astype(jnp.bfloat16)
        logits_ref[...] = jnp.dot(feat_bf, fcw_ref[...],
                                  preferred_element_type=jnp.float32) + fcb_ref[...]

    return kernel


# ----------------------------------------------------------------------------
# Wrapper around pallas_call (single fused launch)
# ----------------------------------------------------------------------------
def model_forward(kparams, x_btd):
    """x_btd: (B, T, D_in) -> (logits (B, 2), features (B, 2H))."""
    B, T, D = x_btd.shape
    H = HIDDEN
    BP = ((B + 7) // 8) * 8               # pad batch to sublane multiple (8)

    x = x_btd.astype(jnp.float32)
    if BP != B:
        x = jnp.pad(x, ((0, BP - B), (0, 0), (0, 0)))
    # time-major, flattened for the hoisted input projections
    x_flat = jnp.transpose(x, (1, 0, 2)).reshape(T * BP, D)

    args = (x_flat,
            kparams['wih0'], kparams['whh0'], kparams['b0'],
            kparams['wih1'], kparams['whh1'], kparams['b1'],
            kparams['fcw'], kparams['fcb'])

    vmem = pl.BlockSpec(memory_space=pltpu.MemorySpace.VMEM)
    hbm = pl.BlockSpec(memory_space=pl.ANY)
    in_specs = [vmem, vmem, vmem, vmem, hbm, hbm, vmem, vmem, vmem]

    feat, logits = pl.pallas_call(
        _make_fused_kernel(T, BP, H),
        out_shape=(jax.ShapeDtypeStruct((BP, 2 * H), jnp.float32),
                   jax.ShapeDtypeStruct((BP, NUM_CLASSES), jnp.float32)),
        in_specs=in_specs,
        out_specs=(vmem, vmem),
        scratch_shapes=[
            pltpu.VMEM((2 * H, 8 * H), jnp.bfloat16),   # layer-1 W_ih (DMA dst)
            pltpu.VMEM((2 * H, 8 * H), jnp.bfloat16),   # layer-1 W_hh (DMA dst)
            pltpu.VMEM((T * BP, 2 * H), jnp.float32),   # layer-0 hidden sequence
            pltpu.SemaphoreType.DMA((2,)),
        ],
    )(*args)
    return logits[:B], feat[:B]


# ----------------------------------------------------------------------------
# Parameters (PyTorch layout / semantics), plus kernel-ready repacking
# ----------------------------------------------------------------------------
def init_params(key, input_size, hidden=HIDDEN, n_layers=N_LAYERS):
    """PyTorch-style LSTM/Linear params: w_ih (4H,d_in), w_hh (4H,H), gate order i,f,g,o."""
    params = {'lstm': []}
    bound = 1.0 / float(hidden) ** 0.5
    for layer_idx in range(n_layers):
        d_in = input_size if layer_idx == 0 else 2 * hidden
        layer = {}
        for direction in ('fwd', 'bwd'):
            key, k1, k2, k3, k4 = jax.random.split(key, 5)
            layer[direction] = {
                'w_ih': jax.random.uniform(k1, (4 * hidden, d_in), jnp.float32, -bound, bound),
                'w_hh': jax.random.uniform(k2, (4 * hidden, hidden), jnp.float32, -bound, bound),
                'b_ih': jax.random.uniform(k3, (4 * hidden,), jnp.float32, -bound, bound),
                'b_hh': jax.random.uniform(k4, (4 * hidden,), jnp.float32, -bound, bound),
            }
        params['lstm'].append(layer)
    key, kf1, kf2 = jax.random.split(key, 3)
    fb = 1.0 / float(2 * hidden) ** 0.5
    params['fc_w'] = jax.random.uniform(kf1, (NUM_CLASSES, 2 * hidden), jnp.float32, -fb, fb)
    params['fc_b'] = jax.random.uniform(kf2, (NUM_CLASSES,), jnp.float32, -fb, fb)
    return params


def _reorder_ifog(w):
    """Reorder last-axis gate blocks from PyTorch (i,f,g,o) to kernel (i,f,o,g)."""
    H = w.shape[-1] // 4
    return jnp.concatenate(
        [w[..., 0:2 * H], w[..., 3 * H:4 * H], w[..., 2 * H:3 * H]], axis=-1)


def prepare_kernel_params(params, hidden=HIDDEN):
    """Transpose, reorder gates, fuse biases, build block-diag W_hh, cast weights bf16."""
    H = hidden

    def prep_dir(p):
        w_ih = _reorder_ifog(jnp.transpose(p['w_ih']))                  # (d_in, 4H)
        w_hh = _reorder_ifog(jnp.transpose(p['w_hh']))                  # (H, 4H)
        b = _reorder_ifog((p['b_ih'] + p['b_hh'])[None, :])             # (1, 4H)
        return w_ih, w_hh, b

    out = {}
    for li, layer in enumerate(params['lstm']):
        wf_ih, wf_hh, bf = prep_dir(layer['fwd'])
        wb_ih, wb_hh, bb = prep_dir(layer['bwd'])
        out[f'wih{li}'] = jnp.concatenate([wf_ih, wb_ih], axis=1).astype(jnp.bfloat16)
        out[f'b{li}'] = jnp.concatenate([bf, bb], axis=1).astype(jnp.float32)
        whh_block = jnp.zeros((2 * H, 8 * H), jnp.float32)
        whh_block = whh_block.at[0:H, 0:4 * H].set(wf_hh)
        whh_block = whh_block.at[H:2 * H, 4 * H:8 * H].set(wb_hh)
        out[f'whh{li}'] = whh_block.astype(jnp.bfloat16)
    out['fcw'] = jnp.transpose(params['fc_w']).astype(jnp.bfloat16)     # (2H, NC)
    out['fcb'] = params['fc_b'][None, :].astype(jnp.float32)            # (1, NC)
    return out


# ----------------------------------------------------------------------------
# Pure-JAX f32 reference (PyTorch semantics, for sanity check only)
# ----------------------------------------------------------------------------
def _ref_direction(x_tbd, w_ih, w_hh, b_ih, b_hh):
    T, B, _ = x_tbd.shape
    H = w_hh.shape[1]

    def step(carry, x_t):
        h, c = carry
        gates = x_t @ w_ih.T + h @ w_hh.T + b_ih + b_hh
        i = jax.nn.sigmoid(gates[:, 0 * H:1 * H])
        f = jax.nn.sigmoid(gates[:, 1 * H:2 * H])
        g = jnp.tanh(gates[:, 2 * H:3 * H])
        o = jax.nn.sigmoid(gates[:, 3 * H:4 * H])
        c_new = f * c + i * g
        h_new = o * jnp.tanh(c_new)
        return (h_new, c_new), h_new

    init = (jnp.zeros((B, H), jnp.float32), jnp.zeros((B, H), jnp.float32))
    _, hseq = lax.scan(step, init, x_tbd)
    return hseq


def _ref_forward(params, x_btd):
    xt = jnp.transpose(x_btd, (1, 0, 2)).astype(jnp.float32)
    layer_in = xt
    for layer in params['lstm']:
        pf, pb = layer['fwd'], layer['bwd']
        h_fwd = _ref_direction(layer_in, pf['w_ih'], pf['w_hh'], pf['b_ih'], pf['b_hh'])
        h_bwd = _ref_direction(layer_in[::-1], pb['w_ih'], pb['w_hh'],
                               pb['b_ih'], pb['b_hh'])[::-1]
        layer_in = jnp.concatenate([h_fwd, h_bwd], axis=-1)
    features = layer_in[-1]
    logits = features @ params['fc_w'].T + params['fc_b']
    return logits, features


# ----------------------------------------------------------------------------
if __name__ == "__main__":
    B, T, NUM_ROI = 2, 8, 32          # args.num_roi = 32, fusion != 'early'

    key = jax.random.PRNGKey(0)
    key, kx, kp = jax.random.split(key, 3)
    x = jax.random.normal(kx, (B, T, NUM_ROI), jnp.float32)   # data['timeseries']
    params = init_params(kp, NUM_ROI)
    kparams = prepare_kernel_params(params)

    logits, features = jax.jit(model_forward)(kparams, x)
    jax.block_until_ready((logits, features))

    # sanity check vs. f32 pure-JAX reference (kernel uses bf16 MXU operands)
    ref_logits, ref_features = _ref_forward(params, x)
    assert logits.shape == (B, NUM_CLASSES) and features.shape == (B, 2 * HIDDEN)
    assert jnp.allclose(features, ref_features, atol=3e-2, rtol=3e-2)
    assert jnp.allclose(logits, ref_logits, atol=3e-2, rtol=3e-2)

    print("KERNEL_OK")
</pallas_src>

<mosaic_0001>
module attributes {stable_mosaic.version = 11 : i64} {
  func.func @kernel(%arg0: memref<64x32xf32, #tpu.memory_space<vmem>>, %arg1: memref<32x1024xbf16, #tpu.memory_space<vmem>>, %arg2: memref<256x1024xbf16, #tpu.memory_space<vmem>>, %arg3: memref<1x1024xf32, #tpu.memory_space<vmem>>, %arg4: memref<256x1024xbf16, #tpu.memory_space<any>>, %arg5: memref<256x1024xbf16, #tpu.memory_space<any>>, %arg6: memref<1x1024xf32, #tpu.memory_space<vmem>>, %arg7: memref<256x2xbf16, #tpu.memory_space<vmem>>, %arg8: memref<1x2xf32, #tpu.memory_space<vmem>>, %arg9: memref<8x256xf32, #tpu.memory_space<vmem>>, %arg10: memref<8x2xf32, #tpu.memory_space<vmem>>, %arg11: memref<256x1024xbf16, #tpu.memory_space<vmem>>, %arg12: memref<256x1024xbf16, #tpu.memory_space<vmem>>, %arg13: memref<64x256xf32, #tpu.memory_space<vmem>>, %arg14: memref<2x!tpu.dma_semaphore, #tpu.memory_space<semaphore_mem>>) attributes {dimension_semantics = [], scalar_prefetch = 0 : i64, scratch_operands = 4 : i64, tpu.core_type = #tpu.core_type<tc>} {
    %c0_i32 = arith.constant 0 : i32
    %0 = tpu.memref_slice %arg14[%c0_i32] : memref<2x!tpu.dma_semaphore, #tpu.memory_space<semaphore_mem>> -> memref<1x!tpu.dma_semaphore, #tpu.memory_space<semaphore_mem>>
    %1 = tpu.memref_squeeze %0 : memref<1x!tpu.dma_semaphore, #tpu.memory_space<semaphore_mem>> -> memref<!tpu.dma_semaphore, #tpu.memory_space<semaphore_mem>>
    tpu.enqueue_dma source(%arg4 : memref<256x1024xbf16, #tpu.memory_space<any>>) target(%arg11 : memref<256x1024xbf16, #tpu.memory_space<vmem>>) target_semaphore(%1 : memref<!tpu.dma_semaphore, #tpu.memory_space<semaphore_mem>>)
    %c1_i32 = arith.constant 1 : i32
    %2 = tpu.memref_slice %arg14[%c1_i32] : memref<2x!tpu.dma_semaphore, #tpu.memory_space<semaphore_mem>> -> memref<1x!tpu.dma_semaphore, #tpu.memory_space<semaphore_mem>>
    %3 = tpu.memref_squeeze %2 : memref<1x!tpu.dma_semaphore, #tpu.memory_space<semaphore_mem>> -> memref<!tpu.dma_semaphore, #tpu.memory_space<semaphore_mem>>
    tpu.enqueue_dma source(%arg5 : memref<256x1024xbf16, #tpu.memory_space<any>>) target(%arg12 : memref<256x1024xbf16, #tpu.memory_space<vmem>>) target_semaphore(%3 : memref<!tpu.dma_semaphore, #tpu.memory_space<semaphore_mem>>)
    %cst = arith.constant 0.000000e+00 : f32
    %4 = vector.broadcast %cst : f32 to vector<8x128xf32>
    %c0 = arith.constant 0 : index
    %c0_0 = arith.constant 0 : index
    %5 = vector.load %arg0[%c0, %c0_0] : memref<64x32xf32, #tpu.memory_space<vmem>>, vector<64x32xf32>
    %6 = arith.truncf %5 : vector<64x32xf32> to vector<64x32xbf16>
    %c0_1 = arith.constant 0 : index
    %c0_2 = arith.constant 0 : index
    %7 = vector.load %arg1[%c0_1, %c0_2] : memref<32x1024xbf16, #tpu.memory_space<vmem>>, vector<32x1024xbf16>
    %cst_3 = arith.constant dense<0.000000e+00> : vector<64x1024xf32>
    %8 = tpu.matmul %6, %7, %cst_3 {dimension_numbers = #tpu.dot_dimension_numbers<[1], [0], [0], [1], [0, 0, 1, 1], [], []>} : vector<64x32xbf16>, vector<32x1024xbf16>, vector<64x1024xf32> -> vector<64x1024xf32>
    %c0_4 = arith.constant 0 : index
    %c0_5 = arith.constant 0 : index
    %9 = vector.load %arg3[%c0_4, %c0_5] : memref<1x1024xf32, #tpu.memory_space<vmem>>, vector<1x1024xf32>
    %10 = vector.broadcast %9 : vector<1x1024xf32> to vector<64x1024xf32>
    %11 = arith.addf %8, %10 : vector<64x1024xf32>
    %c0_6 = arith.constant 0 : index
    %c0_7 = arith.constant 0 : index
    %12 = vector.load %arg2[%c0_6, %c0_7] : memref<256x1024xbf16, #tpu.memory_space<vmem>>, vector<256x1024xbf16>
    %13 = vector.extract_strided_slice %11 {offsets = [0, 0], sizes = [8, 512], strides = [1, 1]} : vector<64x1024xf32> to vector<8x512xf32>
    %14 = vector.extract_strided_slice %11 {offsets = [56, 512], sizes = [8, 512], strides = [1, 1]} : vector<64x1024xf32> to vector<8x512xf32>
    %15 = tpu.concatenate %4, %4 in 1 : vector<8x128xf32>, vector<8x128xf32> -> vector<8x256xf32>
    %16 = arith.truncf %15 : vector<8x256xf32> to vector<8x256xbf16>
    %cst_8 = arith.constant dense<0.000000e+00> : vector<8x1024xf32>
    %17 = tpu.matmul %16, %12, %cst_8 {dimension_numbers = #tpu.dot_dimension_numbers<[1], [0], [0], [1], [0, 0, 1, 1], [], []>} : vector<8x256xbf16>, vector<256x1024xbf16>, vector<8x1024xf32> -> vector<8x1024xf32>
    %18 = vector.extract_strided_slice %17 {offsets = [0, 0], sizes = [8, 512], strides = [1, 1]} : vector<8x1024xf32> to vector<8x512xf32>
    %19 = arith.addf %13, %18 : vector<8x512xf32>
    %20 = vector.extract_strided_slice %19 {offsets = [0, 0], sizes = [8, 384], strides = [1, 1]} : vector<8x512xf32> to vector<8x384xf32>
    %cst_9 = arith.constant 5.000000e-01 : f32
    %21 = vector.broadcast %cst_9 : f32 to vector<8x384xf32>
    %22 = arith.mulf %21, %20 : vector<8x384xf32>
    %23 = math.tanh %22 : vector<8x384xf32>
    %cst_10 = arith.constant 5.000000e-01 : f32
    %24 = vector.broadcast %cst_10 : f32 to vector<8x384xf32>
    %25 = arith.mulf %24, %23 : vector<8x384xf32>
    %cst_11 = arith.constant 5.000000e-01 : f32
    %26 = vector.broadcast %cst_11 : f32 to vector<8x384xf32>
    %27 = arith.addf %25, %26 : vector<8x384xf32>
    %28 = vector.extract_strided_slice %19 {offsets = [0, 384], sizes = [8, 128], strides = [1, 1]} : vector<8x512xf32> to vector<8x128xf32>
    %29 = math.tanh %28 : vector<8x128xf32>
    %30 = vector.extract_strided_slice %27 {offsets = [0, 0], sizes = [8, 128], strides = [1, 1]} : vector<8x384xf32> to vector<8x128xf32>
    %31 = vector.extract_strided_slice %27 {offsets = [0, 128], sizes = [8, 128], strides = [1, 1]} : vector<8x384xf32> to vector<8x128xf32>
    %32 = vector.extract_strided_slice %27 {offsets = [0, 256], sizes = [8, 128], strides = [1, 1]} : vector<8x384xf32> to vector<8x128xf32>
    %33 = arith.mulf %31, %4 : vector<8x128xf32>
    %34 = arith.mulf %30, %29 : vector<8x128xf32>
    %35 = arith.addf %33, %34 : vector<8x128xf32>
    %36 = math.tanh %35 : vector<8x128xf32>
    %37 = arith.mulf %32, %36 : vector<8x128xf32>
    %38 = vector.extract_strided_slice %17 {offsets = [0, 512], sizes = [8, 512], strides = [1, 1]} : vector<8x1024xf32> to vector<8x512xf32>
    %39 = arith.addf %14, %38 : vector<8x512xf32>
    %40 = vector.extract_strided_slice %39 {offsets = [0, 0], sizes = [8, 384], strides = [1, 1]} : vector<8x512xf32> to vector<8x384xf32>
    %cst_12 = arith.constant 5.000000e-01 : f32
    %41 = vector.broadcast %cst_12 : f32 to vector<8x384xf32>
    %42 = arith.mulf %41, %40 : vector<8x384xf32>
    %43 = math.tanh %42 : vector<8x384xf32>
    %cst_13 = arith.constant 5.000000e-01 : f32
    %44 = vector.broadcast %cst_13 : f32 to vector<8x384xf32>
    %45 = arith.mulf %44, %43 : vector<8x384xf32>
    %cst_14 = arith.constant 5.000000e-01 : f32
    %46 = vector.broadcast %cst_14 : f32 to vector<8x384xf32>
    %47 = arith.addf %45, %46 : vector<8x384xf32>
    %48 = vector.extract_strided_slice %39 {offsets = [0, 384], sizes = [8, 128], strides = [1, 1]} : vector<8x512xf32> to vector<8x128xf32>
    %49 = math.tanh %48 : vector<8x128xf32>
    %50 = vector.extract_strided_slice %47 {offsets = [0, 0], sizes = [8, 128], strides = [1, 1]} : vector<8x384xf32> to vector<8x128xf32>
    %51 = vector.extract_strided_slice %47 {offsets = [0, 128], sizes = [8, 128], strides = [1, 1]} : vector<8x384xf32> to vector<8x128xf32>
    %52 = vector.extract_strided_slice %47 {offsets = [0, 256], sizes = [8, 128], strides = [1, 1]} : vector<8x384xf32> to vector<8x128xf32>
    %53 = arith.mulf %51, %4 : vector<8x128xf32>
    %54 = arith.mulf %50, %49 : vector<8x128xf32>
    %55 = arith.addf %53, %54 : vector<8x128xf32>
    %56 = math.tanh %55 : vector<8x128xf32>
    %57 = arith.mulf %52, %56 : vector<8x128xf32>
    %c0_15 = arith.constant 0 : index
    %c0_16 = arith.constant 0 : index
    %58 = vector.load %arg13[%c0_15, %c0_16] : memref<64x256xf32, #tpu.memory_space<vmem>>, vector<8x128xf32>
    tpu.vector_store %arg13[%c0_15, %c0_16], %37 {strides = array<i32>} : memref<64x256xf32, #tpu.memory_space<vmem>>, vector<8x128xf32>,
    %c56 = arith.constant 56 : index
    %c128 = arith.constant 128 : index
    %59 = vector.load %arg13[%c56, %c128] : memref<64x256xf32, #tpu.memory_space<vmem>>, vector<8x128xf32>
    tpu.vector_store %arg13[%c56, %c128], %57 {strides = array<i32>} : memref<64x256xf32, #tpu.memory_space<vmem>>, vector<8x128xf32>,
    %60 = vector.extract_strided_slice %11 {offsets = [8, 0], sizes = [8, 512], strides = [1, 1]} : vector<64x1024xf32> to vector<8x512xf32>
    %61 = vector.extract_strided_slice %11 {offsets = [48, 512], sizes = [8, 512], strides = [1, 1]} : vector<64x1024xf32> to vector<8x512xf32>
    %62 = tpu.concatenate %37, %57 in 1 : vector<8x128xf32>, vector<8x128xf32> -> vector<8x256xf32>
    %63 = arith.truncf %62 : vector<8x256xf32> to vector<8x256xbf16>
    %cst_17 = arith.constant dense<0.000000e+00> : vector<8x1024xf32>
    %64 = tpu.matmul %63, %12, %cst_17 {dimension_numbers = #tpu.dot_dimension_numbers<[1], [0], [0], [1], [0, 0, 1, 1], [], []>} : vector<8x256xbf16>, vector<256x1024xbf16>, vector<8x1024xf32> -> vector<8x1024xf32>
    %65 = vector.extract_strided_slice %64 {offsets = [0, 0], sizes = [8, 512], strides = [1, 1]} : vector<8x1024xf32> to vector<8x512xf32>
    %66 = arith.addf %60, %65 : vector<8x512xf32>
    %67 = vector.extract_strided_slice %66 {offsets = [0, 0], sizes = [8, 384], strides = [1, 1]} : vector<8x512xf32> to vector<8x384xf32>
    %cst_18 = arith.constant 5.000000e-01 : f32
    %68 = vector.broadcast %cst_18 : f32 to vector<8x384xf32>
    %69 = arith.mulf %68, %67 : vector<8x384xf32>
    %70 = math.tanh %69 : vector<8x384xf32>
    %cst_19 = arith.constant 5.000000e-01 : f32
    %71 = vector.broadcast %cst_19 : f32 to vector<8x384xf32>
    %72 = arith.mulf %71, %70 : vector<8x384xf32>
    %cst_20 = arith.constant 5.000000e-01 : f32
    %73 = vector.broadcast %cst_20 : f32 to vector<8x384xf32>
    %74 = arith.addf %72, %73 : vector<8x384xf32>
    %75 = vector.extract_strided_slice %66 {offsets = [0, 384], sizes = [8, 128], strides = [1, 1]} : vector<8x512xf32> to vector<8x128xf32>
    %76 = math.tanh %75 : vector<8x128xf32>
    %77 = vector.extract_strided_slice %74 {offsets = [0, 0], sizes = [8, 128], strides = [1, 1]} : vector<8x384xf32> to vector<8x128xf32>
    %78 = vector.extract_strided_slice %74 {offsets = [0, 128], sizes = [8, 128], strides = [1, 1]} : vector<8x384xf32> to vector<8x128xf32>
    %79 = vector.extract_strided_slice %74 {offsets = [0, 256], sizes = [8, 128], strides = [1, 1]} : vector<8x384xf32> to vector<8x128xf32>
    %80 = arith.mulf %78, %35 : vector<8x128xf32>
    %81 = arith.mulf %77, %76 : vector<8x128xf32>
    %82 = arith.addf %80, %81 : vector<8x128xf32>
    %83 = math.tanh %82 : vector<8x128xf32>
    %84 = arith.mulf %79, %83 : vector<8x128xf32>
    %85 = vector.extract_strided_slice %64 {offsets = [0, 512], sizes = [8, 512], strides = [1, 1]} : vector<8x1024xf32> to vector<8x512xf32>
    %86 = arith.addf %61, %85 : vector<8x512xf32>
    %87 = vector.extract_strided_slice %86 {offsets = [0, 0], sizes = [8, 384], strides = [1, 1]} : vector<8x512xf32> to vector<8x384xf32>
    %cst_21 = arith.constant 5.000000e-01 : f32
    %88 = vector.broadcast %cst_21 : f32 to vector<8x384xf32>
    %89 = arith.mulf %88, %87 : vector<8x384xf32>
    %90 = math.tanh %89 : vector<8x384xf32>
    %cst_22 = arith.constant 5.000000e-01 : f32
    %91 = vector.broadcast %cst_22 : f32 to vector<8x384xf32>
    %92 = arith.mulf %91, %90 : vector<8x384xf32>
    %cst_23 = arith.constant 5.000000e-01 : f32
    %93 = vector.broadcast %cst_23 : f32 to vector<8x384xf32>
    %94 = arith.addf %92, %93 : vector<8x384xf32>
    %95 = vector.extract_strided_slice %86 {offsets = [0, 384], sizes = [8, 128], strides = [1, 1]} : vector<8x512xf32> to vector<8x128xf32>
    %96 = math.tanh %95 : vector<8x128xf32>
    %97 = vector.extract_strided_slice %94 {offsets = [0, 0], sizes = [8, 128], strides = [1, 1]} : vector<8x384xf32> to vector<8x128xf32>
    %98 = vector.extract_strided_slice %94 {offsets = [0, 128], sizes = [8, 128], strides = [1, 1]} : vector<8x384xf32> to vector<8x128xf32>
    %99 = vector.extract_strided_slice %94 {offsets = [0, 256], sizes = [8, 128], strides = [1, 1]} : vector<8x384xf32> to vector<8x128xf32>
    %100 = arith.mulf %98, %55 : vector<8x128xf32>
    %101 = arith.mulf %97, %96 : vector<8x128xf32>
    %102 = arith.addf %100, %101 : vector<8x128xf32>
    %103 = math.tanh %102 : vector<8x128xf32>
    %104 = arith.mulf %99, %103 : vector<8x128xf32>
    %c8 = arith.constant 8 : index
    %c0_24 = arith.constant 0 : index
    %105 = vector.load %arg13[%c8, %c0_24] : memref<64x256xf32, #tpu.memory_space<vmem>>, vector<8x128xf32>
    tpu.vector_store %arg13[%c8, %c0_24], %84 {strides = array<i32>} : memref<64x256xf32, #tpu.memory_space<vmem>>, vector<8x128xf32>,
    %c48 = arith.constant 48 : index
    %c128_25 = arith.constant 128 : index
    %106 = vector.load %arg13[%c48, %c128_25] : memref<64x256xf32, #tpu.memory_space<vmem>>, vector<8x128xf32>
    tpu.vector_store %arg13[%c48, %c128_25], %104 {strides = array<i32>} : memref<64x256xf32, #tpu.memory_space<vmem>>, vector<8x128xf32>,
    %107 = vector.extract_strided_slice %11 {offsets = [16, 0], sizes = [8, 512], strides = [1, 1]} : vector<64x1024xf32> to vector<8x512xf32>
    %108 = vector.extract_strided_slice %11 {offsets = [40, 512], sizes = [8, 512], strides = [1, 1]} : vector<64x1024xf32> to vector<8x512xf32>
    %109 = tpu.concatenate %84, %104 in 1 : vector<8x128xf32>, vector<8x128xf32> -> vector<8x256xf32>
    %110 = arith.truncf %109 : vector<8x256xf32> to vector<8x256xbf16>
    %cst_26 = arith.constant dense<0.000000e+00> : vector<8x1024xf32>
    %111 = tpu.matmul %110, %12, %cst_26 {dimension_numbers = #tpu.dot_dimension_numbers<[1], [0], [0], [1], [0, 0, 1, 1], [], []>} : vector<8x256xbf16>, vector<256x1024xbf16>, vector<8x1024xf32> -> vector<8x1024xf32>
    %112 = vector.extract_strided_slice %111 {offsets = [0, 0], sizes = [8, 512], strides = [1, 1]} : vector<8x1024xf32> to vector<8x512xf32>
    %113 = arith.addf %107, %112 : vector<8x512xf32>
    %114 = vector.extract_strided_slice %113 {offsets = [0, 0], sizes = [8, 384], strides = [1, 1]} : vector<8x512xf32> to vector<8x384xf32>
    %cst_27 = arith.constant 5.000000e-01 : f32
    %115 = vector.broadcast %cst_27 : f32 to vector<8x384xf32>
    %116 = arith.mulf %115, %114 : vector<8x384xf32>
    %117 = math.tanh %116 : vector<8x384xf32>
    %cst_28 = arith.constant 5.000000e-01 : f32
    %118 = vector.broadcast %cst_28 : f32 to vector<8x384xf32>
    %119 = arith.mulf %118, %117 : vector<8x384xf32>
    %cst_29 = arith.constant 5.000000e-01 : f32
    %120 = vector.broadcast %cst_29 : f32 to vector<8x384xf32>
    %121 = arith.addf %119, %120 : vector<8x384xf32>
    %122 = vector.extract_strided_slice %113 {offsets = [0, 384], sizes = [8, 128], strides = [1, 1]} : vector<8x512xf32> to vector<8x128xf32>
    %123 = math.tanh %122 : vector<8x128xf32>
    %124 = vector.extract_strided_slice %121 {offsets = [0, 0], sizes = [8, 128], strides = [1, 1]} : vector<8x384xf32> to vector<8x128xf32>
    %125 = vector.extract_strided_slice %121 {offsets = [0, 128], sizes = [8, 128], strides = [1, 1]} : vector<8x384xf32> to vector<8x128xf32>
    %126 = vector.extract_strided_slice %121 {offsets = [0, 256], sizes = [8, 128], strides = [1, 1]} : vector<8x384xf32> to vector<8x128xf32>
    %127 = arith.mulf %125, %82 : vector<8x128xf32>
    %128 = arith.mulf %124, %123 : vector<8x128xf32>
    %129 = arith.addf %127, %128 : vector<8x128xf32>
    %130 = math.tanh %129 : vector<8x128xf32>
    %131 = arith.mulf %126, %130 : vector<8x128xf32>
    %132 = vector.extract_strided_slice %111 {offsets = [0, 512], sizes = [8, 512], strides = [1, 1]} : vector<8x1024xf32> to vector<8x512xf32>
    %133 = arith.addf %108, %132 : vector<8x512xf32>
    %134 = vector.extract_strided_slice %133 {offsets = [0, 0], sizes = [8, 384], strides = [1, 1]} : vector<8x512xf32> to vector<8x384xf32>
    %cst_30 = arith.constant 5.000000e-01 : f32
    %135 = vector.broadcast %cst_30 : f32 to vector<8x384xf32>
    %136 = arith.mulf %135, %134 : vector<8x384xf32>
    %137 = math.tanh %136 : vector<8x384xf32>
    %cst_31 = arith.constant 5.000000e-01 : f32
    %138 = vector.broadcast %cst_31 : f32 to vector<8x384xf32>
    %139 = arith.mulf %138, %137 : vector<8x384xf32>
    %cst_32 = arith.constant 5.000000e-01 : f32
    %140 = vector.broadcast %cst_32 : f32 to vector<8x384xf32>
    %141 = arith.addf %139, %140 : vector<8x384xf32>
    %142 = vector.extract_strided_slice %133 {offsets = [0, 384], sizes = [8, 128], strides = [1, 1]} : vector<8x512xf32> to vector<8x128xf32>
    %143 = math.tanh %142 : vector<8x128xf32>
    %144 = vector.extract_strided_slice %141 {offsets = [0, 0], sizes = [8, 128], strides = [1, 1]} : vector<8x384xf32> to vector<8x128xf32>
    %145 = vector.extract_strided_slice %141 {offsets = [0, 128], sizes = [8, 128], strides = [1, 1]} : vector<8x384xf32> to vector<8x128xf32>
    %146 = vector.extract_strided_slice %141 {offsets = [0, 256], sizes = [8, 128], strides = [1, 1]} : vector<8x384xf32> to vector<8x128xf32>
    %147 = arith.mulf %145, %102 : vector<8x128xf32>
    %148 = arith.mulf %144, %143 : vector<8x128xf32>
    %149 = arith.addf %147, %148 : vector<8x128xf32>
    %150 = math.tanh %149 : vector<8x128xf32>
    %151 = arith.mulf %146, %150 : vector<8x128xf32>
    %c16 = arith.constant 16 : index
    %c0_33 = arith.constant 0 : index
    %152 = vector.load %arg13[%c16, %c0_33] : memref<64x256xf32, #tpu.memory_space<vmem>>, vector<8x128xf32>
    tpu.vector_store %arg13[%c16, %c0_33], %131 {strides = array<i32>} : memref<64x256xf32, #tpu.memory_space<vmem>>, vector<8x128xf32>,
    %c40 = arith.constant 40 : index
    %c128_34 = arith.constant 128 : index
    %153 = vector.load %arg13[%c40, %c128_34] : memref<64x256xf32, #tpu.memory_space<vmem>>, vector<8x128xf32>
    tpu.vector_store %arg13[%c40, %c128_34], %151 {strides = array<i32>} : memref<64x256xf32, #tpu.memory_space<vmem>>, vector<8x128xf32>,
    %154 = vector.extract_strided_slice %11 {offsets = [24, 0], sizes = [8, 512], strides = [1, 1]} : vector<64x1024xf32> to vector<8x512xf32>
    %155 = vector.extract_strided_slice %11 {offsets = [32, 512], sizes = [8, 512], strides = [1, 1]} : vector<64x1024xf32> to vector<8x512xf32>
    %156 = tpu.concatenate %131, %151 in 1 : vector<8x128xf32>, vector<8x128xf32> -> vector<8x256xf32>
    %157 = arith.truncf %156 : vector<8x256xf32> to vector<8x256xbf16>
    %cst_35 = arith.constant dense<0.000000e+00> : vector<8x1024xf32>
    %158 = tpu.matmul %157, %12, %cst_35 {dimension_numbers = #tpu.dot_dimension_numbers<[1], [0], [0], [1], [0, 0, 1, 1], [], []>} : vector<8x256xbf16>, vector<256x1024xbf16>, vector<8x1024xf32> -> vector<8x1024xf32>
    %159 = vector.extract_strided_slice %158 {offsets = [0, 0], sizes = [8, 512], strides = [1, 1]} : vector<8x1024xf32> to vector<8x512xf32>
    %160 = arith.addf %154, %159 : vector<8x512xf32>
    %161 = vector.extract_strided_slice %160 {offsets = [0, 0], sizes = [8, 384], strides = [1, 1]} : vector<8x512xf32> to vector<8x384xf32>
    %cst_36 = arith.constant 5.000000e-01 : f32
    %162 = vector.broadcast %cst_36 : f32 to vector<8x384xf32>
    %163 = arith.mulf %162, %161 : vector<8x384xf32>
    %164 = math.tanh %163 : vector<8x384xf32>
    %cst_37 = arith.constant 5.000000e-01 : f32
    %165 = vector.broadcast %cst_37 : f32 to vector<8x384xf32>
    %166 = arith.mulf %165, %164 : vector<8x384xf32>
    %cst_38 = arith.constant 5.000000e-01 : f32
    %167 = vector.broadcast %cst_38 : f32 to vector<8x384xf32>
    %168 = arith.addf %166, %167 : vector<8x384xf32>
    %169 = vector.extract_strided_slice %160 {offsets = [0, 384], sizes = [8, 128], strides = [1, 1]} : vector<8x512xf32> to vector<8x128xf32>
    %170 = math.tanh %169 : vector<8x128xf32>
    %171 = vector.extract_strided_slice %168 {offsets = [0, 0], sizes = [8, 128], strides = [1, 1]} : vector<8x384xf32> to vector<8x128xf32>
    %172 = vector.extract_strided_slice %168 {offsets = [0, 128], sizes = [8, 128], strides = [1, 1]} : vector<8x384xf32> to vector<8x128xf32>
    %173 = vector.extract_strided_slice %168 {offsets = [0, 256], sizes = [8, 128], strides = [1, 1]} : vector<8x384xf32> to vector<8x128xf32>
    %174 = arith.mulf %172, %129 : vector<8x128xf32>
    %175 = arith.mulf %171, %170 : vector<8x128xf32>
    %176 = arith.addf %174, %175 : vector<8x128xf32>
    %177 = math.tanh %176 : vector<8x128xf32>
    %178 = arith.mulf %173, %177 : vector<8x128xf32>
    %179 = vector.extract_strided_slice %158 {offsets = [0, 512], sizes = [8, 512], strides = [1, 1]} : vector<8x1024xf32> to vector<8x512xf32>
    %180 = arith.addf %155, %179 : vector<8x512xf32>
    %181 = vector.extract_strided_slice %180 {offsets = [0, 0], sizes = [8, 384], strides = [1, 1]} : vector<8x512xf32> to vector<8x384xf32>
    %cst_39 = arith.constant 5.000000e-01 : f32
    %182 = vector.broadcast %cst_39 : f32 to vector<8x384xf32>
    %183 = arith.mulf %182, %181 : vector<8x384xf32>
    %184 = math.tanh %183 : vector<8x384xf32>
    %cst_40 = arith.constant 5.000000e-01 : f32
    %185 = vector.broadcast %cst_40 : f32 to vector<8x384xf32>
    %186 = arith.mulf %185, %184 : vector<8x384xf32>
    %cst_41 = arith.constant 5.000000e-01 : f32
    %187 = vector.broadcast %cst_41 : f32 to vector<8x384xf32>
    %188 = arith.addf %186, %187 : vector<8x384xf32>
    %189 = vector.extract_strided_slice %180 {offsets = [0, 384], sizes = [8, 128], strides = [1, 1]} : vector<8x512xf32> to vector<8x128xf32>
    %190 = math.tanh %189 : vector<8x128xf32>
    %191 = vector.extract_strided_slice %188 {offsets = [0, 0], sizes = [8, 128], strides = [1, 1]} : vector<8x384xf32> to vector<8x128xf32>
    %192 = vector.extract_strided_slice %188 {offsets = [0, 128], sizes = [8, 128], strides = [1, 1]} : vector<8x384xf32> to vector<8x128xf32>
    %193 = vector.extract_strided_slice %188 {offsets = [0, 256], sizes = [8, 128], strides = [1, 1]} : vector<8x384xf32> to vector<8x128xf32>
    %194 = arith.mulf %192, %149 : vector<8x128xf32>
    %195 = arith.mulf %191, %190 : vector<8x128xf32>
    %196 = arith.addf %194, %195 : vector<8x128xf32>
    %197 = math.tanh %196 : vector<8x128xf32>
    %198 = arith.mulf %193, %197 : vector<8x128xf32>
    %c24 = arith.constant 24 : index
    %c0_42 = arith.constant 0 : index
    %199 = vector.load %arg13[%c24, %c0_42] : memref<64x256xf32, #tpu.memory_space<vmem>>, vector<8x128xf32>
    tpu.vector_store %arg13[%c24, %c0_42], %178 {strides = array<i32>} : memref<64x256xf32, #tpu.memory_space<vmem>>, vector<8x128xf32>,
    %c32 = arith.constant 32 : index
    %c128_43 = arith.constant 128 : index
    %200 = vector.load %arg13[%c32, %c128_43] : memref<64x256xf32, #tpu.memory_space<vmem>>, vector<8x128xf32>
    tpu.vector_store %arg13[%c32, %c128_43], %198 {strides = array<i32>} : memref<64x256xf32, #tpu.memory_space<vmem>>, vector<8x128xf32>,
    %201 = vector.extract_strided_slice %11 {offsets = [32, 0], sizes = [8, 512], strides = [1, 1]} : vector<64x1024xf32> to vector<8x512xf32>
    %202 = vector.extract_strided_slice %11 {offsets = [24, 512], sizes = [8, 512], strides = [1, 1]} : vector<64x1024xf32> to vector<8x512xf32>
    %203 = tpu.concatenate %178, %198 in 1 : vector<8x128xf32>, vector<8x128xf32> -> vector<8x256xf32>
    %204 = arith.truncf %203 : vector<8x256xf32> to vector<8x256xbf16>
    %cst_44 = arith.constant dense<0.000000e+00> : vector<8x1024xf32>
    %205 = tpu.matmul %204, %12, %cst_44 {dimension_numbers = #tpu.dot_dimension_numbers<[1], [0], [0], [1], [0, 0, 1, 1], [], []>} : vector<8x256xbf16>, vector<256x1024xbf16>, vector<8x1024xf32> -> vector<8x1024xf32>
    %206 = vector.extract_strided_slice %205 {offsets = [0, 0], sizes = [8, 512], strides = [1, 1]} : vector<8x1024xf32> to vector<8x512xf32>
    %207 = arith.addf %201, %206 : vector<8x512xf32>
    %208 = vector.extract_strided_slice %207 {offsets = [0, 0], sizes = [8, 384], strides = [1, 1]} : vector<8x512xf32> to vector<8x384xf32>
    %cst_45 = arith.constant 5.000000e-01 : f32
    %209 = vector.broadcast %cst_45 : f32 to vector<8x384xf32>
    %210 = arith.mulf %209, %208 : vector<8x384xf32>
    %211 = math.tanh %210 : vector<8x384xf32>
    %cst_46 = arith.constant 5.000000e-01 : f32
    %212 = vector.broadcast %cst_46 : f32 to vector<8x384xf32>
    %213 = arith.mulf %212, %211 : vector<8x384xf32>
    %cst_47 = arith.constant 5.000000e-01 : f32
    %214 = vector.broadcast %cst_47 : f32 to vector<8x384xf32>
    %215 = arith.addf %213, %214 : vector<8x384xf32>
    %216 = vector.extract_strided_slice %207 {offsets = [0, 384], sizes = [8, 128], strides = [1, 1]} : vector<8x512xf32> to vector<8x128xf32>
    %217 = math.tanh %216 : vector<8x128xf32>
    %218 = vector.extract_strided_slice %215 {offsets = [0, 0], sizes = [8, 128], strides = [1, 1]} : vector<8x384xf32> to vector<8x128xf32>
    %219 = vector.extract_strided_slice %215 {offsets = [0, 128], sizes = [8, 128], strides = [1, 1]} : vector<8x384xf32> to vector<8x128xf32>
    %220 = vector.extract_strided_slice %215 {offsets = [0, 256], sizes = [8, 128], strides = [1, 1]} : vector<8x384xf32> to vector<8x128xf32>
    %221 = arith.mulf %219, %176 : vector<8x128xf32>
    %222 = arith.mulf %218, %217 : vector<8x128xf32>
    %223 = arith.addf %221, %222 : vector<8x128xf32>
    %224 = math.tanh %223 : vector<8x128xf32>
    %225 = arith.mulf %220, %224 : vector<8x128xf32>
    %226 = vector.extract_strided_slice %205 {offsets = [0, 512], sizes = [8, 512], strides = [1, 1]} : vector<8x1024xf32> to vector<8x512xf32>
    %227 = arith.addf %202, %226 : vector<8x512xf32>
    %228 = vector.extract_strided_slice %227 {offsets = [0, 0], sizes = [8, 384], strides = [1, 1]} : vector<8x512xf32> to vector<8x384xf32>
    %cst_48 = arith.constant 5.000000e-01 : f32
    %229 = vector.broadcast %cst_48 : f32 to vector<8x384xf32>
    %230 = arith.mulf %229, %228 : vector<8x384xf32>
    %231 = math.tanh %230 : vector<8x384xf32>
    %cst_49 = arith.constant 5.000000e-01 : f32
    %232 = vector.broadcast %cst_49 : f32 to vector<8x384xf32>
    %233 = arith.mulf %232, %231 : vector<8x384xf32>
    %cst_50 = arith.constant 5.000000e-01 : f32
    %234 = vector.broadcast %cst_50 : f32 to vector<8x384xf32>
    %235 = arith.addf %233, %234 : vector<8x384xf32>
    %236 = vector.extract_strided_slice %227 {offsets = [0, 384], sizes = [8, 128], strides = [1, 1]} : vector<8x512xf32> to vector<8x128xf32>
    %237 = math.tanh %236 : vector<8x128xf32>
    %238 = vector.extract_strided_slice %235 {offsets = [0, 0], sizes = [8, 128], strides = [1, 1]} : vector<8x384xf32> to vector<8x128xf32>
    %239 = vector.extract_strided_slice %235 {offsets = [0, 128], sizes = [8, 128], strides = [1, 1]} : vector<8x384xf32> to vector<8x128xf32>
    %240 = vector.extract_strided_slice %235 {offsets = [0, 256], sizes = [8, 128], strides = [1, 1]} : vector<8x384xf32> to vector<8x128xf32>
    %241 = arith.mulf %239, %196 : vector<8x128xf32>
    %242 = arith.mulf %238, %237 : vector<8x128xf32>
    %243 = arith.addf %241, %242 : vector<8x128xf32>
    %244 = math.tanh %243 : vector<8x128xf32>
    %245 = arith.mulf %240, %244 : vector<8x128xf32>
    %c32_51 = arith.constant 32 : index
    %c0_52 = arith.constant 0 : index
    %246 = vector.load %arg13[%c32_51, %c0_52] : memref<64x256xf32, #tpu.memory_space<vmem>>, vector<8x128xf32>
    tpu.vector_store %arg13[%c32_51, %c0_52], %225 {strides = array<i32>} : memref<64x256xf32, #tpu.memory_space<vmem>>, vector<8x128xf32>,
    %c24_53 = arith.constant 24 : index
    %c128_54 = arith.constant 128 : index
    %247 = vector.load %arg13[%c24_53, %c128_54] : memref<64x256xf32, #tpu.memory_space<vmem>>, vector<8x128xf32>
    tpu.vector_store %arg13[%c24_53, %c128_54], %245 {strides = array<i32>} : memref<64x256xf32, #tpu.memory_space<vmem>>, vector<8x128xf32>,
    %248 = vector.extract_strided_slice %11 {offsets = [40, 0], sizes = [8, 512], strides = [1, 1]} : vector<64x1024xf32> to vector<8x512xf32>
    %249 = vector.extract_strided_slice %11 {offsets = [16, 512], sizes = [8, 512], strides = [1, 1]} : vector<64x1024xf32> to vector<8x512xf32>
    %250 = tpu.concatenate %225, %245 in 1 : vector<8x128xf32>, vector<8x128xf32> -> vector<8x256xf32>
    %251 = arith.truncf %250 : vector<8x256xf32> to vector<8x256xbf16>
    %cst_55 = arith.constant dense<0.000000e+00> : vector<8x1024xf32>
    %252 = tpu.matmul %251, %12, %cst_55 {dimension_numbers = #tpu.dot_dimension_numbers<[1], [0], [0], [1], [0, 0, 1, 1], [], []>} : vector<8x256xbf16>, vector<256x1024xbf16>, vector<8x1024xf32> -> vector<8x1024xf32>
    %253 = vector.extract_strided_slice %252 {offsets = [0, 0], sizes = [8, 512], strides = [1, 1]} : vector<8x1024xf32> to vector<8x512xf32>
    %254 = arith.addf %248, %253 : vector<8x512xf32>
    %255 = vector.extract_strided_slice %254 {offsets = [0, 0], sizes = [8, 384], strides = [1, 1]} : vector<8x512xf32> to vector<8x384xf32>
    %cst_56 = arith.constant 5.000000e-01 : f32
    %256 = vector.broadcast %cst_56 : f32 to vector<8x384xf32>
    %257 = arith.mulf %256, %255 : vector<8x384xf32>
    %258 = math.tanh %257 : vector<8x384xf32>
    %cst_57 = arith.constant 5.000000e-01 : f32
    %259 = vector.broadcast %cst_57 : f32 to vector<8x384xf32>
    %260 = arith.mulf %259, %258 : vector<8x384xf32>
    %cst_58 = arith.constant 5.000000e-01 : f32
    %261 = vector.broadcast %cst_58 : f32 to vector<8x384xf32>
    %262 = arith.addf %260, %261 : vector<8x384xf32>
    %263 = vector.extract_strided_slice %254 {offsets = [0, 384], sizes = [8, 128], strides = [1, 1]} : vector<8x512xf32> to vector<8x128xf32>
    %264 = math.tanh %263 : vector<8x128xf32>
    %265 = vector.extract_strided_slice %262 {offsets = [0, 0], sizes = [8, 128], strides = [1, 1]} : vector<8x384xf32> to vector<8x128xf32>
    %266 = vector.extract_strided_slice %262 {offsets = [0, 128], sizes = [8, 128], strides = [1, 1]} : vector<8x384xf32> to vector<8x128xf32>
    %267 = vector.extract_strided_slice %262 {offsets = [0, 256], sizes = [8, 128], strides = [1, 1]} : vector<8x384xf32> to vector<8x128xf32>
    %268 = arith.mulf %266, %223 : vector<8x128xf32>
    %269 = arith.mulf %265, %264 : vector<8x128xf32>
    %270 = arith.addf %268, %269 : vector<8x128xf32>
    %271 = math.tanh %270 : vector<8x128xf32>
    %272 = arith.mulf %267, %271 : vector<8x128xf32>
    %273 = vector.extract_strided_slice %252 {offsets = [0, 512], sizes = [8, 512], strides = [1, 1]} : vector<8x1024xf32> to vector<8x512xf32>
    %274 = arith.addf %249, %273 : vector<8x512xf32>
    %275 = vector.extract_strided_slice %274 {offsets = [0, 0], sizes = [8, 384], strides = [1, 1]} : vector<8x512xf32> to vector<8x384xf32>
    %cst_59 = arith.constant 5.000000e-01 : f32
    %276 = vector.broadcast %cst_59 : f32 to vector<8x384xf32>
    %277 = arith.mulf %276, %275 : vector<8x384xf32>
    %278 = math.tanh %277 : vector<8x384xf32>
    %cst_60 = arith.constant 5.000000e-01 : f32
    %279 = vector.broadcast %cst_60 : f32 to vector<8x384xf32>
    %280 = arith.mulf %279, %278 : vector<8x384xf32>
    %cst_61 = arith.constant 5.000000e-01 : f32
    %281 = vector.broadcast %cst_61 : f32 to vector<8x384xf32>
    %282 = arith.addf %280, %281 : vector<8x384xf32>
    %283 = vector.extract_strided_slice %274 {offsets = [0, 384], sizes = [8, 128], strides = [1, 1]} : vector<8x512xf32> to vector<8x128xf32>
    %284 = math.tanh %283 : vector<8x128xf32>
    %285 = vector.extract_strided_slice %282 {offsets = [0, 0], sizes = [8, 128], strides = [1, 1]} : vector<8x384xf32> to vector<8x128xf32>
    %286 = vector.extract_strided_slice %282 {offsets = [0, 128], sizes = [8, 128], strides = [1, 1]} : vector<8x384xf32> to vector<8x128xf32>
    %287 = vector.extract_strided_slice %282 {offsets = [0, 256], sizes = [8, 128], strides = [1, 1]} : vector<8x384xf32> to vector<8x128xf32>
    %288 = arith.mulf %286, %243 : vector<8x128xf32>
    %289 = arith.mulf %285, %284 : vector<8x128xf32>
    %290 = arith.addf %288, %289 : vector<8x128xf32>
    %291 = math.tanh %290 : vector<8x128xf32>
    %292 = arith.mulf %287, %291 : vector<8x128xf32>
    %c40_62 = arith.constant 40 : index
    %c0_63 = arith.constant 0 : index
    %293 = vector.load %arg13[%c40_62, %c0_63] : memref<64x256xf32, #tpu.memory_space<vmem>>, vector<8x128xf32>
    tpu.vector_store %arg13[%c40_62, %c0_63], %272 {strides = array<i32>} : memref<64x256xf32, #tpu.memory_space<vmem>>, vector<8x128xf32>,
    %c16_64 = arith.constant 16 : index
    %c128_65 = arith.constant 128 : index
    %294 = vector.load %arg13[%c16_64, %c128_65] : memref<64x256xf32, #tpu.memory_space<vmem>>, vector<8x128xf32>
    tpu.vector_store %arg13[%c16_64, %c128_65], %292 {strides = array<i32>} : memref<64x256xf32, #tpu.memory_space<vmem>>, vector<8x128xf32>,
    %295 = vector.extract_strided_slice %11 {offsets = [48, 0], sizes = [8, 512], strides = [1, 1]} : vector<64x1024xf32> to vector<8x512xf32>
    %296 = vector.extract_strided_slice %11 {offsets = [8, 512], sizes = [8, 512], strides = [1, 1]} : vector<64x1024xf32> to vector<8x512xf32>
    %297 = tpu.concatenate %272, %292 in 1 : vector<8x128xf32>, vector<8x128xf32> -> vector<8x256xf32>
    %298 = arith.truncf %297 : vector<8x256xf32> to vector<8x256xbf16>
    %cst_66 = arith.constant dense<0.000000e+00> : vector<8x1024xf32>
    %299 = tpu.matmul %298, %12, %cst_66 {dimension_numbers = #tpu.dot_dimension_numbers<[1], [0], [0], [1], [0, 0, 1, 1], [], []>} : vector<8x256xbf16>, vector<256x1024xbf16>, vector<8x1024xf32> -> vector<8x1024xf32>
    %300 = vector.extract_strided_slice %299 {offsets = [0, 0], sizes = [8, 512], strides = [1, 1]} : vector<8x1024xf32> to vector<8x512xf32>
    %301 = arith.addf %295, %300 : vector<8x512xf32>
    %302 = vector.extract_strided_slice %301 {offsets = [0, 0], sizes = [8, 384], strides = [1, 1]} : vector<8x512xf32> to vector<8x384xf32>
    %cst_67 = arith.constant 5.000000e-01 : f32
    %303 = vector.broadcast %cst_67 : f32 to vector<8x384xf32>
    %304 = arith.mulf %303, %302 : vector<8x384xf32>
    %305 = math.tanh %304 : vector<8x384xf32>
    %cst_68 = arith.constant 5.000000e-01 : f32
    %306 = vector.broadcast %cst_68 : f32 to vector<8x384xf32>
    %307 = arith.mulf %306, %305 : vector<8x384xf32>
    %cst_69 = arith.constant 5.000000e-01 : f32
    %308 = vector.broadcast %cst_69 : f32 to vector<8x384xf32>
    %309 = arith.addf %307, %308 : vector<8x384xf32>
    %310 = vector.extract_strided_slice %301 {offsets = [0, 384], sizes = [8, 128], strides = [1, 1]} : vector<8x512xf32> to vector<8x128xf32>
    %311 = math.tanh %310 : vector<8x128xf32>
    %312 = vector.extract_strided_slice %309 {offsets = [0, 0], sizes = [8, 128], strides = [1, 1]} : vector<8x384xf32> to vector<8x128xf32>
    %313 = vector.extract_strided_slice %309 {offsets = [0, 128], sizes = [8, 128], strides = [1, 1]} : vector<8x384xf32> to vector<8x128xf32>
    %314 = vector.extract_strided_slice %309 {offsets = [0, 256], sizes = [8, 128], strides = [1, 1]} : vector<8x384xf32> to vector<8x128xf32>
    %315 = arith.mulf %313, %270 : vector<8x128xf32>
    %316 = arith.mulf %312, %311 : vector<8x128xf32>
    %317 = arith.addf %315, %316 : vector<8x128xf32>
    %318 = math.tanh %317 : vector<8x128xf32>
    %319 = arith.mulf %314, %318 : vector<8x128xf32>
    %320 = vector.extract_strided_slice %299 {offsets = [0, 512], sizes = [8, 512], strides = [1, 1]} : vector<8x1024xf32> to vector<8x512xf32>
    %321 = arith.addf %296, %320 : vector<8x512xf32>
    %322 = vector.extract_strided_slice %321 {offsets = [0, 0], sizes = [8, 384], strides = [1, 1]} : vector<8x512xf32> to vector<8x384xf32>
    %cst_70 = arith.constant 5.000000e-01 : f32
    %323 = vector.broadcast %cst_70 : f32 to vector<8x384xf32>
    %324 = arith.mulf %323, %322 : vector<8x384xf32>
    %325 = math.tanh %324 : vector<8x384xf32>
    %cst_71 = arith.constant 5.000000e-01 : f32
    %326 = vector.broadcast %cst_71 : f32 to vector<8x384xf32>
    %327 = arith.mulf %326, %325 : vector<8x384xf32>
    %cst_72 = arith.constant 5.000000e-01 : f32
    %328 = vector.broadcast %cst_72 : f32 to vector<8x384xf32>
    %329 = arith.addf %327, %328 : vector<8x384xf32>
    %330 = vector.extract_strided_slice %321 {offsets = [0, 384], sizes = [8, 128], strides = [1, 1]} : vector<8x512xf32> to vector<8x128xf32>
    %331 = math.tanh %330 : vector<8x128xf32>
    %332 = vector.extract_strided_slice %329 {offsets = [0, 0], sizes = [8, 128], strides = [1, 1]} : vector<8x384xf32> to vector<8x128xf32>
    %333 = vector.extract_strided_slice %329 {offsets = [0, 128], sizes = [8, 128], strides = [1, 1]} : vector<8x384xf32> to vector<8x128xf32>
    %334 = vector.extract_strided_slice %329 {offsets = [0, 256], sizes = [8, 128], strides = [1, 1]} : vector<8x384xf32> to vector<8x128xf32>
    %335 = arith.mulf %333, %290 : vector<8x128xf32>
    %336 = arith.mulf %332, %331 : vector<8x128xf32>
    %337 = arith.addf %335, %336 : vector<8x128xf32>
    %338 = math.tanh %337 : vector<8x128xf32>
    %339 = arith.mulf %334, %338 : vector<8x128xf32>
    %c48_73 = arith.constant 48 : index
    %c0_74 = arith.constant 0 : index
    %340 = vector.load %arg13[%c48_73, %c0_74] : memref<64x256xf32, #tpu.memory_space<vmem>>, vector<8x128xf32>
    tpu.vector_store %arg13[%c48_73, %c0_74], %319 {strides = array<i32>} : memref<64x256xf32, #tpu.memory_space<vmem>>, vector<8x128xf32>,
    %c8_75 = arith.constant 8 : index
    %c128_76 = arith.constant 128 : index
    %341 = vector.load %arg13[%c8_75, %c128_76] : memref<64x256xf32, #tpu.memory_space<vmem>>, vector<8x128xf32>
    tpu.vector_store %arg13[%c8_75, %c128_76], %339 {strides = array<i32>} : memref<64x256xf32, #tpu.memory_space<vmem>>, vector<8x128xf32>,
    %342 = vector.extract_strided_slice %11 {offsets = [56, 0], sizes = [8, 512], strides = [1, 1]} : vector<64x1024xf32> to vector<8x512xf32>
    %343 = vector.extract_strided_slice %11 {offsets = [0, 512], sizes = [8, 512], strides = [1, 1]} : vector<64x1024xf32> to vector<8x512xf32>
    %344 = tpu.concatenate %319, %339 in 1 : vector<8x128xf32>, vector<8x128xf32> -> vector<8x256xf32>
    %345 = arith.truncf %344 : vector<8x256xf32> to vector<8x256xbf16>
    %cst_77 = arith.constant dense<0.000000e+00> : vector<8x1024xf32>
    %346 = tpu.matmul %345, %12, %cst_77 {dimension_numbers = #tpu.dot_dimension_numbers<[1], [0], [0], [1], [0, 0, 1, 1], [], []>} : vector<8x256xbf16>, vector<256x1024xbf16>, vector<8x1024xf32> -> vector<8x1024xf32>
    %347 = vector.extract_strided_slice %346 {offsets = [0, 0], sizes = [8, 512], strides = [1, 1]} : vector<8x1024xf32> to vector<8x512xf32>
    %348 = arith.addf %342, %347 : vector<8x512xf32>
    %349 = vector.extract_strided_slice %348 {offsets = [0, 0], sizes = [8, 384], strides = [1, 1]} : vector<8x512xf32> to vector<8x384xf32>
    %cst_78 = arith.constant 5.000000e-01 : f32
    %350 = vector.broadcast %cst_78 : f32 to vector<8x384xf32>
    %351 = arith.mulf %350, %349 : vector<8x384xf32>
    %352 = math.tanh %351 : vector<8x384xf32>
    %cst_79 = arith.constant 5.000000e-01 : f32
    %353 = vector.broadcast %cst_79 : f32 to vector<8x384xf32>
    %354 = arith.mulf %353, %352 : vector<8x384xf32>
    %cst_80 = arith.constant 5.000000e-01 : f32
    %355 = vector.broadcast %cst_80 : f32 to vector<8x384xf32>
    %356 = arith.addf %354, %355 : vector<8x384xf32>
    %357 = vector.extract_strided_slice %348 {offsets = [0, 384], sizes = [8, 128], strides = [1, 1]} : vector<8x512xf32> to vector<8x128xf32>
    %358 = math.tanh %357 : vector<8x128xf32>
    %359 = vector.extract_strided_slice %356 {offsets = [0, 0], sizes = [8, 128], strides = [1, 1]} : vector<8x384xf32> to vector<8x128xf32>
    %360 = vector.extract_strided_slice %356 {offsets = [0, 128], sizes = [8, 128], strides = [1, 1]} : vector<8x384xf32> to vector<8x128xf32>
    %361 = vector.extract_strided_slice %356 {offsets = [0, 256], sizes = [8, 128], strides = [1, 1]} : vector<8x384xf32> to vector<8x128xf32>
    %362 = arith.mulf %360, %317 : vector<8x128xf32>
    %363 = arith.mulf %359, %358 : vector<8x128xf32>
    %364 = arith.addf %362, %363 : vector<8x128xf32>
    %365 = math.tanh %364 : vector<8x128xf32>
    %366 = arith.mulf %361, %365 : vector<8x128xf32>
    %367 = vector.extract_strided_slice %346 {offsets = [0, 512], sizes = [8, 512], strides = [1, 1]} : vector<8x1024xf32> to vector<8x512xf32>
    %368 = arith.addf %343, %367 : vector<8x512xf32>
    %369 = vector.extract_strided_slice %368 {offsets = [0, 0], sizes = [8, 384], strides = [1, 1]} : vector<8x512xf32> to vector<8x384xf32>
    %cst_81 = arith.constant 5.000000e-01 : f32
    %370 = vector.broadcast %cst_81 : f32 to vector<8x384xf32>
    %371 = arith.mulf %370, %369 : vector<8x384xf32>
    %372 = math.tanh %371 : vector<8x384xf32>
    %cst_82 = arith.constant 5.000000e-01 : f32
    %373 = vector.broadcast %cst_82 : f32 to vector<8x384xf32>
    %374 = arith.mulf %373, %372 : vector<8x384xf32>
    %cst_83 = arith.constant 5.000000e-01 : f32
    %375 = vector.broadcast %cst_83 : f32 to vector<8x384xf32>
    %376 = arith.addf %374, %375 : vector<8x384xf32>
    %377 = vector.extract_strided_slice %368 {offsets = [0, 384], sizes = [8, 128], strides = [1, 1]} : vector<8x512xf32> to vector<8x128xf32>
    %378 = math.tanh %377 : vector<8x128xf32>
    %379 = vector.extract_strided_slice %376 {offsets = [0, 0], sizes = [8, 128], strides = [1, 1]} : vector<8x384xf32> to vector<8x128xf32>
    %380 = vector.extract_strided_slice %376 {offsets = [0, 128], sizes = [8, 128], strides = [1, 1]} : vector<8x384xf32> to vector<8x128xf32>
    %381 = vector.extract_strided_slice %376 {offsets = [0, 256], sizes = [8, 128], strides = [1, 1]} : vector<8x384xf32> to vector<8x128xf32>
    %382 = arith.mulf %380, %337 : vector<8x128xf32>
    %383 = arith.mulf %379, %378 : vector<8x128xf32>
    %384 = arith.addf %382, %383 : vector<8x128xf32>
    %385 = math.tanh %384 : vector<8x128xf32>
    %386 = arith.mulf %381, %385 : vector<8x128xf32>
    %c56_84 = arith.constant 56 : index
    %c0_85 = arith.constant 0 : index
    %387 = vector.load %arg13[%c56_84, %c0_85] : memref<64x256xf32, #tpu.memory_space<vmem>>, vector<8x128xf32>
    tpu.vector_store %arg13[%c56_84, %c0_85], %366 {strides = array<i32>} : memref<64x256xf32, #tpu.memory_space<vmem>>, vector<8x128xf32>,
    %c0_86 = arith.constant 0 : index
    %c128_87 = arith.constant 128 : index
    %388 = vector.load %arg13[%c0_86, %c128_87] : memref<64x256xf32, #tpu.memory_space<vmem>>, vector<8x128xf32>
    tpu.vector_store %arg13[%c0_86, %c128_87], %386 {strides = array<i32>} : memref<64x256xf32, #tpu.memory_space<vmem>>, vector<8x128xf32>,
    %c0_i32_88 = arith.constant 0 : i32
    %389 = tpu.memref_slice %arg14[%c0_i32_88] : memref<2x!tpu.dma_semaphore, #tpu.memory_space<semaphore_mem>> -> memref<1x!tpu.dma_semaphore, #tpu.memory_space<semaphore_mem>>
    %390 = tpu.memref_squeeze %389 : memref<1x!tpu.dma_semaphore, #tpu.memory_space<semaphore_mem>> -> memref<!tpu.dma_semaphore, #tpu.memory_space<semaphore_mem>>
    tpu.wait_dma2 semaphore(%390 : memref<!tpu.dma_semaphore, #tpu.memory_space<semaphore_mem>>) src(%arg4 : memref<256x1024xbf16, #tpu.memory_space<any>>) dst(%arg11 : memref<256x1024xbf16, #tpu.memory_space<vmem>>)
    %c1_i32_89 = arith.constant 1 : i32
    %391 = tpu.memref_slice %arg14[%c1_i32_89] : memref<2x!tpu.dma_semaphore, #tpu.memory_space<semaphore_mem>> -> memref<1x!tpu.dma_semaphore, #tpu.memory_space<semaphore_mem>>
    %392 = tpu.memref_squeeze %391 : memref<1x!tpu.dma_semaphore, #tpu.memory_space<semaphore_mem>> -> memref<!tpu.dma_semaphore, #tpu.memory_space<semaphore_mem>>
    tpu.wait_dma2 semaphore(%392 : memref<!tpu.dma_semaphore, #tpu.memory_space<semaphore_mem>>) src(%arg5 : memref<256x1024xbf16, #tpu.memory_space<any>>) dst(%arg12 : memref<256x1024xbf16, #tpu.memory_space<vmem>>)
    %c0_90 = arith.constant 0 : index
    %c0_91 = arith.constant 0 : index
    %393 = vector.load %arg13[%c0_90, %c0_91] : memref<64x256xf32, #tpu.memory_space<vmem>>, vector<64x256xf32>
    %394 = arith.truncf %393 : vector<64x256xf32> to vector<64x256xbf16>
    %c0_92 = arith.constant 0 : index
    %c0_93 = arith.constant 0 : index
    %395 = vector.load %arg11[%c0_92, %c0_93] : memref<256x1024xbf16, #tpu.memory_space<vmem>>, vector<256x1024xbf16>
    %cst_94 = arith.constant dense<0.000000e+00> : vector<64x1024xf32>
    %396 = tpu.matmul %394, %395, %cst_94 {dimension_numbers = #tpu.dot_dimension_numbers<[1], [0], [0], [1], [0, 0, 1, 1], [], []>} : vector<64x256xbf16>, vector<256x1024xbf16>, vector<64x1024xf32> -> vector<64x1024xf32>
    %c0_95 = arith.constant 0 : index
    %c0_96 = arith.constant 0 : index
    %397 = vector.load %arg6[%c0_95, %c0_96] : memref<1x1024xf32, #tpu.memory_space<vmem>>, vector<1x1024xf32>
    %398 = vector.broadcast %397 : vector<1x1024xf32> to vector<64x1024xf32>
    %399 = arith.addf %396, %398 : vector<64x1024xf32>
    %c0_97 = arith.constant 0 : index
    %c0_98 = arith.constant 0 : index
    %400 = vector.load %arg12[%c0_97, %c0_98] : memref<256x1024xbf16, #tpu.memory_space<vmem>>, vector<256x1024xbf16>
    %401 = vector.extract_strided_slice %399 {offsets = [0, 0], sizes = [8, 512], strides = [1, 1]} : vector<64x1024xf32> to vector<8x512xf32>
    %402 = vector.extract_strided_slice %399 {offsets = [56, 512], sizes = [8, 512], strides = [1, 1]} : vector<64x1024xf32> to vector<8x512xf32>
    %403 = tpu.concatenate %4, %4 in 1 : vector<8x128xf32>, vector<8x128xf32> -> vector<8x256xf32>
    %404 = arith.truncf %403 : vector<8x256xf32> to vector<8x256xbf16>
    %cst_99 = arith.constant dense<0.000000e+00> : vector<8x1024xf32>
    %405 = tpu.matmul %404, %400, %cst_99 {dimension_numbers = #tpu.dot_dimension_numbers<[1], [0], [0], [1], [0, 0, 1, 1], [], []>} : vector<8x256xbf16>, vector<256x1024xbf16>, vector<8x1024xf32> -> vector<8x1024xf32>
    %406 = vector.extract_strided_slice %405 {offsets = [0, 0], sizes = [8, 512], strides = [1, 1]} : vector<8x1024xf32> to vector<8x512xf32>
    %407 = arith.addf %401, %406 : vector<8x512xf32>
    %408 = vector.extract_strided_slice %407 {offsets = [0, 0], sizes = [8, 384], strides = [1, 1]} : vector<8x512xf32> to vector<8x384xf32>
    %cst_100 = arith.constant 5.000000e-01 : f32
    %409 = vector.broadcast %cst_100 : f32 to vector<8x384xf32>
    %410 = arith.mulf %409, %408 : vector<8x384xf32>
    %411 = math.tanh %410 : vector<8x384xf32>
    %cst_101 = arith.constant 5.000000e-01 : f32
    %412 = vector.broadcast %cst_101 : f32 to vector<8x384xf32>
    %413 = arith.mulf %412, %411 : vector<8x384xf32>
    %cst_102 = arith.constant 5.000000e-01 : f32
    %414 = vector.broadcast %cst_102 : f32 to vector<8x384xf32>
    %415 = arith.addf %413, %414 : vector<8x384xf32>
    %416 = vector.extract_strided_slice %407 {offsets = [0, 384], sizes = [8, 128], strides = [1, 1]} : vector<8x512xf32> to vector<8x128xf32>
    %417 = math.tanh %416 : vector<8x128xf32>
    %418 = vector.extract_strided_slice %415 {offsets = [0, 0], sizes = [8, 128], strides = [1, 1]} : vector<8x384xf32> to vector<8x128xf32>
    %419 = vector.extract_strided_slice %415 {offsets = [0, 128], sizes = [8, 128], strides = [1, 1]} : vector<8x384xf32> to vector<8x128xf32>
    %420 = vector.extract_strided_slice %415 {offsets = [0, 256], sizes = [8, 128], strides = [1, 1]} : vector<8x384xf32> to vector<8x128xf32>
    %421 = arith.mulf %419, %4 : vector<8x128xf32>
    %422 = arith.mulf %418, %417 : vector<8x128xf32>
    %423 = arith.addf %421, %422 : vector<8x128xf32>
    %424 = math.tanh %423 : vector<8x128xf32>
    %425 = arith.mulf %420, %424 : vector<8x128xf32>
    %426 = vector.extract_strided_slice %405 {offsets = [0, 512], sizes = [8, 512], strides = [1, 1]} : vector<8x1024xf32> to vector<8x512xf32>
    %427 = arith.addf %402, %426 : vector<8x512xf32>
    %428 = vector.extract_strided_slice %427 {offsets = [0, 0], sizes = [8, 384], strides = [1, 1]} : vector<8x512xf32> to vector<8x384xf32>
    %cst_103 = arith.constant 5.000000e-01 : f32
    %429 = vector.broadcast %cst_103 : f32 to vector<8x384xf32>
    %430 = arith.mulf %429, %428 : vector<8x384xf32>
    %431 = math.tanh %430 : vector<8x384xf32>
    %cst_104 = arith.constant 5.000000e-01 : f32
    %432 = vector.broadcast %cst_104 : f32 to vector<8x384xf32>
    %433 = arith.mulf %432, %431 : vector<8x384xf32>
    %cst_105 = arith.constant 5.000000e-01 : f32
    %434 = vector.broadcast %cst_105 : f32 to vector<8x384xf32>
    %435 = arith.addf %433, %434 : vector<8x384xf32>
    %436 = vector.extract_strided_slice %427 {offsets = [0, 384], sizes = [8, 128], strides = [1, 1]} : vector<8x512xf32> to vector<8x128xf32>
    %437 = math.tanh %436 : vector<8x128xf32>
    %438 = vector.extract_strided_slice %435 {offsets = [0, 0], sizes = [8, 128], strides = [1, 1]} : vector<8x384xf32> to vector<8x128xf32>
    %439 = vector.extract_strided_slice %435 {offsets = [0, 128], sizes = [8, 128], strides = [1, 1]} : vector<8x384xf32> to vector<8x128xf32>
    %440 = vector.extract_strided_slice %435 {offsets = [0, 256], sizes = [8, 128], strides = [1, 1]} : vector<8x384xf32> to vector<8x128xf32>
    %441 = arith.mulf %439, %4 : vector<8x128xf32>
    %442 = arith.mulf %438, %437 : vector<8x128xf32>
    %443 = arith.addf %441, %442 : vector<8x128xf32>
    %444 = math.tanh %443 : vector<8x128xf32>
    %445 = arith.mulf %440, %444 : vector<8x128xf32>
    %446 = vector.extract_strided_slice %399 {offsets = [8, 0], sizes = [8, 512], strides = [1, 1]} : vector<64x1024xf32> to vector<8x512xf32>
    %447 = vector.extract_strided_slice %399 {offsets = [48, 512], sizes = [8, 512], strides = [1, 1]} : vector<64x1024xf32> to vector<8x512xf32>
    %448 = tpu.concatenate %425, %445 in 1 : vector<8x128xf32>, vector<8x128xf32> -> vector<8x256xf32>
    %449 = arith.truncf %448 : vector<8x256xf32> to vector<8x256xbf16>
    %cst_106 = arith.constant dense<0.000000e+00> : vector<8x1024xf32>
    %450 = tpu.matmul %449, %400, %cst_106 {dimension_numbers = #tpu.dot_dimension_numbers<[1], [0], [0], [1], [0, 0, 1, 1], [], []>} : vector<8x256xbf16>, vector<256x1024xbf16>, vector<8x1024xf32> -> vector<8x1024xf32>
    %451 = vector.extract_strided_slice %450 {offsets = [0, 0], sizes = [8, 512], strides = [1, 1]} : vector<8x1024xf32> to vector<8x512xf32>
    %452 = arith.addf %446, %451 : vector<8x512xf32>
    %453 = vector.extract_strided_slice %452 {offsets = [0, 0], sizes = [8, 384], strides = [1, 1]} : vector<8x512xf32> to vector<8x384xf32>
    %cst_107 = arith.constant 5.000000e-01 : f32
    %454 = vector.broadcast %cst_107 : f32 to vector<8x384xf32>
    %455 = arith.mulf %454, %453 : vector<8x384xf32>
    %456 = math.tanh %455 : vector<8x384xf32>
    %cst_108 = arith.constant 5.000000e-01 : f32
    %457 = vector.broadcast %cst_108 : f32 to vector<8x384xf32>
    %458 = arith.mulf %457, %456 : vector<8x384xf32>
    %cst_109 = arith.constant 5.000000e-01 : f32
    %459 = vector.broadcast %cst_109 : f32 to vector<8x384xf32>
    %460 = arith.addf %458, %459 : vector<8x384xf32>
    %461 = vector.extract_strided_slice %452 {offsets = [0, 384], sizes = [8, 128], strides = [1, 1]} : vector<8x512xf32> to vector<8x128xf32>
    %462 = math.tanh %461 : vector<8x128xf32>
    %463 = vector.extract_strided_slice %460 {offsets = [0, 0], sizes = [8, 128], strides = [1, 1]} : vector<8x384xf32> to vector<8x128xf32>
    %464 = vector.extract_strided_slice %460 {offsets = [0, 128], sizes = [8, 128], strides = [1, 1]} : vector<8x384xf32> to vector<8x128xf32>
    %465 = vector.extract_strided_slice %460 {offsets = [0, 256], sizes = [8, 128], strides = [1, 1]} : vector<8x384xf32> to vector<8x128xf32>
    %466 = arith.mulf %464, %423 : vector<8x128xf32>
    %467 = arith.mulf %463, %462 : vector<8x128xf32>
    %468 = arith.addf %466, %467 : vector<8x128xf32>
    %469 = math.tanh %468 : vector<8x128xf32>
    %470 = arith.mulf %465, %469 : vector<8x128xf32>
    %471 = vector.extract_strided_slice %450 {offsets = [0, 512], sizes = [8, 512], strides = [1, 1]} : vector<8x1024xf32> to vector<8x512xf32>
    %472 = arith.addf %447, %471 : vector<8x512xf32>
    %473 = vector.extract_strided_slice %472 {offsets = [0, 0], sizes = [8, 384], strides = [1, 1]} : vector<8x512xf32> to vector<8x384xf32>
    %cst_110 = arith.constant 5.000000e-01 : f32
    %474 = vector.broadcast %cst_110 : f32 to vector<8x384xf32>
    %475 = arith.mulf %474, %473 : vector<8x384xf32>
    %476 = math.tanh %475 : vector<8x384xf32>
    %cst_111 = arith.constant 5.000000e-01 : f32
    %477 = vector.broadcast %cst_111 : f32 to vector<8x384xf32>
    %478 = arith.mulf %477, %476 : vector<8x384xf32>
    %cst_112 = arith.constant 5.000000e-01 : f32
    %479 = vector.broadcast %cst_112 : f32 to vector<8x384xf32>
    %480 = arith.addf %478, %479 : vector<8x384xf32>
    %481 = vector.extract_strided_slice %472 {offsets = [0, 384], sizes = [8, 128], strides = [1, 1]} : vector<8x512xf32> to vector<8x128xf32>
    %482 = math.tanh %481 : vector<8x128xf32>
    %483 = vector.extract_strided_slice %480 {offsets = [0, 0], sizes = [8, 128], strides = [1, 1]} : vector<8x384xf32> to vector<8x128xf32>
    %484 = vector.extract_strided_slice %480 {offsets = [0, 128], sizes = [8, 128], strides = [1, 1]} : vector<8x384xf32> to vector<8x128xf32>
    %485 = vector.extract_strided_slice %480 {offsets = [0, 256], sizes = [8, 128], strides = [1, 1]} : vector<8x384xf32> to vector<8x128xf32>
    %486 = arith.mulf %484, %443 : vector<8x128xf32>
    %487 = arith.mulf %483, %482 : vector<8x128xf32>
    %488 = arith.addf %486, %487 : vector<8x128xf32>
    %489 = math.tanh %488 : vector<8x128xf32>
    %490 = arith.mulf %485, %489 : vector<8x128xf32>
    %491 = vector.extract_strided_slice %399 {offsets = [16, 0], sizes = [8, 512], strides = [1, 1]} : vector<64x1024xf32> to vector<8x512xf32>
    %492 = vector.extract_strided_slice %399 {offsets = [40, 512], sizes = [8, 512], strides = [1, 1]} : vector<64x1024xf32> to vector<8x512xf32>
    %493 = tpu.concatenate %470, %490 in 1 : vector<8x128xf32>, vector<8x128xf32> -> vector<8x256xf32>
    %494 = arith.truncf %493 : vector<8x256xf32> to vector<8x256xbf16>
    %cst_113 = arith.constant dense<0.000000e+00> : vector<8x1024xf32>
    %495 = tpu.matmul %494, %400, %cst_113 {dimension_numbers = #tpu.dot_dimension_numbers<[1], [0], [0], [1], [0, 0, 1, 1], [], []>} : vector<8x256xbf16>, vector<256x1024xbf16>, vector<8x1024xf32> -> vector<8x1024xf32>
    %496 = vector.extract_strided_slice %495 {offsets = [0, 0], sizes = [8, 512], strides = [1, 1]} : vector<8x1024xf32> to vector<8x512xf32>
    %497 = arith.addf %491, %496 : vector<8x512xf32>
    %498 = vector.extract_strided_slice %497 {offsets = [0, 0], sizes = [8, 384], strides = [1, 1]} : vector<8x512xf32> to vector<8x384xf32>
    %cst_114 = arith.constant 5.000000e-01 : f32
    %499 = vector.broadcast %cst_114 : f32 to vector<8x384xf32>
    %500 = arith.mulf %499, %498 : vector<8x384xf32>
    %501 = math.tanh %500 : vector<8x384xf32>
    %cst_115 = arith.constant 5.000000e-01 : f32
    %502 = vector.broadcast %cst_115 : f32 to vector<8x384xf32>
    %503 = arith.mulf %502, %501 : vector<8x384xf32>
    %cst_116 = arith.constant 5.000000e-01 : f32
    %504 = vector.broadcast %cst_116 : f32 to vector<8x384xf32>
    %505 = arith.addf %503, %504 : vector<8x384xf32>
    %506 = vector.extract_strided_slice %497 {offsets = [0, 384], sizes = [8, 128], strides = [1, 1]} : vector<8x512xf32> to vector<8x128xf32>
    %507 = math.tanh %506 : vector<8x128xf32>
    %508 = vector.extract_strided_slice %505 {offsets = [0, 0], sizes = [8, 128], strides = [1, 1]} : vector<8x384xf32> to vector<8x128xf32>
    %509 = vector.extract_strided_slice %505 {offsets = [0, 128], sizes = [8, 128], strides = [1, 1]} : vector<8x384xf32> to vector<8x128xf32>
    %510 = vector.extract_strided_slice %505 {offsets = [0, 256], sizes = [8, 128], strides = [1, 1]} : vector<8x384xf32> to vector<8x128xf32>
    %511 = arith.mulf %509, %468 : vector<8x128xf32>
    %512 = arith.mulf %508, %507 : vector<8x128xf32>
    %513 = arith.addf %511, %512 : vector<8x128xf32>
    %514 = math.tanh %513 : vector<8x128xf32>
    %515 = arith.mulf %510, %514 : vector<8x128xf32>
    %516 = vector.extract_strided_slice %495 {offsets = [0, 512], sizes = [8, 512], strides = [1, 1]} : vector<8x1024xf32> to vector<8x512xf32>
    %517 = arith.addf %492, %516 : vector<8x512xf32>
    %518 = vector.extract_strided_slice %517 {offsets = [0, 0], sizes = [8, 384], strides = [1, 1]} : vector<8x512xf32> to vector<8x384xf32>
    %cst_117 = arith.constant 5.000000e-01 : f32
    %519 = vector.broadcast %cst_117 : f32 to vector<8x384xf32>
    %520 = arith.mulf %519, %518 : vector<8x384xf32>
    %521 = math.tanh %520 : vector<8x384xf32>
    %cst_118 = arith.constant 5.000000e-01 : f32
    %522 = vector.broadcast %cst_118 : f32 to vector<8x384xf32>
    %523 = arith.mulf %522, %521 : vector<8x384xf32>
    %cst_119 = arith.constant 5.000000e-01 : f32
    %524 = vector.broadcast %cst_119 : f32 to vector<8x384xf32>
    %525 = arith.addf %523, %524 : vector<8x384xf32>
    %526 = vector.extract_strided_slice %517 {offsets = [0, 384], sizes = [8, 128], strides = [1, 1]} : vector<8x512xf32> to vector<8x128xf32>
    %527 = math.tanh %526 : vector<8x128xf32>
    %528 = vector.extract_strided_slice %525 {offsets = [0, 0], sizes = [8, 128], strides = [1, 1]} : vector<8x384xf32> to vector<8x128xf32>
    %529 = vector.extract_strided_slice %525 {offsets = [0, 128], sizes = [8, 128], strides = [1, 1]} : vector<8x384xf32> to vector<8x128xf32>
    %530 = vector.extract_strided_slice %525 {offsets = [0, 256], sizes = [8, 128], strides = [1, 1]} : vector<8x384xf32> to vector<8x128xf32>
    %531 = arith.mulf %529, %488 : vector<8x128xf32>
    %532 = arith.mulf %528, %527 : vector<8x128xf32>
    %533 = arith.addf %531, %532 : vector<8x128xf32>
    %534 = math.tanh %533 : vector<8x128xf32>
    %535 = arith.mulf %530, %534 : vector<8x128xf32>
    %536 = vector.extract_strided_slice %399 {offsets = [24, 0], sizes = [8, 512], strides = [1, 1]} : vector<64x1024xf32> to vector<8x512xf32>
    %537 = vector.extract_strided_slice %399 {offsets = [32, 512], sizes = [8, 512], strides = [1, 1]} : vector<64x1024xf32> to vector<8x512xf32>
    %538 = tpu.concatenate %515, %535 in 1 : vector<8x128xf32>, vector<8x128xf32> -> vector<8x256xf32>
    %539 = arith.truncf %538 : vector<8x256xf32> to vector<8x256xbf16>
    %cst_120 = arith.constant dense<0.000000e+00> : vector<8x1024xf32>
    %540 = tpu.matmul %539, %400, %cst_120 {dimension_numbers = #tpu.dot_dimension_numbers<[1], [0], [0], [1], [0, 0, 1, 1], [], []>} : vector<8x256xbf16>, vector<256x1024xbf16>, vector<8x1024xf32> -> vector<8x1024xf32>
    %541 = vector.extract_strided_slice %540 {offsets = [0, 0], sizes = [8, 512], strides = [1, 1]} : vector<8x1024xf32> to vector<8x512xf32>
    %542 = arith.addf %536, %541 : vector<8x512xf32>
    %543 = vector.extract_strided_slice %542 {offsets = [0, 0], sizes = [8, 384], strides = [1, 1]} : vector<8x512xf32> to vector<8x384xf32>
    %cst_121 = arith.constant 5.000000e-01 : f32
    %544 = vector.broadcast %cst_121 : f32 to vector<8x384xf32>
    %545 = arith.mulf %544, %543 : vector<8x384xf32>
    %546 = math.tanh %545 : vector<8x384xf32>
    %cst_122 = arith.constant 5.000000e-01 : f32
    %547 = vector.broadcast %cst_122 : f32 to vector<8x384xf32>
    %548 = arith.mulf %547, %546 : vector<8x384xf32>
    %cst_123 = arith.constant 5.000000e-01 : f32
    %549 = vector.broadcast %cst_123 : f32 to vector<8x384xf32>
    %550 = arith.addf %548, %549 : vector<8x384xf32>
    %551 = vector.extract_strided_slice %542 {offsets = [0, 384], sizes = [8, 128], strides = [1, 1]} : vector<8x512xf32> to vector<8x128xf32>
    %552 = math.tanh %551 : vector<8x128xf32>
    %553 = vector.extract_strided_slice %550 {offsets = [0, 0], sizes = [8, 128], strides = [1, 1]} : vector<8x384xf32> to vector<8x128xf32>
    %554 = vector.extract_strided_slice %550 {offsets = [0, 128], sizes = [8, 128], strides = [1, 1]} : vector<8x384xf32> to vector<8x128xf32>
    %555 = vector.extract_strided_slice %550 {offsets = [0, 256], sizes = [8, 128], strides = [1, 1]} : vector<8x384xf32> to vector<8x128xf32>
    %556 = arith.mulf %554, %513 : vector<8x128xf32>
    %557 = arith.mulf %553, %552 : vector<8x128xf32>
    %558 = arith.addf %556, %557 : vector<8x128xf32>
    %559 = math.tanh %558 : vector<8x128xf32>
    %560 = arith.mulf %555, %559 : vector<8x128xf32>
    %561 = vector.extract_strided_slice %540 {offsets = [0, 512], sizes = [8, 512], strides = [1, 1]} : vector<8x1024xf32> to vector<8x512xf32>
    %562 = arith.addf %537, %561 : vector<8x512xf32>
    %563 = vector.extract_strided_slice %562 {offsets = [0, 0], sizes = [8, 384], strides = [1, 1]} : vector<8x512xf32> to vector<8x384xf32>
    %cst_124 = arith.constant 5.000000e-01 : f32
    %564 = vector.broadcast %cst_124 : f32 to vector<8x384xf32>
    %565 = arith.mulf %564, %563 : vector<8x384xf32>
    %566 = math.tanh %565 : vector<8x384xf32>
    %cst_125 = arith.constant 5.000000e-01 : f32
    %567 = vector.broadcast %cst_125 : f32 to vector<8x384xf32>
    %568 = arith.mulf %567, %566 : vector<8x384xf32>
    %cst_126 = arith.constant 5.000000e-01 : f32
    %569 = vector.broadcast %cst_126 : f32 to vector<8x384xf32>
    %570 = arith.addf %568, %569 : vector<8x384xf32>
    %571 = vector.extract_strided_slice %562 {offsets = [0, 384], sizes = [8, 128], strides = [1, 1]} : vector<8x512xf32> to vector<8x128xf32>
    %572 = math.tanh %571 : vector<8x128xf32>
    %573 = vector.extract_strided_slice %570 {offsets = [0, 0], sizes = [8, 128], strides = [1, 1]} : vector<8x384xf32> to vector<8x128xf32>
    %574 = vector.extract_strided_slice %570 {offsets = [0, 128], sizes = [8, 128], strides = [1, 1]} : vector<8x384xf32> to vector<8x128xf32>
    %575 = vector.extract_strided_slice %570 {offsets = [0, 256], sizes = [8, 128], strides = [1, 1]} : vector<8x384xf32> to vector<8x128xf32>
    %576 = arith.mulf %574, %533 : vector<8x128xf32>
    %577 = arith.mulf %573, %572 : vector<8x128xf32>
    %578 = arith.addf %576, %577 : vector<8x128xf32>
    %579 = math.tanh %578 : vector<8x128xf32>
    %580 = arith.mulf %575, %579 : vector<8x128xf32>
    %581 = vector.extract_strided_slice %399 {offsets = [32, 0], sizes = [8, 512], strides = [1, 1]} : vector<64x1024xf32> to vector<8x512xf32>
    %582 = vector.extract_strided_slice %399 {offsets = [24, 512], sizes = [8, 512], strides = [1, 1]} : vector<64x1024xf32> to vector<8x512xf32>
    %583 = tpu.concatenate %560, %580 in 1 : vector<8x128xf32>, vector<8x128xf32> -> vector<8x256xf32>
    %584 = arith.truncf %583 : vector<8x256xf32> to vector<8x256xbf16>
    %cst_127 = arith.constant dense<0.000000e+00> : vector<8x1024xf32>
    %585 = tpu.matmul %584, %400, %cst_127 {dimension_numbers = #tpu.dot_dimension_numbers<[1], [0], [0], [1], [0, 0, 1, 1], [], []>} : vector<8x256xbf16>, vector<256x1024xbf16>, vector<8x1024xf32> -> vector<8x1024xf32>
    %586 = vector.extract_strided_slice %585 {offsets = [0, 0], sizes = [8, 512], strides = [1, 1]} : vector<8x1024xf32> to vector<8x512xf32>
    %587 = arith.addf %581, %586 : vector<8x512xf32>
    %588 = vector.extract_strided_slice %587 {offsets = [0, 0], sizes = [8, 384], strides = [1, 1]} : vector<8x512xf32> to vector<8x384xf32>
    %cst_128 = arith.constant 5.000000e-01 : f32
    %589 = vector.broadcast %cst_128 : f32 to vector<8x384xf32>
    %590 = arith.mulf %589, %588 : vector<8x384xf32>
    %591 = math.tanh %590 : vector<8x384xf32>
    %cst_129 = arith.constant 5.000000e-01 : f32
    %592 = vector.broadcast %cst_129 : f32 to vector<8x384xf32>
    %593 = arith.mulf %592, %591 : vector<8x384xf32>
    %cst_130 = arith.constant 5.000000e-01 : f32
    %594 = vector.broadcast %cst_130 : f32 to vector<8x384xf32>
    %595 = arith.addf %593, %594 : vector<8x384xf32>
    %596 = vector.extract_strided_slice %587 {offsets = [0, 384], sizes = [8, 128], strides = [1, 1]} : vector<8x512xf32> to vector<8x128xf32>
    %597 = math.tanh %596 : vector<8x128xf32>
    %598 = vector.extract_strided_slice %595 {offsets = [0, 0], sizes = [8, 128], strides = [1, 1]} : vector<8x384xf32> to vector<8x128xf32>
    %599 = vector.extract_strided_slice %595 {offsets = [0, 128], sizes = [8, 128], strides = [1, 1]} : vector<8x384xf32> to vector<8x128xf32>
    %600 = vector.extract_strided_slice %595 {offsets = [0, 256], sizes = [8, 128], strides = [1, 1]} : vector<8x384xf32> to vector<8x128xf32>
    %601 = arith.mulf %599, %558 : vector<8x128xf32>
    %602 = arith.mulf %598, %597 : vector<8x128xf32>
    %603 = arith.addf %601, %602 : vector<8x128xf32>
    %604 = math.tanh %603 : vector<8x128xf32>
    %605 = arith.mulf %600, %604 : vector<8x128xf32>
    %606 = vector.extract_strided_slice %585 {offsets = [0, 512], sizes = [8, 512], strides = [1, 1]} : vector<8x1024xf32> to vector<8x512xf32>
    %607 = arith.addf %582, %606 : vector<8x512xf32>
    %608 = vector.extract_strided_slice %607 {offsets = [0, 0], sizes = [8, 384], strides = [1, 1]} : vector<8x512xf32> to vector<8x384xf32>
    %cst_131 = arith.constant 5.000000e-01 : f32
    %609 = vector.broadcast %cst_131 : f32 to vector<8x384xf32>
    %610 = arith.mulf %609, %608 : vector<8x384xf32>
    %611 = math.tanh %610 : vector<8x384xf32>
    %cst_132 = arith.constant 5.000000e-01 : f32
    %612 = vector.broadcast %cst_132 : f32 to vector<8x384xf32>
    %613 = arith.mulf %612, %611 : vector<8x384xf32>
    %cst_133 = arith.constant 5.000000e-01 : f32
    %614 = vector.broadcast %cst_133 : f32 to vector<8x384xf32>
    %615 = arith.addf %613, %614 : vector<8x384xf32>
    %616 = vector.extract_strided_slice %607 {offsets = [0, 384], sizes = [8, 128], strides = [1, 1]} : vector<8x512xf32> to vector<8x128xf32>
    %617 = math.tanh %616 : vector<8x128xf32>
    %618 = vector.extract_strided_slice %615 {offsets = [0, 0], sizes = [8, 128], strides = [1, 1]} : vector<8x384xf32> to vector<8x128xf32>
    %619 = vector.extract_strided_slice %615 {offsets = [0, 128], sizes = [8, 128], strides = [1, 1]} : vector<8x384xf32> to vector<8x128xf32>
    %620 = vector.extract_strided_slice %615 {offsets = [0, 256], sizes = [8, 128], strides = [1, 1]} : vector<8x384xf32> to vector<8x128xf32>
    %621 = arith.mulf %619, %578 : vector<8x128xf32>
    %622 = arith.mulf %618, %617 : vector<8x128xf32>
    %623 = arith.addf %621, %622 : vector<8x128xf32>
    %624 = math.tanh %623 : vector<8x128xf32>
    %625 = arith.mulf %620, %624 : vector<8x128xf32>
    %626 = vector.extract_strided_slice %399 {offsets = [40, 0], sizes = [8, 512], strides = [1, 1]} : vector<64x1024xf32> to vector<8x512xf32>
    %627 = vector.extract_strided_slice %399 {offsets = [16, 512], sizes = [8, 512], strides = [1, 1]} : vector<64x1024xf32> to vector<8x512xf32>
    %628 = tpu.concatenate %605, %625 in 1 : vector<8x128xf32>, vector<8x128xf32> -> vector<8x256xf32>
    %629 = arith.truncf %628 : vector<8x256xf32> to vector<8x256xbf16>
    %cst_134 = arith.constant dense<0.000000e+00> : vector<8x1024xf32>
    %630 = tpu.matmul %629, %400, %cst_134 {dimension_numbers = #tpu.dot_dimension_numbers<[1], [0], [0], [1], [0, 0, 1, 1], [], []>} : vector<8x256xbf16>, vector<256x1024xbf16>, vector<8x1024xf32> -> vector<8x1024xf32>
    %631 = vector.extract_strided_slice %630 {offsets = [0, 0], sizes = [8, 512], strides = [1, 1]} : vector<8x1024xf32> to vector<8x512xf32>
    %632 = arith.addf %626, %631 : vector<8x512xf32>
    %633 = vector.extract_strided_slice %632 {offsets = [0, 0], sizes = [8, 384], strides = [1, 1]} : vector<8x512xf32> to vector<8x384xf32>
    %cst_135 = arith.constant 5.000000e-01 : f32
    %634 = vector.broadcast %cst_135 : f32 to vector<8x384xf32>
    %635 = arith.mulf %634, %633 : vector<8x384xf32>
    %636 = math.tanh %635 : vector<8x384xf32>
    %cst_136 = arith.constant 5.000000e-01 : f32
    %637 = vector.broadcast %cst_136 : f32 to vector<8x384xf32>
    %638 = arith.mulf %637, %636 : vector<8x384xf32>
    %cst_137 = arith.constant 5.000000e-01 : f32
    %639 = vector.broadcast %cst_137 : f32 to vector<8x384xf32>
    %640 = arith.addf %638, %639 : vector<8x384xf32>
    %641 = vector.extract_strided_slice %632 {offsets = [0, 384], sizes = [8, 128], strides = [1, 1]} : vector<8x512xf32> to vector<8x128xf32>
    %642 = math.tanh %641 : vector<8x128xf32>
    %643 = vector.extract_strided_slice %640 {offsets = [0, 0], sizes = [8, 128], strides = [1, 1]} : vector<8x384xf32> to vector<8x128xf32>
    %644 = vector.extract_strided_slice %640 {offsets = [0, 128], sizes = [8, 128], strides = [1, 1]} : vector<8x384xf32> to vector<8x128xf32>
    %645 = vector.extract_strided_slice %640 {offsets = [0, 256], sizes = [8, 128], strides = [1, 1]} : vector<8x384xf32> to vector<8x128xf32>
    %646 = arith.mulf %644, %603 : vector<8x128xf32>
    %647 = arith.mulf %643, %642 : vector<8x128xf32>
    %648 = arith.addf %646, %647 : vector<8x128xf32>
    %649 = math.tanh %648 : vector<8x128xf32>
    %650 = arith.mulf %645, %649 : vector<8x128xf32>
    %651 = vector.extract_strided_slice %630 {offsets = [0, 512], sizes = [8, 512], strides = [1, 1]} : vector<8x1024xf32> to vector<8x512xf32>
    %652 = arith.addf %627, %651 : vector<8x512xf32>
    %653 = vector.extract_strided_slice %652 {offsets = [0, 0], sizes = [8, 384], strides = [1, 1]} : vector<8x512xf32> to vector<8x384xf32>
    %cst_138 = arith.constant 5.000000e-01 : f32
    %654 = vector.broadcast %cst_138 : f32 to vector<8x384xf32>
    %655 = arith.mulf %654, %653 : vector<8x384xf32>
    %656 = math.tanh %655 : vector<8x384xf32>
    %cst_139 = arith.constant 5.000000e-01 : f32
    %657 = vector.broadcast %cst_139 : f32 to vector<8x384xf32>
    %658 = arith.mulf %657, %656 : vector<8x384xf32>
    %cst_140 = arith.constant 5.000000e-01 : f32
    %659 = vector.broadcast %cst_140 : f32 to vector<8x384xf32>
    %660 = arith.addf %658, %659 : vector<8x384xf32>
    %661 = vector.extract_strided_slice %652 {offsets = [0, 384], sizes = [8, 128], strides = [1, 1]} : vector<8x512xf32> to vector<8x128xf32>
    %662 = math.tanh %661 : vector<8x128xf32>
    %663 = vector.extract_strided_slice %660 {offsets = [0, 0], sizes = [8, 128], strides = [1, 1]} : vector<8x384xf32> to vector<8x128xf32>
    %664 = vector.extract_strided_slice %660 {offsets = [0, 128], sizes = [8, 128], strides = [1, 1]} : vector<8x384xf32> to vector<8x128xf32>
    %665 = vector.extract_strided_slice %660 {offsets = [0, 256], sizes = [8, 128], strides = [1, 1]} : vector<8x384xf32> to vector<8x128xf32>
    %666 = arith.mulf %664, %623 : vector<8x128xf32>
    %667 = arith.mulf %663, %662 : vector<8x128xf32>
    %668 = arith.addf %666, %667 : vector<8x128xf32>
    %669 = math.tanh %668 : vector<8x128xf32>
    %670 = arith.mulf %665, %669 : vector<8x128xf32>
    %671 = vector.extract_strided_slice %399 {offsets = [48, 0], sizes = [8, 512], strides = [1, 1]} : vector<64x1024xf32> to vector<8x512xf32>
    %672 = vector.extract_strided_slice %399 {offsets = [8, 512], sizes = [8, 512], strides = [1, 1]} : vector<64x1024xf32> to vector<8x512xf32>
    %673 = tpu.concatenate %650, %670 in 1 : vector<8x128xf32>, vector<8x128xf32> -> vector<8x256xf32>
    %674 = arith.truncf %673 : vector<8x256xf32> to vector<8x256xbf16>
    %cst_141 = arith.constant dense<0.000000e+00> : vector<8x1024xf32>
    %675 = tpu.matmul %674, %400, %cst_141 {dimension_numbers = #tpu.dot_dimension_numbers<[1], [0], [0], [1], [0, 0, 1, 1], [], []>} : vector<8x256xbf16>, vector<256x1024xbf16>, vector<8x1024xf32> -> vector<8x1024xf32>
    %676 = vector.extract_strided_slice %675 {offsets = [0, 0], sizes = [8, 512], strides = [1, 1]} : vector<8x1024xf32> to vector<8x512xf32>
    %677 = arith.addf %671, %676 : vector<8x512xf32>
    %678 = vector.extract_strided_slice %677 {offsets = [0, 0], sizes = [8, 384], strides = [1, 1]} : vector<8x512xf32> to vector<8x384xf32>
    %cst_142 = arith.constant 5.000000e-01 : f32
    %679 = vector.broadcast %cst_142 : f32 to vector<8x384xf32>
    %680 = arith.mulf %679, %678 : vector<8x384xf32>
    %681 = math.tanh %680 : vector<8x384xf32>
    %cst_143 = arith.constant 5.000000e-01 : f32
    %682 = vector.broadcast %cst_143 : f32 to vector<8x384xf32>
    %683 = arith.mulf %682, %681 : vector<8x384xf32>
    %cst_144 = arith.constant 5.000000e-01 : f32
    %684 = vector.broadcast %cst_144 : f32 to vector<8x384xf32>
    %685 = arith.addf %683, %684 : vector<8x384xf32>
    %686 = vector.extract_strided_slice %677 {offsets = [0, 384], sizes = [8, 128], strides = [1, 1]} : vector<8x512xf32> to vector<8x128xf32>
    %687 = math.tanh %686 : vector<8x128xf32>
    %688 = vector.extract_strided_slice %685 {offsets = [0, 0], sizes = [8, 128], strides = [1, 1]} : vector<8x384xf32> to vector<8x128xf32>
    %689 = vector.extract_strided_slice %685 {offsets = [0, 128], sizes = [8, 128], strides = [1, 1]} : vector<8x384xf32> to vector<8x128xf32>
    %690 = vector.extract_strided_slice %685 {offsets = [0, 256], sizes = [8, 128], strides = [1, 1]} : vector<8x384xf32> to vector<8x128xf32>
    %691 = arith.mulf %689, %648 : vector<8x128xf32>
    %692 = arith.mulf %688, %687 : vector<8x128xf32>
    %693 = arith.addf %691, %692 : vector<8x128xf32>
    %694 = math.tanh %693 : vector<8x128xf32>
    %695 = arith.mulf %690, %694 : vector<8x128xf32>
    %696 = vector.extract_strided_slice %675 {offsets = [0, 512], sizes = [8, 512], strides = [1, 1]} : vector<8x1024xf32> to vector<8x512xf32>
    %697 = arith.addf %672, %696 : vector<8x512xf32>
    %698 = vector.extract_strided_slice %697 {offsets = [0, 0], sizes = [8, 384], strides = [1, 1]} : vector<8x512xf32> to vector<8x384xf32>
    %cst_145 = arith.constant 5.000000e-01 : f32
    %699 = vector.broadcast %cst_145 : f32 to vector<8x384xf32>
    %700 = arith.mulf %699, %698 : vector<8x384xf32>
    %701 = math.tanh %700 : vector<8x384xf32>
    %cst_146 = arith.constant 5.000000e-01 : f32
    %702 = vector.broadcast %cst_146 : f32 to vector<8x384xf32>
    %703 = arith.mulf %702, %701 : vector<8x384xf32>
    %cst_147 = arith.constant 5.000000e-01 : f32
    %704 = vector.broadcast %cst_147 : f32 to vector<8x384xf32>
    %705 = arith.addf %703, %704 : vector<8x384xf32>
    %706 = vector.extract_strided_slice %697 {offsets = [0, 384], sizes = [8, 128], strides = [1, 1]} : vector<8x512xf32> to vector<8x128xf32>
    %707 = math.tanh %706 : vector<8x128xf32>
    %708 = vector.extract_strided_slice %705 {offsets = [0, 0], sizes = [8, 128], strides = [1, 1]} : vector<8x384xf32> to vector<8x128xf32>
    %709 = vector.extract_strided_slice %705 {offsets = [0, 128], sizes = [8, 128], strides = [1, 1]} : vector<8x384xf32> to vector<8x128xf32>
    %710 = vector.extract_strided_slice %705 {offsets = [0, 256], sizes = [8, 128], strides = [1, 1]} : vector<8x384xf32> to vector<8x128xf32>
    %711 = arith.mulf %709, %668 : vector<8x128xf32>
    %712 = arith.mulf %708, %707 : vector<8x128xf32>
    %713 = arith.addf %711, %712 : vector<8x128xf32>
    %714 = math.tanh %713 : vector<8x128xf32>
    %715 = arith.mulf %710, %714 : vector<8x128xf32>
    %716 = vector.extract_strided_slice %399 {offsets = [56, 0], sizes = [8, 512], strides = [1, 1]} : vector<64x1024xf32> to vector<8x512xf32>
    %717 = tpu.concatenate %695, %715 in 1 : vector<8x128xf32>, vector<8x128xf32> -> vector<8x256xf32>
    %718 = arith.truncf %717 : vector<8x256xf32> to vector<8x256xbf16>
    %cst_148 = arith.constant dense<0.000000e+00> : vector<8x1024xf32>
    %719 = tpu.matmul %718, %400, %cst_148 {dimension_numbers = #tpu.dot_dimension_numbers<[1], [0], [0], [1], [0, 0, 1, 1], [], []>} : vector<8x256xbf16>, vector<256x1024xbf16>, vector<8x1024xf32> -> vector<8x1024xf32>
    %720 = vector.extract_strided_slice %719 {offsets = [0, 0], sizes = [8, 512], strides = [1, 1]} : vector<8x1024xf32> to vector<8x512xf32>
    %721 = arith.addf %716, %720 : vector<8x512xf32>
    %722 = vector.extract_strided_slice %721 {offsets = [0, 0], sizes = [8, 384], strides = [1, 1]} : vector<8x512xf32> to vector<8x384xf32>
    %cst_149 = arith.constant 5.000000e-01 : f32
    %723 = vector.broadcast %cst_149 : f32 to vector<8x384xf32>
    %724 = arith.mulf %723, %722 : vector<8x384xf32>
    %725 = math.tanh %724 : vector<8x384xf32>
    %cst_150 = arith.constant 5.000000e-01 : f32
    %726 = vector.broadcast %cst_150 : f32 to vector<8x384xf32>
    %727 = arith.mulf %726, %725 : vector<8x384xf32>
    %cst_151 = arith.constant 5.000000e-01 : f32
    %728 = vector.broadcast %cst_151 : f32 to vector<8x384xf32>
    %729 = arith.addf %727, %728 : vector<8x384xf32>
    %730 = vector.extract_strided_slice %721 {offsets = [0, 384], sizes = [8, 128], strides = [1, 1]} : vector<8x512xf32> to vector<8x128xf32>
    %731 = math.tanh %730 : vector<8x128xf32>
    %732 = vector.extract_strided_slice %729 {offsets = [0, 0], sizes = [8, 128], strides = [1, 1]} : vector<8x384xf32> to vector<8x128xf32>
    %733 = vector.extract_strided_slice %729 {offsets = [0, 128], sizes = [8, 128], strides = [1, 1]} : vector<8x384xf32> to vector<8x128xf32>
    %734 = vector.extract_strided_slice %729 {offsets = [0, 256], sizes = [8, 128], strides = [1, 1]} : vector<8x384xf32> to vector<8x128xf32>
    %735 = arith.mulf %733, %693 : vector<8x128xf32>
    %736 = arith.mulf %732, %731 : vector<8x128xf32>
    %737 = arith.addf %735, %736 : vector<8x128xf32>
    %738 = math.tanh %737 : vector<8x128xf32>
    %739 = arith.mulf %734, %738 : vector<8x128xf32>
    %c0_152 = arith.constant 0 : index
    %c0_153 = arith.constant 0 : index
    %740 = vector.load %arg9[%c0_152, %c0_153] : memref<8x256xf32, #tpu.memory_space<vmem>>, vector<8x128xf32>
    tpu.vector_store %arg9[%c0_152, %c0_153], %739 {strides = array<i32>} : memref<8x256xf32, #tpu.memory_space<vmem>>, vector<8x128xf32>,
    %c0_154 = arith.constant 0 : index
    %c128_155 = arith.constant 128 : index
    %741 = vector.load %arg9[%c0_154, %c128_155] : memref<8x256xf32, #tpu.memory_space<vmem>>, vector<8x128xf32>
    tpu.vector_store %arg9[%c0_154, %c128_155], %445 {strides = array<i32>} : memref<8x256xf32, #tpu.memory_space<vmem>>, vector<8x128xf32>,
    %742 = tpu.concatenate %739, %445 in 1 : vector<8x128xf32>, vector<8x128xf32> -> vector<8x256xf32>
    %743 = arith.truncf %742 : vector<8x256xf32> to vector<8x256xbf16>
    %c0_156 = arith.constant 0 : index
    %c0_157 = arith.constant 0 : index
    %744 = vector.load %arg7[%c0_156, %c0_157] : memref<256x2xbf16, #tpu.memory_space<vmem>>, vector<256x2xbf16>
    %cst_158 = arith.constant dense<0.000000e+00> : vector<8x2xf32>
    %745 = tpu.matmul %743, %744, %cst_158 {dimension_numbers = #tpu.dot_dimension_numbers<[1], [0], [0], [1], [0, 0, 1, 1], [], []>} : vector<8x256xbf16>, vector<256x2xbf16>, vector<8x2xf32> -> vector<8x2xf32>
    %c0_159 = arith.constant 0 : index
    %c0_160 = arith.constant 0 : index
    %746 = vector.load %arg8[%c0_159, %c0_160] : memref<1x2xf32, #tpu.memory_space<vmem>>, vector<1x2xf32>
    %747 = vector.broadcast %746 : vector<1x2xf32> to vector<8x2xf32>
    %748 = arith.addf %745, %747 : vector<8x2xf32>
    %c0_161 = arith.constant 0 : index
    %c0_162 = arith.constant 0 : index
    %749 = vector.load %arg10[%c0_161, %c0_162] : memref<8x2xf32, #tpu.memory_space<vmem>>, vector<8x2xf32>
    tpu.vector_store %arg10[%c0_161, %c0_162], %748 {strides = array<i32>} : memref<8x2xf32, #tpu.memory_space<vmem>>, vector<8x2xf32>,
    return
  }
}

</mosaic_0001>

<llo_original>
// kernel: model_forward.1
$region0: #{model_forward.1}
  #allocation0 [shape = 'u32[]', space=smem, size = 0x4, offset = 0x4, fixed_abs, tag = 'smem constant byte address 0x4 - core index']
  #allocation1 [shape = 'u32[144,128]{1,0:T(1,128)}', space=vmem, size = 0x12000, scoped, tag = 'internal scratch']
  #allocation2 [shape = 'bf16[256,1024]{1,0:T(16,128)(2,1)}', space=vmem, size = 0x80000, scoped, tag = 'scratch operand']
  #allocation3 [shape = 'bf16[256,1024]{1,0:T(16,128)(2,1)}', space=vmem, size = 0x80000, scoped, tag = 'scratch operand']
  #allocation4 [shape = 'f32[64,256]{1,0:T(8,128)}', space=vmem, size = 0x10000, scoped, tag = 'scratch operand']
  #allocation5 [shape = 's32[2]{0}', space=sflag, size = 0x8, scoped, tag = 'scratch operand']
  #allocation8 [shape = 's32[]', space=sflag, size = 0x4, offset = 0, fixed_abs, tag = 'sflag constant byte address 0x0 - dummy sync flag']
  #allocation10 [shape = 's32[]', space=sflag, size = 0x4, offset = 0, fixed_abs, tag = 'sflag constant byte address 0x0 - dummy sync flag']
  %s0 = inlined_call_operand.vmem [shape: f32[64,32], index: 0, kind: input, shape index: {}]
  %s1 = inlined_call_operand.vmem [shape: bf16[32,1024], index: 1, kind: input, shape index: {}]
  %s2 = inlined_call_operand.hbm [shape: bf16[256,1024], index: 2, kind: input, shape index: {}]
  %s3 = inlined_call_operand.vmem [shape: f32[1,1024], index: 3, kind: input, shape index: {}]
  %s4 = inlined_call_operand.hbm [shape: bf16[256,1024], index: 4, kind: input, shape index: {}]
  %s5 = inlined_call_operand.hbm [shape: bf16[256,1024], index: 5, kind: input, shape index: {}]
  %s6 = inlined_call_operand.vmem [shape: f32[1,1024], index: 6, kind: input, shape index: {}]
  %s7 = inlined_call_operand.vmem [shape: bf16[256,2], index: 7, kind: input, shape index: {}]
  %s8 = inlined_call_operand.vmem [shape: f32[1,2], index: 8, kind: input, shape index: {}]
  %s9 = inlined_call_operand.vmem [shape: f32[8,256], index: 9, kind: output, shape index: {0}]
  %s10 = inlined_call_operand.vmem [shape: f32[8,2], index: 10, kind: output, shape index: {1}]
  %11 = xla_tuple %s9, %s10
  %s12 = sld [smem:[#allocation0]]
  $region50: #{model_forward.1} parent=0
    _
  %s14 = ssub.s32 1, %s12
  %s15 = scalar_select 0, %s14, %s12
  $region1: #{model_forward.1} parent=0
    #allocation6 [shape = 'u8[524288]{0}', space=vmem, size = 0x80000, scoped, tag = 'input window, operand 2, single buffered']
    #allocation7 [shape = 's32[1]{0}', space=sflag, size = 0x4, scoped, tag = 'scoped memory for model_forward.1']
    #allocation9 [shape = 'u32[9]{0}', space=smem, size = 0x24, scoped, tag = 'DMA stride descriptor']
    #allocation11 [shape = 'u32[9]{0}', space=smem, size = 0x24, scoped, tag = 'DMA stride descriptor']
    %16 = vsyncpa [#allocation7], 0
    // Predicated region
    $region2: #{model_forward.1} parent=1 // pred_check
      _
    $region3: #{model_forward.1} parent=1 // pred_check_branch
      %18 = sbr.rel (0) target = $region5
    $region4: #{model_forward.1} parent=1 // pred_region
      _
    $region5: #{model_forward.1} parent=1 // pred_fallthru
      _
    // Predicated region
    $region6: #{model_forward.1} parent=1 // pred_check
      _
    $region7: #{model_forward.1} parent=1 // pred_check_branch
      %20 = sbr.rel (0) target = $region9
    $region8: #{model_forward.1} parent=1 // pred_region
      _
    $region9: #{model_forward.1} parent=1 // pred_fallthru
      _
    // Predicated region
    $region10: #{model_forward.1} parent=1 // pred_check
      _
    $region11: #{model_forward.1} parent=1 // pred_check_branch
      %22 = sbr.rel (0) target = $region13
    $region12: #{model_forward.1} parent=1 // pred_region
      %s24 = ssub.s32 16384, 16384
      %25 = vsyncadd [#allocation7], %s24
      %s26 = sshll.u32 [#allocation6], 4
      %s27 = int_to_ptr.vmem [resolvable:$true] %s26
      %32 = dma.hbm_to_vmem [thread:$0]  %s2, 16384, %s27, [#allocation7], 512, 512, 32
    $region13: #{model_forward.1} parent=1 // pred_fallthru
      _
    // Predicated region
    $region14: #{model_forward.1} parent=1 // pred_check
      _
    $region15: #{model_forward.1} parent=1 // pred_check_branch
      %34 = sbr.rel (0) target = $region17
    $region16: #{model_forward.1} parent=1 // pred_region
      _
    $region17: #{model_forward.1} parent=1 // pred_fallthru
      _
    // Predicated region
    $region18: #{model_forward.1} parent=1 // pred_check
      _
    $region19: #{model_forward.1} parent=1 // pred_check_branch
      %36 = sbr.rel (0) target = $region21
    $region20: #{model_forward.1} parent=1 // pred_region
      _
    $region21: #{model_forward.1} parent=1 // pred_fallthru
      _
    // Predicated region
    $region22: #{model_forward.1} parent=1 // pred_check
      _
    $region23: #{model_forward.1} parent=1 // pred_check_branch
      %38 = sbr.rel (0) target = $region25
    $region24: #{model_forward.1} parent=1 // pred_region
      _
    $region25: #{model_forward.1} parent=1 // pred_fallthru
      _
    // Predicated region
    $region26: #{model_forward.1} parent=1 // pred_check
      _
    $region27: #{model_forward.1} parent=1 // pred_check_branch
      %40 = sbr.rel (0) target = $region29
    $region28: #{model_forward.1} parent=1 // pred_region
      _
    $region29: #{model_forward.1} parent=1 // pred_fallthru
      _
    // Predicated region
    $region30: #{model_forward.1} parent=1 // pred_check
      _
    $region31: #{model_forward.1} parent=1 // pred_check_branch
      %42 = sbr.rel (0) target = $region33
    $region32: #{model_forward.1} parent=1 // pred_region
      %43 = dma.done [#allocation7], 16384
    $region33: #{model_forward.1} parent=1 // pred_fallthru
      _
    %s46 = sshll.u32 1, 14
    %s47 = sxor.u32 4294967295, %s46
    %s49 = sld [smem:[#allocation0]]
    %s50 = sadd.s32 2, %s49
    %s52 = sshll.u32 7, 26
    %s53 = sxor.u32 4294967295, %s52
    %s54 = sand.u32 0, %s53
    %s55 = sshll.u32 %s50, 26
    %s56 = sor.u32 %s54, %s55
    %s57 = sshll.u32 [#allocation2], 4
    %s58 = int_to_ptr.vmem [resolvable:$true] %s57
    %61 = sst [smem:[#allocation9]] 1024
    %s62 = scalar_lea.smem [#allocation9], 1
    %63 = sst [smem:[%s62]] 1024
    %s64 = scalar_lea.smem [#allocation9], 2
    %65 = sst [smem:[%s64]] 8
    %s66 = scalar_lea.smem [#allocation9], 3
    %67 = sst [smem:[%s66]] 64
    %s68 = scalar_lea.smem [#allocation9], 4
    %69 = sst [smem:[%s68]] 128
    %s70 = scalar_lea.smem [#allocation9], 5
    %71 = sst [smem:[%s70]] 2
    %s72 = scalar_lea.smem [#allocation9], 6
    %73 = sst [smem:[%s72]] 512
    %s74 = scalar_lea.smem [#allocation9], 7
    %75 = sst [smem:[%s74]] 64
    %s76 = scalar_lea.smem [#allocation9], 8
    %77 = sst [smem:[%s76]] 4
    %79 = dma.general %s4, 16384, %s58, [#allocation5], [#allocation8], [#allocation9], %s56, 0
    %s80 = scalar_lea.sflag [#allocation5], 1
    %s82 = sshll.u32 1, 14
    %s83 = sxor.u32 4294967295, %s82
    %s85 = sadd.s32 2, %s49
    %s87 = sshll.u32 7, 26
    %s88 = sxor.u32 4294967295, %s87
    %s89 = sand.u32 0, %s88
    %s90 = sshll.u32 %s85, 26
    %s91 = sor.u32 %s89, %s90
    %s92 = sshll.u32 [#allocation3], 4
    %s93 = int_to_ptr.vmem [resolvable:$true] %s92
    %96 = sst [smem:[#allocation11]] 1024
    %s97 = scalar_lea.smem [#allocation11], 1
    %98 = sst [smem:[%s97]] 1024
    %s99 = scalar_lea.smem [#allocation11], 2
    %100 = sst [smem:[%s99]] 8
    %s101 = scalar_lea.smem [#allocation11], 3
    %102 = sst [smem:[%s101]] 64
    %s103 = scalar_lea.smem [#allocation11], 4
    %104 = sst [smem:[%s103]] 128
    %s105 = scalar_lea.smem [#allocation11], 5
    %106 = sst [smem:[%s105]] 2
    %s107 = scalar_lea.smem [#allocation11], 6
    %108 = sst [smem:[%s107]] 512
    %s109 = scalar_lea.smem [#allocation11], 7
    %110 = sst [smem:[%s109]] 64
    %s111 = scalar_lea.smem [#allocation11], 8
    %112 = sst [smem:[%s111]] 4
    %114 = dma.general %s5, 16384, %s93, %s80, [#allocation10], [#allocation11], %s91, 0
    %v115 = vld [vmem:[%s0] sm:$0xff]
    %v116 = vld [vmem:[%s0 + $0x8] sm:$0xff]
    %v117 = vld [vmem:[%s0 + $0x10] sm:$0xff]
    %v118 = vld [vmem:[%s0 + $0x18] sm:$0xff]
    %v119 = vld [vmem:[%s0 + $0x20] sm:$0xff]
    %v120 = vld [vmem:[%s0 + $0x28] sm:$0xff]
    %v121 = vld [vmem:[%s0 + $0x30] sm:$0xff]
    %v122 = vld [vmem:[%s0 + $0x38] sm:$0xff]
    %v123 = vpack.c.bf16 %v116, %v115
    %v124 = vpack.c.bf16 %v118, %v117
    %v125 = vpack.c.bf16 %v120, %v119
    %v126 = vpack.c.bf16 %v122, %v121
    %v127 = vld [vmem:[%s1] sm:$0xff]
    %v128 = vld [vmem:[%s1 + $0x8] sm:$0xff]
    %v129 = vld [vmem:[%s1 + $0x10] sm:$0xff]
    %v130 = vld [vmem:[%s1 + $0x18] sm:$0xff]
    %v131 = vld [vmem:[%s1 + $0x20] sm:$0xff]
    %v132 = vld [vmem:[%s1 + $0x28] sm:$0xff]
    %v133 = vld [vmem:[%s1 + $0x30] sm:$0xff]
    %v134 = vld [vmem:[%s1 + $0x38] sm:$0xff]
    %v135 = vld [vmem:[%s1 + $0x40] sm:$0xff]
    %v136 = vld [vmem:[%s1 + $0x48] sm:$0xff]
    %v137 = vld [vmem:[%s1 + $0x50] sm:$0xff]
    %v138 = vld [vmem:[%s1 + $0x58] sm:$0xff]
    %v139 = vld [vmem:[%s1 + $0x60] sm:$0xff]
    %v140 = vld [vmem:[%s1 + $0x68] sm:$0xff]
    %v141 = vld [vmem:[%s1 + $0x70] sm:$0xff]
    %v142 = vld [vmem:[%s1 + $0x78] sm:$0xff]
    %v143 = vld [vmem:[%s3] sm:$0xff]
    %v145 = vlaneseq
    %v146 = vshrl.u32 %v145, 7
    %v147 = vsub.s32 0, %v146
    %v148 = vrot.slane %v143, %v147
    %v149 = vlaneseq
    %v150 = vshrl.u32 %v149, 7
    %v151 = vsub.s32 1, %v150
    %v152 = vrot.slane %v143, %v151
    %v153 = vlaneseq
    %v154 = vshrl.u32 %v153, 7
    %v155 = vsub.s32 2, %v154
    %v156 = vrot.slane %v143, %v155
    %v157 = vlaneseq
    %v158 = vshrl.u32 %v157, 7
    %v159 = vsub.s32 3, %v158
    %v160 = vrot.slane %v143, %v159
    %v161 = vlaneseq
    %v162 = vshrl.u32 %v161, 7
    %v163 = vsub.s32 4, %v162
    %v164 = vrot.slane %v143, %v163
    %v165 = vlaneseq
    %v166 = vshrl.u32 %v165, 7
    %v167 = vsub.s32 5, %v166
    %v168 = vrot.slane %v143, %v167
    %v169 = vlaneseq
    %v170 = vshrl.u32 %v169, 7
    %v171 = vsub.s32 6, %v170
    %v172 = vrot.slane %v143, %v171
    %v173 = vlaneseq
    %v174 = vshrl.u32 %v173, 7
    %v175 = vsub.s32 7, %v174
    %v176 = vrot.slane %v143, %v175
    %v201 = vunpack.c.l.b16 %v127
    %v202 = vunpack.c.h.b16 %v127
    %v203 = vunpack.c.l.b16 %v128
    %v204 = vunpack.c.h.b16 %v128
    %v205 = vunpack.c.l.b16 %v129
    %v206 = vunpack.c.h.b16 %v129
    %v207 = vunpack.c.l.b16 %v130
    %v208 = vunpack.c.h.b16 %v130
    %v209 = vunpack.c.l.b16 %v131
    %v210 = vunpack.c.h.b16 %v131
    %v211 = vunpack.c.l.b16 %v132
    %v212 = vunpack.c.h.b16 %v132
    %v213 = vunpack.c.l.b16 %v133
    %v214 = vunpack.c.h.b16 %v133
    %v215 = vunpack.c.l.b16 %v134
    %v216 = vunpack.c.h.b16 %v134
    %v217 = vunpack.c.l.b16 %v135
    %v218 = vunpack.c.h.b16 %v135
    %v219 = vunpack.c.l.b16 %v136
    %v220 = vunpack.c.h.b16 %v136
    %v221 = vunpack.c.l.b16 %v137
    %v222 = vunpack.c.h.b16 %v137
    %v223 = vunpack.c.l.b16 %v138
    %v224 = vunpack.c.h.b16 %v138
    %v225 = vunpack.c.l.b16 %v139
    %v226 = vunpack.c.h.b16 %v139
    %v227 = vunpack.c.l.b16 %v140
    %v228 = vunpack.c.h.b16 %v140
    %v229 = vunpack.c.l.b16 %v141
    %v230 = vunpack.c.h.b16 %v141
    %v231 = vunpack.c.l.b16 %v142
    %v232 = vunpack.c.h.b16 %v142
    %v233 = vpack.c.b16 %v209, %v201
    %v234 = vpack.c.b16 %v210, %v202
    %v235 = vpack.c.b16 %v211, %v203
    %v236 = vpack.c.b16 %v212, %v204
    %v237 = vpack.c.b16 %v213, %v205
    %v238 = vpack.c.b16 %v214, %v206
    %v239 = vpack.c.b16 %v215, %v207
    %v240 = vpack.c.b16 %v216, %v208
    %v241 = vpack.c.b16 %v225, %v217
    %v242 = vpack.c.b16 %v226, %v218
    %v243 = vpack.c.b16 %v227, %v219
    %v244 = vpack.c.b16 %v228, %v220
    %v245 = vpack.c.b16 %v229, %v221
    %v246 = vpack.c.b16 %v230, %v222
    %v247 = vpack.c.b16 %v231, %v223
    %v248 = vpack.c.b16 %v232, %v224
    %vm265 = vcmask 261120
    %v267 = vsel %vm265, %v123, 0
    %v270 = vsel %vm265, %v124, 0
    %v273 = vsel %vm265, %v125, 0
    %v276 = vsel %vm265, %v126, 0
    %278 = vmatprep.subr.bf16.mxu0 %v234
    %279 = vmatpush1.bf16.msra.mxu0 %v233
    %280 = vmatprep.subr.bf16.mxu0 %v242
    %281 = vmatpush1.bf16.msra.mxu0 %v241
    %282 = vmatprep.subr.bf16.mxu0 0
    %283 = vmatpush1.bf16.msra.mxu0 0
    %284 = vmatprep.subr.bf16.mxu0 0
    %285 = vmatpush1.bf16.msra.mxu0 0
    %286 = vmatprep.subr.bf16.mxu0 0
    %287 = vmatpush1.bf16.msra.mxu0 0
    %288 = vmatprep.subr.bf16.mxu0 0
    %289 = vmatpush1.bf16.msra.mxu0 0
    %290 = vmatprep.subr.bf16.mxu0 0
    %291 = vmatpush1.bf16.msra.mxu0 0
    %292 = vmatprep.subr.bf16.mxu0 0
    %293 = vmatpush1.bf16.msra.mxu0 0
    %294 = vmatprep.subr.bf16.mxu0 0
    %295 = vmatpush1.bf16.msra.mxu0 0
    %296 = vmatprep.subr.bf16.mxu0 0
    %297 = vmatpush1.bf16.msra.mxu0 0
    %298 = vmatprep.subr.bf16.mxu0 0
    %299 = vmatpush1.bf16.msra.mxu0 0
    %300 = vmatprep.subr.bf16.mxu0 0
    %301 = vmatpush1.bf16.msra.mxu0 0
    %302 = vmatprep.subr.bf16.mxu0 0
    %303 = vmatpush1.bf16.msra.mxu0 0
    %304 = vmatprep.subr.bf16.mxu0 0
    %305 = vmatpush1.bf16.msra.mxu0 0
    %306 = vmatprep.subr.bf16.mxu0 0
    %307 = vmatpush1.bf16.msra.mxu0 0
    %308 = vmatprep.subr.bf16.mxu0 0
    %309 = vmatpush1.bf16.msra.mxu0 0
    %310 = vmatprep.mubr.bf16.mxu0 0
    %311 = vmatmul.mubr.bf16.gmra.mrb[0].mxu0 %v267
    %v312 = vpop.f32.mrb[0].mxu0
    %v313 = vadd.f32 %v148, %v312
    %v314 = vpop.f32.mrb[0].mxu0
    %v315 = vadd.f32 %v152, %v314
    %v316 = vpop.f32.mrb[0].mxu0
    %v317 = vadd.f32 %v148, %v316
    %v318 = vpop.f32.mrb[0].mxu0
    %v319 = vadd.f32 %v152, %v318
    %320 = vmatprep.mubr.bf16.mxu0 0
    %321 = vmatmul.mubr.bf16.gmra.mrb[0].mxu0 %v270
    %v322 = vpop.f32.mrb[0].mxu0
    %v323 = vadd.f32 %v148, %v322
    %v324 = vpop.f32.mrb[0].mxu0
    %v325 = vadd.f32 %v152, %v324
    %v326 = vpop.f32.mrb[0].mxu0
    %v327 = vadd.f32 %v148, %v326
    %v328 = vpop.f32.mrb[0].mxu0
    %v329 = vadd.f32 %v152, %v328
    %330 = vmatprep.mubr.bf16.mxu0 0
    %331 = vmatmul.mubr.bf16.gmra.mrb[0].mxu0 %v273
    %v332 = vpop.f32.mrb[0].mxu0
    %v333 = vadd.f32 %v148, %v332
    %v334 = vpop.f32.mrb[0].mxu0
    %v335 = vadd.f32 %v152, %v334
    %v336 = vpop.f32.mrb[0].mxu0
    %v337 = vadd.f32 %v148, %v336
    %v338 = vpop.f32.mrb[0].mxu0
    %v339 = vadd.f32 %v152, %v338
    %340 = vmatprep.mubr.bf16.mxu0 0
    %341 = vmatmul.mubr.bf16.gmra.mrb[0].mxu0 %v276
    %v342 = vpop.f32.mrb[0].mxu0
    %v343 = vadd.f32 %v148, %v342
    %v344 = vpop.f32.mrb[0].mxu0
    %v345 = vadd.f32 %v152, %v344
    %v346 = vpop.f32.mrb[0].mxu0
    %v347 = vadd.f32 %v148, %v346
    %v348 = vpop.f32.mrb[0].mxu0
    %v349 = vadd.f32 %v152, %v348
    %350 = vdwg.mxu0
    %351 = vmatprep.subr.bf16.mxu0 %v236
    %352 = vmatpush1.bf16.msra.mxu0 %v235
    %353 = vmatprep.subr.bf16.mxu0 %v244
    %354 = vmatpush1.bf16.msra.mxu0 %v243
    %355 = vmatprep.subr.bf16.mxu0 0
    %356 = vmatpush1.bf16.msra.mxu0 0
    %357 = vmatprep.subr.bf16.mxu0 0
    %358 = vmatpush1.bf16.msra.mxu0 0
    %359 = vmatprep.subr.bf16.mxu0 0
    %360 = vmatpush1.bf16.msra.mxu0 0
    %361 = vmatprep.subr.bf16.mxu0 0
    %362 = vmatpush1.bf16.msra.mxu0 0
    %363 = vmatprep.subr.bf16.mxu0 0
    %364 = vmatpush1.bf16.msra.mxu0 0
    %365 = vmatprep.subr.bf16.mxu0 0
    %366 = vmatpush1.bf16.msra.mxu0 0
    %367 = vmatprep.subr.bf16.mxu0 0
    %368 = vmatpush1.bf16.msra.mxu0 0
    %369 = vmatprep.subr.bf16.mxu0 0
    %370 = vmatpush1.bf16.msra.mxu0 0
    %371 = vmatprep.subr.bf16.mxu0 0
    %372 = vmatpush1.bf16.msra.mxu0 0
    %373 = vmatprep.subr.bf16.mxu0 0
    %374 = vmatpush1.bf16.msra.mxu0 0
    %375 = vmatprep.subr.bf16.mxu0 0
    %376 = vmatpush1.bf16.msra.mxu0 0
    %377 = vmatprep.subr.bf16.mxu0 0
    %378 = vmatpush1.bf16.msra.mxu0 0
    %379 = vmatprep.subr.bf16.mxu0 0
    %380 = vmatpush1.bf16.msra.mxu0 0
    %381 = vmatprep.subr.bf16.mxu0 0
    %382 = vmatpush1.bf16.msra.mxu0 0
    %383 = vmatprep.mubr.bf16.mxu0 0
    %384 = vmatmul.mubr.bf16.gmra.mrb[0].mxu0 %v267
    %v385 = vpop.f32.mrb[0].mxu0
    %v386 = vadd.f32 %v156, %v385
    %v387 = vpop.f32.mrb[0].mxu0
    %v388 = vadd.f32 %v160, %v387
    %v389 = vpop.f32.mrb[0].mxu0
    %v390 = vadd.f32 %v156, %v389
    %v391 = vpop.f32.mrb[0].mxu0
    %v392 = vadd.f32 %v160, %v391
    %393 = vmatprep.mubr.bf16.mxu0 0
    %394 = vmatmul.mubr.bf16.gmra.mrb[0].mxu0 %v270
    %v395 = vpop.f32.mrb[0].mxu0
    %v396 = vadd.f32 %v156, %v395
    %v397 = vpop.f32.mrb[0].mxu0
    %v398 = vadd.f32 %v160, %v397
    %v399 = vpop.f32.mrb[0].mxu0
    %v400 = vadd.f32 %v156, %v399
    %v401 = vpop.f32.mrb[0].mxu0
    %v402 = vadd.f32 %v160, %v401
    %403 = vmatprep.mubr.bf16.mxu0 0
    %404 = vmatmul.mubr.bf16.gmra.mrb[0].mxu0 %v273
    %v405 = vpop.f32.mrb[0].mxu0
    %v406 = vadd.f32 %v156, %v405
    %v407 = vpop.f32.mrb[0].mxu0
    %v408 = vadd.f32 %v160, %v407
    %v409 = vpop.f32.mrb[0].mxu0
    %v410 = vadd.f32 %v156, %v409
    %v411 = vpop.f32.mrb[0].mxu0
    %v412 = vadd.f32 %v160, %v411
    %413 = vmatprep.mubr.bf16.mxu0 0
    %414 = vmatmul.mubr.bf16.gmra.mrb[0].mxu0 %v276
    %v415 = vpop.f32.mrb[0].mxu0
    %v416 = vadd.f32 %v156, %v415
    %v417 = vpop.f32.mrb[0].mxu0
    %v418 = vadd.f32 %v160, %v417
    %v419 = vpop.f32.mrb[0].mxu0
    %v420 = vadd.f32 %v156, %v419
    %v421 = vpop.f32.mrb[0].mxu0
    %v422 = vadd.f32 %v160, %v421
    %423 = vdwg.mxu0
    %424 = vmatprep.subr.bf16.mxu0 %v238
    %425 = vmatpush1.bf16.msra.mxu0 %v237
    %426 = vmatprep.subr.bf16.mxu0 %v246
    %427 = vmatpush1.bf16.msra.mxu0 %v245
    %428 = vmatprep.subr.bf16.mxu0 0
    %429 = vmatpush1.bf16.msra.mxu0 0
    %430 = vmatprep.subr.bf16.mxu0 0
    %431 = vmatpush1.bf16.msra.mxu0 0
    %432 = vmatprep.subr.bf16.mxu0 0
    %433 = vmatpush1.bf16.msra.mxu0 0
    %434 = vmatprep.subr.bf16.mxu0 0
    %435 = vmatpush1.bf16.msra.mxu0 0
    %436 = vmatprep.subr.bf16.mxu0 0
    %437 = vmatpush1.bf16.msra.mxu0 0
    %438 = vmatprep.subr.bf16.mxu0 0
    %439 = vmatpush1.bf16.msra.mxu0 0
    %440 = vmatprep.subr.bf16.mxu0 0
    %441 = vmatpush1.bf16.msra.mxu0 0
    %442 = vmatprep.subr.bf16.mxu0 0
    %443 = vmatpush1.bf16.msra.mxu0 0
    %444 = vmatprep.subr.bf16.mxu0 0
    %445 = vmatpush1.bf16.msra.mxu0 0
    %446 = vmatprep.subr.bf16.mxu0 0
    %447 = vmatpush1.bf16.msra.mxu0 0
    %448 = vmatprep.subr.bf16.mxu0 0
    %449 = vmatpush1.bf16.msra.mxu0 0
    %450 = vmatprep.subr.bf16.mxu0 0
    %451 = vmatpush1.bf16.msra.mxu0 0
    %452 = vmatprep.subr.bf16.mxu0 0
    %453 = vmatpush1.bf16.msra.mxu0 0
    %454 = vmatprep.subr.bf16.mxu0 0
    %455 = vmatpush1.bf16.msra.mxu0 0
    %456 = vmatprep.mubr.bf16.mxu0 0
    %457 = vmatmul.mubr.bf16.gmra.mrb[0].mxu0 %v267
    %v458 = vpop.f32.mrb[0].mxu0
    %v459 = vadd.f32 %v164, %v458
    %v460 = vpop.f32.mrb[0].mxu0
    %v461 = vadd.f32 %v168, %v460
    %v462 = vpop.f32.mrb[0].mxu0
    %v463 = vadd.f32 %v164, %v462
    %v464 = vpop.f32.mrb[0].mxu0
    %v465 = vadd.f32 %v168, %v464
    %466 = vmatprep.mubr.bf16.mxu0 0
    %467 = vmatmul.mubr.bf16.gmra.mrb[0].mxu0 %v270
    %v468 = vpop.f32.mrb[0].mxu0
    %v469 = vadd.f32 %v164, %v468
    %v470 = vpop.f32.mrb[0].mxu0
    %v471 = vadd.f32 %v168, %v470
    %v472 = vpop.f32.mrb[0].mxu0
    %v473 = vadd.f32 %v164, %v472
    %v474 = vpop.f32.mrb[0].mxu0
    %v475 = vadd.f32 %v168, %v474
    %476 = vmatprep.mubr.bf16.mxu0 0
    %477 = vmatmul.mubr.bf16.gmra.mrb[0].mxu0 %v273
    %v478 = vpop.f32.mrb[0].mxu0
    %v479 = vadd.f32 %v164, %v478
    %v480 = vpop.f32.mrb[0].mxu0
    %v481 = vadd.f32 %v168, %v480
    %v482 = vpop.f32.mrb[0].mxu0
    %v483 = vadd.f32 %v164, %v482
    %v484 = vpop.f32.mrb[0].mxu0
    %v485 = vadd.f32 %v168, %v484
    %486 = vmatprep.mubr.bf16.mxu0 0
    %487 = vmatmul.mubr.bf16.gmra.mrb[0].mxu0 %v276
    %v488 = vpop.f32.mrb[0].mxu0
    %v489 = vadd.f32 %v164, %v488
    %v490 = vpop.f32.mrb[0].mxu0
    %v491 = vadd.f32 %v168, %v490
    %v492 = vpop.f32.mrb[0].mxu0
    %v493 = vadd.f32 %v164, %v492
    %v494 = vpop.f32.mrb[0].mxu0
    %v495 = vadd.f32 %v168, %v494
    %496 = vdwg.mxu0
    %497 = vmatprep.subr.bf16.mxu0 %v240
    %498 = vmatpush1.bf16.msra.mxu0 %v239
    %499 = vmatprep.subr.bf16.mxu0 %v248
    %500 = vmatpush1.bf16.msra.mxu0 %v247
    %501 = vmatprep.subr.bf16.mxu0 0
    %502 = vmatpush1.bf16.msra.mxu0 0
    %503 = vmatprep.subr.bf16.mxu0 0
    %504 = vmatpush1.bf16.msra.mxu0 0
    %505 = vmatprep.subr.bf16.mxu0 0
    %506 = vmatpush1.bf16.msra.mxu0 0
    %507 = vmatprep.subr.bf16.mxu0 0
    %508 = vmatpush1.bf16.msra.mxu0 0
    %509 = vmatprep.subr.bf16.mxu0 0
    %510 = vmatpush1.bf16.msra.mxu0 0
    %511 = vmatprep.subr.bf16.mxu0 0
    %512 = vmatpush1.bf16.msra.mxu0 0
    %513 = vmatprep.subr.bf16.mxu0 0
    %514 = vmatpush1.bf16.msra.mxu0 0
    %515 = vmatprep.subr.bf16.mxu0 0
    %516 = vmatpush1.bf16.msra.mxu0 0
    %517 = vmatprep.subr.bf16.mxu0 0
    %518 = vmatpush1.bf16.msra.mxu0 0
    %519 = vmatprep.subr.bf16.mxu0 0
    %520 = vmatpush1.bf16.msra.mxu0 0
    %521 = vmatprep.subr.bf16.mxu0 0
    %522 = vmatpush1.bf16.msra.mxu0 0
    %523 = vmatprep.subr.bf16.mxu0 0
    %524 = vmatpush1.bf16.msra.mxu0 0
    %525 = vmatprep.subr.bf16.mxu0 0
    %526 = vmatpush1.bf16.msra.mxu0 0
    %527 = vmatprep.subr.bf16.mxu0 0
    %528 = vmatpush1.bf16.msra.mxu0 0
    %529 = vmatprep.mubr.bf16.mxu0 0
    %530 = vmatmul.mubr.bf16.gmra.mrb[0].mxu0 %v267
    %v531 = vpop.f32.mrb[0].mxu0
    %v532 = vadd.f32 %v172, %v531
    %v533 = vpop.f32.mrb[0].mxu0
    %v534 = vadd.f32 %v176, %v533
    %v535 = vpop.f32.mrb[0].mxu0
    %v536 = vadd.f32 %v172, %v535
    %v537 = vpop.f32.mrb[0].mxu0
    %v538 = vadd.f32 %v176, %v537
    %539 = vmatprep.mubr.bf16.mxu0 0
    %540 = vmatmul.mubr.bf16.gmra.mrb[0].mxu0 %v270
    %v541 = vpop.f32.mrb[0].mxu0
    %v542 = vadd.f32 %v172, %v541
    %v543 = vpop.f32.mrb[0].mxu0
    %v544 = vadd.f32 %v176, %v543
    %v545 = vpop.f32.mrb[0].mxu0
    %v546 = vadd.f32 %v172, %v545
    %v547 = vpop.f32.mrb[0].mxu0
    %v548 = vadd.f32 %v176, %v547
    %549 = vmatprep.mubr.bf16.mxu0 0
    %550 = vmatmul.mubr.bf16.gmra.mrb[0].mxu0 %v273
    %v551 = vpop.f32.mrb[0].mxu0
    %v552 = vadd.f32 %v172, %v551
    %v553 = vpop.f32.mrb[0].mxu0
    %v554 = vadd.f32 %v176, %v553
    %v555 = vpop.f32.mrb[0].mxu0
    %v556 = vadd.f32 %v172, %v555
    %v557 = vpop.f32.mrb[0].mxu0
    %v558 = vadd.f32 %v176, %v557
    %559 = vmatprep.mubr.bf16.mxu0 0
    %560 = vmatmul.mubr.bf16.gmra.mrb[0].mxu0 %v276
    %v561 = vpop.f32.mrb[0].mxu0
    %v562 = vadd.f32 %v172, %v561
    %v563 = vpop.f32.mrb[0].mxu0
    %v564 = vadd.f32 %v176, %v563
    %v565 = vpop.f32.mrb[0].mxu0
    %v566 = vadd.f32 %v172, %v565
    %v567 = vpop.f32.mrb[0].mxu0
    %v568 = vadd.f32 %v176, %v567
    %569 = vdwg.mxu0
    %v570 = vld [vmem:[#allocation6] sm:$0xff]
    %v571 = vld [vmem:[#allocation6 + $0x8] sm:$0xff]
    %v572 = vld [vmem:[#allocation6 + $0x10] sm:$0xff]
    %v573 = vld [vmem:[#allocation6 + $0x18] sm:$0xff]
    %v574 = vld [vmem:[#allocation6 + $0x20] sm:$0xff]
    %v575 = vld [vmem:[#allocation6 + $0x28] sm:$0xff]
    %v576 = vld [vmem:[#allocation6 + $0x30] sm:$0xff]
    %v577 = vld [vmem:[#allocation6 + $0x38] sm:$0xff]
    %v578 = vld [vmem:[#allocation6 + $0x40] sm:$0xff]
    %v579 = vld [vmem:[#allocation6 + $0x48] sm:$0xff]
    %v580 = vld [vmem:[#allocation6 + $0x50] sm:$0xff]
    %v581 = vld [vmem:[#allocation6 + $0x58] sm:$0xff]
    %v582 = vld [vmem:[#allocation6 + $0x60] sm:$0xff]
    %v583 = vld [vmem:[#allocation6 + $0x68] sm:$0xff]
    %v584 = vld [vmem:[#allocation6 + $0x70] sm:$0xff]
    %v585 = vld [vmem:[#allocation6 + $0x78] sm:$0xff]
    %v586 = vld [vmem:[#allocation6 + $0x80] sm:$0xff]
    %v587 = vld [vmem:[#allocation6 + $0x88] sm:$0xff]
    %v588 = vld [vmem:[#allocation6 + $0x90] sm:$0xff]
    %v589 = vld [vmem:[#allocation6 + $0x98] sm:$0xff]
    %v590 = vld [vmem:[#allocation6 + $0xa0] sm:$0xff]
    %v591 = vld [vmem:[#allocation6 + $0xa8] sm:$0xff]
    %v592 = vld [vmem:[#allocation6 + $0xb0] sm:$0xff]
    %v593 = vld [vmem:[#allocation6 + $0xb8] sm:$0xff]
    %v594 = vld [vmem:[#allocation6 + $0xc0] sm:$0xff]
    %v595 = vld [vmem:[#allocation6 + $0xc8] sm:$0xff]
    %v596 = vld [vmem:[#allocation6 + $0xd0] sm:$0xff]
    %v597 = vld [vmem:[#allocation6 + $0xd8] sm:$0xff]
    %v598 = vld [vmem:[#allocation6 + $0xe0] sm:$0xff]
    %v599 = vld [vmem:[#allocation6 + $0xe8] sm:$0xff]
    %v600 = vld [vmem:[#allocation6 + $0xf0] sm:$0xff]
    %v601 = vld [vmem:[#allocation6 + $0xf8] sm:$0xff]
    %v602 = vld [vmem:[#allocation6 + $0x100] sm:$0xff]
    %v603 = vld [vmem:[#allocation6 + $0x108] sm:$0xff]
    %v604 = vld [vmem:[#allocation6 + $0x110] sm:$0xff]
    %v605 = vld [vmem:[#allocation6 + $0x118] sm:$0xff]
    %v606 = vld [vmem:[#allocation6 + $0x120] sm:$0xff]
    %v607 = vld [vmem:[#allocation6 + $0x128] sm:$0xff]
    %v608 = vld [vmem:[#allocation6 + $0x130] sm:$0xff]
    %v609 = vld [vmem:[#allocation6 + $0x138] sm:$0xff]
    %v610 = vld [vmem:[#allocation6 + $0x140] sm:$0xff]
    %v611 = vld [vmem:[#allocation6 + $0x148] sm:$0xff]
    %v612 = vld [vmem:[#allocation6 + $0x150] sm:$0xff]
    %v613 = vld [vmem:[#allocation6 + $0x158] sm:$0xff]
    %v614 = vld [vmem:[#allocation6 + $0x160] sm:$0xff]
    %v615 = vld [vmem:[#allocation6 + $0x168] sm:$0xff]
    %v616 = vld [vmem:[#allocation6 + $0x170] sm:$0xff]
    %v617 = vld [vmem:[#allocation6 + $0x178] sm:$0xff]
    %v618 = vld [vmem:[#allocation6 + $0x180] sm:$0xff]
    %v619 = vld [vmem:[#allocation6 + $0x188] sm:$0xff]
    %v620 = vld [vmem:[#allocation6 + $0x190] sm:$0xff]
    %v621 = vld [vmem:[#allocation6 + $0x198] sm:$0xff]
    %v622 = vld [vmem:[#allocation6 + $0x1a0] sm:$0xff]
    %v623 = vld [vmem:[#allocation6 + $0x1a8] sm:$0xff]
    %v624 = vld [vmem:[#allocation6 + $0x1b0] sm:$0xff]
    %v625 = vld [vmem:[#allocation6 + $0x1b8] sm:$0xff]
    %v626 = vld [vmem:[#allocation6 + $0x1c0] sm:$0xff]
    %v627 = vld [vmem:[#allocation6 + $0x1c8] sm:$0xff]
    %v628 = vld [vmem:[#allocation6 + $0x1d0] sm:$0xff]
    %v629 = vld [vmem:[#allocation6 + $0x1d8] sm:$0xff]
    %v630 = vld [vmem:[#allocation6 + $0x1e0] sm:$0xff]
    %v631 = vld [vmem:[#allocation6 + $0x1e8] sm:$0xff]
    %v632 = vld [vmem:[#allocation6 + $0x1f0] sm:$0xff]
    %v633 = vld [vmem:[#allocation6 + $0x1f8] sm:$0xff]
    %v634 = vld [vmem:[#allocation6 + $0x200] sm:$0xff]
    %v635 = vld [vmem:[#allocation6 + $0x208] sm:$0xff]
    %v636 = vld [vmem:[#allocation6 + $0x210] sm:$0xff]
    %v637 = vld [vmem:[#allocation6 + $0x218] sm:$0xff]
    %v638 = vld [vmem:[#allocation6 + $0x220] sm:$0xff]
    %v639 = vld [vmem:[#allocation6 + $0x228] sm:$0xff]
    %v640 = vld [vmem:[#allocation6 + $0x230] sm:$0xff]
    %v641 = vld [vmem:[#allocation6 + $0x238] sm:$0xff]
    %v642 = vld [vmem:[#allocation6 + $0x240] sm:$0xff]
    %v643 = vld [vmem:[#allocation6 + $0x248] sm:$0xff]
    %v644 = vld [vmem:[#allocation6 + $0x250] sm:$0xff]
    %v645 = vld [vmem:[#allocation6 + $0x258] sm:$0xff]
    %v646 = vld [vmem:[#allocation6 + $0x260] sm:$0xff]
    %v647 = vld [vmem:[#allocation6 + $0x268] sm:$0xff]
    %v648 = vld [vmem:[#allocation6 + $0x270] sm:$0xff]
    %v649 = vld [vmem:[#allocation6 + $0x278] sm:$0xff]
    %v650 = vld [vmem:[#allocation6 + $0x280] sm:$0xff]
    %v651 = vld [vmem:[#allocation6 + $0x288] sm:$0xff]
    %v652 = vld [vmem:[#allocation6 + $0x290] sm:$0xff]
    %v653 = vld [vmem:[#allocation6 + $0x298] sm:$0xff]
    %v654 = vld [vmem:[#allocation6 + $0x2a0] sm:$0xff]
    %v655 = vld [vmem:[#allocation6 + $0x2a8] sm:$0xff]
    %v656 = vld [vmem:[#allocation6 + $0x2b0] sm:$0xff]
    %v657 = vld [vmem:[#allocation6 + $0x2b8] sm:$0xff]
    %v658 = vld [vmem:[#allocation6 + $0x2c0] sm:$0xff]
    %v659 = vld [vmem:[#allocation6 + $0x2c8] sm:$0xff]
    %v660 = vld [vmem:[#allocation6 + $0x2d0] sm:$0xff]
    %v661 = vld [vmem:[#allocation6 + $0x2d8] sm:$0xff]
    %v662 = vld [vmem:[#allocation6 + $0x2e0] sm:$0xff]
    %v663 = vld [vmem:[#allocation6 + $0x2e8] sm:$0xff]
    %v664 = vld [vmem:[#allocation6 + $0x2f0] sm:$0xff]
    %v665 = vld [vmem:[#allocation6 + $0x2f8] sm:$0xff]
    %v666 = vld [vmem:[#allocation6 + $0x300] sm:$0xff]
    %v667 = vld [vmem:[#allocation6 + $0x308] sm:$0xff]
    %v668 = vld [vmem:[#allocation6 + $0x310] sm:$0xff]
    %v669 = vld [vmem:[#allocation6 + $0x318] sm:$0xff]
    %v670 = vld [vmem:[#allocation6 + $0x320] sm:$0xff]
    %v671 = vld [vmem:[#allocation6 + $0x328] sm:$0xff]
    %v672 = vld [vmem:[#allocation6 + $0x330] sm:$0xff]
    %v673 = vld [vmem:[#allocation6 + $0x338] sm:$0xff]
    %v674 = vld [vmem:[#allocation6 + $0x340] sm:$0xff]
    %v675 = vld [vmem:[#allocation6 + $0x348] sm:$0xff]
    %v676 = vld [vmem:[#allocation6 + $0x350] sm:$0xff]
    %v677 = vld [vmem:[#allocation6 + $0x358] sm:$0xff]
    %v678 = vld [vmem:[#allocation6 + $0x360] sm:$0xff]
    %v679 = vld [vmem:[#allocation6 + $0x368] sm:$0xff]
    %v680 = vld [vmem:[#allocation6 + $0x370] sm:$0xff]
    %v681 = vld [vmem:[#allocation6 + $0x378] sm:$0xff]
    %v682 = vld [vmem:[#allocation6 + $0x380] sm:$0xff]
    %v683 = vld [vmem:[#allocation6 + $0x388] sm:$0xff]
    %v684 = vld [vmem:[#allocation6 + $0x390] sm:$0xff]
    %v685 = vld [vmem:[#allocation6 + $0x398] sm:$0xff]
    %v686 = vld [vmem:[#allocation6 + $0x3a0] sm:$0xff]
    %v687 = vld [vmem:[#allocation6 + $0x3a8] sm:$0xff]
    %v688 = vld [vmem:[#allocation6 + $0x3b0] sm:$0xff]
    %v689 = vld [vmem:[#allocation6 + $0x3b8] sm:$0xff]
    %v690 = vld [vmem:[#allocation6 + $0x3c0] sm:$0xff]
    %v691 = vld [vmem:[#allocation6 + $0x3c8] sm:$0xff]
    %v692 = vld [vmem:[#allocation6 + $0x3d0] sm:$0xff]
    %v693 = vld [vmem:[#allocation6 + $0x3d8] sm:$0xff]
    %v694 = vld [vmem:[#allocation6 + $0x3e0] sm:$0xff]
    %v695 = vld [vmem:[#allocation6 + $0x3e8] sm:$0xff]
    %v696 = vld [vmem:[#allocation6 + $0x3f0] sm:$0xff]
    %v697 = vld [vmem:[#allocation6 + $0x3f8] sm:$0xff]
    %v698 = vpack.c.bf16 0.0, 0.0
    %v827 = vunpack.c.l.b16 %v570
    %v828 = vunpack.c.h.b16 %v570
    %v829 = vunpack.c.l.b16 %v571
    %v830 = vunpack.c.h.b16 %v571
    %v831 = vunpack.c.l.b16 %v572
    %v832 = vunpack.c.h.b16 %v572
    %v833 = vunpack.c.l.b16 %v573
    %v834 = vunpack.c.h.b16 %v573
    %v835 = vunpack.c.l.b16 %v574
    %v836 = vunpack.c.h.b16 %v574
    %v837 = vunpack.c.l.b16 %v575
    %v838 = vunpack.c.h.b16 %v575
    %v839 = vunpack.c.l.b16 %v576
    %v840 = vunpack.c.h.b16 %v576
    %v841 = vunpack.c.l.b16 %v577
    %v842 = vunpack.c.h.b16 %v577
    %v843 = vunpack.c.l.b16 %v578
    %v844 = vunpack.c.h.b16 %v578
    %v845 = vunpack.c.l.b16 %v579
    %v846 = vunpack.c.h.b16 %v579
    %v847 = vunpack.c.l.b16 %v580
    %v848 = vunpack.c.h.b16 %v580
    %v849 = vunpack.c.l.b16 %v581
    %v850 = vunpack.c.h.b16 %v581
    %v851 = vunpack.c.l.b16 %v582
    %v852 = vunpack.c.h.b16 %v582
    %v853 = vunpack.c.l.b16 %v583
    %v854 = vunpack.c.h.b16 %v583
    %v855 = vunpack.c.l.b16 %v584
    %v856 = vunpack.c.h.b16 %v584
    %v857 = vunpack.c.l.b16 %v585
    %v858 = vunpack.c.h.b16 %v585
    %v859 = vunpack.c.l.b16 %v586
    %v860 = vunpack.c.h.b16 %v586
    %v861 = vunpack.c.l.b16 %v587
    %v862 = vunpack.c.h.b16 %v587
    %v863 = vunpack.c.l.b16 %v588
    %v864 = vunpack.c.h.b16 %v588
    %v865 = vunpack.c.l.b16 %v589
    %v866 = vunpack.c.h.b16 %v589
    %v867 = vunpack.c.l.b16 %v590
    %v868 = vunpack.c.h.b16 %v590
    %v869 = vunpack.c.l.b16 %v591
    %v870 = vunpack.c.h.b16 %v591
    %v871 = vunpack.c.l.b16 %v592
    %v872 = vunpack.c.h.b16 %v592
    %v873 = vunpack.c.l.b16 %v593
    %v874 = vunpack.c.h.b16 %v593
    %v875 = vunpack.c.l.b16 %v594
    %v876 = vunpack.c.h.b16 %v594
    %v877 = vunpack.c.l.b16 %v595
    %v878 = vunpack.c.h.b16 %v595
    %v879 = vunpack.c.l.b16 %v596
    %v880 = vunpack.c.h.b16 %v596
    %v881 = vunpack.c.l.b16 %v597
    %v882 = vunpack.c.h.b16 %v597
    %v883 = vunpack.c.l.b16 %v598
    %v884 = vunpack.c.h.b16 %v598
    %v885 = vunpack.c.l.b16 %v599
    %v886 = vunpack.c.h.b16 %v599
    %v887 = vunpack.c.l.b16 %v600
    %v888 = vunpack.c.h.b16 %v600
    %v889 = vunpack.c.l.b16 %v601
    %v890 = vunpack.c.h.b16 %v601
    %v891 = vunpack.c.l.b16 %v602
    %v892 = vunpack.c.h.b16 %v602
    %v893 = vunpack.c.l.b16 %v603
    %v894 = vunpack.c.h.b16 %v603
    %v895 = vunpack.c.l.b16 %v604
    %v896 = vunpack.c.h.b16 %v604
    %v897 = vunpack.c.l.b16 %v605
    %v898 = vunpack.c.h.b16 %v605
    %v899 = vunpack.c.l.b16 %v606
    %v900 = vunpack.c.h.b16 %v606
    %v901 = vunpack.c.l.b16 %v607
    %v902 = vunpack.c.h.b16 %v607
    %v903 = vunpack.c.l.b16 %v608
    %v904 = vunpack.c.h.b16 %v608
    %v905 = vunpack.c.l.b16 %v609
    %v906 = vunpack.c.h.b16 %v609
    %v907 = vunpack.c.l.b16 %v610
    %v908 = vunpack.c.h.b16 %v610
    %v909 = vunpack.c.l.b16 %v611
    %v910 = vunpack.c.h.b16 %v611
    %v911 = vunpack.c.l.b16 %v612
    %v912 = vunpack.c.h.b16 %v612
    %v913 = vunpack.c.l.b16 %v613
    %v914 = vunpack.c.h.b16 %v613
    %v915 = vunpack.c.l.b16 %v614
    %v916 = vunpack.c.h.b16 %v614
    %v917 = vunpack.c.l.b16 %v615
    %v918 = vunpack.c.h.b16 %v615
    %v919 = vunpack.c.l.b16 %v616
    %v920 = vunpack.c.h.b16 %v616
    %v921 = vunpack.c.l.b16 %v617
    %v922 = vunpack.c.h.b16 %v617
    %v923 = vunpack.c.l.b16 %v618
    %v924 = vunpack.c.h.b16 %v618
    %v925 = vunpack.c.l.b16 %v619
    %v926 = vunpack.c.h.b16 %v619
    %v927 = vunpack.c.l.b16 %v620
    %v928 = vunpack.c.h.b16 %v620
    %v929 = vunpack.c.l.b16 %v621
    %v930 = vunpack.c.h.b16 %v621
    %v931 = vunpack.c.l.b16 %v622
    %v932 = vunpack.c.h.b16 %v622
    %v933 = vunpack.c.l.b16 %v623
    %v934 = vunpack.c.h.b16 %v623
    %v935 = vunpack.c.l.b16 %v624
    %v936 = vunpack.c.h.b16 %v624
    %v937 = vunpack.c.l.b16 %v625
    %v938 = vunpack.c.h.b16 %v625
    %v939 = vunpack.c.l.b16 %v626
    %v940 = vunpack.c.h.b16 %v626
    %v941 = vunpack.c.l.b16 %v627
    %v942 = vunpack.c.h.b16 %v627
    %v943 = vunpack.c.l.b16 %v628
    %v944 = vunpack.c.h.b16 %v628
    %v945 = vunpack.c.l.b16 %v629
    %v946 = vunpack.c.h.b16 %v629
    %v947 = vunpack.c.l.b16 %v630
    %v948 = vunpack.c.h.b16 %v630
    %v949 = vunpack.c.l.b16 %v631
    %v950 = vunpack.c.h.b16 %v631
    %v951 = vunpack.c.l.b16 %v632
    %v952 = vunpack.c.h.b16 %v632
    %v953 = vunpack.c.l.b16 %v633
    %v954 = vunpack.c.h.b16 %v633
    %v955 = vunpack.c.l.b16 %v634
    %v956 = vunpack.c.h.b16 %v634
    %v957 = vunpack.c.l.b16 %v635
    %v958 = vunpack.c.h.b16 %v635
    %v959 = vunpack.c.l.b16 %v636
    %v960 = vunpack.c.h.b16 %v636
    %v961 = vunpack.c.l.b16 %v637
    %v962 = vunpack.c.h.b16 %v637
    %v963 = vunpack.c.l.b16 %v638
    %v964 = vunpack.c.h.b16 %v638
    %v965 = vunpack.c.l.b16 %v639
    %v966 = vunpack.c.h.b16 %v639
    %v967 = vunpack.c.l.b16 %v640
    %v968 = vunpack.c.h.b16 %v640
    %v969 = vunpack.c.l.b16 %v641
    %v970 = vunpack.c.h.b16 %v641
    %v971 = vunpack.c.l.b16 %v642
    %v972 = vunpack.c.h.b16 %v642
    %v973 = vunpack.c.l.b16 %v643
    %v974 = vunpack.c.h.b16 %v643
    %v975 = vunpack.c.l.b16 %v644
    %v976 = vunpack.c.h.b16 %v644
    %v977 = vunpack.c.l.b16 %v645
    %v978 = vunpack.c.h.b16 %v645
    %v979 = vunpack.c.l.b16 %v646
    %v980 = vunpack.c.h.b16 %v646
    %v981 = vunpack.c.l.b16 %v647
    %v982 = vunpack.c.h.b16 %v647
    %v983 = vunpack.c.l.b16 %v648
    %v984 = vunpack.c.h.b16 %v648
    %v985 = vunpack.c.l.b16 %v649
    %v986 = vunpack.c.h.b16 %v649
    %v987 = vunpack.c.l.b16 %v650
    %v988 = vunpack.c.h.b16 %v650
    %v989 = vunpack.c.l.b16 %v651
    %v990 = vunpack.c.h.b16 %v651
    %v991 = vunpack.c.l.b16 %v652
    %v992 = vunpack.c.h.b16 %v652
    %v993 = vunpack.c.l.b16 %v653
    %v994 = vunpack.c.h.b16 %v653
    %v995 = vunpack.c.l.b16 %v654
    %v996 = vunpack.c.h.b16 %v654
    %v997 = vunpack.c.l.b16 %v655
    %v998 = vunpack.c.h.b16 %v655
    %v999 = vunpack.c.l.b16 %v656
    %v1000 = vunpack.c.h.b16 %v656
    %v1001 = vunpack.c.l.b16 %v657
    %v1002 = vunpack.c.h.b16 %v657
    %v1003 = vunpack.c.l.b16 %v658
    %v1004 = vunpack.c.h.b16 %v658
    %v1005 = vunpack.c.l.b16 %v659
    %v1006 = vunpack.c.h.b16 %v659
    %v1007 = vunpack.c.l.b16 %v660
    %v1008 = vunpack.c.h.b16 %v660
    %v1009 = vunpack.c.l.b16 %v661
    %v1010 = vunpack.c.h.b16 %v661
    %v1011 = vunpack.c.l.b16 %v662
    %v1012 = vunpack.c.h.b16 %v662
    %v1013 = vunpack.c.l.b16 %v663
    %v1014 = vunpack.c.h.b16 %v663
    %v1015 = vunpack.c.l.b16 %v664
    %v1016 = vunpack.c.h.b16 %v664
    %v1017 = vunpack.c.l.b16 %v665
    %v1018 = vunpack.c.h.b16 %v665
    %v1019 = vunpack.c.l.b16 %v666
    %v1020 = vunpack.c.h.b16 %v666
    %v1021 = vunpack.c.l.b16 %v667
    %v1022 = vunpack.c.h.b16 %v667
    %v1023 = vunpack.c.l.b16 %v668
    %v1024 = vunpack.c.h.b16 %v668
    %v1025 = vunpack.c.l.b16 %v669
    %v1026 = vunpack.c.h.b16 %v669
    %v1027 = vunpack.c.l.b16 %v670
    %v1028 = vunpack.c.h.b16 %v670
    %v1029 = vunpack.c.l.b16 %v671
    %v1030 = vunpack.c.h.b16 %v671
    %v1031 = vunpack.c.l.b16 %v672
    %v1032 = vunpack.c.h.b16 %v672
    %v1033 = vunpack.c.l.b16 %v673
    %v1034 = vunpack.c.h.b16 %v673
    %v1035 = vunpack.c.l.b16 %v674
    %v1036 = vunpack.c.h.b16 %v674
    %v1037 = vunpack.c.l.b16 %v675
    %v1038 = vunpack.c.h.b16 %v675
    %v1039 = vunpack.c.l.b16 %v676
    %v1040 = vunpack.c.h.b16 %v676
    %v1041 = vunpack.c.l.b16 %v677
    %v1042 = vunpack.c.h.b16 %v677
    %v1043 = vunpack.c.l.b16 %v678
    %v1044 = vunpack.c.h.b16 %v678
    %v1045 = vunpack.c.l.b16 %v679
    %v1046 = vunpack.c.h.b16 %v679
    %v1047 = vunpack.c.l.b16 %v680
    %v1048 = vunpack.c.h.b16 %v680
    %v1049 = vunpack.c.l.b16 %v681
    %v1050 = vunpack.c.h.b16 %v681
    %v1051 = vunpack.c.l.b16 %v682
    %v1052 = vunpack.c.h.b16 %v682
    %v1053 = vunpack.c.l.b16 %v683
    %v1054 = vunpack.c.h.b16 %v683
    %v1055 = vunpack.c.l.b16 %v684
    %v1056 = vunpack.c.h.b16 %v684
    %v1057 = vunpack.c.l.b16 %v685
    %v1058 = vunpack.c.h.b16 %v685
    %v1059 = vunpack.c.l.b16 %v686
    %v1060 = vunpack.c.h.b16 %v686
    %v1061 = vunpack.c.l.b16 %v687
    %v1062 = vunpack.c.h.b16 %v687
    %v1063 = vunpack.c.l.b16 %v688
    %v1064 = vunpack.c.h.b16 %v688
    %v1065 = vunpack.c.l.b16 %v689
    %v1066 = vunpack.c.h.b16 %v689
    %v1067 = vunpack.c.l.b16 %v690
    %v1068 = vunpack.c.h.b16 %v690
    %v1069 = vunpack.c.l.b16 %v691
    %v1070 = vunpack.c.h.b16 %v691
    %v1071 = vunpack.c.l.b16 %v692
    %v1072 = vunpack.c.h.b16 %v692
    %v1073 = vunpack.c.l.b16 %v693
    %v1074 = vunpack.c.h.b16 %v693
    %v1075 = vunpack.c.l.b16 %v694
    %v1076 = vunpack.c.h.b16 %v694
    %v1077 = vunpack.c.l.b16 %v695
    %v1078 = vunpack.c.h.b16 %v695
    %v1079 = vunpack.c.l.b16 %v696
    %v1080 = vunpack.c.h.b16 %v696
    %v1081 = vunpack.c.l.b16 %v697
    %v1082 = vunpack.c.h.b16 %v697
    %v1083 = vpack.c.b16 %v835, %v827
    %v1084 = vpack.c.b16 %v836, %v828
    %v1085 = vpack.c.b16 %v837, %v829
    %v1086 = vpack.c.b16 %v838, %v830
    %v1087 = vpack.c.b16 %v839, %v831
    %v1088 = vpack.c.b16 %v840, %v832
    %v1089 = vpack.c.b16 %v841, %v833
    %v1090 = vpack.c.b16 %v842, %v834
    %v1091 = vpack.c.b16 %v851, %v843
    %v1092 = vpack.c.b16 %v852, %v844
    %v1093 = vpack.c.b16 %v853, %v845
    %v1094 = vpack.c.b16 %v854, %v846
    %v1095 = vpack.c.b16 %v855, %v847
    %v1096 = vpack.c.b16 %v856, %v848
    %v1097 = vpack.c.b16 %v857, %v849
    %v1098 = vpack.c.b16 %v858, %v850
    %v1099 = vpack.c.b16 %v867, %v859
    %v1100 = vpack.c.b16 %v868, %v860
    %v1101 = vpack.c.b16 %v869, %v861
    %v1102 = vpack.c.b16 %v870, %v862
    %v1103 = vpack.c.b16 %v871, %v863
    %v1104 = vpack.c.b16 %v872, %v864
    %v1105 = vpack.c.b16 %v873, %v865
    %v1106 = vpack.c.b16 %v874, %v866
    %v1107 = vpack.c.b16 %v883, %v875
    %v1108 = vpack.c.b16 %v884, %v876
    %v1109 = vpack.c.b16 %v885, %v877
    %v1110 = vpack.c.b16 %v886, %v878
    %v1111 = vpack.c.b16 %v887, %v879
    %v1112 = vpack.c.b16 %v888, %v880
    %v1113 = vpack.c.b16 %v889, %v881
    %v1114 = vpack.c.b16 %v890, %v882
    %v1115 = vpack.c.b16 %v899, %v891
    %v1116 = vpack.c.b16 %v900, %v892
    %v1117 = vpack.c.b16 %v901, %v893
    %v1118 = vpack.c.b16 %v902, %v894
    %v1119 = vpack.c.b16 %v903, %v895
    %v1120 = vpack.c.b16 %v904, %v896
    %v1121 = vpack.c.b16 %v905, %v897
    %v1122 = vpack.c.b16 %v906, %v898
    %v1123 = vpack.c.b16 %v915, %v907
    %v1124 = vpack.c.b16 %v916, %v908
    %v1125 = vpack.c.b16 %v917, %v909
    %v1126 = vpack.c.b16 %v918, %v910
    %v1127 = vpack.c.b16 %v919, %v911
    %v1128 = vpack.c.b16 %v920, %v912
    %v1129 = vpack.c.b16 %v921, %v913
    %v1130 = vpack.c.b16 %v922, %v914
    %v1131 = vpack.c.b16 %v931, %v923
    %v1132 = vpack.c.b16 %v932, %v924
    %v1133 = vpack.c.b16 %v933, %v925
    %v1134 = vpack.c.b16 %v934, %v926
    %v1135 = vpack.c.b16 %v935, %v927
    %v1136 = vpack.c.b16 %v936, %v928
    %v1137 = vpack.c.b16 %v937, %v929
    %v1138 = vpack.c.b16 %v938, %v930
    %v1139 = vpack.c.b16 %v947, %v939
    %v1140 = vpack.c.b16 %v948, %v940
    %v1141 = vpack.c.b16 %v949, %v941
    %v1142 = vpack.c.b16 %v950, %v942
    %v1143 = vpack.c.b16 %v951, %v943
    %v1144 = vpack.c.b16 %v952, %v944
    %v1145 = vpack.c.b16 %v953, %v945
    %v1146 = vpack.c.b16 %v954, %v946
    %v1147 = vpack.c.b16 %v963, %v955
    %v1148 = vpack.c.b16 %v964, %v956
    %v1149 = vpack.c.b16 %v965, %v957
    %v1150 = vpack.c.b16 %v966, %v958
    %v1151 = vpack.c.b16 %v967, %v959
    %v1152 = vpack.c.b16 %v968, %v960
    %v1153 = vpack.c.b16 %v969, %v961
    %v1154 = vpack.c.b16 %v970, %v962
    %v1155 = vpack.c.b16 %v979, %v971
    %v1156 = vpack.c.b16 %v980, %v972
    %v1157 = vpack.c.b16 %v981, %v973
    %v1158 = vpack.c.b16 %v982, %v974
    %v1159 = vpack.c.b16 %v983, %v975
    %v1160 = vpack.c.b16 %v984, %v976
    %v1161 = vpack.c.b16 %v985, %v977
    %v1162 = vpack.c.b16 %v986, %v978
    %v1163 = vpack.c.b16 %v995, %v987
    %v1164 = vpack.c.b16 %v996, %v988
    %v1165 = vpack.c.b16 %v997, %v989
    %v1166 = vpack.c.b16 %v998, %v990
    %v1167 = vpack.c.b16 %v999, %v991
    %v1168 = vpack.c.b16 %v1000, %v992
    %v1169 = vpack.c.b16 %v1001, %v993
    %v1170 = vpack.c.b16 %v1002, %v994
    %v1171 = vpack.c.b16 %v1011, %v1003
    %v1172 = vpack.c.b16 %v1012, %v1004
    %v1173 = vpack.c.b16 %v1013, %v1005
    %v1174 = vpack.c.b16 %v1014, %v1006
    %v1175 = vpack.c.b16 %v1015, %v1007
    %v1176 = vpack.c.b16 %v1016, %v1008
    %v1177 = vpack.c.b16 %v1017, %v1009
    %v1178 = vpack.c.b16 %v1018, %v1010
    %v1179 = vpack.c.b16 %v1027, %v1019
    %v1180 = vpack.c.b16 %v1028, %v1020
    %v1181 = vpack.c.b16 %v1029, %v1021
    %v1182 = vpack.c.b16 %v1030, %v1022
    %v1183 = vpack.c.b16 %v1031, %v1023
    %v1184 = vpack.c.b16 %v1032, %v1024
    %v1185 = vpack.c.b16 %v1033, %v1025
    %v1186 = vpack.c.b16 %v1034, %v1026
    %v1187 = vpack.c.b16 %v1043, %v1035
    %v1188 = vpack.c.b16 %v1044, %v1036
    %v1189 = vpack.c.b16 %v1045, %v1037
    %v1190 = vpack.c.b16 %v1046, %v1038
    %v1191 = vpack.c.b16 %v1047, %v1039
    %v1192 = vpack.c.b16 %v1048, %v1040
    %v1193 = vpack.c.b16 %v1049, %v1041
    %v1194 = vpack.c.b16 %v1050, %v1042
    %v1195 = vpack.c.b16 %v1059, %v1051
    %v1196 = vpack.c.b16 %v1060, %v1052
    %v1197 = vpack.c.b16 %v1061, %v1053
    %v1198 = vpack.c.b16 %v1062, %v1054
    %v1199 = vpack.c.b16 %v1063, %v1055
    %v1200 = vpack.c.b16 %v1064, %v1056
    %v1201 = vpack.c.b16 %v1065, %v1057
    %v1202 = vpack.c.b16 %v1066, %v1058
    %v1203 = vpack.c.b16 %v1075, %v1067
    %v1204 = vpack.c.b16 %v1076, %v1068
    %v1205 = vpack.c.b16 %v1077, %v1069
    %v1206 = vpack.c.b16 %v1078, %v1070
    %v1207 = vpack.c.b16 %v1079, %v1071
    %v1208 = vpack.c.b16 %v1080, %v1072
    %v1209 = vpack.c.b16 %v1081, %v1073
    %v1210 = vpack.c.b16 %v1082, %v1074
    %1339 = vmatprep.subr.bf16.mxu0 %v1084
    %1340 = vmatpush1.bf16.msra.mxu0 %v1083
    %1341 = vmatprep.subr.bf16.mxu0 %v1092
    %1342 = vmatpush1.bf16.msra.mxu0 %v1091
    %1343 = vmatprep.subr.bf16.mxu0 %v1100
    %1344 = vmatpush1.bf16.msra.mxu0 %v1099
    %1345 = vmatprep.subr.bf16.mxu0 %v1108
    %1346 = vmatpush1.bf16.msra.mxu0 %v1107
    %1347 = vmatprep.subr.bf16.mxu0 %v1116
    %1348 = vmatpush1.bf16.msra.mxu0 %v1115
    %1349 = vmatprep.subr.bf16.mxu0 %v1124
    %1350 = vmatpush1.bf16.msra.mxu0 %v1123
    %1351 = vmatprep.subr.bf16.mxu0 %v1132
    %1352 = vmatpush1.bf16.msra.mxu0 %v1131
    %1353 = vmatprep.subr.bf16.mxu0 %v1140
    %1354 = vmatpush1.bf16.msra.mxu0 %v1139
    %1355 = vmatprep.subr.bf16.mxu0 %v1148
    %1356 = vmatpush1.bf16.msra.mxu0 %v1147
    %1357 = vmatprep.subr.bf16.mxu0 %v1156
    %1358 = vmatpush1.bf16.msra.mxu0 %v1155
    %1359 = vmatprep.subr.bf16.mxu0 %v1164
    %1360 = vmatpush1.bf16.msra.mxu0 %v1163
    %1361 = vmatprep.subr.bf16.mxu0 %v1172
    %1362 = vmatpush1.bf16.msra.mxu0 %v1171
    %1363 = vmatprep.subr.bf16.mxu0 %v1180
    %1364 = vmatpush1.bf16.msra.mxu0 %v1179
    %1365 = vmatprep.subr.bf16.mxu0 %v1188
    %1366 = vmatpush1.bf16.msra.mxu0 %v1187
    %1367 = vmatprep.subr.bf16.mxu0 %v1196
    %1368 = vmatpush1.bf16.msra.mxu0 %v1195
    %1369 = vmatprep.subr.bf16.mxu0 %v1204
    %1370 = vmatpush1.bf16.msra.mxu0 %v1203
    %1371 = vmatprep.mubr.bf16.mxu0 %v698
    %1372 = vmatmul.mubr.bf16.gmra.mrb[0].mxu0 %v698
    %v1373 = vpop.f32.mrb[0].mxu0
    %v1374 = vadd.f32 0.0, %v1373
    %v1375 = vpop.f32.mrb[0].mxu0
    %v1376 = vadd.f32 0.0, %v1375
    %v1377 = vpop.f32.mrb[0].mxu0
    %v1378 = vpop.f32.mrb[0].mxu0
    %1379 = vdwg.mxu0
    %1380 = vmatprep.subr.bf16.mxu0 %v1086
    %1381 = vmatpush1.bf16.msra.mxu0 %v1085
    %1382 = vmatprep.subr.bf16.mxu0 %v1094
    %1383 = vmatpush1.bf16.msra.mxu0 %v1093
    %1384 = vmatprep.subr.bf16.mxu0 %v1102
    %1385 = vmatpush1.bf16.msra.mxu0 %v1101
    %1386 = vmatprep.subr.bf16.mxu0 %v1110
    %1387 = vmatpush1.bf16.msra.mxu0 %v1109
    %1388 = vmatprep.subr.bf16.mxu0 %v1118
    %1389 = vmatpush1.bf16.msra.mxu0 %v1117
    %1390 = vmatprep.subr.bf16.mxu0 %v1126
    %1391 = vmatpush1.bf16.msra.mxu0 %v1125
    %1392 = vmatprep.subr.bf16.mxu0 %v1134
    %1393 = vmatpush1.bf16.msra.mxu0 %v1133
    %1394 = vmatprep.subr.bf16.mxu0 %v1142
    %1395 = vmatpush1.bf16.msra.mxu0 %v1141
    %1396 = vmatprep.subr.bf16.mxu0 %v1150
    %1397 = vmatpush1.bf16.msra.mxu0 %v1149
    %1398 = vmatprep.subr.bf16.mxu0 %v1158
    %1399 = vmatpush1.bf16.msra.mxu0 %v1157
    %1400 = vmatprep.subr.bf16.mxu0 %v1166
    %1401 = vmatpush1.bf16.msra.mxu0 %v1165
    %1402 = vmatprep.subr.bf16.mxu0 %v1174
    %1403 = vmatpush1.bf16.msra.mxu0 %v1173
    %1404 = vmatprep.subr.bf16.mxu0 %v1182
    %1405 = vmatpush1.bf16.msra.mxu0 %v1181
    %1406 = vmatprep.subr.bf16.mxu0 %v1190
    %1407 = vmatpush1.bf16.msra.mxu0 %v1189
    %1408 = vmatprep.subr.bf16.mxu0 %v1198
    %1409 = vmatpush1.bf16.msra.mxu0 %v1197
    %1410 = vmatprep.subr.bf16.mxu0 %v1206
    %1411 = vmatpush1.bf16.msra.mxu0 %v1205
    %1412 = vmatprep.mubr.bf16.mxu0 %v698
    %1413 = vmatmul.mubr.bf16.gmra.mrb[0].mxu0 %v698
    %v1414 = vpop.f32.mrb[0].mxu0
    %v1415 = vadd.f32 0.0, %v1414
    %v1416 = vpop.f32.mrb[0].mxu0
    %v1417 = vadd.f32 0.0, %v1416
    %v1418 = vpop.f32.mrb[0].mxu0
    %v1419 = vpop.f32.mrb[0].mxu0
    %1420 = vdwg.mxu0
    %1421 = vmatprep.subr.bf16.mxu0 %v1088
    %1422 = vmatpush1.bf16.msra.mxu0 %v1087
    %1423 = vmatprep.subr.bf16.mxu0 %v1096
    %1424 = vmatpush1.bf16.msra.mxu0 %v1095
    %1425 = vmatprep.subr.bf16.mxu0 %v1104
    %1426 = vmatpush1.bf16.msra.mxu0 %v1103
    %1427 = vmatprep.subr.bf16.mxu0 %v1112
    %1428 = vmatpush1.bf16.msra.mxu0 %v1111
    %1429 = vmatprep.subr.bf16.mxu0 %v1120
    %1430 = vmatpush1.bf16.msra.mxu0 %v1119
    %1431 = vmatprep.subr.bf16.mxu0 %v1128
    %1432 = vmatpush1.bf16.msra.mxu0 %v1127
    %1433 = vmatprep.subr.bf16.mxu0 %v1136
    %1434 = vmatpush1.bf16.msra.mxu0 %v1135
    %1435 = vmatprep.subr.bf16.mxu0 %v1144
    %1436 = vmatpush1.bf16.msra.mxu0 %v1143
    %1437 = vmatprep.subr.bf16.mxu0 %v1152
    %1438 = vmatpush1.bf16.msra.mxu0 %v1151
    %1439 = vmatprep.subr.bf16.mxu0 %v1160
    %1440 = vmatpush1.bf16.msra.mxu0 %v1159
    %1441 = vmatprep.subr.bf16.mxu0 %v1168
    %1442 = vmatpush1.bf16.msra.mxu0 %v1167
    %1443 = vmatprep.subr.bf16.mxu0 %v1176
    %1444 = vmatpush1.bf16.msra.mxu0 %v1175
    %1445 = vmatprep.subr.bf16.mxu0 %v1184
    %1446 = vmatpush1.bf16.msra.mxu0 %v1183
    %1447 = vmatprep.subr.bf16.mxu0 %v1192
    %1448 = vmatpush1.bf16.msra.mxu0 %v1191
    %1449 = vmatprep.subr.bf16.mxu0 %v1200
    %1450 = vmatpush1.bf16.msra.mxu0 %v1199
    %1451 = vmatprep.subr.bf16.mxu0 %v1208
    %1452 = vmatpush1.bf16.msra.mxu0 %v1207
    %1453 = vmatprep.mubr.bf16.mxu0 %v698
    %1454 = vmatmul.mubr.bf16.gmra.mrb[0].mxu0 %v698
    %v1455 = vpop.f32.mrb[0].mxu0
    %v1456 = vadd.f32 0.0, %v1455
    %v1457 = vpop.f32.mrb[0].mxu0
    %v1458 = vadd.f32 0.0, %v1457
    %v1459 = vpop.f32.mrb[0].mxu0
    %v1460 = vpop.f32.mrb[0].mxu0
    %1461 = vdwg.mxu0
    %1462 = vmatprep.subr.bf16.mxu0 %v1090
    %1463 = vmatpush1.bf16.msra.mxu0 %v1089
    %1464 = vmatprep.subr.bf16.mxu0 %v1098
    %1465 = vmatpush1.bf16.msra.mxu0 %v1097
    %1466 = vmatprep.subr.bf16.mxu0 %v1106
    %1467 = vmatpush1.bf16.msra.mxu0 %v1105
    %1468 = vmatprep.subr.bf16.mxu0 %v1114
    %1469 = vmatpush1.bf16.msra.mxu0 %v1113
    %1470 = vmatprep.subr.bf16.mxu0 %v1122
    %1471 = vmatpush1.bf16.msra.mxu0 %v1121
    %1472 = vmatprep.subr.bf16.mxu0 %v1130
    %1473 = vmatpush1.bf16.msra.mxu0 %v1129
    %1474 = vmatprep.subr.bf16.mxu0 %v1138
    %1475 = vmatpush1.bf16.msra.mxu0 %v1137
    %1476 = vmatprep.subr.bf16.mxu0 %v1146
    %1477 = vmatpush1.bf16.msra.mxu0 %v1145
    %1478 = vmatprep.subr.bf16.mxu0 %v1154
    %1479 = vmatpush1.bf16.msra.mxu0 %v1153
    %1480 = vmatprep.subr.bf16.mxu0 %v1162
    %1481 = vmatpush1.bf16.msra.mxu0 %v1161
    %1482 = vmatprep.subr.bf16.mxu0 %v1170
    %1483 = vmatpush1.bf16.msra.mxu0 %v1169
    %1484 = vmatprep.subr.bf16.mxu0 %v1178
    %1485 = vmatpush1.bf16.msra.mxu0 %v1177
    %1486 = vmatprep.subr.bf16.mxu0 %v1186
    %1487 = vmatpush1.bf16.msra.mxu0 %v1185
    %1488 = vmatprep.subr.bf16.mxu0 %v1194
    %1489 = vmatpush1.bf16.msra.mxu0 %v1193
    %1490 = vmatprep.subr.bf16.mxu0 %v1202
    %1491 = vmatpush1.bf16.msra.mxu0 %v1201
    %1492 = vmatprep.subr.bf16.mxu0 %v1210
    %1493 = vmatpush1.bf16.msra.mxu0 %v1209
    %1494 = vmatprep.mubr.bf16.mxu0 %v698
    %1495 = vmatmul.mubr.bf16.gmra.mrb[0].mxu0 %v698
    %v1496 = vpop.f32.mrb[0].mxu0
    %v1497 = vadd.f32 0.0, %v1496
    %v1498 = vpop.f32.mrb[0].mxu0
    %v1499 = vadd.f32 0.0, %v1498
    %v1500 = vpop.f32.mrb[0].mxu0
    %v1501 = vpop.f32.mrb[0].mxu0
    %1502 = vdwg.mxu0
    %v1503 = vadd.f32 %v313, %v1374
    %v1504 = vadd.f32 %v315, %v1376
    %v1505 = vadd.f32 %v386, %v1415
    %v1506 = vadd.f32 %v388, %v1417
    %v1507 = vmul.f32 %v1503, 0.5
    %v1508 = vmul.f32 %v1504, 0.5
    %v1509 = vmul.f32 %v1505, 0.5
    %v1510 = vtanh.pop %v1507
    %v1511 = vtanh.pop %v1508
    %v1512 = vtanh.pop %v1509
    %v1513 = vmul.f32 %v1510, 0.5
    %v1514 = vmul.f32 %v1511, 0.5
    %v1515 = vmul.f32 %v1512, 0.5
    %v1516 = vadd.f32 %v1513, 0.5
    %v1517 = vadd.f32 %v1514, 0.5
    %v1518 = vadd.f32 %v1515, 0.5
    %v1519 = vtanh.pop %v1506
    %v1520 = vmul.f32 %v1517, 0.0
    %v1521 = vmul.f32 %v1516, %v1519
    %v1522 = vadd.f32 %v1520, %v1521
    %v1523 = vtanh.pop %v1522
    %v1524 = vmul.f32 %v1518, %v1523
    %v1525 = vadd.f32 %v493, %v1456
    %v1526 = vadd.f32 %v495, %v1458
    %v1527 = vadd.f32 %v566, %v1497
    %v1528 = vadd.f32 %v568, %v1499
    %v1529 = vmul.f32 %v1525, 0.5
    %v1530 = vmul.f32 %v1526, 0.5
    %v1531 = vmul.f32 %v1527, 0.5
    %v1532 = vtanh.pop %v1529
    %v1533 = vtanh.pop %v1530
    %v1534 = vtanh.pop %v1531
    %v1535 = vmul.f32 %v1532, 0.5
    %v1536 = vmul.f32 %v1533, 0.5
    %v1537 = vmul.f32 %v1534, 0.5
    %v1538 = vadd.f32 %v1535, 0.5
    %v1539 = vadd.f32 %v1536, 0.5
    %v1540 = vadd.f32 %v1537, 0.5
    %v1541 = vtanh.pop %v1528
    %v1542 = vmul.f32 %v1539, 0.0
    %v1543 = vmul.f32 %v1538, %v1541
    %v1544 = vadd.f32 %v1542, %v1543
    %v1545 = vtanh.pop %v1544
    %v1546 = vmul.f32 %v1540, %v1545
    %1547 = vst [vmem:[#allocation4] sm:$0xff] %v1524
    %1548 = vst [vmem:[#allocation4 + $0x78] sm:$0xff] %v1546
    %v1549 = vpack.c.bf16 %v1524, %v1524
    %v1550 = vpack.c.bf16 %v1546, %v1546
    %1551 = vmatprep.subr.bf16.mxu0 %v1084
    %1552 = vmatpush1.bf16.msra.mxu0 %v1083
    %1553 = vmatprep.subr.bf16.mxu0 %v1092
    %1554 = vmatpush1.bf16.msra.mxu0 %v1091
    %1555 = vmatprep.subr.bf16.mxu0 %v1100
    %1556 = vmatpush1.bf16.msra.mxu0 %v1099
    %1557 = vmatprep.subr.bf16.mxu0 %v1108
    %1558 = vmatpush1.bf16.msra.mxu0 %v1107
    %1559 = vmatprep.subr.bf16.mxu0 %v1116
    %1560 = vmatpush1.bf16.msra.mxu0 %v1115
    %1561 = vmatprep.subr.bf16.mxu0 %v1124
    %1562 = vmatpush1.bf16.msra.mxu0 %v1123
    %1563 = vmatprep.subr.bf16.mxu0 %v1132
    %1564 = vmatpush1.bf16.msra.mxu0 %v1131
    %1565 = vmatprep.subr.bf16.mxu0 %v1140
    %1566 = vmatpush1.bf16.msra.mxu0 %v1139
    %1567 = vmatprep.subr.bf16.mxu0 %v1148
    %1568 = vmatpush1.bf16.msra.mxu0 %v1147
    %1569 = vmatprep.subr.bf16.mxu0 %v1156
    %1570 = vmatpush1.bf16.msra.mxu0 %v1155
    %1571 = vmatprep.subr.bf16.mxu0 %v1164
    %1572 = vmatpush1.bf16.msra.mxu0 %v1163
    %1573 = vmatprep.subr.bf16.mxu0 %v1172
    %1574 = vmatpush1.bf16.msra.mxu0 %v1171
    %1575 = vmatprep.subr.bf16.mxu0 %v1180
    %1576 = vmatpush1.bf16.msra.mxu0 %v1179
    %1577 = vmatprep.subr.bf16.mxu0 %v1188
    %1578 = vmatpush1.bf16.msra.mxu0 %v1187
    %1579 = vmatprep.subr.bf16.mxu0 %v1196
    %1580 = vmatpush1.bf16.msra.mxu0 %v1195
    %1581 = vmatprep.subr.bf16.mxu0 %v1204
    %1582 = vmatpush1.bf16.msra.mxu0 %v1203
    %1583 = vmatprep.mubr.bf16.mxu0 %v1550
    %1584 = vmatmul.mubr.bf16.gmra.mrb[0].mxu0 %v1549
    %v1585 = vpop.f32.mrb[0].mxu0
    %v1586 = vadd.f32 0.0, %v1585
    %v1587 = vpop.f32.mrb[0].mxu0
    %v1588 = vadd.f32 0.0, %v1587
    %v1589 = vpop.f32.mrb[0].mxu0
    %v1590 = vpop.f32.mrb[0].mxu0
    %1591 = vdwg.mxu0
    %1592 = vmatprep.subr.bf16.mxu0 %v1086
    %1593 = vmatpush1.bf16.msra.mxu0 %v1085
    %1594 = vmatprep.subr.bf16.mxu0 %v1094
    %1595 = vmatpush1.bf16.msra.mxu0 %v1093
    %1596 = vmatprep.subr.bf16.mxu0 %v1102
    %1597 = vmatpush1.bf16.msra.mxu0 %v1101
    %1598 = vmatprep.subr.bf16.mxu0 %v1110
    %1599 = vmatpush1.bf16.msra.mxu0 %v1109
    %1600 = vmatprep.subr.bf16.mxu0 %v1118
    %1601 = vmatpush1.bf16.msra.mxu0 %v1117
    %1602 = vmatprep.subr.bf16.mxu0 %v1126
    %1603 = vmatpush1.bf16.msra.mxu0 %v1125
    %1604 = vmatprep.subr.bf16.mxu0 %v1134
    %1605 = vmatpush1.bf16.msra.mxu0 %v1133
    %1606 = vmatprep.subr.bf16.mxu0 %v1142
    %1607 = vmatpush1.bf16.msra.mxu0 %v1141
    %1608 = vmatprep.subr.bf16.mxu0 %v1150
    %1609 = vmatpush1.bf16.msra.mxu0 %v1149
    %1610 = vmatprep.subr.bf16.mxu0 %v1158
    %1611 = vmatpush1.bf16.msra.mxu0 %v1157
    %1612 = vmatprep.subr.bf16.mxu0 %v1166
    %1613 = vmatpush1.bf16.msra.mxu0 %v1165
    %1614 = vmatprep.subr.bf16.mxu0 %v1174
    %1615 = vmatpush1.bf16.msra.mxu0 %v1173
    %1616 = vmatprep.subr.bf16.mxu0 %v1182
    %1617 = vmatpush1.bf16.msra.mxu0 %v1181
    %1618 = vmatprep.subr.bf16.mxu0 %v1190
    %1619 = vmatpush1.bf16.msra.mxu0 %v1189
    %1620 = vmatprep.subr.bf16.mxu0 %v1198
    %1621 = vmatpush1.bf16.msra.mxu0 %v1197
    %1622 = vmatprep.subr.bf16.mxu0 %v1206
    %1623 = vmatpush1.bf16.msra.mxu0 %v1205
    %1624 = vmatprep.mubr.bf16.mxu0 %v1550
    %1625 = vmatmul.mubr.bf16.gmra.mrb[0].mxu0 %v1549
    %v1626 = vpop.f32.mrb[0].mxu0
    %v1627 = vadd.f32 0.0, %v1626
    %v1628 = vpop.f32.mrb[0].mxu0
    %v1629 = vadd.f32 0.0, %v1628
    %v1630 = vpop.f32.mrb[0].mxu0
    %v1631 = vpop.f32.mrb[0].mxu0
    %1632 = vdwg.mxu0
    %1633 = vmatprep.subr.bf16.mxu0 %v1088
    %1634 = vmatpush1.bf16.msra.mxu0 %v1087
    %1635 = vmatprep.subr.bf16.mxu0 %v1096
    %1636 = vmatpush1.bf16.msra.mxu0 %v1095
    %1637 = vmatprep.subr.bf16.mxu0 %v1104
    %1638 = vmatpush1.bf16.msra.mxu0 %v1103
    %1639 = vmatprep.subr.bf16.mxu0 %v1112
    %1640 = vmatpush1.bf16.msra.mxu0 %v1111
    %1641 = vmatprep.subr.bf16.mxu0 %v1120
    %1642 = vmatpush1.bf16.msra.mxu0 %v1119
    %1643 = vmatprep.subr.bf16.mxu0 %v1128
    %1644 = vmatpush1.bf16.msra.mxu0 %v1127
    %1645 = vmatprep.subr.bf16.mxu0 %v1136
    %1646 = vmatpush1.bf16.msra.mxu0 %v1135
    %1647 = vmatprep.subr.bf16.mxu0 %v1144
    %1648 = vmatpush1.bf16.msra.mxu0 %v1143
    %1649 = vmatprep.subr.bf16.mxu0 %v1152
    %1650 = vmatpush1.bf16.msra.mxu0 %v1151
    %1651 = vmatprep.subr.bf16.mxu0 %v1160
    %1652 = vmatpush1.bf16.msra.mxu0 %v1159
    %1653 = vmatprep.subr.bf16.mxu0 %v1168
    %1654 = vmatpush1.bf16.msra.mxu0 %v1167
    %1655 = vmatprep.subr.bf16.mxu0 %v1176
    %1656 = vmatpush1.bf16.msra.mxu0 %v1175
    %1657 = vmatprep.subr.bf16.mxu0 %v1184
    %1658 = vmatpush1.bf16.msra.mxu0 %v1183
    %1659 = vmatprep.subr.bf16.mxu0 %v1192
    %1660 = vmatpush1.bf16.msra.mxu0 %v1191
    %1661 = vmatprep.subr.bf16.mxu0 %v1200
    %1662 = vmatpush1.bf16.msra.mxu0 %v1199
    %1663 = vmatprep.subr.bf16.mxu0 %v1208
    %1664 = vmatpush1.bf16.msra.mxu0 %v1207
    %1665 = vmatprep.mubr.bf16.mxu0 %v1550
    %1666 = vmatmul.mubr.bf16.gmra.mrb[0].mxu0 %v1549
    %v1667 = vpop.f32.mrb[0].mxu0
    %v1668 = vadd.f32 0.0, %v1667
    %v1669 = vpop.f32.mrb[0].mxu0
    %v1670 = vadd.f32 0.0, %v1669
    %v1671 = vpop.f32.mrb[0].mxu0
    %v1672 = vpop.f32.mrb[0].mxu0
    %1673 = vdwg.mxu0
    %1674 = vmatprep.subr.bf16.mxu0 %v1090
    %1675 = vmatpush1.bf16.msra.mxu0 %v1089
    %1676 = vmatprep.subr.bf16.mxu0 %v1098
    %1677 = vmatpush1.bf16.msra.mxu0 %v1097
    %1678 = vmatprep.subr.bf16.mxu0 %v1106
    %1679 = vmatpush1.bf16.msra.mxu0 %v1105
    %1680 = vmatprep.subr.bf16.mxu0 %v1114
    %1681 = vmatpush1.bf16.msra.mxu0 %v1113
    %1682 = vmatprep.subr.bf16.mxu0 %v1122
    %1683 = vmatpush1.bf16.msra.mxu0 %v1121
    %1684 = vmatprep.subr.bf16.mxu0 %v1130
    %1685 = vmatpush1.bf16.msra.mxu0 %v1129
    %1686 = vmatprep.subr.bf16.mxu0 %v1138
    %1687 = vmatpush1.bf16.msra.mxu0 %v1137
    %1688 = vmatprep.subr.bf16.mxu0 %v1146
    %1689 = vmatpush1.bf16.msra.mxu0 %v1145
    %1690 = vmatprep.subr.bf16.mxu0 %v1154
    %1691 = vmatpush1.bf16.msra.mxu0 %v1153
    %1692 = vmatprep.subr.bf16.mxu0 %v1162
    %1693 = vmatpush1.bf16.msra.mxu0 %v1161
    %1694 = vmatprep.subr.bf16.mxu0 %v1170
    %1695 = vmatpush1.bf16.msra.mxu0 %v1169
    %1696 = vmatprep.subr.bf16.mxu0 %v1178
    %1697 = vmatpush1.bf16.msra.mxu0 %v1177
    %1698 = vmatprep.subr.bf16.mxu0 %v1186
    %1699 = vmatpush1.bf16.msra.mxu0 %v1185
    %1700 = vmatprep.subr.bf16.mxu0 %v1194
    %1701 = vmatpush1.bf16.msra.mxu0 %v1193
    %1702 = vmatprep.subr.bf16.mxu0 %v1202
    %1703 = vmatpush1.bf16.msra.mxu0 %v1201
    %1704 = vmatprep.subr.bf16.mxu0 %v1210
    %1705 = vmatpush1.bf16.msra.mxu0 %v1209
    %1706 = vmatprep.mubr.bf16.mxu0 %v1550
    %1707 = vmatmul.mubr.bf16.gmra.mrb[0].mxu0 %v1549
    %v1708 = vpop.f32.mrb[0].mxu0
    %v1709 = vadd.f32 0.0, %v1708
    %v1710 = vpop.f32.mrb[0].mxu0
    %v1711 = vadd.f32 0.0, %v1710
    %v1712 = vpop.f32.mrb[0].mxu0
    %v1713 = vpop.f32.mrb[0].mxu0
    %1714 = vdwg.mxu0
    %v1715 = vadd.f32 %v317, %v1586
    %v1716 = vadd.f32 %v319, %v1588
    %v1717 = vadd.f32 %v390, %v1627
    %v1718 = vadd.f32 %v392, %v1629
    %v1719 = vmul.f32 %v1715, 0.5
    %v1720 = vmul.f32 %v1716, 0.5
    %v1721 = vmul.f32 %v1717, 0.5
    %v1722 = vtanh.pop %v1719
    %v1723 = vtanh.pop %v1720
    %v1724 = vtanh.pop %v1721
    %v1725 = vmul.f32 %v1722, 0.5
    %v1726 = vmul.f32 %v1723, 0.5
    %v1727 = vmul.f32 %v1724, 0.5
    %v1728 = vadd.f32 %v1725, 0.5
    %v1729 = vadd.f32 %v1726, 0.5
    %v1730 = vadd.f32 %v1727, 0.5
    %v1731 = vtanh.pop %v1718
    %v1732 = vmul.f32 %v1729, %v1522
    %v1733 = vmul.f32 %v1728, %v1731
    %v1734 = vadd.f32 %v1732, %v1733
    %v1735 = vtanh.pop %v1734
    %v1736 = vmul.f32 %v1730, %v1735
    %v1737 = vadd.f32 %v489, %v1668
    %v1738 = vadd.f32 %v491, %v1670
    %v1739 = vadd.f32 %v562, %v1709
    %v1740 = vadd.f32 %v564, %v1711
    %v1741 = vmul.f32 %v1737, 0.5
    %v1742 = vmul.f32 %v1738, 0.5
    %v1743 = vmul.f32 %v1739, 0.5
    %v1744 = vtanh.pop %v1741
    %v1745 = vtanh.pop %v1742
    %v1746 = vtanh.pop %v1743
    %v1747 = vmul.f32 %v1744, 0.5
    %v1748 = vmul.f32 %v1745, 0.5
    %v1749 = vmul.f32 %v1746, 0.5
    %v1750 = vadd.f32 %v1747, 0.5
    %v1751 = vadd.f32 %v1748, 0.5
    %v1752 = vadd.f32 %v1749, 0.5
    %v1753 = vtanh.pop %v1740
    %v1754 = vmul.f32 %v1751, %v1544
    %v1755 = vmul.f32 %v1750, %v1753
    %v1756 = vadd.f32 %v1754, %v1755
    %v1757 = vtanh.pop %v1756
    %v1758 = vmul.f32 %v1752, %v1757
    %1759 = vst [vmem:[#allocation4 + $0x10] sm:$0xff] %v1736
    %1760 = vst [vmem:[#allocation4 + $0x68] sm:$0xff] %v1758
    %v1761 = vpack.c.bf16 %v1736, %v1736
    %v1762 = vpack.c.bf16 %v1758, %v1758
    %1763 = vmatprep.subr.bf16.mxu0 %v1084
    %1764 = vmatpush1.bf16.msra.mxu0 %v1083
    %1765 = vmatprep.subr.bf16.mxu0 %v1092
    %1766 = vmatpush1.bf16.msra.mxu0 %v1091
    %1767 = vmatprep.subr.bf16.mxu0 %v1100
    %1768 = vmatpush1.bf16.msra.mxu0 %v1099
    %1769 = vmatprep.subr.bf16.mxu0 %v1108
    %1770 = vmatpush1.bf16.msra.mxu0 %v1107
    %1771 = vmatprep.subr.bf16.mxu0 %v1116
    %1772 = vmatpush1.bf16.msra.mxu0 %v1115
    %1773 = vmatprep.subr.bf16.mxu0 %v1124
    %1774 = vmatpush1.bf16.msra.mxu0 %v1123
    %1775 = vmatprep.subr.bf16.mxu0 %v1132
    %1776 = vmatpush1.bf16.msra.mxu0 %v1131
    %1777 = vmatprep.subr.bf16.mxu0 %v1140
    %1778 = vmatpush1.bf16.msra.mxu0 %v1139
    %1779 = vmatprep.subr.bf16.mxu0 %v1148
    %1780 = vmatpush1.bf16.msra.mxu0 %v1147
    %1781 = vmatprep.subr.bf16.mxu0 %v1156
    %1782 = vmatpush1.bf16.msra.mxu0 %v1155
    %1783 = vmatprep.subr.bf16.mxu0 %v1164
    %1784 = vmatpush1.bf16.msra.mxu0 %v1163
    %1785 = vmatprep.subr.bf16.mxu0 %v1172
    %1786 = vmatpush1.bf16.msra.mxu0 %v1171
    %1787 = vmatprep.subr.bf16.mxu0 %v1180
    %1788 = vmatpush1.bf16.msra.mxu0 %v1179
    %1789 = vmatprep.subr.bf16.mxu0 %v1188
    %1790 = vmatpush1.bf16.msra.mxu0 %v1187
    %1791 = vmatprep.subr.bf16.mxu0 %v1196
    %1792 = vmatpush1.bf16.msra.mxu0 %v1195
    %1793 = vmatprep.subr.bf16.mxu0 %v1204
    %1794 = vmatpush1.bf16.msra.mxu0 %v1203
    %1795 = vmatprep.mubr.bf16.mxu0 %v1762
    %1796 = vmatmul.mubr.bf16.gmra.mrb[0].mxu0 %v1761
    %v1797 = vpop.f32.mrb[0].mxu0
    %v1798 = vadd.f32 0.0, %v1797
    %v1799 = vpop.f32.mrb[0].mxu0
    %v1800 = vadd.f32 0.0, %v1799
    %v1801 = vpop.f32.mrb[0].mxu0
    %v1802 = vpop.f32.mrb[0].mxu0
    %1803 = vdwg.mxu0
    %1804 = vmatprep.subr.bf16.mxu0 %v1086
    %1805 = vmatpush1.bf16.msra.mxu0 %v1085
    %1806 = vmatprep.subr.bf16.mxu0 %v1094
    %1807 = vmatpush1.bf16.msra.mxu0 %v1093
    %1808 = vmatprep.subr.bf16.mxu0 %v1102
    %1809 = vmatpush1.bf16.msra.mxu0 %v1101
    %1810 = vmatprep.subr.bf16.mxu0 %v1110
    %1811 = vmatpush1.bf16.msra.mxu0 %v1109
    %1812 = vmatprep.subr.bf16.mxu0 %v1118
    %1813 = vmatpush1.bf16.msra.mxu0 %v1117
    %1814 = vmatprep.subr.bf16.mxu0 %v1126
    %1815 = vmatpush1.bf16.msra.mxu0 %v1125
    %1816 = vmatprep.subr.bf16.mxu0 %v1134
    %1817 = vmatpush1.bf16.msra.mxu0 %v1133
    %1818 = vmatprep.subr.bf16.mxu0 %v1142
    %1819 = vmatpush1.bf16.msra.mxu0 %v1141
    %1820 = vmatprep.subr.bf16.mxu0 %v1150
    %1821 = vmatpush1.bf16.msra.mxu0 %v1149
    %1822 = vmatprep.subr.bf16.mxu0 %v1158
    %1823 = vmatpush1.bf16.msra.mxu0 %v1157
    %1824 = vmatprep.subr.bf16.mxu0 %v1166
    %1825 = vmatpush1.bf16.msra.mxu0 %v1165
    %1826 = vmatprep.subr.bf16.mxu0 %v1174
    %1827 = vmatpush1.bf16.msra.mxu0 %v1173
    %1828 = vmatprep.subr.bf16.mxu0 %v1182
    %1829 = vmatpush1.bf16.msra.mxu0 %v1181
    %1830 = vmatprep.subr.bf16.mxu0 %v1190
    %1831 = vmatpush1.bf16.msra.mxu0 %v1189
    %1832 = vmatprep.subr.bf16.mxu0 %v1198
    %1833 = vmatpush1.bf16.msra.mxu0 %v1197
    %1834 = vmatprep.subr.bf16.mxu0 %v1206
    %1835 = vmatpush1.bf16.msra.mxu0 %v1205
    %1836 = vmatprep.mubr.bf16.mxu0 %v1762
    %1837 = vmatmul.mubr.bf16.gmra.mrb[0].mxu0 %v1761
    %v1838 = vpop.f32.mrb[0].mxu0
    %v1839 = vadd.f32 0.0, %v1838
    %v1840 = vpop.f32.mrb[0].mxu0
    %v1841 = vadd.f32 0.0, %v1840
    %v1842 = vpop.f32.mrb[0].mxu0
    %v1843 = vpop.f32.mrb[0].mxu0
    %1844 = vdwg.mxu0
    %1845 = vmatprep.subr.bf16.mxu0 %v1088
    %1846 = vmatpush1.bf16.msra.mxu0 %v1087
    %1847 = vmatprep.subr.bf16.mxu0 %v1096
    %1848 = vmatpush1.bf16.msra.mxu0 %v1095
    %1849 = vmatprep.subr.bf16.mxu0 %v1104
    %1850 = vmatpush1.bf16.msra.mxu0 %v1103
    %1851 = vmatprep.subr.bf16.mxu0 %v1112
    %1852 = vmatpush1.bf16.msra.mxu0 %v1111
    %1853 = vmatprep.subr.bf16.mxu0 %v1120
    %1854 = vmatpush1.bf16.msra.mxu0 %v1119
    %1855 = vmatprep.subr.bf16.mxu0 %v1128
    %1856 = vmatpush1.bf16.msra.mxu0 %v1127
    %1857 = vmatprep.subr.bf16.mxu0 %v1136
    %1858 = vmatpush1.bf16.msra.mxu0 %v1135
    %1859 = vmatprep.subr.bf16.mxu0 %v1144
    %1860 = vmatpush1.bf16.msra.mxu0 %v1143
    %1861 = vmatprep.subr.bf16.mxu0 %v1152
    %1862 = vmatpush1.bf16.msra.mxu0 %v1151
    %1863 = vmatprep.subr.bf16.mxu0 %v1160
    %1864 = vmatpush1.bf16.msra.mxu0 %v1159
    %1865 = vmatprep.subr.bf16.mxu0 %v1168
    %1866 = vmatpush1.bf16.msra.mxu0 %v1167
    %1867 = vmatprep.subr.bf16.mxu0 %v1176
    %1868 = vmatpush1.bf16.msra.mxu0 %v1175
    %1869 = vmatprep.subr.bf16.mxu0 %v1184
    %1870 = vmatpush1.bf16.msra.mxu0 %v1183
    %1871 = vmatprep.subr.bf16.mxu0 %v1192
    %1872 = vmatpush1.bf16.msra.mxu0 %v1191
    %1873 = vmatprep.subr.bf16.mxu0 %v1200
    %1874 = vmatpush1.bf16.msra.mxu0 %v1199
    %1875 = vmatprep.subr.bf16.mxu0 %v1208
    %1876 = vmatpush1.bf16.msra.mxu0 %v1207
    %1877 = vmatprep.mubr.bf16.mxu0 %v1762
    %1878 = vmatmul.mubr.bf16.gmra.mrb[0].mxu0 %v1761
    %v1879 = vpop.f32.mrb[0].mxu0
    %v1880 = vadd.f32 0.0, %v1879
    %v1881 = vpop.f32.mrb[0].mxu0
    %v1882 = vadd.f32 0.0, %v1881
    %v1883 = vpop.f32.mrb[0].mxu0
    %v1884 = vpop.f32.mrb[0].mxu0
    %1885 = vdwg.mxu0
    %1886 = vmatprep.subr.bf16.mxu0 %v1090
    %1887 = vmatpush1.bf16.msra.mxu0 %v1089
    %1888 = vmatprep.subr.bf16.mxu0 %v1098
    %1889 = vmatpush1.bf16.msra.mxu0 %v1097
    %1890 = vmatprep.subr.bf16.mxu0 %v1106
    %1891 = vmatpush1.bf16.msra.mxu0 %v1105
    %1892 = vmatprep.subr.bf16.mxu0 %v1114
    %1893 = vmatpush1.bf16.msra.mxu0 %v1113
    %1894 = vmatprep.subr.bf16.mxu0 %v1122
    %1895 = vmatpush1.bf16.msra.mxu0 %v1121
    %1896 = vmatprep.subr.bf16.mxu0 %v1130
    %1897 = vmatpush1.bf16.msra.mxu0 %v1129
    %1898 = vmatprep.subr.bf16.mxu0 %v1138
    %1899 = vmatpush1.bf16.msra.mxu0 %v1137
    %1900 = vmatprep.subr.bf16.mxu0 %v1146
    %1901 = vmatpush1.bf16.msra.mxu0 %v1145
    %1902 = vmatprep.subr.bf16.mxu0 %v1154
    %1903 = vmatpush1.bf16.msra.mxu0 %v1153
    %1904 = vmatprep.subr.bf16.mxu0 %v1162
    %1905 = vmatpush1.bf16.msra.mxu0 %v1161
    %1906 = vmatprep.subr.bf16.mxu0 %v1170
    %1907 = vmatpush1.bf16.msra.mxu0 %v1169
    %1908 = vmatprep.subr.bf16.mxu0 %v1178
    %1909 = vmatpush1.bf16.msra.mxu0 %v1177
    %1910 = vmatprep.subr.bf16.mxu0 %v1186
    %1911 = vmatpush1.bf16.msra.mxu0 %v1185
    %1912 = vmatprep.subr.bf16.mxu0 %v1194
    %1913 = vmatpush1.bf16.msra.mxu0 %v1193
    %1914 = vmatprep.subr.bf16.mxu0 %v1202
    %1915 = vmatpush1.bf16.msra.mxu0 %v1201
    %1916 = vmatprep.subr.bf16.mxu0 %v1210
    %1917 = vmatpush1.bf16.msra.mxu0 %v1209
    %1918 = vmatprep.mubr.bf16.mxu0 %v1762
    %1919 = vmatmul.mubr.bf16.gmra.mrb[0].mxu0 %v1761
    %v1920 = vpop.f32.mrb[0].mxu0
    %v1921 = vadd.f32 0.0, %v1920
    %v1922 = vpop.f32.mrb[0].mxu0
    %v1923 = vadd.f32 0.0, %v1922
    %v1924 = vpop.f32.mrb[0].mxu0
    %v1925 = vpop.f32.mrb[0].mxu0
    %1926 = vdwg.mxu0
    %v1927 = vadd.f32 %v323, %v1798
    %v1928 = vadd.f32 %v325, %v1800
    %v1929 = vadd.f32 %v396, %v1839
    %v1930 = vadd.f32 %v398, %v1841
    %v1931 = vmul.f32 %v1927, 0.5
    %v1932 = vmul.f32 %v1928, 0.5
    %v1933 = vmul.f32 %v1929, 0.5
    %v1934 = vtanh.pop %v1931
    %v1935 = vtanh.pop %v1932
    %v1936 = vtanh.pop %v1933
    %v1937 = vmul.f32 %v1934, 0.5
    %v1938 = vmul.f32 %v1935, 0.5
    %v1939 = vmul.f32 %v1936, 0.5
    %v1940 = vadd.f32 %v1937, 0.5
    %v1941 = vadd.f32 %v1938, 0.5
    %v1942 = vadd.f32 %v1939, 0.5
    %v1943 = vtanh.pop %v1930
    %v1944 = vmul.f32 %v1941, %v1734
    %v1945 = vmul.f32 %v1940, %v1943
    %v1946 = vadd.f32 %v1944, %v1945
    %v1947 = vtanh.pop %v1946
    %v1948 = vmul.f32 %v1942, %v1947
    %v1949 = vadd.f32 %v483, %v1880
    %v1950 = vadd.f32 %v485, %v1882
    %v1951 = vadd.f32 %v556, %v1921
    %v1952 = vadd.f32 %v558, %v1923
    %v1953 = vmul.f32 %v1949, 0.5
    %v1954 = vmul.f32 %v1950, 0.5
    %v1955 = vmul.f32 %v1951, 0.5
    %v1956 = vtanh.pop %v1953
    %v1957 = vtanh.pop %v1954
    %v1958 = vtanh.pop %v1955
    %v1959 = vmul.f32 %v1956, 0.5
    %v1960 = vmul.f32 %v1957, 0.5
    %v1961 = vmul.f32 %v1958, 0.5
    %v1962 = vadd.f32 %v1959, 0.5
    %v1963 = vadd.f32 %v1960, 0.5
    %v1964 = vadd.f32 %v1961, 0.5
    %v1965 = vtanh.pop %v1952
    %v1966 = vmul.f32 %v1963, %v1756
    %v1967 = vmul.f32 %v1962, %v1965
    %v1968 = vadd.f32 %v1966, %v1967
    %v1969 = vtanh.pop %v1968
    %v1970 = vmul.f32 %v1964, %v1969
    %1971 = vst [vmem:[#allocation4 + $0x20] sm:$0xff] %v1948
    %1972 = vst [vmem:[#allocation4 + $0x58] sm:$0xff] %v1970
    %v1973 = vpack.c.bf16 %v1948, %v1948
    %v1974 = vpack.c.bf16 %v1970, %v1970
    %1975 = vmatprep.subr.bf16.mxu0 %v1084
    %1976 = vmatpush1.bf16.msra.mxu0 %v1083
    %1977 = vmatprep.subr.bf16.mxu0 %v1092
    %1978 = vmatpush1.bf16.msra.mxu0 %v1091
    %1979 = vmatprep.subr.bf16.mxu0 %v1100
    %1980 = vmatpush1.bf16.msra.mxu0 %v1099
    %1981 = vmatprep.subr.bf16.mxu0 %v1108
    %1982 = vmatpush1.bf16.msra.mxu0 %v1107
    %1983 = vmatprep.subr.bf16.mxu0 %v1116
    %1984 = vmatpush1.bf16.msra.mxu0 %v1115
    %1985 = vmatprep.subr.bf16.mxu0 %v1124
    %1986 = vmatpush1.bf16.msra.mxu0 %v1123
    %1987 = vmatprep.subr.bf16.mxu0 %v1132
    %1988 = vmatpush1.bf16.msra.mxu0 %v1131
    %1989 = vmatprep.subr.bf16.mxu0 %v1140
    %1990 = vmatpush1.bf16.msra.mxu0 %v1139
    %1991 = vmatprep.subr.bf16.mxu0 %v1148
    %1992 = vmatpush1.bf16.msra.mxu0 %v1147
    %1993 = vmatprep.subr.bf16.mxu0 %v1156
    %1994 = vmatpush1.bf16.msra.mxu0 %v1155
    %1995 = vmatprep.subr.bf16.mxu0 %v1164
    %1996 = vmatpush1.bf16.msra.mxu0 %v1163
    %1997 = vmatprep.subr.bf16.mxu0 %v1172
    %1998 = vmatpush1.bf16.msra.mxu0 %v1171
    %1999 = vmatprep.subr.bf16.mxu0 %v1180
    %2000 = vmatpush1.bf16.msra.mxu0 %v1179
    %2001 = vmatprep.subr.bf16.mxu0 %v1188
    %2002 = vmatpush1.bf16.msra.mxu0 %v1187
    %2003 = vmatprep.subr.bf16.mxu0 %v1196
    %2004 = vmatpush1.bf16.msra.mxu0 %v1195
    %2005 = vmatprep.subr.bf16.mxu0 %v1204
    %2006 = vmatpush1.bf16.msra.mxu0 %v1203
    %2007 = vmatprep.mubr.bf16.mxu0 %v1974
    %2008 = vmatmul.mubr.bf16.gmra.mrb[0].mxu0 %v1973
    %v2009 = vpop.f32.mrb[0].mxu0
    %v2010 = vadd.f32 0.0, %v2009
    %v2011 = vpop.f32.mrb[0].mxu0
    %v2012 = vadd.f32 0.0, %v2011
    %v2013 = vpop.f32.mrb[0].mxu0
    %v2014 = vpop.f32.mrb[0].mxu0
    %2015 = vdwg.mxu0
    %2016 = vmatprep.subr.bf16.mxu0 %v1086
    %2017 = vmatpush1.bf16.msra.mxu0 %v1085
    %2018 = vmatprep.subr.bf16.mxu0 %v1094
    %2019 = vmatpush1.bf16.msra.mxu0 %v1093
    %2020 = vmatprep.subr.bf16.mxu0 %v1102
    %2021 = vmatpush1.bf16.msra.mxu0 %v1101
    %2022 = vmatprep.subr.bf16.mxu0 %v1110
    %2023 = vmatpush1.bf16.msra.mxu0 %v1109
    %2024 = vmatprep.subr.bf16.mxu0 %v1118
    %2025 = vmatpush1.bf16.msra.mxu0 %v1117
    %2026 = vmatprep.subr.bf16.mxu0 %v1126
    %2027 = vmatpush1.bf16.msra.mxu0 %v1125
    %2028 = vmatprep.subr.bf16.mxu0 %v1134
    %2029 = vmatpush1.bf16.msra.mxu0 %v1133
    %2030 = vmatprep.subr.bf16.mxu0 %v1142
    %2031 = vmatpush1.bf16.msra.mxu0 %v1141
    %2032 = vmatprep.subr.bf16.mxu0 %v1150
    %2033 = vmatpush1.bf16.msra.mxu0 %v1149
    %2034 = vmatprep.subr.bf16.mxu0 %v1158
    %2035 = vmatpush1.bf16.msra.mxu0 %v1157
    %2036 = vmatprep.subr.bf16.mxu0 %v1166
    %2037 = vmatpush1.bf16.msra.mxu0 %v1165
    %2038 = vmatprep.subr.bf16.mxu0 %v1174
    %2039 = vmatpush1.bf16.msra.mxu0 %v1173
    %2040 = vmatprep.subr.bf16.mxu0 %v1182
    %2041 = vmatpush1.bf16.msra.mxu0 %v1181
    %2042 = vmatprep.subr.bf16.mxu0 %v1190
    %2043 = vmatpush1.bf16.msra.mxu0 %v1189
    %2044 = vmatprep.subr.bf16.mxu0 %v1198
    %2045 = vmatpush1.bf16.msra.mxu0 %v1197
    %2046 = vmatprep.subr.bf16.mxu0 %v1206
    %2047 = vmatpush1.bf16.msra.mxu0 %v1205
    %2048 = vmatprep.mubr.bf16.mxu0 %v1974
    %2049 = vmatmul.mubr.bf16.gmra.mrb[0].mxu0 %v1973
    %v2050 = vpop.f32.mrb[0].mxu0
    %v2051 = vadd.f32 0.0, %v2050
    %v2052 = vpop.f32.mrb[0].mxu0
    %v2053 = vadd.f32 0.0, %v2052
    %v2054 = vpop.f32.mrb[0].mxu0
    %v2055 = vpop.f32.mrb[0].mxu0
    %2056 = vdwg.mxu0
    %2057 = vmatprep.subr.bf16.mxu0 %v1088
    %2058 = vmatpush1.bf16.msra.mxu0 %v1087
    %2059 = vmatprep.subr.bf16.mxu0 %v1096
    %2060 = vmatpush1.bf16.msra.mxu0 %v1095
    %2061 = vmatprep.subr.bf16.mxu0 %v1104
    %2062 = vmatpush1.bf16.msra.mxu0 %v1103
    %2063 = vmatprep.subr.bf16.mxu0 %v1112
    %2064 = vmatpush1.bf16.msra.mxu0 %v1111
    %2065 = vmatprep.subr.bf16.mxu0 %v1120
    %2066 = vmatpush1.bf16.msra.mxu0 %v1119
    %2067 = vmatprep.subr.bf16.mxu0 %v1128
    %2068 = vmatpush1.bf16.msra.mxu0 %v1127
    %2069 = vmatprep.subr.bf16.mxu0 %v1136
    %2070 = vmatpush1.bf16.msra.mxu0 %v1135
    %2071 = vmatprep.subr.bf16.mxu0 %v1144
    %2072 = vmatpush1.bf16.msra.mxu0 %v1143
    %2073 = vmatprep.subr.bf16.mxu0 %v1152
    %2074 = vmatpush1.bf16.msra.mxu0 %v1151
    %2075 = vmatprep.subr.bf16.mxu0 %v1160
    %2076 = vmatpush1.bf16.msra.mxu0 %v1159
    %2077 = vmatprep.subr.bf16.mxu0 %v1168
    %2078 = vmatpush1.bf16.msra.mxu0 %v1167
    %2079 = vmatprep.subr.bf16.mxu0 %v1176
    %2080 = vmatpush1.bf16.msra.mxu0 %v1175
    %2081 = vmatprep.subr.bf16.mxu0 %v1184
    %2082 = vmatpush1.bf16.msra.mxu0 %v1183
    %2083 = vmatprep.subr.bf16.mxu0 %v1192
    %2084 = vmatpush1.bf16.msra.mxu0 %v1191
    %2085 = vmatprep.subr.bf16.mxu0 %v1200
    %2086 = vmatpush1.bf16.msra.mxu0 %v1199
    %2087 = vmatprep.subr.bf16.mxu0 %v1208
    %2088 = vmatpush1.bf16.msra.mxu0 %v1207
    %2089 = vmatprep.mubr.bf16.mxu0 %v1974
    %2090 = vmatmul.mubr.bf16.gmra.mrb[0].mxu0 %v1973
    %v2091 = vpop.f32.mrb[0].mxu0
    %v2092 = vadd.f32 0.0, %v2091
    %v2093 = vpop.f32.mrb[0].mxu0
    %v2094 = vadd.f32 0.0, %v2093
    %v2095 = vpop.f32.mrb[0].mxu0
    %v2096 = vpop.f32.mrb[0].mxu0
    %2097 = vdwg.mxu0
    %2098 = vmatprep.subr.bf16.mxu0 %v1090
    %2099 = vmatpush1.bf16.msra.mxu0 %v1089
    %2100 = vmatprep.subr.bf16.mxu0 %v1098
    %2101 = vmatpush1.bf16.msra.mxu0 %v1097
    %2102 = vmatprep.subr.bf16.mxu0 %v1106
    %2103 = vmatpush1.bf16.msra.mxu0 %v1105
    %2104 = vmatprep.subr.bf16.mxu0 %v1114
    %2105 = vmatpush1.bf16.msra.mxu0 %v1113
    %2106 = vmatprep.subr.bf16.mxu0 %v1122
    %2107 = vmatpush1.bf16.msra.mxu0 %v1121
    %2108 = vmatprep.subr.bf16.mxu0 %v1130
    %2109 = vmatpush1.bf16.msra.mxu0 %v1129
    %2110 = vmatprep.subr.bf16.mxu0 %v1138
    %2111 = vmatpush1.bf16.msra.mxu0 %v1137
    %2112 = vmatprep.subr.bf16.mxu0 %v1146
    %2113 = vmatpush1.bf16.msra.mxu0 %v1145
    %2114 = vmatprep.subr.bf16.mxu0 %v1154
    %2115 = vmatpush1.bf16.msra.mxu0 %v1153
    %2116 = vmatprep.subr.bf16.mxu0 %v1162
    %2117 = vmatpush1.bf16.msra.mxu0 %v1161
    %2118 = vmatprep.subr.bf16.mxu0 %v1170
    %2119 = vmatpush1.bf16.msra.mxu0 %v1169
    %2120 = vmatprep.subr.bf16.mxu0 %v1178
    %2121 = vmatpush1.bf16.msra.mxu0 %v1177
    %2122 = vmatprep.subr.bf16.mxu0 %v1186
    %2123 = vmatpush1.bf16.msra.mxu0 %v1185
    %2124 = vmatprep.subr.bf16.mxu0 %v1194
    %2125 = vmatpush1.bf16.msra.mxu0 %v1193
    %2126 = vmatprep.subr.bf16.mxu0 %v1202
    %2127 = vmatpush1.bf16.msra.mxu0 %v1201
    %2128 = vmatprep.subr.bf16.mxu0 %v1210
    %2129 = vmatpush1.bf16.msra.mxu0 %v1209
    %2130 = vmatprep.mubr.bf16.mxu0 %v1974
    %2131 = vmatmul.mubr.bf16.gmra.mrb[0].mxu0 %v1973
    %v2132 = vpop.f32.mrb[0].mxu0
    %v2133 = vadd.f32 0.0, %v2132
    %v2134 = vpop.f32.mrb[0].mxu0
    %v2135 = vadd.f32 0.0, %v2134
    %v2136 = vpop.f32.mrb[0].mxu0
    %v2137 = vpop.f32.mrb[0].mxu0
    %2138 = vdwg.mxu0
    %v2139 = vadd.f32 %v327, %v2010
    %v2140 = vadd.f32 %v329, %v2012
    %v2141 = vadd.f32 %v400, %v2051
    %v2142 = vadd.f32 %v402, %v2053
    %v2143 = vmul.f32 %v2139, 0.5
    %v2144 = vmul.f32 %v2140, 0.5
    %v2145 = vmul.f32 %v2141, 0.5
    %v2146 = vtanh.pop %v2143
    %v2147 = vtanh.pop %v2144
    %v2148 = vtanh.pop %v2145
    %v2149 = vmul.f32 %v2146, 0.5
    %v2150 = vmul.f32 %v2147, 0.5
    %v2151 = vmul.f32 %v2148, 0.5
    %v2152 = vadd.f32 %v2149, 0.5
    %v2153 = vadd.f32 %v2150, 0.5
    %v2154 = vadd.f32 %v2151, 0.5
    %v2155 = vtanh.pop %v2142
    %v2156 = vmul.f32 %v2153, %v1946
    %v2157 = vmul.f32 %v2152, %v2155
    %v2158 = vadd.f32 %v2156, %v2157
    %v2159 = vtanh.pop %v2158
    %v2160 = vmul.f32 %v2154, %v2159
    %v2161 = vadd.f32 %v479, %v2092
    %v2162 = vadd.f32 %v481, %v2094
    %v2163 = vadd.f32 %v552, %v2133
    %v2164 = vadd.f32 %v554, %v2135
    %v2165 = vmul.f32 %v2161, 0.5
    %v2166 = vmul.f32 %v2162, 0.5
    %v2167 = vmul.f32 %v2163, 0.5
    %v2168 = vtanh.pop %v2165
    %v2169 = vtanh.pop %v2166
    %v2170 = vtanh.pop %v2167
    %v2171 = vmul.f32 %v2168, 0.5
    %v2172 = vmul.f32 %v2169, 0.5
    %v2173 = vmul.f32 %v2170, 0.5
    %v2174 = vadd.f32 %v2171, 0.5
    %v2175 = vadd.f32 %v2172, 0.5
    %v2176 = vadd.f32 %v2173, 0.5
    %v2177 = vtanh.pop %v2164
    %v2178 = vmul.f32 %v2175, %v1968
    %v2179 = vmul.f32 %v2174, %v2177
    %v2180 = vadd.f32 %v2178, %v2179
    %v2181 = vtanh.pop %v2180
    %v2182 = vmul.f32 %v2176, %v2181
    %2183 = vst [vmem:[#allocation4 + $0x30] sm:$0xff] %v2160
    %2184 = vst [vmem:[#allocation4 + $0x48] sm:$0xff] %v2182
    %v2185 = vpack.c.bf16 %v2160, %v2160
    %v2186 = vpack.c.bf16 %v2182, %v2182
    %2187 = vmatprep.subr.bf16.mxu0 %v1084
    %2188 = vmatpush1.bf16.msra.mxu0 %v1083
    %2189 = vmatprep.subr.bf16.mxu0 %v1092
    %2190 = vmatpush1.bf16.msra.mxu0 %v1091
    %2191 = vmatprep.subr.bf16.mxu0 %v1100
    %2192 = vmatpush1.bf16.msra.mxu0 %v1099
    %2193 = vmatprep.subr.bf16.mxu0 %v1108
    %2194 = vmatpush1.bf16.msra.mxu0 %v1107
    %2195 = vmatprep.subr.bf16.mxu0 %v1116
    %2196 = vmatpush1.bf16.msra.mxu0 %v1115
    %2197 = vmatprep.subr.bf16.mxu0 %v1124
    %2198 = vmatpush1.bf16.msra.mxu0 %v1123
    %2199 = vmatprep.subr.bf16.mxu0 %v1132
    %2200 = vmatpush1.bf16.msra.mxu0 %v1131
    %2201 = vmatprep.subr.bf16.mxu0 %v1140
    %2202 = vmatpush1.bf16.msra.mxu0 %v1139
    %2203 = vmatprep.subr.bf16.mxu0 %v1148
    %2204 = vmatpush1.bf16.msra.mxu0 %v1147
    %2205 = vmatprep.subr.bf16.mxu0 %v1156
    %2206 = vmatpush1.bf16.msra.mxu0 %v1155
    %2207 = vmatprep.subr.bf16.mxu0 %v1164
    %2208 = vmatpush1.bf16.msra.mxu0 %v1163
    %2209 = vmatprep.subr.bf16.mxu0 %v1172
    %2210 = vmatpush1.bf16.msra.mxu0 %v1171
    %2211 = vmatprep.subr.bf16.mxu0 %v1180
    %2212 = vmatpush1.bf16.msra.mxu0 %v1179
    %2213 = vmatprep.subr.bf16.mxu0 %v1188
    %2214 = vmatpush1.bf16.msra.mxu0 %v1187
    %2215 = vmatprep.subr.bf16.mxu0 %v1196
    %2216 = vmatpush1.bf16.msra.mxu0 %v1195
    %2217 = vmatprep.subr.bf16.mxu0 %v1204
    %2218 = vmatpush1.bf16.msra.mxu0 %v1203
    %2219 = vmatprep.mubr.bf16.mxu0 %v2186
    %2220 = vmatmul.mubr.bf16.gmra.mrb[0].mxu0 %v2185
    %v2221 = vpop.f32.mrb[0].mxu0
    %v2222 = vadd.f32 0.0, %v2221
    %v2223 = vpop.f32.mrb[0].mxu0
    %v2224 = vadd.f32 0.0, %v2223
    %v2225 = vpop.f32.mrb[0].mxu0
    %v2226 = vpop.f32.mrb[0].mxu0
    %2227 = vdwg.mxu0
    %2228 = vmatprep.subr.bf16.mxu0 %v1086
    %2229 = vmatpush1.bf16.msra.mxu0 %v1085
    %2230 = vmatprep.subr.bf16.mxu0 %v1094
    %2231 = vmatpush1.bf16.msra.mxu0 %v1093
    %2232 = vmatprep.subr.bf16.mxu0 %v1102
    %2233 = vmatpush1.bf16.msra.mxu0 %v1101
    %2234 = vmatprep.subr.bf16.mxu0 %v1110
    %2235 = vmatpush1.bf16.msra.mxu0 %v1109
    %2236 = vmatprep.subr.bf16.mxu0 %v1118
    %2237 = vmatpush1.bf16.msra.mxu0 %v1117
    %2238 = vmatprep.subr.bf16.mxu0 %v1126
    %2239 = vmatpush1.bf16.msra.mxu0 %v1125
    %2240 = vmatprep.subr.bf16.mxu0 %v1134
    %2241 = vmatpush1.bf16.msra.mxu0 %v1133
    %2242 = vmatprep.subr.bf16.mxu0 %v1142
    %2243 = vmatpush1.bf16.msra.mxu0 %v1141
    %2244 = vmatprep.subr.bf16.mxu0 %v1150
    %2245 = vmatpush1.bf16.msra.mxu0 %v1149
    %2246 = vmatprep.subr.bf16.mxu0 %v1158
    %2247 = vmatpush1.bf16.msra.mxu0 %v1157
    %2248 = vmatprep.subr.bf16.mxu0 %v1166
    %2249 = vmatpush1.bf16.msra.mxu0 %v1165
    %2250 = vmatprep.subr.bf16.mxu0 %v1174
    %2251 = vmatpush1.bf16.msra.mxu0 %v1173
    %2252 = vmatprep.subr.bf16.mxu0 %v1182
    %2253 = vmatpush1.bf16.msra.mxu0 %v1181
    %2254 = vmatprep.subr.bf16.mxu0 %v1190
    %2255 = vmatpush1.bf16.msra.mxu0 %v1189
    %2256 = vmatprep.subr.bf16.mxu0 %v1198
    %2257 = vmatpush1.bf16.msra.mxu0 %v1197
    %2258 = vmatprep.subr.bf16.mxu0 %v1206
    %2259 = vmatpush1.bf16.msra.mxu0 %v1205
    %2260 = vmatprep.mubr.bf16.mxu0 %v2186
    %2261 = vmatmul.mubr.bf16.gmra.mrb[0].mxu0 %v2185
    %v2262 = vpop.f32.mrb[0].mxu0
    %v2263 = vadd.f32 0.0, %v2262
    %v2264 = vpop.f32.mrb[0].mxu0
    %v2265 = vadd.f32 0.0, %v2264
    %v2266 = vpop.f32.mrb[0].mxu0
    %v2267 = vpop.f32.mrb[0].mxu0
    %2268 = vdwg.mxu0
    %2269 = vmatprep.subr.bf16.mxu0 %v1088
    %2270 = vmatpush1.bf16.msra.mxu0 %v1087
    %2271 = vmatprep.subr.bf16.mxu0 %v1096
    %2272 = vmatpush1.bf16.msra.mxu0 %v1095
    %2273 = vmatprep.subr.bf16.mxu0 %v1104
    %2274 = vmatpush1.bf16.msra.mxu0 %v1103
    %2275 = vmatprep.subr.bf16.mxu0 %v1112
    %2276 = vmatpush1.bf16.msra.mxu0 %v1111
    %2277 = vmatprep.subr.bf16.mxu0 %v1120
    %2278 = vmatpush1.bf16.msra.mxu0 %v1119
    %2279 = vmatprep.subr.bf16.mxu0 %v1128
    %2280 = vmatpush1.bf16.msra.mxu0 %v1127
    %2281 = vmatprep.subr.bf16.mxu0 %v1136
    %2282 = vmatpush1.bf16.msra.mxu0 %v1135
    %2283 = vmatprep.subr.bf16.mxu0 %v1144
    %2284 = vmatpush1.bf16.msra.mxu0 %v1143
    %2285 = vmatprep.subr.bf16.mxu0 %v1152
    %2286 = vmatpush1.bf16.msra.mxu0 %v1151
    %2287 = vmatprep.subr.bf16.mxu0 %v1160
    %2288 = vmatpush1.bf16.msra.mxu0 %v1159
    %2289 = vmatprep.subr.bf16.mxu0 %v1168
    %2290 = vmatpush1.bf16.msra.mxu0 %v1167
    %2291 = vmatprep.subr.bf16.mxu0 %v1176
    %2292 = vmatpush1.bf16.msra.mxu0 %v1175
    %2293 = vmatprep.subr.bf16.mxu0 %v1184
    %2294 = vmatpush1.bf16.msra.mxu0 %v1183
    %2295 = vmatprep.subr.bf16.mxu0 %v1192
    %2296 = vmatpush1.bf16.msra.mxu0 %v1191
    %2297 = vmatprep.subr.bf16.mxu0 %v1200
    %2298 = vmatpush1.bf16.msra.mxu0 %v1199
    %2299 = vmatprep.subr.bf16.mxu0 %v1208
    %2300 = vmatpush1.bf16.msra.mxu0 %v1207
    %2301 = vmatprep.mubr.bf16.mxu0 %v2186
    %2302 = vmatmul.mubr.bf16.gmra.mrb[0].mxu0 %v2185
    %v2303 = vpop.f32.mrb[0].mxu0
    %v2304 = vadd.f32 0.0, %v2303
    %v2305 = vpop.f32.mrb[0].mxu0
    %v2306 = vadd.f32 0.0, %v2305
    %v2307 = vpop.f32.mrb[0].mxu0
    %v2308 = vpop.f32.mrb[0].mxu0
    %2309 = vdwg.mxu0
    %2310 = vmatprep.subr.bf16.mxu0 %v1090
    %2311 = vmatpush1.bf16.msra.mxu0 %v1089
    %2312 = vmatprep.subr.bf16.mxu0 %v1098
    %2313 = vmatpush1.bf16.msra.mxu0 %v1097
    %2314 = vmatprep.subr.bf16.mxu0 %v1106
    %2315 = vmatpush1.bf16.msra.mxu0 %v1105
    %2316 = vmatprep.subr.bf16.mxu0 %v1114
    %2317 = vmatpush1.bf16.msra.mxu0 %v1113
    %2318 = vmatprep.subr.bf16.mxu0 %v1122
    %2319 = vmatpush1.bf16.msra.mxu0 %v1121
    %2320 = vmatprep.subr.bf16.mxu0 %v1130
    %2321 = vmatpush1.bf16.msra.mxu0 %v1129
    %2322 = vmatprep.subr.bf16.mxu0 %v1138
    %2323 = vmatpush1.bf16.msra.mxu0 %v1137
    %2324 = vmatprep.subr.bf16.mxu0 %v1146
    %2325 = vmatpush1.bf16.msra.mxu0 %v1145
    %2326 = vmatprep.subr.bf16.mxu0 %v1154
    %2327 = vmatpush1.bf16.msra.mxu0 %v1153
    %2328 = vmatprep.subr.bf16.mxu0 %v1162
    %2329 = vmatpush1.bf16.msra.mxu0 %v1161
    %2330 = vmatprep.subr.bf16.mxu0 %v1170
    %2331 = vmatpush1.bf16.msra.mxu0 %v1169
    %2332 = vmatprep.subr.bf16.mxu0 %v1178
    %2333 = vmatpush1.bf16.msra.mxu0 %v1177
    %2334 = vmatprep.subr.bf16.mxu0 %v1186
    %2335 = vmatpush1.bf16.msra.mxu0 %v1185
    %2336 = vmatprep.subr.bf16.mxu0 %v1194
    %2337 = vmatpush1.bf16.msra.mxu0 %v1193
    %2338 = vmatprep.subr.bf16.mxu0 %v1202
    %2339 = vmatpush1.bf16.msra.mxu0 %v1201
    %2340 = vmatprep.subr.bf16.mxu0 %v1210
    %2341 = vmatpush1.bf16.msra.mxu0 %v1209
    %2342 = vmatprep.mubr.bf16.mxu0 %v2186
    %2343 = vmatmul.mubr.bf16.gmra.mrb[0].mxu0 %v2185
    %v2344 = vpop.f32.mrb[0].mxu0
    %v2345 = vadd.f32 0.0, %v2344
    %v2346 = vpop.f32.mrb[0].mxu0
    %v2347 = vadd.f32 0.0, %v2346
    %v2348 = vpop.f32.mrb[0].mxu0
    %v2349 = vpop.f32.mrb[0].mxu0
    %2350 = vdwg.mxu0
    %v2351 = vadd.f32 %v333, %v2222
    %v2352 = vadd.f32 %v335, %v2224
    %v2353 = vadd.f32 %v406, %v2263
    %v2354 = vadd.f32 %v408, %v2265
    %v2355 = vmul.f32 %v2351, 0.5
    %v2356 = vmul.f32 %v2352, 0.5
    %v2357 = vmul.f32 %v2353, 0.5
    %v2358 = vtanh.pop %v2355
    %v2359 = vtanh.pop %v2356
    %v2360 = vtanh.pop %v2357
    %v2361 = vmul.f32 %v2358, 0.5
    %v2362 = vmul.f32 %v2359, 0.5
    %v2363 = vmul.f32 %v2360, 0.5
    %v2364 = vadd.f32 %v2361, 0.5
    %v2365 = vadd.f32 %v2362, 0.5
    %v2366 = vadd.f32 %v2363, 0.5
    %v2367 = vtanh.pop %v2354
    %v2368 = vmul.f32 %v2365, %v2158
    %v2369 = vmul.f32 %v2364, %v2367
    %v2370 = vadd.f32 %v2368, %v2369
    %v2371 = vtanh.pop %v2370
    %v2372 = vmul.f32 %v2366, %v2371
    %v2373 = vadd.f32 %v473, %v2304
    %v2374 = vadd.f32 %v475, %v2306
    %v2375 = vadd.f32 %v546, %v2345
    %v2376 = vadd.f32 %v548, %v2347
    %v2377 = vmul.f32 %v2373, 0.5
    %v2378 = vmul.f32 %v2374, 0.5
    %v2379 = vmul.f32 %v2375, 0.5
    %v2380 = vtanh.pop %v2377
    %v2381 = vtanh.pop %v2378
    %v2382 = vtanh.pop %v2379
    %v2383 = vmul.f32 %v2380, 0.5
    %v2384 = vmul.f32 %v2381, 0.5
    %v2385 = vmul.f32 %v2382, 0.5
    %v2386 = vadd.f32 %v2383, 0.5
    %v2387 = vadd.f32 %v2384, 0.5
    %v2388 = vadd.f32 %v2385, 0.5
    %v2389 = vtanh.pop %v2376
    %v2390 = vmul.f32 %v2387, %v2180
    %v2391 = vmul.f32 %v2386, %v2389
    %v2392 = vadd.f32 %v2390, %v2391
    %v2393 = vtanh.pop %v2392
    %v2394 = vmul.f32 %v2388, %v2393
    %2395 = vst [vmem:[#allocation4 + $0x40] sm:$0xff] %v2372
    %2396 = vst [vmem:[#allocation4 + $0x38] sm:$0xff] %v2394
    %v2397 = vpack.c.bf16 %v2372, %v2372
    %v2398 = vpack.c.bf16 %v2394, %v2394
    %2399 = vmatprep.subr.bf16.mxu0 %v1084
    %2400 = vmatpush1.bf16.msra.mxu0 %v1083
    %2401 = vmatprep.subr.bf16.mxu0 %v1092
    %2402 = vmatpush1.bf16.msra.mxu0 %v1091
    %2403 = vmatprep.subr.bf16.mxu0 %v1100
    %2404 = vmatpush1.bf16.msra.mxu0 %v1099
    %2405 = vmatprep.subr.bf16.mxu0 %v1108
    %2406 = vmatpush1.bf16.msra.mxu0 %v1107
    %2407 = vmatprep.subr.bf16.mxu0 %v1116
    %2408 = vmatpush1.bf16.msra.mxu0 %v1115
    %2409 = vmatprep.subr.bf16.mxu0 %v1124
    %2410 = vmatpush1.bf16.msra.mxu0 %v1123
    %2411 = vmatprep.subr.bf16.mxu0 %v1132
    %2412 = vmatpush1.bf16.msra.mxu0 %v1131
    %2413 = vmatprep.subr.bf16.mxu0 %v1140
    %2414 = vmatpush1.bf16.msra.mxu0 %v1139
    %2415 = vmatprep.subr.bf16.mxu0 %v1148
    %2416 = vmatpush1.bf16.msra.mxu0 %v1147
    %2417 = vmatprep.subr.bf16.mxu0 %v1156
    %2418 = vmatpush1.bf16.msra.mxu0 %v1155
    %2419 = vmatprep.subr.bf16.mxu0 %v1164
    %2420 = vmatpush1.bf16.msra.mxu0 %v1163
    %2421 = vmatprep.subr.bf16.mxu0 %v1172
    %2422 = vmatpush1.bf16.msra.mxu0 %v1171
    %2423 = vmatprep.subr.bf16.mxu0 %v1180
    %2424 = vmatpush1.bf16.msra.mxu0 %v1179
    %2425 = vmatprep.subr.bf16.mxu0 %v1188
    %2426 = vmatpush1.bf16.msra.mxu0 %v1187
    %2427 = vmatprep.subr.bf16.mxu0 %v1196
    %2428 = vmatpush1.bf16.msra.mxu0 %v1195
    %2429 = vmatprep.subr.bf16.mxu0 %v1204
    %2430 = vmatpush1.bf16.msra.mxu0 %v1203
    %2431 = vmatprep.mubr.bf16.mxu0 %v2398
    %2432 = vmatmul.mubr.bf16.gmra.mrb[0].mxu0 %v2397
    %v2433 = vpop.f32.mrb[0].mxu0
    %v2434 = vadd.f32 0.0, %v2433
    %v2435 = vpop.f32.mrb[0].mxu0
    %v2436 = vadd.f32 0.0, %v2435
    %v2437 = vpop.f32.mrb[0].mxu0
    %v2438 = vpop.f32.mrb[0].mxu0
    %2439 = vdwg.mxu0
    %2440 = vmatprep.subr.bf16.mxu0 %v1086
    %2441 = vmatpush1.bf16.msra.mxu0 %v1085
    %2442 = vmatprep.subr.bf16.mxu0 %v1094
    %2443 = vmatpush1.bf16.msra.mxu0 %v1093
    %2444 = vmatprep.subr.bf16.mxu0 %v1102
    %2445 = vmatpush1.bf16.msra.mxu0 %v1101
    %2446 = vmatprep.subr.bf16.mxu0 %v1110
    %2447 = vmatpush1.bf16.msra.mxu0 %v1109
    %2448 = vmatprep.subr.bf16.mxu0 %v1118
    %2449 = vmatpush1.bf16.msra.mxu0 %v1117
    %2450 = vmatprep.subr.bf16.mxu0 %v1126
    %2451 = vmatpush1.bf16.msra.mxu0 %v1125
    %2452 = vmatprep.subr.bf16.mxu0 %v1134
    %2453 = vmatpush1.bf16.msra.mxu0 %v1133
    %2454 = vmatprep.subr.bf16.mxu0 %v1142
    %2455 = vmatpush1.bf16.msra.mxu0 %v1141
    %2456 = vmatprep.subr.bf16.mxu0 %v1150
    %2457 = vmatpush1.bf16.msra.mxu0 %v1149
    %2458 = vmatprep.subr.bf16.mxu0 %v1158
    %2459 = vmatpush1.bf16.msra.mxu0 %v1157
    %2460 = vmatprep.subr.bf16.mxu0 %v1166
    %2461 = vmatpush1.bf16.msra.mxu0 %v1165
    %2462 = vmatprep.subr.bf16.mxu0 %v1174
    %2463 = vmatpush1.bf16.msra.mxu0 %v1173
    %2464 = vmatprep.subr.bf16.mxu0 %v1182
    %2465 = vmatpush1.bf16.msra.mxu0 %v1181
    %2466 = vmatprep.subr.bf16.mxu0 %v1190
    %2467 = vmatpush1.bf16.msra.mxu0 %v1189
    %2468 = vmatprep.subr.bf16.mxu0 %v1198
    %2469 = vmatpush1.bf16.msra.mxu0 %v1197
    %2470 = vmatprep.subr.bf16.mxu0 %v1206
    %2471 = vmatpush1.bf16.msra.mxu0 %v1205
    %2472 = vmatprep.mubr.bf16.mxu0 %v2398
    %2473 = vmatmul.mubr.bf16.gmra.mrb[0].mxu0 %v2397
    %v2474 = vpop.f32.mrb[0].mxu0
    %v2475 = vadd.f32 0.0, %v2474
    %v2476 = vpop.f32.mrb[0].mxu0
    %v2477 = vadd.f32 0.0, %v2476
    %v2478 = vpop.f32.mrb[0].mxu0
    %v2479 = vpop.f32.mrb[0].mxu0
    %2480 = vdwg.mxu0
    %2481 = vmatprep.subr.bf16.mxu0 %v1088
    %2482 = vmatpush1.bf16.msra.mxu0 %v1087
    %2483 = vmatprep.subr.bf16.mxu0 %v1096
    %2484 = vmatpush1.bf16.msra.mxu0 %v1095
    %2485 = vmatprep.subr.bf16.mxu0 %v1104
    %2486 = vmatpush1.bf16.msra.mxu0 %v1103
    %2487 = vmatprep.subr.bf16.mxu0 %v1112
    %2488 = vmatpush1.bf16.msra.mxu0 %v1111
    %2489 = vmatprep.subr.bf16.mxu0 %v1120
    %2490 = vmatpush1.bf16.msra.mxu0 %v1119
    %2491 = vmatprep.subr.bf16.mxu0 %v1128
    %2492 = vmatpush1.bf16.msra.mxu0 %v1127
    %2493 = vmatprep.subr.bf16.mxu0 %v1136
    %2494 = vmatpush1.bf16.msra.mxu0 %v1135
    %2495 = vmatprep.subr.bf16.mxu0 %v1144
    %2496 = vmatpush1.bf16.msra.mxu0 %v1143
    %2497 = vmatprep.subr.bf16.mxu0 %v1152
    %2498 = vmatpush1.bf16.msra.mxu0 %v1151
    %2499 = vmatprep.subr.bf16.mxu0 %v1160
    %2500 = vmatpush1.bf16.msra.mxu0 %v1159
    %2501 = vmatprep.subr.bf16.mxu0 %v1168
    %2502 = vmatpush1.bf16.msra.mxu0 %v1167
    %2503 = vmatprep.subr.bf16.mxu0 %v1176
    %2504 = vmatpush1.bf16.msra.mxu0 %v1175
    %2505 = vmatprep.subr.bf16.mxu0 %v1184
    %2506 = vmatpush1.bf16.msra.mxu0 %v1183
    %2507 = vmatprep.subr.bf16.mxu0 %v1192
    %2508 = vmatpush1.bf16.msra.mxu0 %v1191
    %2509 = vmatprep.subr.bf16.mxu0 %v1200
    %2510 = vmatpush1.bf16.msra.mxu0 %v1199
    %2511 = vmatprep.subr.bf16.mxu0 %v1208
    %2512 = vmatpush1.bf16.msra.mxu0 %v1207
    %2513 = vmatprep.mubr.bf16.mxu0 %v2398
    %2514 = vmatmul.mubr.bf16.gmra.mrb[0].mxu0 %v2397
    %v2515 = vpop.f32.mrb[0].mxu0
    %v2516 = vadd.f32 0.0, %v2515
    %v2517 = vpop.f32.mrb[0].mxu0
    %v2518 = vadd.f32 0.0, %v2517
    %v2519 = vpop.f32.mrb[0].mxu0
    %v2520 = vpop.f32.mrb[0].mxu0
    %2521 = vdwg.mxu0
    %2522 = vmatprep.subr.bf16.mxu0 %v1090
    %2523 = vmatpush1.bf16.msra.mxu0 %v1089
    %2524 = vmatprep.subr.bf16.mxu0 %v1098
    %2525 = vmatpush1.bf16.msra.mxu0 %v1097
    %2526 = vmatprep.subr.bf16.mxu0 %v1106
    %2527 = vmatpush1.bf16.msra.mxu0 %v1105
    %2528 = vmatprep.subr.bf16.mxu0 %v1114
    %2529 = vmatpush1.bf16.msra.mxu0 %v1113
    %2530 = vmatprep.subr.bf16.mxu0 %v1122
    %2531 = vmatpush1.bf16.msra.mxu0 %v1121
    %2532 = vmatprep.subr.bf16.mxu0 %v1130
    %2533 = vmatpush1.bf16.msra.mxu0 %v1129
    %2534 = vmatprep.subr.bf16.mxu0 %v1138
    %2535 = vmatpush1.bf16.msra.mxu0 %v1137
    %2536 = vmatprep.subr.bf16.mxu0 %v1146
    %2537 = vmatpush1.bf16.msra.mxu0 %v1145
    %2538 = vmatprep.subr.bf16.mxu0 %v1154
    %2539 = vmatpush1.bf16.msra.mxu0 %v1153
    %2540 = vmatprep.subr.bf16.mxu0 %v1162
    %2541 = vmatpush1.bf16.msra.mxu0 %v1161
    %2542 = vmatprep.subr.bf16.mxu0 %v1170
    %2543 = vmatpush1.bf16.msra.mxu0 %v1169
    %2544 = vmatprep.subr.bf16.mxu0 %v1178
    %2545 = vmatpush1.bf16.msra.mxu0 %v1177
    %2546 = vmatprep.subr.bf16.mxu0 %v1186
    %2547 = vmatpush1.bf16.msra.mxu0 %v1185
    %2548 = vmatprep.subr.bf16.mxu0 %v1194
    %2549 = vmatpush1.bf16.msra.mxu0 %v1193
    %2550 = vmatprep.subr.bf16.mxu0 %v1202
    %2551 = vmatpush1.bf16.msra.mxu0 %v1201
    %2552 = vmatprep.subr.bf16.mxu0 %v1210
    %2553 = vmatpush1.bf16.msra.mxu0 %v1209
    %2554 = vmatprep.mubr.bf16.mxu0 %v2398
    %2555 = vmatmul.mubr.bf16.gmra.mrb[0].mxu0 %v2397
    %v2556 = vpop.f32.mrb[0].mxu0
    %v2557 = vadd.f32 0.0, %v2556
    %v2558 = vpop.f32.mrb[0].mxu0
    %v2559 = vadd.f32 0.0, %v2558
    %v2560 = vpop.f32.mrb[0].mxu0
    %v2561 = vpop.f32.mrb[0].mxu0
    %2562 = vdwg.mxu0
    %v2563 = vadd.f32 %v337, %v2434
    %v2564 = vadd.f32 %v339, %v2436
    %v2565 = vadd.f32 %v410, %v2475
    %v2566 = vadd.f32 %v412, %v2477
    %v2567 = vmul.f32 %v2563, 0.5
    %v2568 = vmul.f32 %v2564, 0.5
    %v2569 = vmul.f32 %v2565, 0.5
    %v2570 = vtanh.pop %v2567
    %v2571 = vtanh.pop %v2568
    %v2572 = vtanh.pop %v2569
    %v2573 = vmul.f32 %v2570, 0.5
    %v2574 = vmul.f32 %v2571, 0.5
    %v2575 = vmul.f32 %v2572, 0.5
    %v2576 = vadd.f32 %v2573, 0.5
    %v2577 = vadd.f32 %v2574, 0.5
    %v2578 = vadd.f32 %v2575, 0.5
    %v2579 = vtanh.pop %v2566
    %v2580 = vmul.f32 %v2577, %v2370
    %v2581 = vmul.f32 %v2576, %v2579
    %v2582 = vadd.f32 %v2580, %v2581
    %v2583 = vtanh.pop %v2582
    %v2584 = vmul.f32 %v2578, %v2583
    %v2585 = vadd.f32 %v469, %v2516
    %v2586 = vadd.f32 %v471, %v2518
    %v2587 = vadd.f32 %v542, %v2557
    %v2588 = vadd.f32 %v544, %v2559
    %v2589 = vmul.f32 %v2585, 0.5
    %v2590 = vmul.f32 %v2586, 0.5
    %v2591 = vmul.f32 %v2587, 0.5
    %v2592 = vtanh.pop %v2589
    %v2593 = vtanh.pop %v2590
    %v2594 = vtanh.pop %v2591
    %v2595 = vmul.f32 %v2592, 0.5
    %v2596 = vmul.f32 %v2593, 0.5
    %v2597 = vmul.f32 %v2594, 0.5
    %v2598 = vadd.f32 %v2595, 0.5
    %v2599 = vadd.f32 %v2596, 0.5
    %v2600 = vadd.f32 %v2597, 0.5
    %v2601 = vtanh.pop %v2588
    %v2602 = vmul.f32 %v2599, %v2392
    %v2603 = vmul.f32 %v2598, %v2601
    %v2604 = vadd.f32 %v2602, %v2603
    %v2605 = vtanh.pop %v2604
    %v2606 = vmul.f32 %v2600, %v2605
    %2607 = vst [vmem:[#allocation4 + $0x50] sm:$0xff] %v2584
    %2608 = vst [vmem:[#allocation4 + $0x28] sm:$0xff] %v2606
    %v2609 = vpack.c.bf16 %v2584, %v2584
    %v2610 = vpack.c.bf16 %v2606, %v2606
    %2611 = vmatprep.subr.bf16.mxu0 %v1084
    %2612 = vmatpush1.bf16.msra.mxu0 %v1083
    %2613 = vmatprep.subr.bf16.mxu0 %v1092
    %2614 = vmatpush1.bf16.msra.mxu0 %v1091
    %2615 = vmatprep.subr.bf16.mxu0 %v1100
    %2616 = vmatpush1.bf16.msra.mxu0 %v1099
    %2617 = vmatprep.subr.bf16.mxu0 %v1108
    %2618 = vmatpush1.bf16.msra.mxu0 %v1107
    %2619 = vmatprep.subr.bf16.mxu0 %v1116
    %2620 = vmatpush1.bf16.msra.mxu0 %v1115
    %2621 = vmatprep.subr.bf16.mxu0 %v1124
    %2622 = vmatpush1.bf16.msra.mxu0 %v1123
    %2623 = vmatprep.subr.bf16.mxu0 %v1132
    %2624 = vmatpush1.bf16.msra.mxu0 %v1131
    %2625 = vmatprep.subr.bf16.mxu0 %v1140
    %2626 = vmatpush1.bf16.msra.mxu0 %v1139
    %2627 = vmatprep.subr.bf16.mxu0 %v1148
    %2628 = vmatpush1.bf16.msra.mxu0 %v1147
    %2629 = vmatprep.subr.bf16.mxu0 %v1156
    %2630 = vmatpush1.bf16.msra.mxu0 %v1155
    %2631 = vmatprep.subr.bf16.mxu0 %v1164
    %2632 = vmatpush1.bf16.msra.mxu0 %v1163
    %2633 = vmatprep.subr.bf16.mxu0 %v1172
    %2634 = vmatpush1.bf16.msra.mxu0 %v1171
    %2635 = vmatprep.subr.bf16.mxu0 %v1180
    %2636 = vmatpush1.bf16.msra.mxu0 %v1179
    %2637 = vmatprep.subr.bf16.mxu0 %v1188
    %2638 = vmatpush1.bf16.msra.mxu0 %v1187
    %2639 = vmatprep.subr.bf16.mxu0 %v1196
    %2640 = vmatpush1.bf16.msra.mxu0 %v1195
    %2641 = vmatprep.subr.bf16.mxu0 %v1204
    %2642 = vmatpush1.bf16.msra.mxu0 %v1203
    %2643 = vmatprep.mubr.bf16.mxu0 %v2610
    %2644 = vmatmul.mubr.bf16.gmra.mrb[0].mxu0 %v2609
    %v2645 = vpop.f32.mrb[0].mxu0
    %v2646 = vadd.f32 0.0, %v2645
    %v2647 = vpop.f32.mrb[0].mxu0
    %v2648 = vadd.f32 0.0, %v2647
    %v2649 = vpop.f32.mrb[0].mxu0
    %v2650 = vpop.f32.mrb[0].mxu0
    %2651 = vdwg.mxu0
    %2652 = vmatprep.subr.bf16.mxu0 %v1086
    %2653 = vmatpush1.bf16.msra.mxu0 %v1085
    %2654 = vmatprep.subr.bf16.mxu0 %v1094
    %2655 = vmatpush1.bf16.msra.mxu0 %v1093
    %2656 = vmatprep.subr.bf16.mxu0 %v1102
    %2657 = vmatpush1.bf16.msra.mxu0 %v1101
    %2658 = vmatprep.subr.bf16.mxu0 %v1110
    %2659 = vmatpush1.bf16.msra.mxu0 %v1109
    %2660 = vmatprep.subr.bf16.mxu0 %v1118
    %2661 = vmatpush1.bf16.msra.mxu0 %v1117
    %2662 = vmatprep.subr.bf16.mxu0 %v1126
    %2663 = vmatpush1.bf16.msra.mxu0 %v1125
    %2664 = vmatprep.subr.bf16.mxu0 %v1134
    %2665 = vmatpush1.bf16.msra.mxu0 %v1133
    %2666 = vmatprep.subr.bf16.mxu0 %v1142
    %2667 = vmatpush1.bf16.msra.mxu0 %v1141
    %2668 = vmatprep.subr.bf16.mxu0 %v1150
    %2669 = vmatpush1.bf16.msra.mxu0 %v1149
    %2670 = vmatprep.subr.bf16.mxu0 %v1158
    %2671 = vmatpush1.bf16.msra.mxu0 %v1157
    %2672 = vmatprep.subr.bf16.mxu0 %v1166
    %2673 = vmatpush1.bf16.msra.mxu0 %v1165
    %2674 = vmatprep.subr.bf16.mxu0 %v1174
    %2675 = vmatpush1.bf16.msra.mxu0 %v1173
    %2676 = vmatprep.subr.bf16.mxu0 %v1182
    %2677 = vmatpush1.bf16.msra.mxu0 %v1181
    %2678 = vmatprep.subr.bf16.mxu0 %v1190
    %2679 = vmatpush1.bf16.msra.mxu0 %v1189
    %2680 = vmatprep.subr.bf16.mxu0 %v1198
    %2681 = vmatpush1.bf16.msra.mxu0 %v1197
    %2682 = vmatprep.subr.bf16.mxu0 %v1206
    %2683 = vmatpush1.bf16.msra.mxu0 %v1205
    %2684 = vmatprep.mubr.bf16.mxu0 %v2610
    %2685 = vmatmul.mubr.bf16.gmra.mrb[0].mxu0 %v2609
    %v2686 = vpop.f32.mrb[0].mxu0
    %v2687 = vadd.f32 0.0, %v2686
    %v2688 = vpop.f32.mrb[0].mxu0
    %v2689 = vadd.f32 0.0, %v2688
    %v2690 = vpop.f32.mrb[0].mxu0
    %v2691 = vpop.f32.mrb[0].mxu0
    %2692 = vdwg.mxu0
    %2693 = vmatprep.subr.bf16.mxu0 %v1088
    %2694 = vmatpush1.bf16.msra.mxu0 %v1087
    %2695 = vmatprep.subr.bf16.mxu0 %v1096
    %2696 = vmatpush1.bf16.msra.mxu0 %v1095
    %2697 = vmatprep.subr.bf16.mxu0 %v1104
    %2698 = vmatpush1.bf16.msra.mxu0 %v1103
    %2699 = vmatprep.subr.bf16.mxu0 %v1112
    %2700 = vmatpush1.bf16.msra.mxu0 %v1111
    %2701 = vmatprep.subr.bf16.mxu0 %v1120
    %2702 = vmatpush1.bf16.msra.mxu0 %v1119
    %2703 = vmatprep.subr.bf16.mxu0 %v1128
    %2704 = vmatpush1.bf16.msra.mxu0 %v1127
    %2705 = vmatprep.subr.bf16.mxu0 %v1136
    %2706 = vmatpush1.bf16.msra.mxu0 %v1135
    %2707 = vmatprep.subr.bf16.mxu0 %v1144
    %2708 = vmatpush1.bf16.msra.mxu0 %v1143
    %2709 = vmatprep.subr.bf16.mxu0 %v1152
    %2710 = vmatpush1.bf16.msra.mxu0 %v1151
    %2711 = vmatprep.subr.bf16.mxu0 %v1160
    %2712 = vmatpush1.bf16.msra.mxu0 %v1159
    %2713 = vmatprep.subr.bf16.mxu0 %v1168
    %2714 = vmatpush1.bf16.msra.mxu0 %v1167
    %2715 = vmatprep.subr.bf16.mxu0 %v1176
    %2716 = vmatpush1.bf16.msra.mxu0 %v1175
    %2717 = vmatprep.subr.bf16.mxu0 %v1184
    %2718 = vmatpush1.bf16.msra.mxu0 %v1183
    %2719 = vmatprep.subr.bf16.mxu0 %v1192
    %2720 = vmatpush1.bf16.msra.mxu0 %v1191
    %2721 = vmatprep.subr.bf16.mxu0 %v1200
    %2722 = vmatpush1.bf16.msra.mxu0 %v1199
    %2723 = vmatprep.subr.bf16.mxu0 %v1208
    %2724 = vmatpush1.bf16.msra.mxu0 %v1207
    %2725 = vmatprep.mubr.bf16.mxu0 %v2610
    %2726 = vmatmul.mubr.bf16.gmra.mrb[0].mxu0 %v2609
    %v2727 = vpop.f32.mrb[0].mxu0
    %v2728 = vadd.f32 0.0, %v2727
    %v2729 = vpop.f32.mrb[0].mxu0
    %v2730 = vadd.f32 0.0, %v2729
    %v2731 = vpop.f32.mrb[0].mxu0
    %v2732 = vpop.f32.mrb[0].mxu0
    %2733 = vdwg.mxu0
    %2734 = vmatprep.subr.bf16.mxu0 %v1090
    %2735 = vmatpush1.bf16.msra.mxu0 %v1089
    %2736 = vmatprep.subr.bf16.mxu0 %v1098
    %2737 = vmatpush1.bf16.msra.mxu0 %v1097
    %2738 = vmatprep.subr.bf16.mxu0 %v1106
    %2739 = vmatpush1.bf16.msra.mxu0 %v1105
    %2740 = vmatprep.subr.bf16.mxu0 %v1114
    %2741 = vmatpush1.bf16.msra.mxu0 %v1113
    %2742 = vmatprep.subr.bf16.mxu0 %v1122
    %2743 = vmatpush1.bf16.msra.mxu0 %v1121
    %2744 = vmatprep.subr.bf16.mxu0 %v1130
    %2745 = vmatpush1.bf16.msra.mxu0 %v1129
    %2746 = vmatprep.subr.bf16.mxu0 %v1138
    %2747 = vmatpush1.bf16.msra.mxu0 %v1137
    %2748 = vmatprep.subr.bf16.mxu0 %v1146
    %2749 = vmatpush1.bf16.msra.mxu0 %v1145
    %2750 = vmatprep.subr.bf16.mxu0 %v1154
    %2751 = vmatpush1.bf16.msra.mxu0 %v1153
    %2752 = vmatprep.subr.bf16.mxu0 %v1162
    %2753 = vmatpush1.bf16.msra.mxu0 %v1161
    %2754 = vmatprep.subr.bf16.mxu0 %v1170
    %2755 = vmatpush1.bf16.msra.mxu0 %v1169
    %2756 = vmatprep.subr.bf16.mxu0 %v1178
    %2757 = vmatpush1.bf16.msra.mxu0 %v1177
    %2758 = vmatprep.subr.bf16.mxu0 %v1186
    %2759 = vmatpush1.bf16.msra.mxu0 %v1185
    %2760 = vmatprep.subr.bf16.mxu0 %v1194
    %2761 = vmatpush1.bf16.msra.mxu0 %v1193
    %2762 = vmatprep.subr.bf16.mxu0 %v1202
    %2763 = vmatpush1.bf16.msra.mxu0 %v1201
    %2764 = vmatprep.subr.bf16.mxu0 %v1210
    %2765 = vmatpush1.bf16.msra.mxu0 %v1209
    %2766 = vmatprep.mubr.bf16.mxu0 %v2610
    %2767 = vmatmul.mubr.bf16.gmra.mrb[0].mxu0 %v2609
    %v2768 = vpop.f32.mrb[0].mxu0
    %v2769 = vadd.f32 0.0, %v2768
    %v2770 = vpop.f32.mrb[0].mxu0
    %v2771 = vadd.f32 0.0, %v2770
    %v2772 = vpop.f32.mrb[0].mxu0
    %v2773 = vpop.f32.mrb[0].mxu0
    %2774 = vdwg.mxu0
    %v2775 = vadd.f32 %v343, %v2646
    %v2776 = vadd.f32 %v345, %v2648
    %v2777 = vadd.f32 %v416, %v2687
    %v2778 = vadd.f32 %v418, %v2689
    %v2779 = vmul.f32 %v2775, 0.5
    %v2780 = vmul.f32 %v2776, 0.5
    %v2781 = vmul.f32 %v2777, 0.5
    %v2782 = vtanh.pop %v2779
    %v2783 = vtanh.pop %v2780
    %v2784 = vtanh.pop %v2781
    %v2785 = vmul.f32 %v2782, 0.5
    %v2786 = vmul.f32 %v2783, 0.5
    %v2787 = vmul.f32 %v2784, 0.5
    %v2788 = vadd.f32 %v2785, 0.5
    %v2789 = vadd.f32 %v2786, 0.5
    %v2790 = vadd.f32 %v2787, 0.5
    %v2791 = vtanh.pop %v2778
    %v2792 = vmul.f32 %v2789, %v2582
    %v2793 = vmul.f32 %v2788, %v2791
    %v2794 = vadd.f32 %v2792, %v2793
    %v2795 = vtanh.pop %v2794
    %v2796 = vmul.f32 %v2790, %v2795
    %v2797 = vadd.f32 %v463, %v2728
    %v2798 = vadd.f32 %v465, %v2730
    %v2799 = vadd.f32 %v536, %v2769
    %v2800 = vadd.f32 %v538, %v2771
    %v2801 = vmul.f32 %v2797, 0.5
    %v2802 = vmul.f32 %v2798, 0.5
    %v2803 = vmul.f32 %v2799, 0.5
    %v2804 = vtanh.pop %v2801
    %v2805 = vtanh.pop %v2802
    %v2806 = vtanh.pop %v2803
    %v2807 = vmul.f32 %v2804, 0.5
    %v2808 = vmul.f32 %v2805, 0.5
    %v2809 = vmul.f32 %v2806, 0.5
    %v2810 = vadd.f32 %v2807, 0.5
    %v2811 = vadd.f32 %v2808, 0.5
    %v2812 = vadd.f32 %v2809, 0.5
    %v2813 = vtanh.pop %v2800
    %v2814 = vmul.f32 %v2811, %v2604
    %v2815 = vmul.f32 %v2810, %v2813
    %v2816 = vadd.f32 %v2814, %v2815
    %v2817 = vtanh.pop %v2816
    %v2818 = vmul.f32 %v2812, %v2817
    %2819 = vst [vmem:[#allocation4 + $0x60] sm:$0xff] %v2796
    %2820 = vst [vmem:[#allocation4 + $0x18] sm:$0xff] %v2818
    %v2821 = vpack.c.bf16 %v2796, %v2796
    %v2822 = vpack.c.bf16 %v2818, %v2818
    %2823 = vmatprep.subr.bf16.mxu0 %v1084
    %2824 = vmatpush1.bf16.msra.mxu0 %v1083
    %2825 = vmatprep.subr.bf16.mxu0 %v1092
    %2826 = vmatpush1.bf16.msra.mxu0 %v1091
    %2827 = vmatprep.subr.bf16.mxu0 %v1100
    %2828 = vmatpush1.bf16.msra.mxu0 %v1099
    %2829 = vmatprep.subr.bf16.mxu0 %v1108
    %2830 = vmatpush1.bf16.msra.mxu0 %v1107
    %2831 = vmatprep.subr.bf16.mxu0 %v1116
    %2832 = vmatpush1.bf16.msra.mxu0 %v1115
    %2833 = vmatprep.subr.bf16.mxu0 %v1124
    %2834 = vmatpush1.bf16.msra.mxu0 %v1123
    %2835 = vmatprep.subr.bf16.mxu0 %v1132
    %2836 = vmatpush1.bf16.msra.mxu0 %v1131
    %2837 = vmatprep.subr.bf16.mxu0 %v1140
    %2838 = vmatpush1.bf16.msra.mxu0 %v1139
    %2839 = vmatprep.subr.bf16.mxu0 %v1148
    %2840 = vmatpush1.bf16.msra.mxu0 %v1147
    %2841 = vmatprep.subr.bf16.mxu0 %v1156
    %2842 = vmatpush1.bf16.msra.mxu0 %v1155
    %2843 = vmatprep.subr.bf16.mxu0 %v1164
    %2844 = vmatpush1.bf16.msra.mxu0 %v1163
    %2845 = vmatprep.subr.bf16.mxu0 %v1172
    %2846 = vmatpush1.bf16.msra.mxu0 %v1171
    %2847 = vmatprep.subr.bf16.mxu0 %v1180
    %2848 = vmatpush1.bf16.msra.mxu0 %v1179
    %2849 = vmatprep.subr.bf16.mxu0 %v1188
    %2850 = vmatpush1.bf16.msra.mxu0 %v1187
    %2851 = vmatprep.subr.bf16.mxu0 %v1196
    %2852 = vmatpush1.bf16.msra.mxu0 %v1195
    %2853 = vmatprep.subr.bf16.mxu0 %v1204
    %2854 = vmatpush1.bf16.msra.mxu0 %v1203
    %2855 = vmatprep.mubr.bf16.mxu0 %v2822
    %2856 = vmatmul.mubr.bf16.gmra.mrb[0].mxu0 %v2821
    %v2857 = vpop.f32.mrb[0].mxu0
    %v2858 = vadd.f32 0.0, %v2857
    %v2859 = vpop.f32.mrb[0].mxu0
    %v2860 = vadd.f32 0.0, %v2859
    %v2861 = vpop.f32.mrb[0].mxu0
    %v2862 = vpop.f32.mrb[0].mxu0
    %2863 = vdwg.mxu0
    %2864 = vmatprep.subr.bf16.mxu0 %v1086
    %2865 = vmatpush1.bf16.msra.mxu0 %v1085
    %2866 = vmatprep.subr.bf16.mxu0 %v1094
    %2867 = vmatpush1.bf16.msra.mxu0 %v1093
    %2868 = vmatprep.subr.bf16.mxu0 %v1102
    %2869 = vmatpush1.bf16.msra.mxu0 %v1101
    %2870 = vmatprep.subr.bf16.mxu0 %v1110
    %2871 = vmatpush1.bf16.msra.mxu0 %v1109
    %2872 = vmatprep.subr.bf16.mxu0 %v1118
    %2873 = vmatpush1.bf16.msra.mxu0 %v1117
    %2874 = vmatprep.subr.bf16.mxu0 %v1126
    %2875 = vmatpush1.bf16.msra.mxu0 %v1125
    %2876 = vmatprep.subr.bf16.mxu0 %v1134
    %2877 = vmatpush1.bf16.msra.mxu0 %v1133
    %2878 = vmatprep.subr.bf16.mxu0 %v1142
    %2879 = vmatpush1.bf16.msra.mxu0 %v1141
    %2880 = vmatprep.subr.bf16.mxu0 %v1150
    %2881 = vmatpush1.bf16.msra.mxu0 %v1149
    %2882 = vmatprep.subr.bf16.mxu0 %v1158
    %2883 = vmatpush1.bf16.msra.mxu0 %v1157
    %2884 = vmatprep.subr.bf16.mxu0 %v1166
    %2885 = vmatpush1.bf16.msra.mxu0 %v1165
    %2886 = vmatprep.subr.bf16.mxu0 %v1174
    %2887 = vmatpush1.bf16.msra.mxu0 %v1173
    %2888 = vmatprep.subr.bf16.mxu0 %v1182
    %2889 = vmatpush1.bf16.msra.mxu0 %v1181
    %2890 = vmatprep.subr.bf16.mxu0 %v1190
    %2891 = vmatpush1.bf16.msra.mxu0 %v1189
    %2892 = vmatprep.subr.bf16.mxu0 %v1198
    %2893 = vmatpush1.bf16.msra.mxu0 %v1197
    %2894 = vmatprep.subr.bf16.mxu0 %v1206
    %2895 = vmatpush1.bf16.msra.mxu0 %v1205
    %2896 = vmatprep.mubr.bf16.mxu0 %v2822
    %2897 = vmatmul.mubr.bf16.gmra.mrb[0].mxu0 %v2821
    %v2898 = vpop.f32.mrb[0].mxu0
    %v2899 = vadd.f32 0.0, %v2898
    %v2900 = vpop.f32.mrb[0].mxu0
    %v2901 = vadd.f32 0.0, %v2900
    %v2902 = vpop.f32.mrb[0].mxu0
    %v2903 = vpop.f32.mrb[0].mxu0
    %2904 = vdwg.mxu0
    %2905 = vmatprep.subr.bf16.mxu0 %v1088
    %2906 = vmatpush1.bf16.msra.mxu0 %v1087
    %2907 = vmatprep.subr.bf16.mxu0 %v1096
    %2908 = vmatpush1.bf16.msra.mxu0 %v1095
    %2909 = vmatprep.subr.bf16.mxu0 %v1104
    %2910 = vmatpush1.bf16.msra.mxu0 %v1103
    %2911 = vmatprep.subr.bf16.mxu0 %v1112
    %2912 = vmatpush1.bf16.msra.mxu0 %v1111
    %2913 = vmatprep.subr.bf16.mxu0 %v1120
    %2914 = vmatpush1.bf16.msra.mxu0 %v1119
    %2915 = vmatprep.subr.bf16.mxu0 %v1128
    %2916 = vmatpush1.bf16.msra.mxu0 %v1127
    %2917 = vmatprep.subr.bf16.mxu0 %v1136
    %2918 = vmatpush1.bf16.msra.mxu0 %v1135
    %2919 = vmatprep.subr.bf16.mxu0 %v1144
    %2920 = vmatpush1.bf16.msra.mxu0 %v1143
    %2921 = vmatprep.subr.bf16.mxu0 %v1152
    %2922 = vmatpush1.bf16.msra.mxu0 %v1151
    %2923 = vmatprep.subr.bf16.mxu0 %v1160
    %2924 = vmatpush1.bf16.msra.mxu0 %v1159
    %2925 = vmatprep.subr.bf16.mxu0 %v1168
    %2926 = vmatpush1.bf16.msra.mxu0 %v1167
    %2927 = vmatprep.subr.bf16.mxu0 %v1176
    %2928 = vmatpush1.bf16.msra.mxu0 %v1175
    %2929 = vmatprep.subr.bf16.mxu0 %v1184
    %2930 = vmatpush1.bf16.msra.mxu0 %v1183
    %2931 = vmatprep.subr.bf16.mxu0 %v1192
    %2932 = vmatpush1.bf16.msra.mxu0 %v1191
    %2933 = vmatprep.subr.bf16.mxu0 %v1200
    %2934 = vmatpush1.bf16.msra.mxu0 %v1199
    %2935 = vmatprep.subr.bf16.mxu0 %v1208
    %2936 = vmatpush1.bf16.msra.mxu0 %v1207
    %2937 = vmatprep.mubr.bf16.mxu0 %v2822
    %2938 = vmatmul.mubr.bf16.gmra.mrb[0].mxu0 %v2821
    %v2939 = vpop.f32.mrb[0].mxu0
    %v2940 = vadd.f32 0.0, %v2939
    %v2941 = vpop.f32.mrb[0].mxu0
    %v2942 = vadd.f32 0.0, %v2941
    %v2943 = vpop.f32.mrb[0].mxu0
    %v2944 = vpop.f32.mrb[0].mxu0
    %2945 = vdwg.mxu0
    %2946 = vmatprep.subr.bf16.mxu0 %v1090
    %2947 = vmatpush1.bf16.msra.mxu0 %v1089
    %2948 = vmatprep.subr.bf16.mxu0 %v1098
    %2949 = vmatpush1.bf16.msra.mxu0 %v1097
    %2950 = vmatprep.subr.bf16.mxu0 %v1106
    %2951 = vmatpush1.bf16.msra.mxu0 %v1105
    %2952 = vmatprep.subr.bf16.mxu0 %v1114
    %2953 = vmatpush1.bf16.msra.mxu0 %v1113
    %2954 = vmatprep.subr.bf16.mxu0 %v1122
    %2955 = vmatpush1.bf16.msra.mxu0 %v1121
    %2956 = vmatprep.subr.bf16.mxu0 %v1130
    %2957 = vmatpush1.bf16.msra.mxu0 %v1129
    %2958 = vmatprep.subr.bf16.mxu0 %v1138
    %2959 = vmatpush1.bf16.msra.mxu0 %v1137
    %2960 = vmatprep.subr.bf16.mxu0 %v1146
    %2961 = vmatpush1.bf16.msra.mxu0 %v1145
    %2962 = vmatprep.subr.bf16.mxu0 %v1154
    %2963 = vmatpush1.bf16.msra.mxu0 %v1153
    %2964 = vmatprep.subr.bf16.mxu0 %v1162
    %2965 = vmatpush1.bf16.msra.mxu0 %v1161
    %2966 = vmatprep.subr.bf16.mxu0 %v1170
    %2967 = vmatpush1.bf16.msra.mxu0 %v1169
    %2968 = vmatprep.subr.bf16.mxu0 %v1178
    %2969 = vmatpush1.bf16.msra.mxu0 %v1177
    %2970 = vmatprep.subr.bf16.mxu0 %v1186
    %2971 = vmatpush1.bf16.msra.mxu0 %v1185
    %2972 = vmatprep.subr.bf16.mxu0 %v1194
    %2973 = vmatpush1.bf16.msra.mxu0 %v1193
    %2974 = vmatprep.subr.bf16.mxu0 %v1202
    %2975 = vmatpush1.bf16.msra.mxu0 %v1201
    %2976 = vmatprep.subr.bf16.mxu0 %v1210
    %2977 = vmatpush1.bf16.msra.mxu0 %v1209
    %2978 = vmatprep.mubr.bf16.mxu0 %v2822
    %2979 = vmatmul.mubr.bf16.gmra.mrb[0].mxu0 %v2821
    %v2980 = vpop.f32.mrb[0].mxu0
    %v2981 = vadd.f32 0.0, %v2980
    %v2982 = vpop.f32.mrb[0].mxu0
    %v2983 = vadd.f32 0.0, %v2982
    %v2984 = vpop.f32.mrb[0].mxu0
    %v2985 = vpop.f32.mrb[0].mxu0
    %2986 = vdwg.mxu0
    %v2987 = vadd.f32 %v347, %v2858
    %v2988 = vadd.f32 %v349, %v2860
    %v2989 = vadd.f32 %v420, %v2899
    %v2990 = vadd.f32 %v422, %v2901
    %v2991 = vmul.f32 %v2987, 0.5
    %v2992 = vmul.f32 %v2988, 0.5
    %v2993 = vmul.f32 %v2989, 0.5
    %v2994 = vtanh.pop %v2991
    %v2995 = vtanh.pop %v2992
    %v2996 = vtanh.pop %v2993
    %v2997 = vmul.f32 %v2994, 0.5
    %v2998 = vmul.f32 %v2995, 0.5
    %v2999 = vmul.f32 %v2996, 0.5
    %v3000 = vadd.f32 %v2997, 0.5
    %v3001 = vadd.f32 %v2998, 0.5
    %v3002 = vadd.f32 %v2999, 0.5
    %v3003 = vtanh.pop %v2990
    %v3004 = vmul.f32 %v3001, %v2794
    %v3005 = vmul.f32 %v3000, %v3003
    %v3006 = vadd.f32 %v3004, %v3005
    %v3007 = vtanh.pop %v3006
    %v3008 = vmul.f32 %v3002, %v3007
    %v3009 = vadd.f32 %v459, %v2940
    %v3010 = vadd.f32 %v461, %v2942
    %v3011 = vadd.f32 %v532, %v2981
    %v3012 = vadd.f32 %v534, %v2983
    %v3013 = vmul.f32 %v3009, 0.5
    %v3014 = vmul.f32 %v3010, 0.5
    %v3015 = vmul.f32 %v3011, 0.5
    %v3016 = vtanh.pop %v3013
    %v3017 = vtanh.pop %v3014
    %v3018 = vtanh.pop %v3015
    %v3019 = vmul.f32 %v3016, 0.5
    %v3020 = vmul.f32 %v3017, 0.5
    %v3021 = vmul.f32 %v3018, 0.5
    %v3022 = vadd.f32 %v3019, 0.5
    %v3023 = vadd.f32 %v3020, 0.5
    %v3024 = vadd.f32 %v3021, 0.5
    %v3025 = vtanh.pop %v3012
    %v3026 = vmul.f32 %v3023, %v2816
    %v3027 = vmul.f32 %v3022, %v3025
    %v3028 = vadd.f32 %v3026, %v3027
    %v3029 = vtanh.pop %v3028
    %v3030 = vmul.f32 %v3024, %v3029
    %3031 = vst [vmem:[#allocation4 + $0x70] sm:$0xff] %v3008
    %3032 = vst [vmem:[#allocation4 + $0x8] sm:$0xff] %v3030
    %s3033 = smul.u32 4, 32
    %s3034 = smul.u32 %s3033, 8
    %s3035 = sshll.u32 %s3034, 4
    %3036 = dma.done [#allocation5], %s3035
    %s3037 = sshll.u32 %s3034, 4
    %3038 = dma.done %s80, %s3037
    %v3039 = vld [vmem:[#allocation4] sm:$0xff]
    %v3040 = vld [vmem:[#allocation4 + $0x8] sm:$0xff]
    %v3041 = vld [vmem:[#allocation4 + $0x10] sm:$0xff]
    %v3042 = vld [vmem:[#allocation4 + $0x18] sm:$0xff]
    %v3043 = vld [vmem:[#allocation4 + $0x20] sm:$0xff]
    %v3044 = vld [vmem:[#allocation4 + $0x28] sm:$0xff]
    %v3045 = vld [vmem:[#allocation4 + $0x30] sm:$0xff]
    %v3046 = vld [vmem:[#allocation4 + $0x38] sm:$0xff]
    %v3047 = vld [vmem:[#allocation4 + $0x40] sm:$0xff]
    %v3048 = vld [vmem:[#allocation4 + $0x48] sm:$0xff]
    %v3049 = vld [vmem:[#allocation4 + $0x50] sm:$0xff]
    %v3050 = vld [vmem:[#allocation4 + $0x58] sm:$0xff]
    %v3051 = vld [vmem:[#allocation4 + $0x60] sm:$0xff]
    %v3052 = vld [vmem:[#allocation4 + $0x68] sm:$0xff]
    %v3053 = vld [vmem:[#allocation4 + $0x70] sm:$0xff]
    %v3054 = vld [vmem:[#allocation4 + $0x78] sm:$0xff]
    %v3055 = vpack.c.bf16 %v3041, %v3039
    %v3056 = vpack.c.bf16 %v3042, %v3040
    %v3057 = vpack.c.bf16 %v3045, %v3043
    %v3058 = vpack.c.bf16 %v3046, %v3044
    %v3059 = vpack.c.bf16 %v3049, %v3047
    %v3060 = vpack.c.bf16 %v3050, %v3048
    %v3061 = vpack.c.bf16 %v3053, %v3051
    %v3062 = vpack.c.bf16 %v3054, %v3052
    %v3063 = vld [vmem:[#allocation2] sm:$0xff]
    %v3064 = vld [vmem:[#allocation2 + $0x8] sm:$0xff]
    %v3065 = vld [vmem:[#allocation2 + $0x10] sm:$0xff]
    %v3066 = vld [vmem:[#allocation2 + $0x18] sm:$0xff]
    %v3067 = vld [vmem:[#allocation2 + $0x20] sm:$0xff]
    %v3068 = vld [vmem:[#allocation2 + $0x28] sm:$0xff]
    %v3069 = vld [vmem:[#allocation2 + $0x30] sm:$0xff]
    %v3070 = vld [vmem:[#allocation2 + $0x38] sm:$0xff]
    %v3071 = vld [vmem:[#allocation2 + $0x40] sm:$0xff]
    %v3072 = vld [vmem:[#allocation2 + $0x48] sm:$0xff]
    %v3073 = vld [vmem:[#allocation2 + $0x50] sm:$0xff]
    %v3074 = vld [vmem:[#allocation2 + $0x58] sm:$0xff]
    %v3075 = vld [vmem:[#allocation2 + $0x60] sm:$0xff]
    %v3076 = vld [vmem:[#allocation2 + $0x68] sm:$0xff]
    %v3077 = vld [vmem:[#allocation2 + $0x70] sm:$0xff]
    %v3078 = vld [vmem:[#allocation2 + $0x78] sm:$0xff]
    %v3079 = vld [vmem:[#allocation2 + $0x80] sm:$0xff]
    %v3080 = vld [vmem:[#allocation2 + $0x88] sm:$0xff]
    %v3081 = vld [vmem:[#allocation2 + $0x90] sm:$0xff]
    %v3082 = vld [vmem:[#allocation2 + $0x98] sm:$0xff]
    %v3083 = vld [vmem:[#allocation2 + $0xa0] sm:$0xff]
    %v3084 = vld [vmem:[#allocation2 + $0xa8] sm:$0xff]
    %v3085 = vld [vmem:[#allocation2 + $0xb0] sm:$0xff]
    %v3086 = vld [vmem:[#allocation2 + $0xb8] sm:$0xff]
    %v3087 = vld [vmem:[#allocation2 + $0xc0] sm:$0xff]
    %v3088 = vld [vmem:[#allocation2 + $0xc8] sm:$0xff]
    %v3089 = vld [vmem:[#allocation2 + $0xd0] sm:$0xff]
    %v3090 = vld [vmem:[#allocation2 + $0xd8] sm:$0xff]
    %v3091 = vld [vmem:[#allocation2 + $0xe0] sm:$0xff]
    %v3092 = vld [vmem:[#allocation2 + $0xe8] sm:$0xff]
    %v3093 = vld [vmem:[#allocation2 + $0xf0] sm:$0xff]
    %v3094 = vld [vmem:[#allocation2 + $0xf8] sm:$0xff]
    %v3095 = vld [vmem:[#allocation2 + $0x100] sm:$0xff]
    %v3096 = vld [vmem:[#allocation2 + $0x108] sm:$0xff]
    %v3097 = vld [vmem:[#allocation2 + $0x110] sm:$0xff]
    %v3098 = vld [vmem:[#allocation2 + $0x118] sm:$0xff]
    %v3099 = vld [vmem:[#allocation2 + $0x120] sm:$0xff]
    %v3100 = vld [vmem:[#allocation2 + $0x128] sm:$0xff]
    %v3101 = vld [vmem:[#allocation2 + $0x130] sm:$0xff]
    %v3102 = vld [vmem:[#allocation2 + $0x138] sm:$0xff]
    %v3103 = vld [vmem:[#allocation2 + $0x140] sm:$0xff]
    %v3104 = vld [vmem:[#allocation2 + $0x148] sm:$0xff]
    %v3105 = vld [vmem:[#allocation2 + $0x150] sm:$0xff]
    %v3106 = vld [vmem:[#allocation2 + $0x158] sm:$0xff]
    %v3107 = vld [vmem:[#allocation2 + $0x160] sm:$0xff]
    %v3108 = vld [vmem:[#allocation2 + $0x168] sm:$0xff]
    %v3109 = vld [vmem:[#allocation2 + $0x170] sm:$0xff]
    %v3110 = vld [vmem:[#allocation2 + $0x178] sm:$0xff]
    %v3111 = vld [vmem:[#allocation2 + $0x180] sm:$0xff]
    %v3112 = vld [vmem:[#allocation2 + $0x188] sm:$0xff]
    %v3113 = vld [vmem:[#allocation2 + $0x190] sm:$0xff]
    %v3114 = vld [vmem:[#allocation2 + $0x198] sm:$0xff]
    %v3115 = vld [vmem:[#allocation2 + $0x1a0] sm:$0xff]
    %v3116 = vld [vmem:[#allocation2 + $0x1a8] sm:$0xff]
    %v3117 = vld [vmem:[#allocation2 + $0x1b0] sm:$0xff]
    %v3118 = vld [vmem:[#allocation2 + $0x1b8] sm:$0xff]
    %v3119 = vld [vmem:[#allocation2 + $0x1c0] sm:$0xff]
    %v3120 = vld [vmem:[#allocation2 + $0x1c8] sm:$0xff]
    %v3121 = vld [vmem:[#allocation2 + $0x1d0] sm:$0xff]
    %v3122 = vld [vmem:[#allocation2 + $0x1d8] sm:$0xff]
    %v3123 = vld [vmem:[#allocation2 + $0x1e0] sm:$0xff]
    %v3124 = vld [vmem:[#allocation2 + $0x1e8] sm:$0xff]
    %v3125 = vld [vmem:[#allocation2 + $0x1f0] sm:$0xff]
    %v3126 = vld [vmem:[#allocation2 + $0x1f8] sm:$0xff]
    %v3127 = vld [vmem:[#allocation2 + $0x200] sm:$0xff]
    %v3128 = vld [vmem:[#allocation2 + $0x208] sm:$0xff]
    %v3129 = vld [vmem:[#allocation2 + $0x210] sm:$0xff]
    %v3130 = vld [vmem:[#allocation2 + $0x218] sm:$0xff]
    %v3131 = vld [vmem:[#allocation2 + $0x220] sm:$0xff]
    %v3132 = vld [vmem:[#allocation2 + $0x228] sm:$0xff]
    %v3133 = vld [vmem:[#allocation2 + $0x230] sm:$0xff]
    %v3134 = vld [vmem:[#allocation2 + $0x238] sm:$0xff]
    %v3135 = vld [vmem:[#allocation2 + $0x240] sm:$0xff]
    %v3136 = vld [vmem:[#allocation2 + $0x248] sm:$0xff]
    %v3137 = vld [vmem:[#allocation2 + $0x250] sm:$0xff]
    %v3138 = vld [vmem:[#allocation2 + $0x258] sm:$0xff]
    %v3139 = vld [vmem:[#allocation2 + $0x260] sm:$0xff]
    %v3140 = vld [vmem:[#allocation2 + $0x268] sm:$0xff]
    %v3141 = vld [vmem:[#allocation2 + $0x270] sm:$0xff]
    %v3142 = vld [vmem:[#allocation2 + $0x278] sm:$0xff]
    %v3143 = vld [vmem:[#allocation2 + $0x280] sm:$0xff]
    %v3144 = vld [vmem:[#allocation2 + $0x288] sm:$0xff]
    %v3145 = vld [vmem:[#allocation2 + $0x290] sm:$0xff]
    %v3146 = vld [vmem:[#allocation2 + $0x298] sm:$0xff]
    %v3147 = vld [vmem:[#allocation2 + $0x2a0] sm:$0xff]
    %v3148 = vld [vmem:[#allocation2 + $0x2a8] sm:$0xff]
    %v3149 = vld [vmem:[#allocation2 + $0x2b0] sm:$0xff]
    %v3150 = vld [vmem:[#allocation2 + $0x2b8] sm:$0xff]
    %v3151 = vld [vmem:[#allocation2 + $0x2c0] sm:$0xff]
    %v3152 = vld [vmem:[#allocation2 + $0x2c8] sm:$0xff]
    %v3153 = vld [vmem:[#allocation2 + $0x2d0] sm:$0xff]
    %v3154 = vld [vmem:[#allocation2 + $0x2d8] sm:$0xff]
    %v3155 = vld [vmem:[#allocation2 + $0x2e0] sm:$0xff]
    %v3156 = vld [vmem:[#allocation2 + $0x2e8] sm:$0xff]
    %v3157 = vld [vmem:[#allocation2 + $0x2f0] sm:$0xff]
    %v3158 = vld [vmem:[#allocation2 + $0x2f8] sm:$0xff]
    %v3159 = vld [vmem:[#allocation2 + $0x300] sm:$0xff]
    %v3160 = vld [vmem:[#allocation2 + $0x308] sm:$0xff]
    %v3161 = vld [vmem:[#allocation2 + $0x310] sm:$0xff]
    %v3162 = vld [vmem:[#allocation2 + $0x318] sm:$0xff]
    %v3163 = vld [vmem:[#allocation2 + $0x320] sm:$0xff]
    %v3164 = vld [vmem:[#allocation2 + $0x328] sm:$0xff]
    %v3165 = vld [vmem:[#allocation2 + $0x330] sm:$0xff]
    %v3166 = vld [vmem:[#allocation2 + $0x338] sm:$0xff]
    %v3167 = vld [vmem:[#allocation2 + $0x340] sm:$0xff]
    %v3168 = vld [vmem:[#allocation2 + $0x348] sm:$0xff]
    %v3169 = vld [vmem:[#allocation2 + $0x350] sm:$0xff]
    %v3170 = vld [vmem:[#allocation2 + $0x358] sm:$0xff]
    %v3171 = vld [vmem:[#allocation2 + $0x360] sm:$0xff]
    %v3172 = vld [vmem:[#allocation2 + $0x368] sm:$0xff]
    %v3173 = vld [vmem:[#allocation2 + $0x370] sm:$0xff]
    %v3174 = vld [vmem:[#allocation2 + $0x378] sm:$0xff]
    %v3175 = vld [vmem:[#allocation2 + $0x380] sm:$0xff]
    %v3176 = vld [vmem:[#allocation2 + $0x388] sm:$0xff]
    %v3177 = vld [vmem:[#allocation2 + $0x390] sm:$0xff]
    %v3178 = vld [vmem:[#allocation2 + $0x398] sm:$0xff]
    %v3179 = vld [vmem:[#allocation2 + $0x3a0] sm:$0xff]
    %v3180 = vld [vmem:[#allocation2 + $0x3a8] sm:$0xff]
    %v3181 = vld [vmem:[#allocation2 + $0x3b0] sm:$0xff]
    %v3182 = vld [vmem:[#allocation2 + $0x3b8] sm:$0xff]
    %v3183 = vld [vmem:[#allocation2 + $0x3c0] sm:$0xff]
    %v3184 = vld [vmem:[#allocation2 + $0x3c8] sm:$0xff]
    %v3185 = vld [vmem:[#allocation2 + $0x3d0] sm:$0xff]
    %v3186 = vld [vmem:[#allocation2 + $0x3d8] sm:$0xff]
    %v3187 = vld [vmem:[#allocation2 + $0x3e0] sm:$0xff]
    %v3188 = vld [vmem:[#allocation2 + $0x3e8] sm:$0xff]
    %v3189 = vld [vmem:[#allocation2 + $0x3f0] sm:$0xff]
    %v3190 = vld [vmem:[#allocation2 + $0x3f8] sm:$0xff]
    %v3191 = vld [vmem:[%s6] sm:$0xff]
    %v3193 = vlaneseq
    %v3194 = vshrl.u32 %v3193, 7
    %v3195 = vsub.s32 0, %v3194
    %v3196 = vrot.slane %v3191, %v3195
    %v3197 = vlaneseq
    %v3198 = vshrl.u32 %v3197, 7
    %v3199 = vsub.s32 1, %v3198
    %v3200 = vrot.slane %v3191, %v3199
    %v3201 = vlaneseq
    %v3202 = vshrl.u32 %v3201, 7
    %v3203 = vsub.s32 2, %v3202
    %v3204 = vrot.slane %v3191, %v3203
    %v3205 = vlaneseq
    %v3206 = vshrl.u32 %v3205, 7
    %v3207 = vsub.s32 3, %v3206
    %v3208 = vrot.slane %v3191, %v3207
    %v3209 = vlaneseq
    %v3210 = vshrl.u32 %v3209, 7
    %v3211 = vsub.s32 4, %v3210
    %v3212 = vrot.slane %v3191, %v3211
    %v3213 = vlaneseq
    %v3214 = vshrl.u32 %v3213, 7
    %v3215 = vsub.s32 5, %v3214
    %v3216 = vrot.slane %v3191, %v3215
    %v3217 = vlaneseq
    %v3218 = vshrl.u32 %v3217, 7
    %v3219 = vsub.s32 6, %v3218
    %v3220 = vrot.slane %v3191, %v3219
    %v3221 = vlaneseq
    %v3222 = vshrl.u32 %v3221, 7
    %v3223 = vsub.s32 7, %v3222
    %v3224 = vrot.slane %v3191, %v3223
    %3233 = vmatprep.subr.bf16.mxu0 %v3064
    %3234 = vmatpush1.bf16.msra.mxu0 %v3063
    %3235 = vmatprep.subr.bf16.mxu0 %v3072
    %3236 = vmatpush1.bf16.msra.mxu0 %v3071
    %3237 = vmatprep.subr.bf16.mxu0 %v3080
    %3238 = vmatpush1.bf16.msra.mxu0 %v3079
    %3239 = vmatprep.subr.bf16.mxu0 %v3088
    %3240 = vmatpush1.bf16.msra.mxu0 %v3087
    %3241 = vmatprep.subr.bf16.mxu0 %v3096
    %3242 = vmatpush1.bf16.msra.mxu0 %v3095
    %3243 = vmatprep.subr.bf16.mxu0 %v3104
    %3244 = vmatpush1.bf16.msra.mxu0 %v3103
    %3245 = vmatprep.subr.bf16.mxu0 %v3112
    %3246 = vmatpush1.bf16.msra.mxu0 %v3111
    %3247 = vmatprep.subr.bf16.mxu0 %v3120
    %3248 = vmatpush1.bf16.msra.mxu0 %v3119
    %3249 = vmatprep.subr.bf16.mxu0 %v3128
    %3250 = vmatpush1.bf16.msra.mxu0 %v3127
    %3251 = vmatprep.subr.bf16.mxu0 %v3136
    %3252 = vmatpush1.bf16.msra.mxu0 %v3135
    %3253 = vmatprep.subr.bf16.mxu0 %v3144
    %3254 = vmatpush1.bf16.msra.mxu0 %v3143
    %3255 = vmatprep.subr.bf16.mxu0 %v3152
    %3256 = vmatpush1.bf16.msra.mxu0 %v3151
    %3257 = vmatprep.subr.bf16.mxu0 %v3160
    %3258 = vmatpush1.bf16.msra.mxu0 %v3159
    %3259 = vmatprep.subr.bf16.mxu0 %v3168
    %3260 = vmatpush1.bf16.msra.mxu0 %v3167
    %3261 = vmatprep.subr.bf16.mxu0 %v3176
    %3262 = vmatpush1.bf16.msra.mxu0 %v3175
    %3263 = vmatprep.subr.bf16.mxu0 %v3184
    %3264 = vmatpush1.bf16.msra.mxu0 %v3183
    %3265 = vmatprep.mubr.bf16.mxu0 %v3056
    %3266 = vmatmul.mubr.bf16.gmra.mrb[0].mxu0 %v3055
    %v3267 = vpop.f32.mrb[0].mxu0
    %v3268 = vadd.f32 %v3196, %v3267
    %v3269 = vpop.f32.mrb[0].mxu0
    %v3270 = vadd.f32 %v3200, %v3269
    %v3271 = vpop.f32.mrb[0].mxu0
    %v3272 = vadd.f32 %v3196, %v3271
    %v3273 = vpop.f32.mrb[0].mxu0
    %v3274 = vadd.f32 %v3200, %v3273
    %3275 = vmatprep.mubr.bf16.mxu0 %v3058
    %3276 = vmatmul.mubr.bf16.gmra.mrb[0].mxu0 %v3057
    %v3277 = vpop.f32.mrb[0].mxu0
    %v3278 = vadd.f32 %v3196, %v3277
    %v3279 = vpop.f32.mrb[0].mxu0
    %v3280 = vadd.f32 %v3200, %v3279
    %v3281 = vpop.f32.mrb[0].mxu0
    %v3282 = vadd.f32 %v3196, %v3281
    %v3283 = vpop.f32.mrb[0].mxu0
    %v3284 = vadd.f32 %v3200, %v3283
    %3285 = vmatprep.mubr.bf16.mxu0 %v3060
    %3286 = vmatmul.mubr.bf16.gmra.mrb[0].mxu0 %v3059
    %v3287 = vpop.f32.mrb[0].mxu0
    %v3288 = vadd.f32 %v3196, %v3287
    %v3289 = vpop.f32.mrb[0].mxu0
    %v3290 = vadd.f32 %v3200, %v3289
    %v3291 = vpop.f32.mrb[0].mxu0
    %v3292 = vadd.f32 %v3196, %v3291
    %v3293 = vpop.f32.mrb[0].mxu0
    %v3294 = vadd.f32 %v3200, %v3293
    %3295 = vmatprep.mubr.bf16.mxu0 %v3062
    %3296 = vmatmul.mubr.bf16.gmra.mrb[0].mxu0 %v3061
    %v3297 = vpop.f32.mrb[0].mxu0
    %v3298 = vadd.f32 %v3196, %v3297
    %v3299 = vpop.f32.mrb[0].mxu0
    %v3300 = vadd.f32 %v3200, %v3299
    %v3301 = vpop.f32.mrb[0].mxu0
    %v3302 = vadd.f32 %v3196, %v3301
    %v3303 = vpop.f32.mrb[0].mxu0
    %v3304 = vadd.f32 %v3200, %v3303
    %3305 = vdwg.mxu0
    %3306 = vmatprep.subr.bf16.mxu0 %v3066
    %3307 = vmatpush1.bf16.msra.mxu0 %v3065
    %3308 = vmatprep.subr.bf16.mxu0 %v3074
    %3309 = vmatpush1.bf16.msra.mxu0 %v3073
    %3310 = vmatprep.subr.bf16.mxu0 %v3082
    %3311 = vmatpush1.bf16.msra.mxu0 %v3081
    %3312 = vmatprep.subr.bf16.mxu0 %v3090
    %3313 = vmatpush1.bf16.msra.mxu0 %v3089
    %3314 = vmatprep.subr.bf16.mxu0 %v3098
    %3315 = vmatpush1.bf16.msra.mxu0 %v3097
    %3316 = vmatprep.subr.bf16.mxu0 %v3106
    %3317 = vmatpush1.bf16.msra.mxu0 %v3105
    %3318 = vmatprep.subr.bf16.mxu0 %v3114
    %3319 = vmatpush1.bf16.msra.mxu0 %v3113
    %3320 = vmatprep.subr.bf16.mxu0 %v3122
    %3321 = vmatpush1.bf16.msra.mxu0 %v3121
    %3322 = vmatprep.subr.bf16.mxu0 %v3130
    %3323 = vmatpush1.bf16.msra.mxu0 %v3129
    %3324 = vmatprep.subr.bf16.mxu0 %v3138
    %3325 = vmatpush1.bf16.msra.mxu0 %v3137
    %3326 = vmatprep.subr.bf16.mxu0 %v3146
    %3327 = vmatpush1.bf16.msra.mxu0 %v3145
    %3328 = vmatprep.subr.bf16.mxu0 %v3154
    %3329 = vmatpush1.bf16.msra.mxu0 %v3153
    %3330 = vmatprep.subr.bf16.mxu0 %v3162
    %3331 = vmatpush1.bf16.msra.mxu0 %v3161
    %3332 = vmatprep.subr.bf16.mxu0 %v3170
    %3333 = vmatpush1.bf16.msra.mxu0 %v3169
    %3334 = vmatprep.subr.bf16.mxu0 %v3178
    %3335 = vmatpush1.bf16.msra.mxu0 %v3177
    %3336 = vmatprep.subr.bf16.mxu0 %v3186
    %3337 = vmatpush1.bf16.msra.mxu0 %v3185
    %3338 = vmatprep.mubr.bf16.mxu0 %v3056
    %3339 = vmatmul.mubr.bf16.gmra.mrb[0].mxu0 %v3055
    %v3340 = vpop.f32.mrb[0].mxu0
    %v3341 = vadd.f32 %v3204, %v3340
    %v3342 = vpop.f32.mrb[0].mxu0
    %v3343 = vadd.f32 %v3208, %v3342
    %v3344 = vpop.f32.mrb[0].mxu0
    %v3345 = vadd.f32 %v3204, %v3344
    %v3346 = vpop.f32.mrb[0].mxu0
    %v3347 = vadd.f32 %v3208, %v3346
    %3348 = vmatprep.mubr.bf16.mxu0 %v3058
    %3349 = vmatmul.mubr.bf16.gmra.mrb[0].mxu0 %v3057
    %v3350 = vpop.f32.mrb[0].mxu0
    %v3351 = vadd.f32 %v3204, %v3350
    %v3352 = vpop.f32.mrb[0].mxu0
    %v3353 = vadd.f32 %v3208, %v3352
    %v3354 = vpop.f32.mrb[0].mxu0
    %v3355 = vadd.f32 %v3204, %v3354
    %v3356 = vpop.f32.mrb[0].mxu0
    %v3357 = vadd.f32 %v3208, %v3356
    %3358 = vmatprep.mubr.bf16.mxu0 %v3060
    %3359 = vmatmul.mubr.bf16.gmra.mrb[0].mxu0 %v3059
    %v3360 = vpop.f32.mrb[0].mxu0
    %v3361 = vadd.f32 %v3204, %v3360
    %v3362 = vpop.f32.mrb[0].mxu0
    %v3363 = vadd.f32 %v3208, %v3362
    %v3364 = vpop.f32.mrb[0].mxu0
    %v3365 = vadd.f32 %v3204, %v3364
    %v3366 = vpop.f32.mrb[0].mxu0
    %v3367 = vadd.f32 %v3208, %v3366
    %3368 = vmatprep.mubr.bf16.mxu0 %v3062
    %3369 = vmatmul.mubr.bf16.gmra.mrb[0].mxu0 %v3061
    %v3370 = vpop.f32.mrb[0].mxu0
    %v3371 = vadd.f32 %v3204, %v3370
    %v3372 = vpop.f32.mrb[0].mxu0
    %v3373 = vadd.f32 %v3208, %v3372
    %v3374 = vpop.f32.mrb[0].mxu0
    %v3375 = vadd.f32 %v3204, %v3374
    %v3376 = vpop.f32.mrb[0].mxu0
    %v3377 = vadd.f32 %v3208, %v3376
    %3378 = vdwg.mxu0
    %3379 = vmatprep.subr.bf16.mxu0 %v3068
    %3380 = vmatpush1.bf16.msra.mxu0 %v3067
    %3381 = vmatprep.subr.bf16.mxu0 %v3076
    %3382 = vmatpush1.bf16.msra.mxu0 %v3075
    %3383 = vmatprep.subr.bf16.mxu0 %v3084
    %3384 = vmatpush1.bf16.msra.mxu0 %v3083
    %3385 = vmatprep.subr.bf16.mxu0 %v3092
    %3386 = vmatpush1.bf16.msra.mxu0 %v3091
    %3387 = vmatprep.subr.bf16.mxu0 %v3100
    %3388 = vmatpush1.bf16.msra.mxu0 %v3099
    %3389 = vmatprep.subr.bf16.mxu0 %v3108
    %3390 = vmatpush1.bf16.msra.mxu0 %v3107
    %3391 = vmatprep.subr.bf16.mxu0 %v3116
    %3392 = vmatpush1.bf16.msra.mxu0 %v3115
    %3393 = vmatprep.subr.bf16.mxu0 %v3124
    %3394 = vmatpush1.bf16.msra.mxu0 %v3123
    %3395 = vmatprep.subr.bf16.mxu0 %v3132
    %3396 = vmatpush1.bf16.msra.mxu0 %v3131
    %3397 = vmatprep.subr.bf16.mxu0 %v3140
    %3398 = vmatpush1.bf16.msra.mxu0 %v3139
    %3399 = vmatprep.subr.bf16.mxu0 %v3148
    %3400 = vmatpush1.bf16.msra.mxu0 %v3147
    %3401 = vmatprep.subr.bf16.mxu0 %v3156
    %3402 = vmatpush1.bf16.msra.mxu0 %v3155
    %3403 = vmatprep.subr.bf16.mxu0 %v3164
    %3404 = vmatpush1.bf16.msra.mxu0 %v3163
    %3405 = vmatprep.subr.bf16.mxu0 %v3172
    %3406 = vmatpush1.bf16.msra.mxu0 %v3171
    %3407 = vmatprep.subr.bf16.mxu0 %v3180
    %3408 = vmatpush1.bf16.msra.mxu0 %v3179
    %3409 = vmatprep.subr.bf16.mxu0 %v3188
    %3410 = vmatpush1.bf16.msra.mxu0 %v3187
    %3411 = vmatprep.mubr.bf16.mxu0 %v3056
    %3412 = vmatmul.mubr.bf16.gmra.mrb[0].mxu0 %v3055
    %v3413 = vpop.f32.mrb[0].mxu0
    %v3414 = vpop.f32.mrb[0].mxu0
    %v3415 = vpop.f32.mrb[0].mxu0
    %v3416 = vadd.f32 %v3212, %v3415
    %v3417 = vpop.f32.mrb[0].mxu0
    %v3418 = vadd.f32 %v3216, %v3417
    %3419 = vmatprep.mubr.bf16.mxu0 %v3058
    %3420 = vmatmul.mubr.bf16.gmra.mrb[0].mxu0 %v3057
    %v3421 = vpop.f32.mrb[0].mxu0
    %v3422 = vadd.f32 %v3212, %v3421
    %v3423 = vpop.f32.mrb[0].mxu0
    %v3424 = vadd.f32 %v3216, %v3423
    %v3425 = vpop.f32.mrb[0].mxu0
    %v3426 = vadd.f32 %v3212, %v3425
    %v3427 = vpop.f32.mrb[0].mxu0
    %v3428 = vadd.f32 %v3216, %v3427
    %3429 = vmatprep.mubr.bf16.mxu0 %v3060
    %3430 = vmatmul.mubr.bf16.gmra.mrb[0].mxu0 %v3059
    %v3431 = vpop.f32.mrb[0].mxu0
    %v3432 = vadd.f32 %v3212, %v3431
    %v3433 = vpop.f32.mrb[0].mxu0
    %v3434 = vadd.f32 %v3216, %v3433
    %v3435 = vpop.f32.mrb[0].mxu0
    %v3436 = vadd.f32 %v3212, %v3435
    %v3437 = vpop.f32.mrb[0].mxu0
    %v3438 = vadd.f32 %v3216, %v3437
    %3439 = vmatprep.mubr.bf16.mxu0 %v3062
    %3440 = vmatmul.mubr.bf16.gmra.mrb[0].mxu0 %v3061
    %v3441 = vpop.f32.mrb[0].mxu0
    %v3442 = vadd.f32 %v3212, %v3441
    %v3443 = vpop.f32.mrb[0].mxu0
    %v3444 = vadd.f32 %v3216, %v3443
    %v3445 = vpop.f32.mrb[0].mxu0
    %v3446 = vadd.f32 %v3212, %v3445
    %v3447 = vpop.f32.mrb[0].mxu0
    %v3448 = vadd.f32 %v3216, %v3447
    %3449 = vdwg.mxu0
    %3450 = vmatprep.subr.bf16.mxu0 %v3070
    %3451 = vmatpush1.bf16.msra.mxu0 %v3069
    %3452 = vmatprep.subr.bf16.mxu0 %v3078
    %3453 = vmatpush1.bf16.msra.mxu0 %v3077
    %3454 = vmatprep.subr.bf16.mxu0 %v3086
    %3455 = vmatpush1.bf16.msra.mxu0 %v3085
    %3456 = vmatprep.subr.bf16.mxu0 %v3094
    %3457 = vmatpush1.bf16.msra.mxu0 %v3093
    %3458 = vmatprep.subr.bf16.mxu0 %v3102
    %3459 = vmatpush1.bf16.msra.mxu0 %v3101
    %3460 = vmatprep.subr.bf16.mxu0 %v3110
    %3461 = vmatpush1.bf16.msra.mxu0 %v3109
    %3462 = vmatprep.subr.bf16.mxu0 %v3118
    %3463 = vmatpush1.bf16.msra.mxu0 %v3117
    %3464 = vmatprep.subr.bf16.mxu0 %v3126
    %3465 = vmatpush1.bf16.msra.mxu0 %v3125
    %3466 = vmatprep.subr.bf16.mxu0 %v3134
    %3467 = vmatpush1.bf16.msra.mxu0 %v3133
    %3468 = vmatprep.subr.bf16.mxu0 %v3142
    %3469 = vmatpush1.bf16.msra.mxu0 %v3141
    %3470 = vmatprep.subr.bf16.mxu0 %v3150
    %3471 = vmatpush1.bf16.msra.mxu0 %v3149
    %3472 = vmatprep.subr.bf16.mxu0 %v3158
    %3473 = vmatpush1.bf16.msra.mxu0 %v3157
    %3474 = vmatprep.subr.bf16.mxu0 %v3166
    %3475 = vmatpush1.bf16.msra.mxu0 %v3165
    %3476 = vmatprep.subr.bf16.mxu0 %v3174
    %3477 = vmatpush1.bf16.msra.mxu0 %v3173
    %3478 = vmatprep.subr.bf16.mxu0 %v3182
    %3479 = vmatpush1.bf16.msra.mxu0 %v3181
    %3480 = vmatprep.subr.bf16.mxu0 %v3190
    %3481 = vmatpush1.bf16.msra.mxu0 %v3189
    %3482 = vmatprep.mubr.bf16.mxu0 %v3056
    %3483 = vmatmul.mubr.bf16.gmra.mrb[0].mxu0 %v3055
    %v3484 = vpop.f32.mrb[0].mxu0
    %v3485 = vpop.f32.mrb[0].mxu0
    %v3486 = vpop.f32.mrb[0].mxu0
    %v3487 = vadd.f32 %v3220, %v3486
    %v3488 = vpop.f32.mrb[0].mxu0
    %v3489 = vadd.f32 %v3224, %v3488
    %3490 = vmatprep.mubr.bf16.mxu0 %v3058
    %3491 = vmatmul.mubr.bf16.gmra.mrb[0].mxu0 %v3057
    %v3492 = vpop.f32.mrb[0].mxu0
    %v3493 = vadd.f32 %v3220, %v3492
    %v3494 = vpop.f32.mrb[0].mxu0
    %v3495 = vadd.f32 %v3224, %v3494
    %v3496 = vpop.f32.mrb[0].mxu0
    %v3497 = vadd.f32 %v3220, %v3496
    %v3498 = vpop.f32.mrb[0].mxu0
    %v3499 = vadd.f32 %v3224, %v3498
    %3500 = vmatprep.mubr.bf16.mxu0 %v3060
    %3501 = vmatmul.mubr.bf16.gmra.mrb[0].mxu0 %v3059
    %v3502 = vpop.f32.mrb[0].mxu0
    %v3503 = vadd.f32 %v3220, %v3502
    %v3504 = vpop.f32.mrb[0].mxu0
    %v3505 = vadd.f32 %v3224, %v3504
    %v3506 = vpop.f32.mrb[0].mxu0
    %v3507 = vadd.f32 %v3220, %v3506
    %v3508 = vpop.f32.mrb[0].mxu0
    %v3509 = vadd.f32 %v3224, %v3508
    %3510 = vmatprep.mubr.bf16.mxu0 %v3062
    %3511 = vmatmul.mubr.bf16.gmra.mrb[0].mxu0 %v3061
    %v3512 = vpop.f32.mrb[0].mxu0
    %v3513 = vadd.f32 %v3220, %v3512
    %v3514 = vpop.f32.mrb[0].mxu0
    %v3515 = vadd.f32 %v3224, %v3514
    %v3516 = vpop.f32.mrb[0].mxu0
    %v3517 = vadd.f32 %v3220, %v3516
    %v3518 = vpop.f32.mrb[0].mxu0
    %v3519 = vadd.f32 %v3224, %v3518
    %3520 = vdwg.mxu0
    %v3521 = vld [vmem:[#allocation3] sm:$0xff]
    %v3522 = vld [vmem:[#allocation3 + $0x8] sm:$0xff]
    %v3523 = vld [vmem:[#allocation3 + $0x10] sm:$0xff]
    %v3524 = vld [vmem:[#allocation3 + $0x18] sm:$0xff]
    %v3525 = vld [vmem:[#allocation3 + $0x20] sm:$0xff]
    %v3526 = vld [vmem:[#allocation3 + $0x28] sm:$0xff]
    %v3527 = vld [vmem:[#allocation3 + $0x30] sm:$0xff]
    %v3528 = vld [vmem:[#allocation3 + $0x38] sm:$0xff]
    %v3529 = vld [vmem:[#allocation3 + $0x40] sm:$0xff]
    %v3530 = vld [vmem:[#allocation3 + $0x48] sm:$0xff]
    %v3531 = vld [vmem:[#allocation3 + $0x50] sm:$0xff]
    %v3532 = vld [vmem:[#allocation3 + $0x58] sm:$0xff]
    %v3533 = vld [vmem:[#allocation3 + $0x60] sm:$0xff]
    %v3534 = vld [vmem:[#allocation3 + $0x68] sm:$0xff]
    %v3535 = vld [vmem:[#allocation3 + $0x70] sm:$0xff]
    %v3536 = vld [vmem:[#allocation3 + $0x78] sm:$0xff]
    %v3537 = vld [vmem:[#allocation3 + $0x80] sm:$0xff]
    %v3538 = vld [vmem:[#allocation3 + $0x88] sm:$0xff]
    %v3539 = vld [vmem:[#allocation3 + $0x90] sm:$0xff]
    %v3540 = vld [vmem:[#allocation3 + $0x98] sm:$0xff]
    %v3541 = vld [vmem:[#allocation3 + $0xa0] sm:$0xff]
    %v3542 = vld [vmem:[#allocation3 + $0xa8] sm:$0xff]
    %v3543 = vld [vmem:[#allocation3 + $0xb0] sm:$0xff]
    %v3544 = vld [vmem:[#allocation3 + $0xb8] sm:$0xff]
    %v3545 = vld [vmem:[#allocation3 + $0xc0] sm:$0xff]
    %v3546 = vld [vmem:[#allocation3 + $0xc8] sm:$0xff]
    %v3547 = vld [vmem:[#allocation3 + $0xd0] sm:$0xff]
    %v3548 = vld [vmem:[#allocation3 + $0xd8] sm:$0xff]
    %v3549 = vld [vmem:[#allocation3 + $0xe0] sm:$0xff]
    %v3550 = vld [vmem:[#allocation3 + $0xe8] sm:$0xff]
    %v3551 = vld [vmem:[#allocation3 + $0xf0] sm:$0xff]
    %v3552 = vld [vmem:[#allocation3 + $0xf8] sm:$0xff]
    %v3553 = vld [vmem:[#allocation3 + $0x100] sm:$0xff]
    %v3554 = vld [vmem:[#allocation3 + $0x108] sm:$0xff]
    %v3555 = vld [vmem:[#allocation3 + $0x110] sm:$0xff]
    %v3556 = vld [vmem:[#allocation3 + $0x118] sm:$0xff]
    %v3557 = vld [vmem:[#allocation3 + $0x120] sm:$0xff]
    %v3558 = vld [vmem:[#allocation3 + $0x128] sm:$0xff]
    %v3559 = vld [vmem:[#allocation3 + $0x130] sm:$0xff]
    %v3560 = vld [vmem:[#allocation3 + $0x138] sm:$0xff]
    %v3561 = vld [vmem:[#allocation3 + $0x140] sm:$0xff]
    %v3562 = vld [vmem:[#allocation3 + $0x148] sm:$0xff]
    %v3563 = vld [vmem:[#allocation3 + $0x150] sm:$0xff]
    %v3564 = vld [vmem:[#allocation3 + $0x158] sm:$0xff]
    %v3565 = vld [vmem:[#allocation3 + $0x160] sm:$0xff]
    %v3566 = vld [vmem:[#allocation3 + $0x168] sm:$0xff]
    %v3567 = vld [vmem:[#allocation3 + $0x170] sm:$0xff]
    %v3568 = vld [vmem:[#allocation3 + $0x178] sm:$0xff]
    %v3569 = vld [vmem:[#allocation3 + $0x180] sm:$0xff]
    %v3570 = vld [vmem:[#allocation3 + $0x188] sm:$0xff]
    %v3571 = vld [vmem:[#allocation3 + $0x190] sm:$0xff]
    %v3572 = vld [vmem:[#allocation3 + $0x198] sm:$0xff]
    %v3573 = vld [vmem:[#allocation3 + $0x1a0] sm:$0xff]
    %v3574 = vld [vmem:[#allocation3 + $0x1a8] sm:$0xff]
    %v3575 = vld [vmem:[#allocation3 + $0x1b0] sm:$0xff]
    %v3576 = vld [vmem:[#allocation3 + $0x1b8] sm:$0xff]
    %v3577 = vld [vmem:[#allocation3 + $0x1c0] sm:$0xff]
    %v3578 = vld [vmem:[#allocation3 + $0x1c8] sm:$0xff]
    %v3579 = vld [vmem:[#allocation3 + $0x1d0] sm:$0xff]
    %v3580 = vld [vmem:[#allocation3 + $0x1d8] sm:$0xff]
    %v3581 = vld [vmem:[#allocation3 + $0x1e0] sm:$0xff]
    %v3582 = vld [vmem:[#allocation3 + $0x1e8] sm:$0xff]
    %v3583 = vld [vmem:[#allocation3 + $0x1f0] sm:$0xff]
    %v3584 = vld [vmem:[#allocation3 + $0x1f8] sm:$0xff]
    %v3585 = vld [vmem:[#allocation3 + $0x200] sm:$0xff]
    %v3586 = vld [vmem:[#allocation3 + $0x208] sm:$0xff]
    %v3587 = vld [vmem:[#allocation3 + $0x210] sm:$0xff]
    %v3588 = vld [vmem:[#allocation3 + $0x218] sm:$0xff]
    %v3589 = vld [vmem:[#allocation3 + $0x220] sm:$0xff]
    %v3590 = vld [vmem:[#allocation3 + $0x228] sm:$0xff]
    %v3591 = vld [vmem:[#allocation3 + $0x230] sm:$0xff]
    %v3592 = vld [vmem:[#allocation3 + $0x238] sm:$0xff]
    %v3593 = vld [vmem:[#allocation3 + $0x240] sm:$0xff]
    %v3594 = vld [vmem:[#allocation3 + $0x248] sm:$0xff]
    %v3595 = vld [vmem:[#allocation3 + $0x250] sm:$0xff]
    %v3596 = vld [vmem:[#allocation3 + $0x258] sm:$0xff]
    %v3597 = vld [vmem:[#allocation3 + $0x260] sm:$0xff]
    %v3598 = vld [vmem:[#allocation3 + $0x268] sm:$0xff]
    %v3599 = vld [vmem:[#allocation3 + $0x270] sm:$0xff]
    %v3600 = vld [vmem:[#allocation3 + $0x278] sm:$0xff]
    %v3601 = vld [vmem:[#allocation3 + $0x280] sm:$0xff]
    %v3602 = vld [vmem:[#allocation3 + $0x288] sm:$0xff]
    %v3603 = vld [vmem:[#allocation3 + $0x290] sm:$0xff]
    %v3604 = vld [vmem:[#allocation3 + $0x298] sm:$0xff]
    %v3605 = vld [vmem:[#allocation3 + $0x2a0] sm:$0xff]
    %v3606 = vld [vmem:[#allocation3 + $0x2a8] sm:$0xff]
    %v3607 = vld [vmem:[#allocation3 + $0x2b0] sm:$0xff]
    %v3608 = vld [vmem:[#allocation3 + $0x2b8] sm:$0xff]
    %v3609 = vld [vmem:[#allocation3 + $0x2c0] sm:$0xff]
    %v3610 = vld [vmem:[#allocation3 + $0x2c8] sm:$0xff]
    %v3611 = vld [vmem:[#allocation3 + $0x2d0] sm:$0xff]
    %v3612 = vld [vmem:[#allocation3 + $0x2d8] sm:$0xff]
    %v3613 = vld [vmem:[#allocation3 + $0x2e0] sm:$0xff]
    %v3614 = vld [vmem:[#allocation3 + $0x2e8] sm:$0xff]
    %v3615 = vld [vmem:[#allocation3 + $0x2f0] sm:$0xff]
    %v3616 = vld [vmem:[#allocation3 + $0x2f8] sm:$0xff]
    %v3617 = vld [vmem:[#allocation3 + $0x300] sm:$0xff]
    %v3618 = vld [vmem:[#allocation3 + $0x308] sm:$0xff]
    %v3619 = vld [vmem:[#allocation3 + $0x310] sm:$0xff]
    %v3620 = vld [vmem:[#allocation3 + $0x318] sm:$0xff]
    %v3621 = vld [vmem:[#allocation3 + $0x320] sm:$0xff]
    %v3622 = vld [vmem:[#allocation3 + $0x328] sm:$0xff]
    %v3623 = vld [vmem:[#allocation3 + $0x330] sm:$0xff]
    %v3624 = vld [vmem:[#allocation3 + $0x338] sm:$0xff]
    %v3625 = vld [vmem:[#allocation3 + $0x340] sm:$0xff]
    %v3626 = vld [vmem:[#allocation3 + $0x348] sm:$0xff]
    %v3627 = vld [vmem:[#allocation3 + $0x350] sm:$0xff]
    %v3628 = vld [vmem:[#allocation3 + $0x358] sm:$0xff]
    %v3629 = vld [vmem:[#allocation3 + $0x360] sm:$0xff]
    %v3630 = vld [vmem:[#allocation3 + $0x368] sm:$0xff]
    %v3631 = vld [vmem:[#allocation3 + $0x370] sm:$0xff]
    %v3632 = vld [vmem:[#allocation3 + $0x378] sm:$0xff]
    %v3633 = vld [vmem:[#allocation3 + $0x380] sm:$0xff]
    %v3634 = vld [vmem:[#allocation3 + $0x388] sm:$0xff]
    %v3635 = vld [vmem:[#allocation3 + $0x390] sm:$0xff]
    %v3636 = vld [vmem:[#allocation3 + $0x398] sm:$0xff]
    %v3637 = vld [vmem:[#allocation3 + $0x3a0] sm:$0xff]
    %v3638 = vld [vmem:[#allocation3 + $0x3a8] sm:$0xff]
    %v3639 = vld [vmem:[#allocation3 + $0x3b0] sm:$0xff]
    %v3640 = vld [vmem:[#allocation3 + $0x3b8] sm:$0xff]
    %v3641 = vld [vmem:[#allocation3 + $0x3c0] sm:$0xff]
    %v3642 = vld [vmem:[#allocation3 + $0x3c8] sm:$0xff]
    %v3643 = vld [vmem:[#allocation3 + $0x3d0] sm:$0xff]
    %v3644 = vld [vmem:[#allocation3 + $0x3d8] sm:$0xff]
    %v3645 = vld [vmem:[#allocation3 + $0x3e0] sm:$0xff]
    %v3646 = vld [vmem:[#allocation3 + $0x3e8] sm:$0xff]
    %v3647 = vld [vmem:[#allocation3 + $0x3f0] sm:$0xff]
    %v3648 = vld [vmem:[#allocation3 + $0x3f8] sm:$0xff]
    %3649 = vmatprep.subr.bf16.mxu0 %v3522
    %3650 = vmatpush1.bf16.msra.mxu0 %v3521
    %3651 = vmatprep.subr.bf16.mxu0 %v3530
    %3652 = vmatpush1.bf16.msra.mxu0 %v3529
    %3653 = vmatprep.subr.bf16.mxu0 %v3538
    %3654 = vmatpush1.bf16.msra.mxu0 %v3537
    %3655 = vmatprep.subr.bf16.mxu0 %v3546
    %3656 = vmatpush1.bf16.msra.mxu0 %v3545
    %3657 = vmatprep.subr.bf16.mxu0 %v3554
    %3658 = vmatpush1.bf16.msra.mxu0 %v3553
    %3659 = vmatprep.subr.bf16.mxu0 %v3562
    %3660 = vmatpush1.bf16.msra.mxu0 %v3561
    %3661 = vmatprep.subr.bf16.mxu0 %v3570
    %3662 = vmatpush1.bf16.msra.mxu0 %v3569
    %3663 = vmatprep.subr.bf16.mxu0 %v3578
    %3664 = vmatpush1.bf16.msra.mxu0 %v3577
    %3665 = vmatprep.subr.bf16.mxu0 %v3586
    %3666 = vmatpush1.bf16.msra.mxu0 %v3585
    %3667 = vmatprep.subr.bf16.mxu0 %v3594
    %3668 = vmatpush1.bf16.msra.mxu0 %v3593
    %3669 = vmatprep.subr.bf16.mxu0 %v3602
    %3670 = vmatpush1.bf16.msra.mxu0 %v3601
    %3671 = vmatprep.subr.bf16.mxu0 %v3610
    %3672 = vmatpush1.bf16.msra.mxu0 %v3609
    %3673 = vmatprep.subr.bf16.mxu0 %v3618
    %3674 = vmatpush1.bf16.msra.mxu0 %v3617
    %3675 = vmatprep.subr.bf16.mxu0 %v3626
    %3676 = vmatpush1.bf16.msra.mxu0 %v3625
    %3677 = vmatprep.subr.bf16.mxu0 %v3634
    %3678 = vmatpush1.bf16.msra.mxu0 %v3633
    %3679 = vmatprep.subr.bf16.mxu0 %v3642
    %3680 = vmatpush1.bf16.msra.mxu0 %v3641
    %3681 = vmatprep.mubr.bf16.mxu0 %v698
    %3682 = vmatmul.mubr.bf16.gmra.mrb[0].mxu0 %v698
    %v3683 = vpop.f32.mrb[0].mxu0
    %v3684 = vadd.f32 0.0, %v3683
    %v3685 = vpop.f32.mrb[0].mxu0
    %v3686 = vadd.f32 0.0, %v3685
    %v3687 = vpop.f32.mrb[0].mxu0
    %v3688 = vpop.f32.mrb[0].mxu0
    %3689 = vdwg.mxu0
    %3690 = vmatprep.subr.bf16.mxu0 %v3524
    %3691 = vmatpush1.bf16.msra.mxu0 %v3523
    %3692 = vmatprep.subr.bf16.mxu0 %v3532
    %3693 = vmatpush1.bf16.msra.mxu0 %v3531
    %3694 = vmatprep.subr.bf16.mxu0 %v3540
    %3695 = vmatpush1.bf16.msra.mxu0 %v3539
    %3696 = vmatprep.subr.bf16.mxu0 %v3548
    %3697 = vmatpush1.bf16.msra.mxu0 %v3547
    %3698 = vmatprep.subr.bf16.mxu0 %v3556
    %3699 = vmatpush1.bf16.msra.mxu0 %v3555
    %3700 = vmatprep.subr.bf16.mxu0 %v3564
    %3701 = vmatpush1.bf16.msra.mxu0 %v3563
    %3702 = vmatprep.subr.bf16.mxu0 %v3572
    %3703 = vmatpush1.bf16.msra.mxu0 %v3571
    %3704 = vmatprep.subr.bf16.mxu0 %v3580
    %3705 = vmatpush1.bf16.msra.mxu0 %v3579
    %3706 = vmatprep.subr.bf16.mxu0 %v3588
    %3707 = vmatpush1.bf16.msra.mxu0 %v3587
    %3708 = vmatprep.subr.bf16.mxu0 %v3596
    %3709 = vmatpush1.bf16.msra.mxu0 %v3595
    %3710 = vmatprep.subr.bf16.mxu0 %v3604
    %3711 = vmatpush1.bf16.msra.mxu0 %v3603
    %3712 = vmatprep.subr.bf16.mxu0 %v3612
    %3713 = vmatpush1.bf16.msra.mxu0 %v3611
    %3714 = vmatprep.subr.bf16.mxu0 %v3620
    %3715 = vmatpush1.bf16.msra.mxu0 %v3619
    %3716 = vmatprep.subr.bf16.mxu0 %v3628
    %3717 = vmatpush1.bf16.msra.mxu0 %v3627
    %3718 = vmatprep.subr.bf16.mxu0 %v3636
    %3719 = vmatpush1.bf16.msra.mxu0 %v3635
    %3720 = vmatprep.subr.bf16.mxu0 %v3644
    %3721 = vmatpush1.bf16.msra.mxu0 %v3643
    %3722 = vmatprep.mubr.bf16.mxu0 %v698
    %3723 = vmatmul.mubr.bf16.gmra.mrb[0].mxu0 %v698
    %v3724 = vpop.f32.mrb[0].mxu0
    %v3725 = vadd.f32 0.0, %v3724
    %v3726 = vpop.f32.mrb[0].mxu0
    %v3727 = vadd.f32 0.0, %v3726
    %v3728 = vpop.f32.mrb[0].mxu0
    %v3729 = vpop.f32.mrb[0].mxu0
    %3730 = vdwg.mxu0
    %3731 = vmatprep.subr.bf16.mxu0 %v3526
    %3732 = vmatpush1.bf16.msra.mxu0 %v3525
    %3733 = vmatprep.subr.bf16.mxu0 %v3534
    %3734 = vmatpush1.bf16.msra.mxu0 %v3533
    %3735 = vmatprep.subr.bf16.mxu0 %v3542
    %3736 = vmatpush1.bf16.msra.mxu0 %v3541
    %3737 = vmatprep.subr.bf16.mxu0 %v3550
    %3738 = vmatpush1.bf16.msra.mxu0 %v3549
    %3739 = vmatprep.subr.bf16.mxu0 %v3558
    %3740 = vmatpush1.bf16.msra.mxu0 %v3557
    %3741 = vmatprep.subr.bf16.mxu0 %v3566
    %3742 = vmatpush1.bf16.msra.mxu0 %v3565
    %3743 = vmatprep.subr.bf16.mxu0 %v3574
    %3744 = vmatpush1.bf16.msra.mxu0 %v3573
    %3745 = vmatprep.subr.bf16.mxu0 %v3582
    %3746 = vmatpush1.bf16.msra.mxu0 %v3581
    %3747 = vmatprep.subr.bf16.mxu0 %v3590
    %3748 = vmatpush1.bf16.msra.mxu0 %v3589
    %3749 = vmatprep.subr.bf16.mxu0 %v3598
    %3750 = vmatpush1.bf16.msra.mxu0 %v3597
    %3751 = vmatprep.subr.bf16.mxu0 %v3606
    %3752 = vmatpush1.bf16.msra.mxu0 %v3605
    %3753 = vmatprep.subr.bf16.mxu0 %v3614
    %3754 = vmatpush1.bf16.msra.mxu0 %v3613
    %3755 = vmatprep.subr.bf16.mxu0 %v3622
    %3756 = vmatpush1.bf16.msra.mxu0 %v3621
    %3757 = vmatprep.subr.bf16.mxu0 %v3630
    %3758 = vmatpush1.bf16.msra.mxu0 %v3629
    %3759 = vmatprep.subr.bf16.mxu0 %v3638
    %3760 = vmatpush1.bf16.msra.mxu0 %v3637
    %3761 = vmatprep.subr.bf16.mxu0 %v3646
    %3762 = vmatpush1.bf16.msra.mxu0 %v3645
    %3763 = vmatprep.mubr.bf16.mxu0 %v698
    %3764 = vmatmul.mubr.bf16.gmra.mrb[0].mxu0 %v698
    %v3765 = vpop.f32.mrb[0].mxu0
    %v3766 = vadd.f32 0.0, %v3765
    %v3767 = vpop.f32.mrb[0].mxu0
    %v3768 = vadd.f32 0.0, %v3767
    %v3769 = vpop.f32.mrb[0].mxu0
    %v3770 = vpop.f32.mrb[0].mxu0
    %3771 = vdwg.mxu0
    %3772 = vmatprep.subr.bf16.mxu0 %v3528
    %3773 = vmatpush1.bf16.msra.mxu0 %v3527
    %3774 = vmatprep.subr.bf16.mxu0 %v3536
    %3775 = vmatpush1.bf16.msra.mxu0 %v3535
    %3776 = vmatprep.subr.bf16.mxu0 %v3544
    %3777 = vmatpush1.bf16.msra.mxu0 %v3543
    %3778 = vmatprep.subr.bf16.mxu0 %v3552
    %3779 = vmatpush1.bf16.msra.mxu0 %v3551
    %3780 = vmatprep.subr.bf16.mxu0 %v3560
    %3781 = vmatpush1.bf16.msra.mxu0 %v3559
    %3782 = vmatprep.subr.bf16.mxu0 %v3568
    %3783 = vmatpush1.bf16.msra.mxu0 %v3567
    %3784 = vmatprep.subr.bf16.mxu0 %v3576
    %3785 = vmatpush1.bf16.msra.mxu0 %v3575
    %3786 = vmatprep.subr.bf16.mxu0 %v3584
    %3787 = vmatpush1.bf16.msra.mxu0 %v3583
    %3788 = vmatprep.subr.bf16.mxu0 %v3592
    %3789 = vmatpush1.bf16.msra.mxu0 %v3591
    %3790 = vmatprep.subr.bf16.mxu0 %v3600
    %3791 = vmatpush1.bf16.msra.mxu0 %v3599
    %3792 = vmatprep.subr.bf16.mxu0 %v3608
    %3793 = vmatpush1.bf16.msra.mxu0 %v3607
    %3794 = vmatprep.subr.bf16.mxu0 %v3616
    %3795 = vmatpush1.bf16.msra.mxu0 %v3615
    %3796 = vmatprep.subr.bf16.mxu0 %v3624
    %3797 = vmatpush1.bf16.msra.mxu0 %v3623
    %3798 = vmatprep.subr.bf16.mxu0 %v3632
    %3799 = vmatpush1.bf16.msra.mxu0 %v3631
    %3800 = vmatprep.subr.bf16.mxu0 %v3640
    %3801 = vmatpush1.bf16.msra.mxu0 %v3639
    %3802 = vmatprep.subr.bf16.mxu0 %v3648
    %3803 = vmatpush1.bf16.msra.mxu0 %v3647
    %3804 = vmatprep.mubr.bf16.mxu0 %v698
    %3805 = vmatmul.mubr.bf16.gmra.mrb[0].mxu0 %v698
    %v3806 = vpop.f32.mrb[0].mxu0
    %v3807 = vadd.f32 0.0, %v3806
    %v3808 = vpop.f32.mrb[0].mxu0
    %v3809 = vadd.f32 0.0, %v3808
    %v3810 = vpop.f32.mrb[0].mxu0
    %v3811 = vpop.f32.mrb[0].mxu0
    %3812 = vdwg.mxu0
    %v3813 = vadd.f32 %v3268, %v3684
    %v3814 = vadd.f32 %v3270, %v3686
    %v3815 = vadd.f32 %v3341, %v3725
    %v3816 = vadd.f32 %v3343, %v3727
    %v3817 = vmul.f32 %v3813, 0.5
    %v3818 = vmul.f32 %v3814, 0.5
    %v3819 = vmul.f32 %v3815, 0.5
    %v3820 = vtanh.pop %v3817
    %v3821 = vtanh.pop %v3818
    %v3822 = vtanh.pop %v3819
    %v3823 = vmul.f32 %v3820, 0.5
    %v3824 = vmul.f32 %v3821, 0.5
    %v3825 = vmul.f32 %v3822, 0.5
    %v3826 = vadd.f32 %v3823, 0.5
    %v3827 = vadd.f32 %v3824, 0.5
    %v3828 = vadd.f32 %v3825, 0.5
    %v3829 = vtanh.pop %v3816
    %v3830 = vmul.f32 %v3827, 0.0
    %v3831 = vmul.f32 %v3826, %v3829
    %v3832 = vadd.f32 %v3830, %v3831
    %v3833 = vtanh.pop %v3832
    %v3834 = vmul.f32 %v3828, %v3833
    %v3835 = vadd.f32 %v3446, %v3766
    %v3836 = vadd.f32 %v3448, %v3768
    %v3837 = vadd.f32 %v3517, %v3807
    %v3838 = vadd.f32 %v3519, %v3809
    %v3839 = vmul.f32 %v3835, 0.5
    %v3840 = vmul.f32 %v3836, 0.5
    %v3841 = vmul.f32 %v3837, 0.5
    %v3842 = vtanh.pop %v3839
    %v3843 = vtanh.pop %v3840
    %v3844 = vtanh.pop %v3841
    %v3845 = vmul.f32 %v3842, 0.5
    %v3846 = vmul.f32 %v3843, 0.5
    %v3847 = vmul.f32 %v3844, 0.5
    %v3848 = vadd.f32 %v3845, 0.5
    %v3849 = vadd.f32 %v3846, 0.5
    %v3850 = vadd.f32 %v3847, 0.5
    %v3851 = vtanh.pop %v3838
    %v3852 = vmul.f32 %v3849, 0.0
    %v3853 = vmul.f32 %v3848, %v3851
    %v3854 = vadd.f32 %v3852, %v3853
    %v3855 = vtanh.pop %v3854
    %v3856 = vmul.f32 %v3850, %v3855
    %v3857 = vpack.c.bf16 %v3834, %v3834
    %v3858 = vpack.c.bf16 %v3856, %v3856
    %3859 = vmatprep.subr.bf16.mxu0 %v3522
    %3860 = vmatpush1.bf16.msra.mxu0 %v3521
    %3861 = vmatprep.subr.bf16.mxu0 %v3530
    %3862 = vmatpush1.bf16.msra.mxu0 %v3529
    %3863 = vmatprep.subr.bf16.mxu0 %v3538
    %3864 = vmatpush1.bf16.msra.mxu0 %v3537
    %3865 = vmatprep.subr.bf16.mxu0 %v3546
    %3866 = vmatpush1.bf16.msra.mxu0 %v3545
    %3867 = vmatprep.subr.bf16.mxu0 %v3554
    %3868 = vmatpush1.bf16.msra.mxu0 %v3553
    %3869 = vmatprep.subr.bf16.mxu0 %v3562
    %3870 = vmatpush1.bf16.msra.mxu0 %v3561
    %3871 = vmatprep.subr.bf16.mxu0 %v3570
    %3872 = vmatpush1.bf16.msra.mxu0 %v3569
    %3873 = vmatprep.subr.bf16.mxu0 %v3578
    %3874 = vmatpush1.bf16.msra.mxu0 %v3577
    %3875 = vmatprep.subr.bf16.mxu0 %v3586
    %3876 = vmatpush1.bf16.msra.mxu0 %v3585
    %3877 = vmatprep.subr.bf16.mxu0 %v3594
    %3878 = vmatpush1.bf16.msra.mxu0 %v3593
    %3879 = vmatprep.subr.bf16.mxu0 %v3602
    %3880 = vmatpush1.bf16.msra.mxu0 %v3601
    %3881 = vmatprep.subr.bf16.mxu0 %v3610
    %3882 = vmatpush1.bf16.msra.mxu0 %v3609
    %3883 = vmatprep.subr.bf16.mxu0 %v3618
    %3884 = vmatpush1.bf16.msra.mxu0 %v3617
    %3885 = vmatprep.subr.bf16.mxu0 %v3626
    %3886 = vmatpush1.bf16.msra.mxu0 %v3625
    %3887 = vmatprep.subr.bf16.mxu0 %v3634
    %3888 = vmatpush1.bf16.msra.mxu0 %v3633
    %3889 = vmatprep.subr.bf16.mxu0 %v3642
    %3890 = vmatpush1.bf16.msra.mxu0 %v3641
    %3891 = vmatprep.mubr.bf16.mxu0 %v3858
    %3892 = vmatmul.mubr.bf16.gmra.mrb[0].mxu0 %v3857
    %v3893 = vpop.f32.mrb[0].mxu0
    %v3894 = vadd.f32 0.0, %v3893
    %v3895 = vpop.f32.mrb[0].mxu0
    %v3896 = vadd.f32 0.0, %v3895
    %v3897 = vpop.f32.mrb[0].mxu0
    %v3898 = vpop.f32.mrb[0].mxu0
    %3899 = vdwg.mxu0
    %3900 = vmatprep.subr.bf16.mxu0 %v3524
    %3901 = vmatpush1.bf16.msra.mxu0 %v3523
    %3902 = vmatprep.subr.bf16.mxu0 %v3532
    %3903 = vmatpush1.bf16.msra.mxu0 %v3531
    %3904 = vmatprep.subr.bf16.mxu0 %v3540
    %3905 = vmatpush1.bf16.msra.mxu0 %v3539
    %3906 = vmatprep.subr.bf16.mxu0 %v3548
    %3907 = vmatpush1.bf16.msra.mxu0 %v3547
    %3908 = vmatprep.subr.bf16.mxu0 %v3556
    %3909 = vmatpush1.bf16.msra.mxu0 %v3555
    %3910 = vmatprep.subr.bf16.mxu0 %v3564
    %3911 = vmatpush1.bf16.msra.mxu0 %v3563
    %3912 = vmatprep.subr.bf16.mxu0 %v3572
    %3913 = vmatpush1.bf16.msra.mxu0 %v3571
    %3914 = vmatprep.subr.bf16.mxu0 %v3580
    %3915 = vmatpush1.bf16.msra.mxu0 %v3579
    %3916 = vmatprep.subr.bf16.mxu0 %v3588
    %3917 = vmatpush1.bf16.msra.mxu0 %v3587
    %3918 = vmatprep.subr.bf16.mxu0 %v3596
    %3919 = vmatpush1.bf16.msra.mxu0 %v3595
    %3920 = vmatprep.subr.bf16.mxu0 %v3604
    %3921 = vmatpush1.bf16.msra.mxu0 %v3603
    %3922 = vmatprep.subr.bf16.mxu0 %v3612
    %3923 = vmatpush1.bf16.msra.mxu0 %v3611
    %3924 = vmatprep.subr.bf16.mxu0 %v3620
    %3925 = vmatpush1.bf16.msra.mxu0 %v3619
    %3926 = vmatprep.subr.bf16.mxu0 %v3628
    %3927 = vmatpush1.bf16.msra.mxu0 %v3627
    %3928 = vmatprep.subr.bf16.mxu0 %v3636
    %3929 = vmatpush1.bf16.msra.mxu0 %v3635
    %3930 = vmatprep.subr.bf16.mxu0 %v3644
    %3931 = vmatpush1.bf16.msra.mxu0 %v3643
    %3932 = vmatprep.mubr.bf16.mxu0 %v3858
    %3933 = vmatmul.mubr.bf16.gmra.mrb[0].mxu0 %v3857
    %v3934 = vpop.f32.mrb[0].mxu0
    %v3935 = vadd.f32 0.0, %v3934
    %v3936 = vpop.f32.mrb[0].mxu0
    %v3937 = vadd.f32 0.0, %v3936
    %v3938 = vpop.f32.mrb[0].mxu0
    %v3939 = vpop.f32.mrb[0].mxu0
    %3940 = vdwg.mxu0
    %3941 = vmatprep.subr.bf16.mxu0 %v3526
    %3942 = vmatpush1.bf16.msra.mxu0 %v3525
    %3943 = vmatprep.subr.bf16.mxu0 %v3534
    %3944 = vmatpush1.bf16.msra.mxu0 %v3533
    %3945 = vmatprep.subr.bf16.mxu0 %v3542
    %3946 = vmatpush1.bf16.msra.mxu0 %v3541
    %3947 = vmatprep.subr.bf16.mxu0 %v3550
    %3948 = vmatpush1.bf16.msra.mxu0 %v3549
    %3949 = vmatprep.subr.bf16.mxu0 %v3558
    %3950 = vmatpush1.bf16.msra.mxu0 %v3557
    %3951 = vmatprep.subr.bf16.mxu0 %v3566
    %3952 = vmatpush1.bf16.msra.mxu0 %v3565
    %3953 = vmatprep.subr.bf16.mxu0 %v3574
    %3954 = vmatpush1.bf16.msra.mxu0 %v3573
    %3955 = vmatprep.subr.bf16.mxu0 %v3582
    %3956 = vmatpush1.bf16.msra.mxu0 %v3581
    %3957 = vmatprep.subr.bf16.mxu0 %v3590
    %3958 = vmatpush1.bf16.msra.mxu0 %v3589
    %3959 = vmatprep.subr.bf16.mxu0 %v3598
    %3960 = vmatpush1.bf16.msra.mxu0 %v3597
    %3961 = vmatprep.subr.bf16.mxu0 %v3606
    %3962 = vmatpush1.bf16.msra.mxu0 %v3605
    %3963 = vmatprep.subr.bf16.mxu0 %v3614
    %3964 = vmatpush1.bf16.msra.mxu0 %v3613
    %3965 = vmatprep.subr.bf16.mxu0 %v3622
    %3966 = vmatpush1.bf16.msra.mxu0 %v3621
    %3967 = vmatprep.subr.bf16.mxu0 %v3630
    %3968 = vmatpush1.bf16.msra.mxu0 %v3629
    %3969 = vmatprep.subr.bf16.mxu0 %v3638
    %3970 = vmatpush1.bf16.msra.mxu0 %v3637
    %3971 = vmatprep.subr.bf16.mxu0 %v3646
    %3972 = vmatpush1.bf16.msra.mxu0 %v3645
    %3973 = vmatprep.mubr.bf16.mxu0 %v3858
    %3974 = vmatmul.mubr.bf16.gmra.mrb[0].mxu0 %v3857
    %v3975 = vpop.f32.mrb[0].mxu0
    %v3976 = vadd.f32 0.0, %v3975
    %v3977 = vpop.f32.mrb[0].mxu0
    %v3978 = vadd.f32 0.0, %v3977
    %v3979 = vpop.f32.mrb[0].mxu0
    %v3980 = vpop.f32.mrb[0].mxu0
    %3981 = vdwg.mxu0
    %3982 = vmatprep.subr.bf16.mxu0 %v3528
    %3983 = vmatpush1.bf16.msra.mxu0 %v3527
    %3984 = vmatprep.subr.bf16.mxu0 %v3536
    %3985 = vmatpush1.bf16.msra.mxu0 %v3535
    %3986 = vmatprep.subr.bf16.mxu0 %v3544
    %3987 = vmatpush1.bf16.msra.mxu0 %v3543
    %3988 = vmatprep.subr.bf16.mxu0 %v3552
    %3989 = vmatpush1.bf16.msra.mxu0 %v3551
    %3990 = vmatprep.subr.bf16.mxu0 %v3560
    %3991 = vmatpush1.bf16.msra.mxu0 %v3559
    %3992 = vmatprep.subr.bf16.mxu0 %v3568
    %3993 = vmatpush1.bf16.msra.mxu0 %v3567
    %3994 = vmatprep.subr.bf16.mxu0 %v3576
    %3995 = vmatpush1.bf16.msra.mxu0 %v3575
    %3996 = vmatprep.subr.bf16.mxu0 %v3584
    %3997 = vmatpush1.bf16.msra.mxu0 %v3583
    %3998 = vmatprep.subr.bf16.mxu0 %v3592
    %3999 = vmatpush1.bf16.msra.mxu0 %v3591
    %4000 = vmatprep.subr.bf16.mxu0 %v3600
    %4001 = vmatpush1.bf16.msra.mxu0 %v3599
    %4002 = vmatprep.subr.bf16.mxu0 %v3608
    %4003 = vmatpush1.bf16.msra.mxu0 %v3607
    %4004 = vmatprep.subr.bf16.mxu0 %v3616
    %4005 = vmatpush1.bf16.msra.mxu0 %v3615
    %4006 = vmatprep.subr.bf16.mxu0 %v3624
    %4007 = vmatpush1.bf16.msra.mxu0 %v3623
    %4008 = vmatprep.subr.bf16.mxu0 %v3632
    %4009 = vmatpush1.bf16.msra.mxu0 %v3631
    %4010 = vmatprep.subr.bf16.mxu0 %v3640
    %4011 = vmatpush1.bf16.msra.mxu0 %v3639
    %4012 = vmatprep.subr.bf16.mxu0 %v3648
    %4013 = vmatpush1.bf16.msra.mxu0 %v3647
    %4014 = vmatprep.mubr.bf16.mxu0 %v3858
    %4015 = vmatmul.mubr.bf16.gmra.mrb[0].mxu0 %v3857
    %v4016 = vpop.f32.mrb[0].mxu0
    %v4017 = vadd.f32 0.0, %v4016
    %v4018 = vpop.f32.mrb[0].mxu0
    %v4019 = vadd.f32 0.0, %v4018
    %v4020 = vpop.f32.mrb[0].mxu0
    %v4021 = vpop.f32.mrb[0].mxu0
    %4022 = vdwg.mxu0
    %v4023 = vadd.f32 %v3272, %v3894
    %v4024 = vadd.f32 %v3274, %v3896
    %v4025 = vadd.f32 %v3345, %v3935
    %v4026 = vadd.f32 %v3347, %v3937
    %v4027 = vmul.f32 %v4023, 0.5
    %v4028 = vmul.f32 %v4024, 0.5
    %v4029 = vmul.f32 %v4025, 0.5
    %v4030 = vtanh.pop %v4027
    %v4031 = vtanh.pop %v4028
    %v4032 = vtanh.pop %v4029
    %v4033 = vmul.f32 %v4030, 0.5
    %v4034 = vmul.f32 %v4031, 0.5
    %v4035 = vmul.f32 %v4032, 0.5
    %v4036 = vadd.f32 %v4033, 0.5
    %v4037 = vadd.f32 %v4034, 0.5
    %v4038 = vadd.f32 %v4035, 0.5
    %v4039 = vtanh.pop %v4026
    %v4040 = vmul.f32 %v4037, %v3832
    %v4041 = vmul.f32 %v4036, %v4039
    %v4042 = vadd.f32 %v4040, %v4041
    %v4043 = vtanh.pop %v4042
    %v4044 = vmul.f32 %v4038, %v4043
    %v4045 = vadd.f32 %v3442, %v3976
    %v4046 = vadd.f32 %v3444, %v3978
    %v4047 = vadd.f32 %v3513, %v4017
    %v4048 = vadd.f32 %v3515, %v4019
    %v4049 = vmul.f32 %v4045, 0.5
    %v4050 = vmul.f32 %v4046, 0.5
    %v4051 = vmul.f32 %v4047, 0.5
    %v4052 = vtanh.pop %v4049
    %v4053 = vtanh.pop %v4050
    %v4054 = vtanh.pop %v4051
    %v4055 = vmul.f32 %v4052, 0.5
    %v4056 = vmul.f32 %v4053, 0.5
    %v4057 = vmul.f32 %v4054, 0.5
    %v4058 = vadd.f32 %v4055, 0.5
    %v4059 = vadd.f32 %v4056, 0.5
    %v4060 = vadd.f32 %v4057, 0.5
    %v4061 = vtanh.pop %v4048
    %v4062 = vmul.f32 %v4059, %v3854
    %v4063 = vmul.f32 %v4058, %v4061
    %v4064 = vadd.f32 %v4062, %v4063
    %v4065 = vtanh.pop %v4064
    %v4066 = vmul.f32 %v4060, %v4065
    %v4067 = vpack.c.bf16 %v4044, %v4044
    %v4068 = vpack.c.bf16 %v4066, %v4066
    %4069 = vmatprep.subr.bf16.mxu0 %v3522
    %4070 = vmatpush1.bf16.msra.mxu0 %v3521
    %4071 = vmatprep.subr.bf16.mxu0 %v3530
    %4072 = vmatpush1.bf16.msra.mxu0 %v3529
    %4073 = vmatprep.subr.bf16.mxu0 %v3538
    %4074 = vmatpush1.bf16.msra.mxu0 %v3537
    %4075 = vmatprep.subr.bf16.mxu0 %v3546
    %4076 = vmatpush1.bf16.msra.mxu0 %v3545
    %4077 = vmatprep.subr.bf16.mxu0 %v3554
    %4078 = vmatpush1.bf16.msra.mxu0 %v3553
    %4079 = vmatprep.subr.bf16.mxu0 %v3562
    %4080 = vmatpush1.bf16.msra.mxu0 %v3561
    %4081 = vmatprep.subr.bf16.mxu0 %v3570
    %4082 = vmatpush1.bf16.msra.mxu0 %v3569
    %4083 = vmatprep.subr.bf16.mxu0 %v3578
    %4084 = vmatpush1.bf16.msra.mxu0 %v3577
    %4085 = vmatprep.subr.bf16.mxu0 %v3586
    %4086 = vmatpush1.bf16.msra.mxu0 %v3585
    %4087 = vmatprep.subr.bf16.mxu0 %v3594
    %4088 = vmatpush1.bf16.msra.mxu0 %v3593
    %4089 = vmatprep.subr.bf16.mxu0 %v3602
    %4090 = vmatpush1.bf16.msra.mxu0 %v3601
    %4091 = vmatprep.subr.bf16.mxu0 %v3610
    %4092 = vmatpush1.bf16.msra.mxu0 %v3609
    %4093 = vmatprep.subr.bf16.mxu0 %v3618
    %4094 = vmatpush1.bf16.msra.mxu0 %v3617
    %4095 = vmatprep.subr.bf16.mxu0 %v3626
    %4096 = vmatpush1.bf16.msra.mxu0 %v3625
    %4097 = vmatprep.subr.bf16.mxu0 %v3634
    %4098 = vmatpush1.bf16.msra.mxu0 %v3633
    %4099 = vmatprep.subr.bf16.mxu0 %v3642
    %4100 = vmatpush1.bf16.msra.mxu0 %v3641
    %4101 = vmatprep.mubr.bf16.mxu0 %v4068
    %4102 = vmatmul.mubr.bf16.gmra.mrb[0].mxu0 %v4067
    %v4103 = vpop.f32.mrb[0].mxu0
    %v4104 = vadd.f32 0.0, %v4103
    %v4105 = vpop.f32.mrb[0].mxu0
    %v4106 = vadd.f32 0.0, %v4105
    %v4107 = vpop.f32.mrb[0].mxu0
    %v4108 = vpop.f32.mrb[0].mxu0
    %4109 = vdwg.mxu0
    %4110 = vmatprep.subr.bf16.mxu0 %v3524
    %4111 = vmatpush1.bf16.msra.mxu0 %v3523
    %4112 = vmatprep.subr.bf16.mxu0 %v3532
    %4113 = vmatpush1.bf16.msra.mxu0 %v3531
    %4114 = vmatprep.subr.bf16.mxu0 %v3540
    %4115 = vmatpush1.bf16.msra.mxu0 %v3539
    %4116 = vmatprep.subr.bf16.mxu0 %v3548
    %4117 = vmatpush1.bf16.msra.mxu0 %v3547
    %4118 = vmatprep.subr.bf16.mxu0 %v3556
    %4119 = vmatpush1.bf16.msra.mxu0 %v3555
    %4120 = vmatprep.subr.bf16.mxu0 %v3564
    %4121 = vmatpush1.bf16.msra.mxu0 %v3563
    %4122 = vmatprep.subr.bf16.mxu0 %v3572
    %4123 = vmatpush1.bf16.msra.mxu0 %v3571
    %4124 = vmatprep.subr.bf16.mxu0 %v3580
    %4125 = vmatpush1.bf16.msra.mxu0 %v3579
    %4126 = vmatprep.subr.bf16.mxu0 %v3588
    %4127 = vmatpush1.bf16.msra.mxu0 %v3587
    %4128 = vmatprep.subr.bf16.mxu0 %v3596
    %4129 = vmatpush1.bf16.msra.mxu0 %v3595
    %4130 = vmatprep.subr.bf16.mxu0 %v3604
    %4131 = vmatpush1.bf16.msra.mxu0 %v3603
    %4132 = vmatprep.subr.bf16.mxu0 %v3612
    %4133 = vmatpush1.bf16.msra.mxu0 %v3611
    %4134 = vmatprep.subr.bf16.mxu0 %v3620
    %4135 = vmatpush1.bf16.msra.mxu0 %v3619
    %4136 = vmatprep.subr.bf16.mxu0 %v3628
    %4137 = vmatpush1.bf16.msra.mxu0 %v3627
    %4138 = vmatprep.subr.bf16.mxu0 %v3636
    %4139 = vmatpush1.bf16.msra.mxu0 %v3635
    %4140 = vmatprep.subr.bf16.mxu0 %v3644
    %4141 = vmatpush1.bf16.msra.mxu0 %v3643
    %4142 = vmatprep.mubr.bf16.mxu0 %v4068
    %4143 = vmatmul.mubr.bf16.gmra.mrb[0].mxu0 %v4067
    %v4144 = vpop.f32.mrb[0].mxu0
    %v4145 = vadd.f32 0.0, %v4144
    %v4146 = vpop.f32.mrb[0].mxu0
    %v4147 = vadd.f32 0.0, %v4146
    %v4148 = vpop.f32.mrb[0].mxu0
    %v4149 = vpop.f32.mrb[0].mxu0
    %4150 = vdwg.mxu0
    %4151 = vmatprep.subr.bf16.mxu0 %v3526
    %4152 = vmatpush1.bf16.msra.mxu0 %v3525
    %4153 = vmatprep.subr.bf16.mxu0 %v3534
    %4154 = vmatpush1.bf16.msra.mxu0 %v3533
    %4155 = vmatprep.subr.bf16.mxu0 %v3542
    %4156 = vmatpush1.bf16.msra.mxu0 %v3541
    %4157 = vmatprep.subr.bf16.mxu0 %v3550
    %4158 = vmatpush1.bf16.msra.mxu0 %v3549
    %4159 = vmatprep.subr.bf16.mxu0 %v3558
    %4160 = vmatpush1.bf16.msra.mxu0 %v3557
    %4161 = vmatprep.subr.bf16.mxu0 %v3566
    %4162 = vmatpush1.bf16.msra.mxu0 %v3565
    %4163 = vmatprep.subr.bf16.mxu0 %v3574
    %4164 = vmatpush1.bf16.msra.mxu0 %v3573
    %4165 = vmatprep.subr.bf16.mxu0 %v3582
    %4166 = vmatpush1.bf16.msra.mxu0 %v3581
    %4167 = vmatprep.subr.bf16.mxu0 %v3590
    %4168 = vmatpush1.bf16.msra.mxu0 %v3589
    %4169 = vmatprep.subr.bf16.mxu0 %v3598
    %4170 = vmatpush1.bf16.msra.mxu0 %v3597
    %4171 = vmatprep.subr.bf16.mxu0 %v3606
    %4172 = vmatpush1.bf16.msra.mxu0 %v3605
    %4173 = vmatprep.subr.bf16.mxu0 %v3614
    %4174 = vmatpush1.bf16.msra.mxu0 %v3613
    %4175 = vmatprep.subr.bf16.mxu0 %v3622
    %4176 = vmatpush1.bf16.msra.mxu0 %v3621
    %4177 = vmatprep.subr.bf16.mxu0 %v3630
    %4178 = vmatpush1.bf16.msra.mxu0 %v3629
    %4179 = vmatprep.subr.bf16.mxu0 %v3638
    %4180 = vmatpush1.bf16.msra.mxu0 %v3637
    %4181 = vmatprep.subr.bf16.mxu0 %v3646
    %4182 = vmatpush1.bf16.msra.mxu0 %v3645
    %4183 = vmatprep.mubr.bf16.mxu0 %v4068
    %4184 = vmatmul.mubr.bf16.gmra.mrb[0].mxu0 %v4067
    %v4185 = vpop.f32.mrb[0].mxu0
    %v4186 = vadd.f32 0.0, %v4185
    %v4187 = vpop.f32.mrb[0].mxu0
    %v4188 = vadd.f32 0.0, %v4187
    %v4189 = vpop.f32.mrb[0].mxu0
    %v4190 = vpop.f32.mrb[0].mxu0
    %4191 = vdwg.mxu0
    %4192 = vmatprep.subr.bf16.mxu0 %v3528
    %4193 = vmatpush1.bf16.msra.mxu0 %v3527
    %4194 = vmatprep.subr.bf16.mxu0 %v3536
    %4195 = vmatpush1.bf16.msra.mxu0 %v3535
    %4196 = vmatprep.subr.bf16.mxu0 %v3544
    %4197 = vmatpush1.bf16.msra.mxu0 %v3543
    %4198 = vmatprep.subr.bf16.mxu0 %v3552
    %4199 = vmatpush1.bf16.msra.mxu0 %v3551
    %4200 = vmatprep.subr.bf16.mxu0 %v3560
    %4201 = vmatpush1.bf16.msra.mxu0 %v3559
    %4202 = vmatprep.subr.bf16.mxu0 %v3568
    %4203 = vmatpush1.bf16.msra.mxu0 %v3567
    %4204 = vmatprep.subr.bf16.mxu0 %v3576
    %4205 = vmatpush1.bf16.msra.mxu0 %v3575
    %4206 = vmatprep.subr.bf16.mxu0 %v3584
    %4207 = vmatpush1.bf16.msra.mxu0 %v3583
    %4208 = vmatprep.subr.bf16.mxu0 %v3592
    %4209 = vmatpush1.bf16.msra.mxu0 %v3591
    %4210 = vmatprep.subr.bf16.mxu0 %v3600
    %4211 = vmatpush1.bf16.msra.mxu0 %v3599
    %4212 = vmatprep.subr.bf16.mxu0 %v3608
    %4213 = vmatpush1.bf16.msra.mxu0 %v3607
    %4214 = vmatprep.subr.bf16.mxu0 %v3616
    %4215 = vmatpush1.bf16.msra.mxu0 %v3615
    %4216 = vmatprep.subr.bf16.mxu0 %v3624
    %4217 = vmatpush1.bf16.msra.mxu0 %v3623
    %4218 = vmatprep.subr.bf16.mxu0 %v3632
    %4219 = vmatpush1.bf16.msra.mxu0 %v3631
    %4220 = vmatprep.subr.bf16.mxu0 %v3640
    %4221 = vmatpush1.bf16.msra.mxu0 %v3639
    %4222 = vmatprep.subr.bf16.mxu0 %v3648
    %4223 = vmatpush1.bf16.msra.mxu0 %v3647
    %4224 = vmatprep.mubr.bf16.mxu0 %v4068
    %4225 = vmatmul.mubr.bf16.gmra.mrb[0].mxu0 %v4067
    %v4226 = vpop.f32.mrb[0].mxu0
    %v4227 = vadd.f32 0.0, %v4226
    %v4228 = vpop.f32.mrb[0].mxu0
    %v4229 = vadd.f32 0.0, %v4228
    %v4230 = vpop.f32.mrb[0].mxu0
    %v4231 = vpop.f32.mrb[0].mxu0
    %4232 = vdwg.mxu0
    %v4233 = vadd.f32 %v3278, %v4104
    %v4234 = vadd.f32 %v3280, %v4106
    %v4235 = vadd.f32 %v3351, %v4145
    %v4236 = vadd.f32 %v3353, %v4147
    %v4237 = vmul.f32 %v4233, 0.5
    %v4238 = vmul.f32 %v4234, 0.5
    %v4239 = vmul.f32 %v4235, 0.5
    %v4240 = vtanh.pop %v4237
    %v4241 = vtanh.pop %v4238
    %v4242 = vtanh.pop %v4239
    %v4243 = vmul.f32 %v4240, 0.5
    %v4244 = vmul.f32 %v4241, 0.5
    %v4245 = vmul.f32 %v4242, 0.5
    %v4246 = vadd.f32 %v4243, 0.5
    %v4247 = vadd.f32 %v4244, 0.5
    %v4248 = vadd.f32 %v4245, 0.5
    %v4249 = vtanh.pop %v4236
    %v4250 = vmul.f32 %v4247, %v4042
    %v4251 = vmul.f32 %v4246, %v4249
    %v4252 = vadd.f32 %v4250, %v4251
    %v4253 = vtanh.pop %v4252
    %v4254 = vmul.f32 %v4248, %v4253
    %v4255 = vadd.f32 %v3436, %v4186
    %v4256 = vadd.f32 %v3438, %v4188
    %v4257 = vadd.f32 %v3507, %v4227
    %v4258 = vadd.f32 %v3509, %v4229
    %v4259 = vmul.f32 %v4255, 0.5
    %v4260 = vmul.f32 %v4256, 0.5
    %v4261 = vmul.f32 %v4257, 0.5
    %v4262 = vtanh.pop %v4259
    %v4263 = vtanh.pop %v4260
    %v4264 = vtanh.pop %v4261
    %v4265 = vmul.f32 %v4262, 0.5
    %v4266 = vmul.f32 %v4263, 0.5
    %v4267 = vmul.f32 %v4264, 0.5
    %v4268 = vadd.f32 %v4265, 0.5
    %v4269 = vadd.f32 %v4266, 0.5
    %v4270 = vadd.f32 %v4267, 0.5
    %v4271 = vtanh.pop %v4258
    %v4272 = vmul.f32 %v4269, %v4064
    %v4273 = vmul.f32 %v4268, %v4271
    %v4274 = vadd.f32 %v4272, %v4273
    %v4275 = vtanh.pop %v4274
    %v4276 = vmul.f32 %v4270, %v4275
    %v4277 = vpack.c.bf16 %v4254, %v4254
    %v4278 = vpack.c.bf16 %v4276, %v4276
    %4279 = vmatprep.subr.bf16.mxu0 %v3522
    %4280 = vmatpush1.bf16.msra.mxu0 %v3521
    %4281 = vmatprep.subr.bf16.mxu0 %v3530
    %4282 = vmatpush1.bf16.msra.mxu0 %v3529
    %4283 = vmatprep.subr.bf16.mxu0 %v3538
    %4284 = vmatpush1.bf16.msra.mxu0 %v3537
    %4285 = vmatprep.subr.bf16.mxu0 %v3546
    %4286 = vmatpush1.bf16.msra.mxu0 %v3545
    %4287 = vmatprep.subr.bf16.mxu0 %v3554
    %4288 = vmatpush1.bf16.msra.mxu0 %v3553
    %4289 = vmatprep.subr.bf16.mxu0 %v3562
    %4290 = vmatpush1.bf16.msra.mxu0 %v3561
    %4291 = vmatprep.subr.bf16.mxu0 %v3570
    %4292 = vmatpush1.bf16.msra.mxu0 %v3569
    %4293 = vmatprep.subr.bf16.mxu0 %v3578
    %4294 = vmatpush1.bf16.msra.mxu0 %v3577
    %4295 = vmatprep.subr.bf16.mxu0 %v3586
    %4296 = vmatpush1.bf16.msra.mxu0 %v3585
    %4297 = vmatprep.subr.bf16.mxu0 %v3594
    %4298 = vmatpush1.bf16.msra.mxu0 %v3593
    %4299 = vmatprep.subr.bf16.mxu0 %v3602
    %4300 = vmatpush1.bf16.msra.mxu0 %v3601
    %4301 = vmatprep.subr.bf16.mxu0 %v3610
    %4302 = vmatpush1.bf16.msra.mxu0 %v3609
    %4303 = vmatprep.subr.bf16.mxu0 %v3618
    %4304 = vmatpush1.bf16.msra.mxu0 %v3617
    %4305 = vmatprep.subr.bf16.mxu0 %v3626
    %4306 = vmatpush1.bf16.msra.mxu0 %v3625
    %4307 = vmatprep.subr.bf16.mxu0 %v3634
    %4308 = vmatpush1.bf16.msra.mxu0 %v3633
    %4309 = vmatprep.subr.bf16.mxu0 %v3642
    %4310 = vmatpush1.bf16.msra.mxu0 %v3641
    %4311 = vmatprep.mubr.bf16.mxu0 %v4278
    %4312 = vmatmul.mubr.bf16.gmra.mrb[0].mxu0 %v4277
    %v4313 = vpop.f32.mrb[0].mxu0
    %v4314 = vadd.f32 0.0, %v4313
    %v4315 = vpop.f32.mrb[0].mxu0
    %v4316 = vadd.f32 0.0, %v4315
    %v4317 = vpop.f32.mrb[0].mxu0
    %v4318 = vpop.f32.mrb[0].mxu0
    %4319 = vdwg.mxu0
    %4320 = vmatprep.subr.bf16.mxu0 %v3524
    %4321 = vmatpush1.bf16.msra.mxu0 %v3523
    %4322 = vmatprep.subr.bf16.mxu0 %v3532
    %4323 = vmatpush1.bf16.msra.mxu0 %v3531
    %4324 = vmatprep.subr.bf16.mxu0 %v3540
    %4325 = vmatpush1.bf16.msra.mxu0 %v3539
    %4326 = vmatprep.subr.bf16.mxu0 %v3548
    %4327 = vmatpush1.bf16.msra.mxu0 %v3547
    %4328 = vmatprep.subr.bf16.mxu0 %v3556
    %4329 = vmatpush1.bf16.msra.mxu0 %v3555
    %4330 = vmatprep.subr.bf16.mxu0 %v3564
    %4331 = vmatpush1.bf16.msra.mxu0 %v3563
    %4332 = vmatprep.subr.bf16.mxu0 %v3572
    %4333 = vmatpush1.bf16.msra.mxu0 %v3571
    %4334 = vmatprep.subr.bf16.mxu0 %v3580
    %4335 = vmatpush1.bf16.msra.mxu0 %v3579
    %4336 = vmatprep.subr.bf16.mxu0 %v3588
    %4337 = vmatpush1.bf16.msra.mxu0 %v3587
    %4338 = vmatprep.subr.bf16.mxu0 %v3596
    %4339 = vmatpush1.bf16.msra.mxu0 %v3595
    %4340 = vmatprep.subr.bf16.mxu0 %v3604
    %4341 = vmatpush1.bf16.msra.mxu0 %v3603
    %4342 = vmatprep.subr.bf16.mxu0 %v3612
    %4343 = vmatpush1.bf16.msra.mxu0 %v3611
    %4344 = vmatprep.subr.bf16.mxu0 %v3620
    %4345 = vmatpush1.bf16.msra.mxu0 %v3619
    %4346 = vmatprep.subr.bf16.mxu0 %v3628
    %4347 = vmatpush1.bf16.msra.mxu0 %v3627
    %4348 = vmatprep.subr.bf16.mxu0 %v3636
    %4349 = vmatpush1.bf16.msra.mxu0 %v3635
    %4350 = vmatprep.subr.bf16.mxu0 %v3644
    %4351 = vmatpush1.bf16.msra.mxu0 %v3643
    %4352 = vmatprep.mubr.bf16.mxu0 %v4278
    %4353 = vmatmul.mubr.bf16.gmra.mrb[0].mxu0 %v4277
    %v4354 = vpop.f32.mrb[0].mxu0
    %v4355 = vadd.f32 0.0, %v4354
    %v4356 = vpop.f32.mrb[0].mxu0
    %v4357 = vadd.f32 0.0, %v4356
    %v4358 = vpop.f32.mrb[0].mxu0
    %v4359 = vpop.f32.mrb[0].mxu0
    %4360 = vdwg.mxu0
    %4361 = vmatprep.subr.bf16.mxu0 %v3526
    %4362 = vmatpush1.bf16.msra.mxu0 %v3525
    %4363 = vmatprep.subr.bf16.mxu0 %v3534
    %4364 = vmatpush1.bf16.msra.mxu0 %v3533
    %4365 = vmatprep.subr.bf16.mxu0 %v3542
    %4366 = vmatpush1.bf16.msra.mxu0 %v3541
    %4367 = vmatprep.subr.bf16.mxu0 %v3550
    %4368 = vmatpush1.bf16.msra.mxu0 %v3549
    %4369 = vmatprep.subr.bf16.mxu0 %v3558
    %4370 = vmatpush1.bf16.msra.mxu0 %v3557
    %4371 = vmatprep.subr.bf16.mxu0 %v3566
    %4372 = vmatpush1.bf16.msra.mxu0 %v3565
    %4373 = vmatprep.subr.bf16.mxu0 %v3574
    %4374 = vmatpush1.bf16.msra.mxu0 %v3573
    %4375 = vmatprep.subr.bf16.mxu0 %v3582
    %4376 = vmatpush1.bf16.msra.mxu0 %v3581
    %4377 = vmatprep.subr.bf16.mxu0 %v3590
    %4378 = vmatpush1.bf16.msra.mxu0 %v3589
    %4379 = vmatprep.subr.bf16.mxu0 %v3598
    %4380 = vmatpush1.bf16.msra.mxu0 %v3597
    %4381 = vmatprep.subr.bf16.mxu0 %v3606
    %4382 = vmatpush1.bf16.msra.mxu0 %v3605
    %4383 = vmatprep.subr.bf16.mxu0 %v3614
    %4384 = vmatpush1.bf16.msra.mxu0 %v3613
    %4385 = vmatprep.subr.bf16.mxu0 %v3622
    %4386 = vmatpush1.bf16.msra.mxu0 %v3621
    %4387 = vmatprep.subr.bf16.mxu0 %v3630
    %4388 = vmatpush1.bf16.msra.mxu0 %v3629
    %4389 = vmatprep.subr.bf16.mxu0 %v3638
    %4390 = vmatpush1.bf16.msra.mxu0 %v3637
    %4391 = vmatprep.subr.bf16.mxu0 %v3646
    %4392 = vmatpush1.bf16.msra.mxu0 %v3645
    %4393 = vmatprep.mubr.bf16.mxu0 %v4278
    %4394 = vmatmul.mubr.bf16.gmra.mrb[0].mxu0 %v4277
    %v4395 = vpop.f32.mrb[0].mxu0
    %v4396 = vadd.f32 0.0, %v4395
    %v4397 = vpop.f32.mrb[0].mxu0
    %v4398 = vadd.f32 0.0, %v4397
    %v4399 = vpop.f32.mrb[0].mxu0
    %v4400 = vpop.f32.mrb[0].mxu0
    %4401 = vdwg.mxu0
    %4402 = vmatprep.subr.bf16.mxu0 %v3528
    %4403 = vmatpush1.bf16.msra.mxu0 %v3527
    %4404 = vmatprep.subr.bf16.mxu0 %v3536
    %4405 = vmatpush1.bf16.msra.mxu0 %v3535
    %4406 = vmatprep.subr.bf16.mxu0 %v3544
    %4407 = vmatpush1.bf16.msra.mxu0 %v3543
    %4408 = vmatprep.subr.bf16.mxu0 %v3552
    %4409 = vmatpush1.bf16.msra.mxu0 %v3551
    %4410 = vmatprep.subr.bf16.mxu0 %v3560
    %4411 = vmatpush1.bf16.msra.mxu0 %v3559
    %4412 = vmatprep.subr.bf16.mxu0 %v3568
    %4413 = vmatpush1.bf16.msra.mxu0 %v3567
    %4414 = vmatprep.subr.bf16.mxu0 %v3576
    %4415 = vmatpush1.bf16.msra.mxu0 %v3575
    %4416 = vmatprep.subr.bf16.mxu0 %v3584
    %4417 = vmatpush1.bf16.msra.mxu0 %v3583
    %4418 = vmatprep.subr.bf16.mxu0 %v3592
    %4419 = vmatpush1.bf16.msra.mxu0 %v3591
    %4420 = vmatprep.subr.bf16.mxu0 %v3600
    %4421 = vmatpush1.bf16.msra.mxu0 %v3599
    %4422 = vmatprep.subr.bf16.mxu0 %v3608
    %4423 = vmatpush1.bf16.msra.mxu0 %v3607
    %4424 = vmatprep.subr.bf16.mxu0 %v3616
    %4425 = vmatpush1.bf16.msra.mxu0 %v3615
    %4426 = vmatprep.subr.bf16.mxu0 %v3624
    %4427 = vmatpush1.bf16.msra.mxu0 %v3623
    %4428 = vmatprep.subr.bf16.mxu0 %v3632
    %4429 = vmatpush1.bf16.msra.mxu0 %v3631
    %4430 = vmatprep.subr.bf16.mxu0 %v3640
    %4431 = vmatpush1.bf16.msra.mxu0 %v3639
    %4432 = vmatprep.subr.bf16.mxu0 %v3648
    %4433 = vmatpush1.bf16.msra.mxu0 %v3647
    %4434 = vmatprep.mubr.bf16.mxu0 %v4278
    %4435 = vmatmul.mubr.bf16.gmra.mrb[0].mxu0 %v4277
    %v4436 = vpop.f32.mrb[0].mxu0
    %v4437 = vadd.f32 0.0, %v4436
    %v4438 = vpop.f32.mrb[0].mxu0
    %v4439 = vadd.f32 0.0, %v4438
    %v4440 = vpop.f32.mrb[0].mxu0
    %v4441 = vpop.f32.mrb[0].mxu0
    %4442 = vdwg.mxu0
    %v4443 = vadd.f32 %v3282, %v4314
    %v4444 = vadd.f32 %v3284, %v4316
    %v4445 = vadd.f32 %v3355, %v4355
    %v4446 = vadd.f32 %v3357, %v4357
    %v4447 = vmul.f32 %v4443, 0.5
    %v4448 = vmul.f32 %v4444, 0.5
    %v4449 = vmul.f32 %v4445, 0.5
    %v4450 = vtanh.pop %v4447
    %v4451 = vtanh.pop %v4448
    %v4452 = vtanh.pop %v4449
    %v4453 = vmul.f32 %v4450, 0.5
    %v4454 = vmul.f32 %v4451, 0.5
    %v4455 = vmul.f32 %v4452, 0.5
    %v4456 = vadd.f32 %v4453, 0.5
    %v4457 = vadd.f32 %v4454, 0.5
    %v4458 = vadd.f32 %v4455, 0.5
    %v4459 = vtanh.pop %v4446
    %v4460 = vmul.f32 %v4457, %v4252
    %v4461 = vmul.f32 %v4456, %v4459
    %v4462 = vadd.f32 %v4460, %v4461
    %v4463 = vtanh.pop %v4462
    %v4464 = vmul.f32 %v4458, %v4463
    %v4465 = vadd.f32 %v3432, %v4396
    %v4466 = vadd.f32 %v3434, %v4398
    %v4467 = vadd.f32 %v3503, %v4437
    %v4468 = vadd.f32 %v3505, %v4439
    %v4469 = vmul.f32 %v4465, 0.5
    %v4470 = vmul.f32 %v4466, 0.5
    %v4471 = vmul.f32 %v4467, 0.5
    %v4472 = vtanh.pop %v4469
    %v4473 = vtanh.pop %v4470
    %v4474 = vtanh.pop %v4471
    %v4475 = vmul.f32 %v4472, 0.5
    %v4476 = vmul.f32 %v4473, 0.5
    %v4477 = vmul.f32 %v4474, 0.5
    %v4478 = vadd.f32 %v4475, 0.5
    %v4479 = vadd.f32 %v4476, 0.5
    %v4480 = vadd.f32 %v4477, 0.5
    %v4481 = vtanh.pop %v4468
    %v4482 = vmul.f32 %v4479, %v4274
    %v4483 = vmul.f32 %v4478, %v4481
    %v4484 = vadd.f32 %v4482, %v4483
    %v4485 = vtanh.pop %v4484
    %v4486 = vmul.f32 %v4480, %v4485
    %v4487 = vpack.c.bf16 %v4464, %v4464
    %v4488 = vpack.c.bf16 %v4486, %v4486
    %4489 = vmatprep.subr.bf16.mxu0 %v3522
    %4490 = vmatpush1.bf16.msra.mxu0 %v3521
    %4491 = vmatprep.subr.bf16.mxu0 %v3530
    %4492 = vmatpush1.bf16.msra.mxu0 %v3529
    %4493 = vmatprep.subr.bf16.mxu0 %v3538
    %4494 = vmatpush1.bf16.msra.mxu0 %v3537
    %4495 = vmatprep.subr.bf16.mxu0 %v3546
    %4496 = vmatpush1.bf16.msra.mxu0 %v3545
    %4497 = vmatprep.subr.bf16.mxu0 %v3554
    %4498 = vmatpush1.bf16.msra.mxu0 %v3553
    %4499 = vmatprep.subr.bf16.mxu0 %v3562
    %4500 = vmatpush1.bf16.msra.mxu0 %v3561
    %4501 = vmatprep.subr.bf16.mxu0 %v3570
    %4502 = vmatpush1.bf16.msra.mxu0 %v3569
    %4503 = vmatprep.subr.bf16.mxu0 %v3578
    %4504 = vmatpush1.bf16.msra.mxu0 %v3577
    %4505 = vmatprep.subr.bf16.mxu0 %v3586
    %4506 = vmatpush1.bf16.msra.mxu0 %v3585
    %4507 = vmatprep.subr.bf16.mxu0 %v3594
    %4508 = vmatpush1.bf16.msra.mxu0 %v3593
    %4509 = vmatprep.subr.bf16.mxu0 %v3602
    %4510 = vmatpush1.bf16.msra.mxu0 %v3601
    %4511 = vmatprep.subr.bf16.mxu0 %v3610
    %4512 = vmatpush1.bf16.msra.mxu0 %v3609
    %4513 = vmatprep.subr.bf16.mxu0 %v3618
    %4514 = vmatpush1.bf16.msra.mxu0 %v3617
    %4515 = vmatprep.subr.bf16.mxu0 %v3626
    %4516 = vmatpush1.bf16.msra.mxu0 %v3625
    %4517 = vmatprep.subr.bf16.mxu0 %v3634
    %4518 = vmatpush1.bf16.msra.mxu0 %v3633
    %4519 = vmatprep.subr.bf16.mxu0 %v3642
    %4520 = vmatpush1.bf16.msra.mxu0 %v3641
    %4521 = vmatprep.mubr.bf16.mxu0 %v4488
    %4522 = vmatmul.mubr.bf16.gmra.mrb[0].mxu0 %v4487
    %v4523 = vpop.f32.mrb[0].mxu0
    %v4524 = vadd.f32 0.0, %v4523
    %v4525 = vpop.f32.mrb[0].mxu0
    %v4526 = vadd.f32 0.0, %v4525
    %v4527 = vpop.f32.mrb[0].mxu0
    %v4528 = vpop.f32.mrb[0].mxu0
    %4529 = vdwg.mxu0
    %4530 = vmatprep.subr.bf16.mxu0 %v3524
    %4531 = vmatpush1.bf16.msra.mxu0 %v3523
    %4532 = vmatprep.subr.bf16.mxu0 %v3532
    %4533 = vmatpush1.bf16.msra.mxu0 %v3531
    %4534 = vmatprep.subr.bf16.mxu0 %v3540
    %4535 = vmatpush1.bf16.msra.mxu0 %v3539
    %4536 = vmatprep.subr.bf16.mxu0 %v3548
    %4537 = vmatpush1.bf16.msra.mxu0 %v3547
    %4538 = vmatprep.subr.bf16.mxu0 %v3556
    %4539 = vmatpush1.bf16.msra.mxu0 %v3555
    %4540 = vmatprep.subr.bf16.mxu0 %v3564
    %4541 = vmatpush1.bf16.msra.mxu0 %v3563
    %4542 = vmatprep.subr.bf16.mxu0 %v3572
    %4543 = vmatpush1.bf16.msra.mxu0 %v3571
    %4544 = vmatprep.subr.bf16.mxu0 %v3580
    %4545 = vmatpush1.bf16.msra.mxu0 %v3579
    %4546 = vmatprep.subr.bf16.mxu0 %v3588
    %4547 = vmatpush1.bf16.msra.mxu0 %v3587
    %4548 = vmatprep.subr.bf16.mxu0 %v3596
    %4549 = vmatpush1.bf16.msra.mxu0 %v3595
    %4550 = vmatprep.subr.bf16.mxu0 %v3604
    %4551 = vmatpush1.bf16.msra.mxu0 %v3603
    %4552 = vmatprep.subr.bf16.mxu0 %v3612
    %4553 = vmatpush1.bf16.msra.mxu0 %v3611
    %4554 = vmatprep.subr.bf16.mxu0 %v3620
    %4555 = vmatpush1.bf16.msra.mxu0 %v3619
    %4556 = vmatprep.subr.bf16.mxu0 %v3628
    %4557 = vmatpush1.bf16.msra.mxu0 %v3627
    %4558 = vmatprep.subr.bf16.mxu0 %v3636
    %4559 = vmatpush1.bf16.msra.mxu0 %v3635
    %4560 = vmatprep.subr.bf16.mxu0 %v3644
    %4561 = vmatpush1.bf16.msra.mxu0 %v3643
    %4562 = vmatprep.mubr.bf16.mxu0 %v4488
    %4563 = vmatmul.mubr.bf16.gmra.mrb[0].mxu0 %v4487
    %v4564 = vpop.f32.mrb[0].mxu0
    %v4565 = vadd.f32 0.0, %v4564
    %v4566 = vpop.f32.mrb[0].mxu0
    %v4567 = vadd.f32 0.0, %v4566
    %v4568 = vpop.f32.mrb[0].mxu0
    %v4569 = vpop.f32.mrb[0].mxu0
    %4570 = vdwg.mxu0
    %4571 = vmatprep.subr.bf16.mxu0 %v3526
    %4572 = vmatpush1.bf16.msra.mxu0 %v3525
    %4573 = vmatprep.subr.bf16.mxu0 %v3534
    %4574 = vmatpush1.bf16.msra.mxu0 %v3533
    %4575 = vmatprep.subr.bf16.mxu0 %v3542
    %4576 = vmatpush1.bf16.msra.mxu0 %v3541
    %4577 = vmatprep.subr.bf16.mxu0 %v3550
    %4578 = vmatpush1.bf16.msra.mxu0 %v3549
    %4579 = vmatprep.subr.bf16.mxu0 %v3558
    %4580 = vmatpush1.bf16.msra.mxu0 %v3557
    %4581 = vmatprep.subr.bf16.mxu0 %v3566
    %4582 = vmatpush1.bf16.msra.mxu0 %v3565
    %4583 = vmatprep.subr.bf16.mxu0 %v3574
    %4584 = vmatpush1.bf16.msra.mxu0 %v3573
    %4585 = vmatprep.subr.bf16.mxu0 %v3582
    %4586 = vmatpush1.bf16.msra.mxu0 %v3581
    %4587 = vmatprep.subr.bf16.mxu0 %v3590
    %4588 = vmatpush1.bf16.msra.mxu0 %v3589
    %4589 = vmatprep.subr.bf16.mxu0 %v3598
    %4590 = vmatpush1.bf16.msra.mxu0 %v3597
    %4591 = vmatprep.subr.bf16.mxu0 %v3606
    %4592 = vmatpush1.bf16.msra.mxu0 %v3605
    %4593 = vmatprep.subr.bf16.mxu0 %v3614
    %4594 = vmatpush1.bf16.msra.mxu0 %v3613
    %4595 = vmatprep.subr.bf16.mxu0 %v3622
    %4596 = vmatpush1.bf16.msra.mxu0 %v3621
    %4597 = vmatprep.subr.bf16.mxu0 %v3630
    %4598 = vmatpush1.bf16.msra.mxu0 %v3629
    %4599 = vmatprep.subr.bf16.mxu0 %v3638
    %4600 = vmatpush1.bf16.msra.mxu0 %v3637
    %4601 = vmatprep.subr.bf16.mxu0 %v3646
    %4602 = vmatpush1.bf16.msra.mxu0 %v3645
    %4603 = vmatprep.mubr.bf16.mxu0 %v4488
    %4604 = vmatmul.mubr.bf16.gmra.mrb[0].mxu0 %v4487
    %v4605 = vpop.f32.mrb[0].mxu0
    %v4606 = vadd.f32 0.0, %v4605
    %v4607 = vpop.f32.mrb[0].mxu0
    %v4608 = vadd.f32 0.0, %v4607
    %v4609 = vpop.f32.mrb[0].mxu0
    %v4610 = vpop.f32.mrb[0].mxu0
    %4611 = vdwg.mxu0
    %4612 = vmatprep.subr.bf16.mxu0 %v3528
    %4613 = vmatpush1.bf16.msra.mxu0 %v3527
    %4614 = vmatprep.subr.bf16.mxu0 %v3536
    %4615 = vmatpush1.bf16.msra.mxu0 %v3535
    %4616 = vmatprep.subr.bf16.mxu0 %v3544
    %4617 = vmatpush1.bf16.msra.mxu0 %v3543
    %4618 = vmatprep.subr.bf16.mxu0 %v3552
    %4619 = vmatpush1.bf16.msra.mxu0 %v3551
    %4620 = vmatprep.subr.bf16.mxu0 %v3560
    %4621 = vmatpush1.bf16.msra.mxu0 %v3559
    %4622 = vmatprep.subr.bf16.mxu0 %v3568
    %4623 = vmatpush1.bf16.msra.mxu0 %v3567
    %4624 = vmatprep.subr.bf16.mxu0 %v3576
    %4625 = vmatpush1.bf16.msra.mxu0 %v3575
    %4626 = vmatprep.subr.bf16.mxu0 %v3584
    %4627 = vmatpush1.bf16.msra.mxu0 %v3583
    %4628 = vmatprep.subr.bf16.mxu0 %v3592
    %4629 = vmatpush1.bf16.msra.mxu0 %v3591
    %4630 = vmatprep.subr.bf16.mxu0 %v3600
    %4631 = vmatpush1.bf16.msra.mxu0 %v3599
    %4632 = vmatprep.subr.bf16.mxu0 %v3608
    %4633 = vmatpush1.bf16.msra.mxu0 %v3607
    %4634 = vmatprep.subr.bf16.mxu0 %v3616
    %4635 = vmatpush1.bf16.msra.mxu0 %v3615
    %4636 = vmatprep.subr.bf16.mxu0 %v3624
    %4637 = vmatpush1.bf16.msra.mxu0 %v3623
    %4638 = vmatprep.subr.bf16.mxu0 %v3632
    %4639 = vmatpush1.bf16.msra.mxu0 %v3631
    %4640 = vmatprep.subr.bf16.mxu0 %v3640
    %4641 = vmatpush1.bf16.msra.mxu0 %v3639
    %4642 = vmatprep.subr.bf16.mxu0 %v3648
    %4643 = vmatpush1.bf16.msra.mxu0 %v3647
    %4644 = vmatprep.mubr.bf16.mxu0 %v4488
    %4645 = vmatmul.mubr.bf16.gmra.mrb[0].mxu0 %v4487
    %v4646 = vpop.f32.mrb[0].mxu0
    %v4647 = vadd.f32 0.0, %v4646
    %v4648 = vpop.f32.mrb[0].mxu0
    %v4649 = vadd.f32 0.0, %v4648
    %v4650 = vpop.f32.mrb[0].mxu0
    %v4651 = vpop.f32.mrb[0].mxu0
    %4652 = vdwg.mxu0
    %v4653 = vadd.f32 %v3288, %v4524
    %v4654 = vadd.f32 %v3290, %v4526
    %v4655 = vadd.f32 %v3361, %v4565
    %v4656 = vadd.f32 %v3363, %v4567
    %v4657 = vmul.f32 %v4653, 0.5
    %v4658 = vmul.f32 %v4654, 0.5
    %v4659 = vmul.f32 %v4655, 0.5
    %v4660 = vtanh.pop %v4657
    %v4661 = vtanh.pop %v4658
    %v4662 = vtanh.pop %v4659
    %v4663 = vmul.f32 %v4660, 0.5
    %v4664 = vmul.f32 %v4661, 0.5
    %v4665 = vmul.f32 %v4662, 0.5
    %v4666 = vadd.f32 %v4663, 0.5
    %v4667 = vadd.f32 %v4664, 0.5
    %v4668 = vadd.f32 %v4665, 0.5
    %v4669 = vtanh.pop %v4656
    %v4670 = vmul.f32 %v4667, %v4462
    %v4671 = vmul.f32 %v4666, %v4669
    %v4672 = vadd.f32 %v4670, %v4671
    %v4673 = vtanh.pop %v4672
    %v4674 = vmul.f32 %v4668, %v4673
    %v4675 = vadd.f32 %v3426, %v4606
    %v4676 = vadd.f32 %v3428, %v4608
    %v4677 = vadd.f32 %v3497, %v4647
    %v4678 = vadd.f32 %v3499, %v4649
    %v4679 = vmul.f32 %v4675, 0.5
    %v4680 = vmul.f32 %v4676, 0.5
    %v4681 = vmul.f32 %v4677, 0.5
    %v4682 = vtanh.pop %v4679
    %v4683 = vtanh.pop %v4680
    %v4684 = vtanh.pop %v4681
    %v4685 = vmul.f32 %v4682, 0.5
    %v4686 = vmul.f32 %v4683, 0.5
    %v4687 = vmul.f32 %v4684, 0.5
    %v4688 = vadd.f32 %v4685, 0.5
    %v4689 = vadd.f32 %v4686, 0.5
    %v4690 = vadd.f32 %v4687, 0.5
    %v4691 = vtanh.pop %v4678
    %v4692 = vmul.f32 %v4689, %v4484
    %v4693 = vmul.f32 %v4688, %v4691
    %v4694 = vadd.f32 %v4692, %v4693
    %v4695 = vtanh.pop %v4694
    %v4696 = vmul.f32 %v4690, %v4695
    %v4697 = vpack.c.bf16 %v4674, %v4674
    %v4698 = vpack.c.bf16 %v4696, %v4696
    %4699 = vmatprep.subr.bf16.mxu0 %v3522
    %4700 = vmatpush1.bf16.msra.mxu0 %v3521
    %4701 = vmatprep.subr.bf16.mxu0 %v3530
    %4702 = vmatpush1.bf16.msra.mxu0 %v3529
    %4703 = vmatprep.subr.bf16.mxu0 %v3538
    %4704 = vmatpush1.bf16.msra.mxu0 %v3537
    %4705 = vmatprep.subr.bf16.mxu0 %v3546
    %4706 = vmatpush1.bf16.msra.mxu0 %v3545
    %4707 = vmatprep.subr.bf16.mxu0 %v3554
    %4708 = vmatpush1.bf16.msra.mxu0 %v3553
    %4709 = vmatprep.subr.bf16.mxu0 %v3562
    %4710 = vmatpush1.bf16.msra.mxu0 %v3561
    %4711 = vmatprep.subr.bf16.mxu0 %v3570
    %4712 = vmatpush1.bf16.msra.mxu0 %v3569
    %4713 = vmatprep.subr.bf16.mxu0 %v3578
    %4714 = vmatpush1.bf16.msra.mxu0 %v3577
    %4715 = vmatprep.subr.bf16.mxu0 %v3586
    %4716 = vmatpush1.bf16.msra.mxu0 %v3585
    %4717 = vmatprep.subr.bf16.mxu0 %v3594
    %4718 = vmatpush1.bf16.msra.mxu0 %v3593
    %4719 = vmatprep.subr.bf16.mxu0 %v3602
    %4720 = vmatpush1.bf16.msra.mxu0 %v3601
    %4721 = vmatprep.subr.bf16.mxu0 %v3610
    %4722 = vmatpush1.bf16.msra.mxu0 %v3609
    %4723 = vmatprep.subr.bf16.mxu0 %v3618
    %4724 = vmatpush1.bf16.msra.mxu0 %v3617
    %4725 = vmatprep.subr.bf16.mxu0 %v3626
    %4726 = vmatpush1.bf16.msra.mxu0 %v3625
    %4727 = vmatprep.subr.bf16.mxu0 %v3634
    %4728 = vmatpush1.bf16.msra.mxu0 %v3633
    %4729 = vmatprep.subr.bf16.mxu0 %v3642
    %4730 = vmatpush1.bf16.msra.mxu0 %v3641
    %4731 = vmatprep.mubr.bf16.mxu0 %v4698
    %4732 = vmatmul.mubr.bf16.gmra.mrb[0].mxu0 %v4697
    %v4733 = vpop.f32.mrb[0].mxu0
    %v4734 = vadd.f32 0.0, %v4733
    %v4735 = vpop.f32.mrb[0].mxu0
    %v4736 = vadd.f32 0.0, %v4735
    %v4737 = vpop.f32.mrb[0].mxu0
    %v4738 = vpop.f32.mrb[0].mxu0
    %4739 = vdwg.mxu0
    %4740 = vmatprep.subr.bf16.mxu0 %v3524
    %4741 = vmatpush1.bf16.msra.mxu0 %v3523
    %4742 = vmatprep.subr.bf16.mxu0 %v3532
    %4743 = vmatpush1.bf16.msra.mxu0 %v3531
    %4744 = vmatprep.subr.bf16.mxu0 %v3540
    %4745 = vmatpush1.bf16.msra.mxu0 %v3539
    %4746 = vmatprep.subr.bf16.mxu0 %v3548
    %4747 = vmatpush1.bf16.msra.mxu0 %v3547
    %4748 = vmatprep.subr.bf16.mxu0 %v3556
    %4749 = vmatpush1.bf16.msra.mxu0 %v3555
    %4750 = vmatprep.subr.bf16.mxu0 %v3564
    %4751 = vmatpush1.bf16.msra.mxu0 %v3563
    %4752 = vmatprep.subr.bf16.mxu0 %v3572
    %4753 = vmatpush1.bf16.msra.mxu0 %v3571
    %4754 = vmatprep.subr.bf16.mxu0 %v3580
    %4755 = vmatpush1.bf16.msra.mxu0 %v3579
    %4756 = vmatprep.subr.bf16.mxu0 %v3588
    %4757 = vmatpush1.bf16.msra.mxu0 %v3587
    %4758 = vmatprep.subr.bf16.mxu0 %v3596
    %4759 = vmatpush1.bf16.msra.mxu0 %v3595
    %4760 = vmatprep.subr.bf16.mxu0 %v3604
    %4761 = vmatpush1.bf16.msra.mxu0 %v3603
    %4762 = vmatprep.subr.bf16.mxu0 %v3612
    %4763 = vmatpush1.bf16.msra.mxu0 %v3611
    %4764 = vmatprep.subr.bf16.mxu0 %v3620
    %4765 = vmatpush1.bf16.msra.mxu0 %v3619
    %4766 = vmatprep.subr.bf16.mxu0 %v3628
    %4767 = vmatpush1.bf16.msra.mxu0 %v3627
    %4768 = vmatprep.subr.bf16.mxu0 %v3636
    %4769 = vmatpush1.bf16.msra.mxu0 %v3635
    %4770 = vmatprep.subr.bf16.mxu0 %v3644
    %4771 = vmatpush1.bf16.msra.mxu0 %v3643
    %4772 = vmatprep.mubr.bf16.mxu0 %v4698
    %4773 = vmatmul.mubr.bf16.gmra.mrb[0].mxu0 %v4697
    %v4774 = vpop.f32.mrb[0].mxu0
    %v4775 = vadd.f32 0.0, %v4774
    %v4776 = vpop.f32.mrb[0].mxu0
    %v4777 = vadd.f32 0.0, %v4776
    %v4778 = vpop.f32.mrb[0].mxu0
    %v4779 = vpop.f32.mrb[0].mxu0
    %4780 = vdwg.mxu0
    %4781 = vmatprep.subr.bf16.mxu0 %v3526
    %4782 = vmatpush1.bf16.msra.mxu0 %v3525
    %4783 = vmatprep.subr.bf16.mxu0 %v3534
    %4784 = vmatpush1.bf16.msra.mxu0 %v3533
    %4785 = vmatprep.subr.bf16.mxu0 %v3542
    %4786 = vmatpush1.bf16.msra.mxu0 %v3541
    %4787 = vmatprep.subr.bf16.mxu0 %v3550
    %4788 = vmatpush1.bf16.msra.mxu0 %v3549
    %4789 = vmatprep.subr.bf16.mxu0 %v3558
    %4790 = vmatpush1.bf16.msra.mxu0 %v3557
    %4791 = vmatprep.subr.bf16.mxu0 %v3566
    %4792 = vmatpush1.bf16.msra.mxu0 %v3565
    %4793 = vmatprep.subr.bf16.mxu0 %v3574
    %4794 = vmatpush1.bf16.msra.mxu0 %v3573
    %4795 = vmatprep.subr.bf16.mxu0 %v3582
    %4796 = vmatpush1.bf16.msra.mxu0 %v3581
    %4797 = vmatprep.subr.bf16.mxu0 %v3590
    %4798 = vmatpush1.bf16.msra.mxu0 %v3589
    %4799 = vmatprep.subr.bf16.mxu0 %v3598
    %4800 = vmatpush1.bf16.msra.mxu0 %v3597
    %4801 = vmatprep.subr.bf16.mxu0 %v3606
    %4802 = vmatpush1.bf16.msra.mxu0 %v3605
    %4803 = vmatprep.subr.bf16.mxu0 %v3614
    %4804 = vmatpush1.bf16.msra.mxu0 %v3613
    %4805 = vmatprep.subr.bf16.mxu0 %v3622
    %4806 = vmatpush1.bf16.msra.mxu0 %v3621
    %4807 = vmatprep.subr.bf16.mxu0 %v3630
    %4808 = vmatpush1.bf16.msra.mxu0 %v3629
    %4809 = vmatprep.subr.bf16.mxu0 %v3638
    %4810 = vmatpush1.bf16.msra.mxu0 %v3637
    %4811 = vmatprep.subr.bf16.mxu0 %v3646
    %4812 = vmatpush1.bf16.msra.mxu0 %v3645
    %4813 = vmatprep.mubr.bf16.mxu0 %v4698
    %4814 = vmatmul.mubr.bf16.gmra.mrb[0].mxu0 %v4697
    %v4815 = vpop.f32.mrb[0].mxu0
    %v4816 = vadd.f32 0.0, %v4815
    %v4817 = vpop.f32.mrb[0].mxu0
    %v4818 = vadd.f32 0.0, %v4817
    %v4819 = vpop.f32.mrb[0].mxu0
    %v4820 = vpop.f32.mrb[0].mxu0
    %4821 = vdwg.mxu0
    %4822 = vmatprep.subr.bf16.mxu0 %v3528
    %4823 = vmatpush1.bf16.msra.mxu0 %v3527
    %4824 = vmatprep.subr.bf16.mxu0 %v3536
    %4825 = vmatpush1.bf16.msra.mxu0 %v3535
    %4826 = vmatprep.subr.bf16.mxu0 %v3544
    %4827 = vmatpush1.bf16.msra.mxu0 %v3543
    %4828 = vmatprep.subr.bf16.mxu0 %v3552
    %4829 = vmatpush1.bf16.msra.mxu0 %v3551
    %4830 = vmatprep.subr.bf16.mxu0 %v3560
    %4831 = vmatpush1.bf16.msra.mxu0 %v3559
    %4832 = vmatprep.subr.bf16.mxu0 %v3568
    %4833 = vmatpush1.bf16.msra.mxu0 %v3567
    %4834 = vmatprep.subr.bf16.mxu0 %v3576
    %4835 = vmatpush1.bf16.msra.mxu0 %v3575
    %4836 = vmatprep.subr.bf16.mxu0 %v3584
    %4837 = vmatpush1.bf16.msra.mxu0 %v3583
    %4838 = vmatprep.subr.bf16.mxu0 %v3592
    %4839 = vmatpush1.bf16.msra.mxu0 %v3591
    %4840 = vmatprep.subr.bf16.mxu0 %v3600
    %4841 = vmatpush1.bf16.msra.mxu0 %v3599
    %4842 = vmatprep.subr.bf16.mxu0 %v3608
    %4843 = vmatpush1.bf16.msra.mxu0 %v3607
    %4844 = vmatprep.subr.bf16.mxu0 %v3616
    %4845 = vmatpush1.bf16.msra.mxu0 %v3615
    %4846 = vmatprep.subr.bf16.mxu0 %v3624
    %4847 = vmatpush1.bf16.msra.mxu0 %v3623
    %4848 = vmatprep.subr.bf16.mxu0 %v3632
    %4849 = vmatpush1.bf16.msra.mxu0 %v3631
    %4850 = vmatprep.subr.bf16.mxu0 %v3640
    %4851 = vmatpush1.bf16.msra.mxu0 %v3639
    %4852 = vmatprep.subr.bf16.mxu0 %v3648
    %4853 = vmatpush1.bf16.msra.mxu0 %v3647
    %4854 = vmatprep.mubr.bf16.mxu0 %v4698
    %4855 = vmatmul.mubr.bf16.gmra.mrb[0].mxu0 %v4697
    %v4856 = vpop.f32.mrb[0].mxu0
    %v4857 = vadd.f32 0.0, %v4856
    %v4858 = vpop.f32.mrb[0].mxu0
    %v4859 = vadd.f32 0.0, %v4858
    %v4860 = vpop.f32.mrb[0].mxu0
    %v4861 = vpop.f32.mrb[0].mxu0
    %4862 = vdwg.mxu0
    %v4863 = vadd.f32 %v3292, %v4734
    %v4864 = vadd.f32 %v3294, %v4736
    %v4865 = vadd.f32 %v3365, %v4775
    %v4866 = vadd.f32 %v3367, %v4777
    %v4867 = vmul.f32 %v4863, 0.5
    %v4868 = vmul.f32 %v4864, 0.5
    %v4869 = vmul.f32 %v4865, 0.5
    %v4870 = vtanh.pop %v4867
    %v4871 = vtanh.pop %v4868
    %v4872 = vtanh.pop %v4869
    %v4873 = vmul.f32 %v4870, 0.5
    %v4874 = vmul.f32 %v4871, 0.5
    %v4875 = vmul.f32 %v4872, 0.5
    %v4876 = vadd.f32 %v4873, 0.5
    %v4877 = vadd.f32 %v4874, 0.5
    %v4878 = vadd.f32 %v4875, 0.5
    %v4879 = vtanh.pop %v4866
    %v4880 = vmul.f32 %v4877, %v4672
    %v4881 = vmul.f32 %v4876, %v4879
    %v4882 = vadd.f32 %v4880, %v4881
    %v4883 = vtanh.pop %v4882
    %v4884 = vmul.f32 %v4878, %v4883
    %v4885 = vadd.f32 %v3422, %v4816
    %v4886 = vadd.f32 %v3424, %v4818
    %v4887 = vadd.f32 %v3493, %v4857
    %v4888 = vadd.f32 %v3495, %v4859
    %v4889 = vmul.f32 %v4885, 0.5
    %v4890 = vmul.f32 %v4886, 0.5
    %v4891 = vmul.f32 %v4887, 0.5
    %v4892 = vtanh.pop %v4889
    %v4893 = vtanh.pop %v4890
    %v4894 = vtanh.pop %v4891
    %v4895 = vmul.f32 %v4892, 0.5
    %v4896 = vmul.f32 %v4893, 0.5
    %v4897 = vmul.f32 %v4894, 0.5
    %v4898 = vadd.f32 %v4895, 0.5
    %v4899 = vadd.f32 %v4896, 0.5
    %v4900 = vadd.f32 %v4897, 0.5
    %v4901 = vtanh.pop %v4888
    %v4902 = vmul.f32 %v4899, %v4694
    %v4903 = vmul.f32 %v4898, %v4901
    %v4904 = vadd.f32 %v4902, %v4903
    %v4905 = vtanh.pop %v4904
    %v4906 = vmul.f32 %v4900, %v4905
    %v4907 = vpack.c.bf16 %v4884, %v4884
    %v4908 = vpack.c.bf16 %v4906, %v4906
    %4909 = vmatprep.subr.bf16.mxu0 %v3522
    %4910 = vmatpush1.bf16.msra.mxu0 %v3521
    %4911 = vmatprep.subr.bf16.mxu0 %v3530
    %4912 = vmatpush1.bf16.msra.mxu0 %v3529
    %4913 = vmatprep.subr.bf16.mxu0 %v3538
    %4914 = vmatpush1.bf16.msra.mxu0 %v3537
    %4915 = vmatprep.subr.bf16.mxu0 %v3546
    %4916 = vmatpush1.bf16.msra.mxu0 %v3545
    %4917 = vmatprep.subr.bf16.mxu0 %v3554
    %4918 = vmatpush1.bf16.msra.mxu0 %v3553
    %4919 = vmatprep.subr.bf16.mxu0 %v3562
    %4920 = vmatpush1.bf16.msra.mxu0 %v3561
    %4921 = vmatprep.subr.bf16.mxu0 %v3570
    %4922 = vmatpush1.bf16.msra.mxu0 %v3569
    %4923 = vmatprep.subr.bf16.mxu0 %v3578
    %4924 = vmatpush1.bf16.msra.mxu0 %v3577
    %4925 = vmatprep.subr.bf16.mxu0 %v3586
    %4926 = vmatpush1.bf16.msra.mxu0 %v3585
    %4927 = vmatprep.subr.bf16.mxu0 %v3594
    %4928 = vmatpush1.bf16.msra.mxu0 %v3593
    %4929 = vmatprep.subr.bf16.mxu0 %v3602
    %4930 = vmatpush1.bf16.msra.mxu0 %v3601
    %4931 = vmatprep.subr.bf16.mxu0 %v3610
    %4932 = vmatpush1.bf16.msra.mxu0 %v3609
    %4933 = vmatprep.subr.bf16.mxu0 %v3618
    %4934 = vmatpush1.bf16.msra.mxu0 %v3617
    %4935 = vmatprep.subr.bf16.mxu0 %v3626
    %4936 = vmatpush1.bf16.msra.mxu0 %v3625
    %4937 = vmatprep.subr.bf16.mxu0 %v3634
    %4938 = vmatpush1.bf16.msra.mxu0 %v3633
    %4939 = vmatprep.subr.bf16.mxu0 %v3642
    %4940 = vmatpush1.bf16.msra.mxu0 %v3641
    %4941 = vmatprep.mubr.bf16.mxu0 %v4908
    %4942 = vmatmul.mubr.bf16.gmra.mrb[0].mxu0 %v4907
    %v4943 = vpop.f32.mrb[0].mxu0
    %v4944 = vadd.f32 0.0, %v4943
    %v4945 = vpop.f32.mrb[0].mxu0
    %v4946 = vadd.f32 0.0, %v4945
    %v4947 = vpop.f32.mrb[0].mxu0
    %v4948 = vpop.f32.mrb[0].mxu0
    %4949 = vdwg.mxu0
    %4950 = vmatprep.subr.bf16.mxu0 %v3524
    %4951 = vmatpush1.bf16.msra.mxu0 %v3523
    %4952 = vmatprep.subr.bf16.mxu0 %v3532
    %4953 = vmatpush1.bf16.msra.mxu0 %v3531
    %4954 = vmatprep.subr.bf16.mxu0 %v3540
    %4955 = vmatpush1.bf16.msra.mxu0 %v3539
    %4956 = vmatprep.subr.bf16.mxu0 %v3548
    %4957 = vmatpush1.bf16.msra.mxu0 %v3547
    %4958 = vmatprep.subr.bf16.mxu0 %v3556
    %4959 = vmatpush1.bf16.msra.mxu0 %v3555
    %4960 = vmatprep.subr.bf16.mxu0 %v3564
    %4961 = vmatpush1.bf16.msra.mxu0 %v3563
    %4962 = vmatprep.subr.bf16.mxu0 %v3572
    %4963 = vmatpush1.bf16.msra.mxu0 %v3571
    %4964 = vmatprep.subr.bf16.mxu0 %v3580
    %4965 = vmatpush1.bf16.msra.mxu0 %v3579
    %4966 = vmatprep.subr.bf16.mxu0 %v3588
    %4967 = vmatpush1.bf16.msra.mxu0 %v3587
    %4968 = vmatprep.subr.bf16.mxu0 %v3596
    %4969 = vmatpush1.bf16.msra.mxu0 %v3595
    %4970 = vmatprep.subr.bf16.mxu0 %v3604
    %4971 = vmatpush1.bf16.msra.mxu0 %v3603
    %4972 = vmatprep.subr.bf16.mxu0 %v3612
    %4973 = vmatpush1.bf16.msra.mxu0 %v3611
    %4974 = vmatprep.subr.bf16.mxu0 %v3620
    %4975 = vmatpush1.bf16.msra.mxu0 %v3619
    %4976 = vmatprep.subr.bf16.mxu0 %v3628
    %4977 = vmatpush1.bf16.msra.mxu0 %v3627
    %4978 = vmatprep.subr.bf16.mxu0 %v3636
    %4979 = vmatpush1.bf16.msra.mxu0 %v3635
    %4980 = vmatprep.subr.bf16.mxu0 %v3644
    %4981 = vmatpush1.bf16.msra.mxu0 %v3643
    %4982 = vmatprep.mubr.bf16.mxu0 %v4908
    %4983 = vmatmul.mubr.bf16.gmra.mrb[0].mxu0 %v4907
    %v4984 = vpop.f32.mrb[0].mxu0
    %v4985 = vadd.f32 0.0, %v4984
    %v4986 = vpop.f32.mrb[0].mxu0
    %v4987 = vadd.f32 0.0, %v4986
    %v4988 = vpop.f32.mrb[0].mxu0
    %v4989 = vpop.f32.mrb[0].mxu0
    %4990 = vdwg.mxu0
    %4991 = vmatprep.subr.bf16.mxu0 %v3526
    %4992 = vmatpush1.bf16.msra.mxu0 %v3525
    %4993 = vmatprep.subr.bf16.mxu0 %v3534
    %4994 = vmatpush1.bf16.msra.mxu0 %v3533
    %4995 = vmatprep.subr.bf16.mxu0 %v3542
    %4996 = vmatpush1.bf16.msra.mxu0 %v3541
    %4997 = vmatprep.subr.bf16.mxu0 %v3550
    %4998 = vmatpush1.bf16.msra.mxu0 %v3549
    %4999 = vmatprep.subr.bf16.mxu0 %v3558
    %5000 = vmatpush1.bf16.msra.mxu0 %v3557
    %5001 = vmatprep.subr.bf16.mxu0 %v3566
    %5002 = vmatpush1.bf16.msra.mxu0 %v3565
    %5003 = vmatprep.subr.bf16.mxu0 %v3574
    %5004 = vmatpush1.bf16.msra.mxu0 %v3573
    %5005 = vmatprep.subr.bf16.mxu0 %v3582
    %5006 = vmatpush1.bf16.msra.mxu0 %v3581
    %5007 = vmatprep.subr.bf16.mxu0 %v3590
    %5008 = vmatpush1.bf16.msra.mxu0 %v3589
    %5009 = vmatprep.subr.bf16.mxu0 %v3598
    %5010 = vmatpush1.bf16.msra.mxu0 %v3597
    %5011 = vmatprep.subr.bf16.mxu0 %v3606
    %5012 = vmatpush1.bf16.msra.mxu0 %v3605
    %5013 = vmatprep.subr.bf16.mxu0 %v3614
    %5014 = vmatpush1.bf16.msra.mxu0 %v3613
    %5015 = vmatprep.subr.bf16.mxu0 %v3622
    %5016 = vmatpush1.bf16.msra.mxu0 %v3621
    %5017 = vmatprep.subr.bf16.mxu0 %v3630
    %5018 = vmatpush1.bf16.msra.mxu0 %v3629
    %5019 = vmatprep.subr.bf16.mxu0 %v3638
    %5020 = vmatpush1.bf16.msra.mxu0 %v3637
    %5021 = vmatprep.subr.bf16.mxu0 %v3646
    %5022 = vmatpush1.bf16.msra.mxu0 %v3645
    %5023 = vmatprep.mubr.bf16.mxu0 %v4908
    %5024 = vmatmul.mubr.bf16.gmra.mrb[0].mxu0 %v4907
    %v5025 = vpop.f32.mrb[0].mxu0
    %v5026 = vadd.f32 0.0, %v5025
    %v5027 = vpop.f32.mrb[0].mxu0
    %v5028 = vadd.f32 0.0, %v5027
    %v5029 = vpop.f32.mrb[0].mxu0
    %v5030 = vpop.f32.mrb[0].mxu0
    %5031 = vdwg.mxu0
    %5032 = vmatprep.subr.bf16.mxu0 %v3528
    %5033 = vmatpush1.bf16.msra.mxu0 %v3527
    %5034 = vmatprep.subr.bf16.mxu0 %v3536
    %5035 = vmatpush1.bf16.msra.mxu0 %v3535
    %5036 = vmatprep.subr.bf16.mxu0 %v3544
    %5037 = vmatpush1.bf16.msra.mxu0 %v3543
    %5038 = vmatprep.subr.bf16.mxu0 %v3552
    %5039 = vmatpush1.bf16.msra.mxu0 %v3551
    %5040 = vmatprep.subr.bf16.mxu0 %v3560
    %5041 = vmatpush1.bf16.msra.mxu0 %v3559
    %5042 = vmatprep.subr.bf16.mxu0 %v3568
    %5043 = vmatpush1.bf16.msra.mxu0 %v3567
    %5044 = vmatprep.subr.bf16.mxu0 %v3576
    %5045 = vmatpush1.bf16.msra.mxu0 %v3575
    %5046 = vmatprep.subr.bf16.mxu0 %v3584
    %5047 = vmatpush1.bf16.msra.mxu0 %v3583
    %5048 = vmatprep.subr.bf16.mxu0 %v3592
    %5049 = vmatpush1.bf16.msra.mxu0 %v3591
    %5050 = vmatprep.subr.bf16.mxu0 %v3600
    %5051 = vmatpush1.bf16.msra.mxu0 %v3599
    %5052 = vmatprep.subr.bf16.mxu0 %v3608
    %5053 = vmatpush1.bf16.msra.mxu0 %v3607
    %5054 = vmatprep.subr.bf16.mxu0 %v3616
    %5055 = vmatpush1.bf16.msra.mxu0 %v3615
    %5056 = vmatprep.subr.bf16.mxu0 %v3624
    %5057 = vmatpush1.bf16.msra.mxu0 %v3623
    %5058 = vmatprep.subr.bf16.mxu0 %v3632
    %5059 = vmatpush1.bf16.msra.mxu0 %v3631
    %5060 = vmatprep.subr.bf16.mxu0 %v3640
    %5061 = vmatpush1.bf16.msra.mxu0 %v3639
    %5062 = vmatprep.subr.bf16.mxu0 %v3648
    %5063 = vmatpush1.bf16.msra.mxu0 %v3647
    %5064 = vmatprep.mubr.bf16.mxu0 %v4908
    %5065 = vmatmul.mubr.bf16.gmra.mrb[0].mxu0 %v4907
    %v5066 = vpop.f32.mrb[0].mxu0
    %v5067 = vadd.f32 0.0, %v5066
    %v5068 = vpop.f32.mrb[0].mxu0
    %v5069 = vadd.f32 0.0, %v5068
    %v5070 = vpop.f32.mrb[0].mxu0
    %v5071 = vpop.f32.mrb[0].mxu0
    %5072 = vdwg.mxu0
    %v5073 = vadd.f32 %v3298, %v4944
    %v5074 = vadd.f32 %v3300, %v4946
    %v5075 = vadd.f32 %v3371, %v4985
    %v5076 = vadd.f32 %v3373, %v4987
    %v5077 = vmul.f32 %v5073, 0.5
    %v5078 = vmul.f32 %v5074, 0.5
    %v5079 = vmul.f32 %v5075, 0.5
    %v5080 = vtanh.pop %v5077
    %v5081 = vtanh.pop %v5078
    %v5082 = vtanh.pop %v5079
    %v5083 = vmul.f32 %v5080, 0.5
    %v5084 = vmul.f32 %v5081, 0.5
    %v5085 = vmul.f32 %v5082, 0.5
    %v5086 = vadd.f32 %v5083, 0.5
    %v5087 = vadd.f32 %v5084, 0.5
    %v5088 = vadd.f32 %v5085, 0.5
    %v5089 = vtanh.pop %v5076
    %v5090 = vmul.f32 %v5087, %v4882
    %v5091 = vmul.f32 %v5086, %v5089
    %v5092 = vadd.f32 %v5090, %v5091
    %v5093 = vtanh.pop %v5092
    %v5094 = vmul.f32 %v5088, %v5093
    %v5095 = vadd.f32 %v3416, %v5026
    %v5096 = vadd.f32 %v3418, %v5028
    %v5097 = vadd.f32 %v3487, %v5067
    %v5098 = vadd.f32 %v3489, %v5069
    %v5099 = vmul.f32 %v5095, 0.5
    %v5100 = vmul.f32 %v5096, 0.5
    %v5101 = vmul.f32 %v5097, 0.5
    %v5102 = vtanh.pop %v5099
    %v5103 = vtanh.pop %v5100
    %v5104 = vtanh.pop %v5101
    %v5105 = vmul.f32 %v5102, 0.5
    %v5106 = vmul.f32 %v5103, 0.5
    %v5107 = vmul.f32 %v5104, 0.5
    %v5108 = vadd.f32 %v5105, 0.5
    %v5109 = vadd.f32 %v5106, 0.5
    %v5110 = vadd.f32 %v5107, 0.5
    %v5111 = vtanh.pop %v5098
    %v5112 = vmul.f32 %v5109, %v4904
    %v5113 = vmul.f32 %v5108, %v5111
    %v5114 = vadd.f32 %v5112, %v5113
    %v5115 = vtanh.pop %v5114
    %v5116 = vmul.f32 %v5110, %v5115
    %v5117 = vpack.c.bf16 %v5094, %v5094
    %v5118 = vpack.c.bf16 %v5116, %v5116
    %5119 = vmatprep.subr.bf16.mxu0 %v3522
    %5120 = vmatpush1.bf16.msra.mxu0 %v3521
    %5121 = vmatprep.subr.bf16.mxu0 %v3530
    %5122 = vmatpush1.bf16.msra.mxu0 %v3529
    %5123 = vmatprep.subr.bf16.mxu0 %v3538
    %5124 = vmatpush1.bf16.msra.mxu0 %v3537
    %5125 = vmatprep.subr.bf16.mxu0 %v3546
    %5126 = vmatpush1.bf16.msra.mxu0 %v3545
    %5127 = vmatprep.subr.bf16.mxu0 %v3554
    %5128 = vmatpush1.bf16.msra.mxu0 %v3553
    %5129 = vmatprep.subr.bf16.mxu0 %v3562
    %5130 = vmatpush1.bf16.msra.mxu0 %v3561
    %5131 = vmatprep.subr.bf16.mxu0 %v3570
    %5132 = vmatpush1.bf16.msra.mxu0 %v3569
    %5133 = vmatprep.subr.bf16.mxu0 %v3578
    %5134 = vmatpush1.bf16.msra.mxu0 %v3577
    %5135 = vmatprep.subr.bf16.mxu0 %v3586
    %5136 = vmatpush1.bf16.msra.mxu0 %v3585
    %5137 = vmatprep.subr.bf16.mxu0 %v3594
    %5138 = vmatpush1.bf16.msra.mxu0 %v3593
    %5139 = vmatprep.subr.bf16.mxu0 %v3602
    %5140 = vmatpush1.bf16.msra.mxu0 %v3601
    %5141 = vmatprep.subr.bf16.mxu0 %v3610
    %5142 = vmatpush1.bf16.msra.mxu0 %v3609
    %5143 = vmatprep.subr.bf16.mxu0 %v3618
    %5144 = vmatpush1.bf16.msra.mxu0 %v3617
    %5145 = vmatprep.subr.bf16.mxu0 %v3626
    %5146 = vmatpush1.bf16.msra.mxu0 %v3625
    %5147 = vmatprep.subr.bf16.mxu0 %v3634
    %5148 = vmatpush1.bf16.msra.mxu0 %v3633
    %5149 = vmatprep.subr.bf16.mxu0 %v3642
    %5150 = vmatpush1.bf16.msra.mxu0 %v3641
    %5151 = vmatprep.mubr.bf16.mxu0 %v5118
    %5152 = vmatmul.mubr.bf16.gmra.mrb[0].mxu0 %v5117
    %v5153 = vpop.f32.mrb[0].mxu0
    %v5154 = vadd.f32 0.0, %v5153
    %v5155 = vpop.f32.mrb[0].mxu0
    %v5156 = vadd.f32 0.0, %v5155
    %v5157 = vpop.f32.mrb[0].mxu0
    %v5158 = vpop.f32.mrb[0].mxu0
    %5159 = vdwg.mxu0
    %5160 = vmatprep.subr.bf16.mxu0 %v3524
    %5161 = vmatpush1.bf16.msra.mxu0 %v3523
    %5162 = vmatprep.subr.bf16.mxu0 %v3532
    %5163 = vmatpush1.bf16.msra.mxu0 %v3531
    %5164 = vmatprep.subr.bf16.mxu0 %v3540
    %5165 = vmatpush1.bf16.msra.mxu0 %v3539
    %5166 = vmatprep.subr.bf16.mxu0 %v3548
    %5167 = vmatpush1.bf16.msra.mxu0 %v3547
    %5168 = vmatprep.subr.bf16.mxu0 %v3556
    %5169 = vmatpush1.bf16.msra.mxu0 %v3555
    %5170 = vmatprep.subr.bf16.mxu0 %v3564
    %5171 = vmatpush1.bf16.msra.mxu0 %v3563
    %5172 = vmatprep.subr.bf16.mxu0 %v3572
    %5173 = vmatpush1.bf16.msra.mxu0 %v3571
    %5174 = vmatprep.subr.bf16.mxu0 %v3580
    %5175 = vmatpush1.bf16.msra.mxu0 %v3579
    %5176 = vmatprep.subr.bf16.mxu0 %v3588
    %5177 = vmatpush1.bf16.msra.mxu0 %v3587
    %5178 = vmatprep.subr.bf16.mxu0 %v3596
    %5179 = vmatpush1.bf16.msra.mxu0 %v3595
    %5180 = vmatprep.subr.bf16.mxu0 %v3604
    %5181 = vmatpush1.bf16.msra.mxu0 %v3603
    %5182 = vmatprep.subr.bf16.mxu0 %v3612
    %5183 = vmatpush1.bf16.msra.mxu0 %v3611
    %5184 = vmatprep.subr.bf16.mxu0 %v3620
    %5185 = vmatpush1.bf16.msra.mxu0 %v3619
    %5186 = vmatprep.subr.bf16.mxu0 %v3628
    %5187 = vmatpush1.bf16.msra.mxu0 %v3627
    %5188 = vmatprep.subr.bf16.mxu0 %v3636
    %5189 = vmatpush1.bf16.msra.mxu0 %v3635
    %5190 = vmatprep.subr.bf16.mxu0 %v3644
    %5191 = vmatpush1.bf16.msra.mxu0 %v3643
    %5192 = vmatprep.mubr.bf16.mxu0 %v5118
    %5193 = vmatmul.mubr.bf16.gmra.mrb[0].mxu0 %v5117
    %v5194 = vpop.f32.mrb[0].mxu0
    %v5195 = vadd.f32 0.0, %v5194
    %v5196 = vpop.f32.mrb[0].mxu0
    %v5197 = vadd.f32 0.0, %v5196
    %v5198 = vpop.f32.mrb[0].mxu0
    %v5199 = vpop.f32.mrb[0].mxu0
    %5200 = vdwg.mxu0
    %v5201 = vadd.f32 %v3302, %v5154
    %v5202 = vadd.f32 %v3304, %v5156
    %v5203 = vadd.f32 %v3375, %v5195
    %v5204 = vadd.f32 %v3377, %v5197
    %v5205 = vmul.f32 %v5201, 0.5
    %v5206 = vmul.f32 %v5202, 0.5
    %v5207 = vmul.f32 %v5203, 0.5
    %v5208 = vtanh.pop %v5205
    %v5209 = vtanh.pop %v5206
    %v5210 = vtanh.pop %v5207
    %v5211 = vmul.f32 %v5208, 0.5
    %v5212 = vmul.f32 %v5209, 0.5
    %v5213 = vmul.f32 %v5210, 0.5
    %v5214 = vadd.f32 %v5211, 0.5
    %v5215 = vadd.f32 %v5212, 0.5
    %v5216 = vadd.f32 %v5213, 0.5
    %v5217 = vtanh.pop %v5204
    %v5218 = vmul.f32 %v5215, %v5092
    %v5219 = vmul.f32 %v5214, %v5217
    %v5220 = vadd.f32 %v5218, %v5219
    %v5221 = vtanh.pop %v5220
    %v5222 = vmul.f32 %v5216, %v5221
    %5223 = vst [vmem:[%s9] sm:$0xff] %v5222
    %5224 = vst [vmem:[%s9 + $0x8] sm:$0xff] %v3856
    %v5225 = vpack.c.bf16 %v5222, %v5222
    %v5226 = vld [vmem:[%s7] sm:$0xf]
    %v5227 = vld [vmem:[%s7 + $0x4] sm:$0xf]
    %v5228 = vld [vmem:[%s7 + $0x8] sm:$0xf]
    %v5229 = vld [vmem:[%s7 + $0xc] sm:$0xf]
    %v5230 = vld [vmem:[%s7 + $0x10] sm:$0xf]
    %v5231 = vld [vmem:[%s7 + $0x14] sm:$0xf]
    %v5232 = vld [vmem:[%s7 + $0x18] sm:$0xf]
    %v5233 = vld [vmem:[%s7 + $0x1c] sm:$0xf]
    %v5234 = vld [vmem:[%s7 + $0x20] sm:$0xf]
    %v5235 = vld [vmem:[%s7 + $0x24] sm:$0xf]
    %v5236 = vld [vmem:[%s7 + $0x28] sm:$0xf]
    %v5237 = vld [vmem:[%s7 + $0x2c] sm:$0xf]
    %v5238 = vld [vmem:[%s7 + $0x30] sm:$0xf]
    %v5239 = vld [vmem:[%s7 + $0x34] sm:$0xf]
    %v5240 = vld [vmem:[%s7 + $0x38] sm:$0xf]
    %v5241 = vld [vmem:[%s7 + $0x3c] sm:$0xf]
    %v5242 = vld [vmem:[%s7 + $0x40] sm:$0xf]
    %v5243 = vld [vmem:[%s7 + $0x44] sm:$0xf]
    %v5244 = vld [vmem:[%s7 + $0x48] sm:$0xf]
    %v5245 = vld [vmem:[%s7 + $0x4c] sm:$0xf]
    %v5246 = vld [vmem:[%s7 + $0x50] sm:$0xf]
    %v5247 = vld [vmem:[%s7 + $0x54] sm:$0xf]
    %v5248 = vld [vmem:[%s7 + $0x58] sm:$0xf]
    %v5249 = vld [vmem:[%s7 + $0x5c] sm:$0xf]
    %v5250 = vld [vmem:[%s7 + $0x60] sm:$0xf]
    %v5251 = vld [vmem:[%s7 + $0x64] sm:$0xf]
    %v5252 = vld [vmem:[%s7 + $0x68] sm:$0xf]
    %v5253 = vld [vmem:[%s7 + $0x6c] sm:$0xf]
    %v5254 = vld [vmem:[%s7 + $0x70] sm:$0xf]
    %v5255 = vld [vmem:[%s7 + $0x74] sm:$0xf]
    %v5256 = vld [vmem:[%s7 + $0x78] sm:$0xf]
    %v5257 = vld [vmem:[%s7 + $0x7c] sm:$0xf]
    %v5258 = vld [vmem:[%s8] sm:$0x1]
    %v5260 = vlaneseq
    %v5261 = vshrl.u32 %v5260, 7
    %v5262 = vsub.s32 0, %v5261
    %v5263 = vrot.slane %v5258, %v5262
    %v5297 = vunpack.c.l.b16 %v5226
    %v5298 = vunpack.c.l.b16 %v5227
    %v5299 = vunpack.c.l.b16 %v5228
    %v5300 = vunpack.c.l.b16 %v5229
    %v5301 = vunpack.c.l.b16 %v5230
    %v5302 = vunpack.c.l.b16 %v5231
    %v5303 = vunpack.c.l.b16 %v5232
    %v5304 = vunpack.c.l.b16 %v5233
    %v5305 = vunpack.c.l.b16 %v5234
    %v5306 = vunpack.c.l.b16 %v5235
    %v5307 = vunpack.c.l.b16 %v5236
    %v5308 = vunpack.c.l.b16 %v5237
    %v5309 = vunpack.c.l.b16 %v5238
    %v5310 = vunpack.c.l.b16 %v5239
    %v5311 = vunpack.c.l.b16 %v5240
    %v5312 = vunpack.c.l.b16 %v5241
    %v5313 = vunpack.c.l.b16 %v5242
    %v5314 = vunpack.c.l.b16 %v5243
    %v5315 = vunpack.c.l.b16 %v5244
    %v5316 = vunpack.c.l.b16 %v5245
    %v5317 = vunpack.c.l.b16 %v5246
    %v5318 = vunpack.c.l.b16 %v5247
    %v5319 = vunpack.c.l.b16 %v5248
    %v5320 = vunpack.c.l.b16 %v5249
    %v5321 = vunpack.c.l.b16 %v5250
    %v5322 = vunpack.c.l.b16 %v5251
    %v5323 = vunpack.c.l.b16 %v5252
    %v5324 = vunpack.c.l.b16 %v5253
    %v5325 = vunpack.c.l.b16 %v5254
    %v5326 = vunpack.c.l.b16 %v5255
    %v5327 = vunpack.c.l.b16 %v5256
    %v5328 = vunpack.c.l.b16 %v5257
    %v5329 = vpack.c.b16 %v5298, %v5297
    %v5330 = vpack.c.b16 %v5300, %v5299
    %v5331 = vpack.c.b16 %v5302, %v5301
    %v5332 = vpack.c.b16 %v5304, %v5303
    %v5333 = vpack.c.b16 %v5306, %v5305
    %v5334 = vpack.c.b16 %v5308, %v5307
    %v5335 = vpack.c.b16 %v5310, %v5309
    %v5336 = vpack.c.b16 %v5312, %v5311
    %v5337 = vpack.c.b16 %v5314, %v5313
    %v5338 = vpack.c.b16 %v5316, %v5315
    %v5339 = vpack.c.b16 %v5318, %v5317
    %v5340 = vpack.c.b16 %v5320, %v5319
    %v5341 = vpack.c.b16 %v5322, %v5321
    %v5342 = vpack.c.b16 %v5324, %v5323
    %v5343 = vpack.c.b16 %v5326, %v5325
    %v5344 = vpack.c.b16 %v5328, %v5327
    %5361 = vmatprep.subr.bf16.mxu0 0
    %5362 = vmatpush1.bf16.msra.mxu0 %v5329
    %5363 = vmatprep.subr.bf16.mxu0 0
    %5364 = vmatpush1.bf16.msra.mxu0 %v5330
    %5365 = vmatprep.subr.bf16.mxu0 0
    %5366 = vmatpush1.bf16.msra.mxu0 %v5331
    %5367 = vmatprep.subr.bf16.mxu0 0
    %5368 = vmatpush1.bf16.msra.mxu0 %v5332
    %5369 = vmatprep.subr.bf16.mxu0 0
    %5370 = vmatpush1.bf16.msra.mxu0 %v5333
    %5371 = vmatprep.subr.bf16.mxu0 0
    %5372 = vmatpush1.bf16.msra.mxu0 %v5334
    %5373 = vmatprep.subr.bf16.mxu0 0
    %5374 = vmatpush1.bf16.msra.mxu0 %v5335
    %5375 = vmatprep.subr.bf16.mxu0 0
    %5376 = vmatpush1.bf16.msra.mxu0 %v5336
    %5377 = vmatprep.subr.bf16.mxu0 0
    %5378 = vmatpush1.bf16.msra.mxu0 %v5337
    %5379 = vmatprep.subr.bf16.mxu0 0
    %5380 = vmatpush1.bf16.msra.mxu0 %v5338
    %5381 = vmatprep.subr.bf16.mxu0 0
    %5382 = vmatpush1.bf16.msra.mxu0 %v5339
    %5383 = vmatprep.subr.bf16.mxu0 0
    %5384 = vmatpush1.bf16.msra.mxu0 %v5340
    %5385 = vmatprep.subr.bf16.mxu0 0
    %5386 = vmatpush1.bf16.msra.mxu0 %v5341
    %5387 = vmatprep.subr.bf16.mxu0 0
    %5388 = vmatpush1.bf16.msra.mxu0 %v5342
    %5389 = vmatprep.subr.bf16.mxu0 0
    %5390 = vmatpush1.bf16.msra.mxu0 %v5343
    %5391 = vmatprep.subr.bf16.mxu0 0
    %5392 = vmatpush1.bf16.msra.mxu0 %v5344
    %5393 = vmatprep.mubr.bf16.mxu0 %v3858
    %5394 = vmatmul.mubr.bf16.gmra.mrb[0].mxu0 %v5225
    %v5395 = vpop.f32.mrb[0].mxu0
    %v5396 = vadd.f32 %v5263, %v5395
    %v5397 = vpop.f32.mrb[0].mxu0
    %v5398 = vpop.f32.mrb[0].mxu0
    %v5399 = vpop.f32.mrb[0].mxu0
    %5400 = vdwg.mxu0
    %vm5401 = vcmask 15360
    %5402 = vst.msk [vmem:[%s10] sm:$0xff] %vm5401, %v5396
    // Predicated region
    $region34: #{model_forward.1} parent=1 // pred_check
      _
    $region35: #{model_forward.1} parent=1 // pred_check_branch
      %5404 = sbr.rel (0) target = $region37
    $region36: #{model_forward.1} parent=1 // pred_region
      _
    $region37: #{model_forward.1} parent=1 // pred_fallthru
      _
    // Predicated region
    $region38: #{model_forward.1} parent=1 // pred_check
      _
    $region39: #{model_forward.1} parent=1 // pred_check_branch
      %5406 = sbr.rel (0) target = $region41
    $region40: #{model_forward.1} parent=1 // pred_region
      _
    $region41: #{model_forward.1} parent=1 // pred_fallthru
      _
    // Predicated region
    $region42: #{model_forward.1} parent=1 // pred_check
      _
    $region43: #{model_forward.1} parent=1 // pred_check_branch
      %5408 = sbr.rel (0) target = $region45
    $region44: #{model_forward.1} parent=1 // pred_region
      _
    $region45: #{model_forward.1} parent=1 // pred_fallthru
      _
    // Predicated region
    $region46: #{model_forward.1} parent=1 // pred_check
      _
    $region47: #{model_forward.1} parent=1 // pred_check_branch
      %5410 = sbr.rel (0) target = $region49
    $region48: #{model_forward.1} parent=1 // pred_region
      _
    $region49: #{model_forward.1} parent=1 // pred_fallthru
      _
    %5411 = vsyncpa [#allocation7], 1
  %5412 = vsyncmov [#allocation5]
  %s5413 = vpop.sfrf %5412
  %p5414 = scmp.eq.s32.totalorder %s5413, 0
  %p5415 = pneg %p5414
  %5417 = shalt.err (%p5415)
  %s5418 = scalar_lea.sflag [#allocation5], 1
  %5419 = vsyncmov %s5418
  %s5420 = vpop.sfrf %5419
  %p5421 = scmp.eq.s32.totalorder %s5420, 0
  %p5422 = pneg %p5421
  %5424 = shalt.err (%p5422)

</llo_original>
